<compile_context>
chip_gen: v7x
topology: tpu7x:2x2x1
jax: 0.10.0
libtpu: 0.0.40
codegen_flags: <defaults>
</compile_context>

<pallas_src>
import math
import numpy as np
import jax
import jax.numpy as jnp
from jax.experimental import pallas as pl
from jax.experimental.pallas import tpu as pltpu

# ----------------------- ZipNeRFMLP configuration (module defaults) ----------
BOTTLENECK_WIDTH = 128
NET_WIDTH_VIEWDIRS = 128
NET_DEPTH_VIEWDIRS = 2
SKIP_LAYER_DIR = 0
NUM_RGB_CHANNELS = 3
DEG_VIEW = 4
DENSITY_BIAS = -1.0
RGB_PREMULT = 1.0
RGB_BIAS = 0.0
RGB_PADDING = 0.001

GRID_BASE_RES = 16
GRID_DESIRED_RES = 8192
GRID_LEVEL_INTERVAL = 2
GRID_LEVEL_DIM = 4
LOG2_HASHMAP = 12           # small hash table for the synthetic test (a kwarg of the module)

GRID_NUM_LEVELS = int(np.log(GRID_DESIRED_RES / GRID_BASE_RES)
                      / np.log(GRID_LEVEL_INTERVAL)) + 1          # = 10
ENC_OUT_DIM = GRID_NUM_LEVELS * GRID_LEVEL_DIM                    # = 40
DIM_DIR_ENC = 3 + 2 * 3 * DEG_VIEW                                # = 27
DIR_ENC_PAD = 32                                                  # 27 -> 32 (zero lanes)
OUT_PACK = 4                                                      # [r, g, b, density]
CAT_WIDTH = NET_WIDTH_VIEWDIRS + BOTTLENECK_WIDTH + DIR_ENC_PAD   # 288 = [h0 | x | d]
TABLE_SIZE = 2 ** LOG2_HASHMAP

_PER_LEVEL_SCALE = np.exp(np.log(GRID_DESIRED_RES / GRID_BASE_RES) / (GRID_NUM_LEVELS - 1))
RESOLUTIONS = np.ceil(GRID_BASE_RES * _PER_LEVEL_SCALE ** np.arange(GRID_NUM_LEVELS)).astype(np.int32)

_HASH_PRIMES = jnp.asarray(np.array([1, 2654435761, 805459861], dtype=np.uint32))


# ----------------------------- plain-JAX glue ---------------------------------
def contract_mean_std(x, std):
    """coord.track_linearize('contract', ...) — reconstructed contraction warp."""
    eps = jnp.finfo(jnp.float32).eps
    x_mag_sq = jnp.maximum(jnp.sum(x ** 2, axis=-1, keepdims=True), eps)
    x_mag = jnp.sqrt(x_mag_sq)
    mask = x_mag_sq <= 1.0
    z = jnp.where(mask, x, ((2.0 * x_mag - 1.0) / x_mag_sq) * x)
    det = ((2.0 * x_mag - 1.0) / (x_mag_sq ** 2)) ** (1.0 / 3.0)
    std_out = jnp.where(mask[..., 0], std, std * det[..., 0])
    return z, std_out


def pos_enc(x, min_deg, max_deg):
    """coord.pos_enc with append_identity=True."""
    scales = 2.0 ** jnp.arange(min_deg, max_deg, dtype=jnp.float32)
    xb = (x[..., None, :] * scales[:, None]).reshape(x.shape[:-1] + (-1,))
    four = jnp.sin(jnp.concatenate([xb, xb + 0.5 * jnp.pi], axis=-1))
    return jnp.concatenate([x, four], axis=-1)


def hash_grid_encode(x, embeddings):
    """Multi-resolution hash-grid encoding (trilinear interp of hashed corners).

    x: [..., 3] in [-1, 1].   embeddings: [L, T, D].   -> [..., L*D]
    # TODO(synk): the data-dependent hash-table gather stays in plain JAX — it
    # has no clean rectangular BlockSpec / in-VMEM table at this hashmap size.
    """
    u = (x + 1.0) * 0.5                                   # [0, 1]
    outs = []
    for lvl in range(GRID_NUM_LEVELS):
        res = float(RESOLUTIONS[lvl])
        pos = u * res
        i0f = jnp.floor(pos)
        frac = pos - i0f
        i0 = i0f.astype(jnp.int32)
        acc = jnp.zeros(x.shape[:-1] + (GRID_LEVEL_DIM,), jnp.float32)
        for corner in range(8):
            offs = jnp.asarray([(corner >> d) & 1 for d in range(3)], dtype=jnp.int32)
            c = (i0 + offs).astype(jnp.uint32)
            w = jnp.prod(jnp.where(offs.astype(bool), frac, 1.0 - frac),
                         axis=-1, keepdims=True)
            h = (c[..., 0] * _HASH_PRIMES[0]) ^ (c[..., 1] * _HASH_PRIMES[1]) \
                ^ (c[..., 2] * _HASH_PRIMES[2])
            idx = (h % jnp.uint32(TABLE_SIZE)).astype(jnp.int32)
            acc = acc + w * embeddings[lvl][idx]
        outs.append(acc)
    return jnp.concatenate(outs, axis=-1)


def precompute_inputs(means, stds, viewdirs, params):
    """Warp + hash-grid encode + erf weighting + dir enc (plain-JAX glue).

    Returns:
      feats_w : [R, n*40] bf16  erf-weighted per-sample features (no transpose;
                reshape from [R, n, 40] is a free view)
      direnc  : [R, 32]   bf16  view-dir positional enc, zero-padded 27->32
      coord   : [R, 3]    f32   mean of contracted means
    """
    means_c, stds_c = contract_mean_std(means, stds)
    means_c = means_c / 2.0
    stds_c = stds_c / 2.0
    feats = hash_grid_encode(means_c, params["embeddings"])            # [R, n, 40]
    grid_sizes = jnp.asarray(RESOLUTIONS, jnp.float32)
    wts = jax.scipy.special.erf(
        1.0 / jnp.sqrt(8.0 * (stds_c[..., None] ** 2) * grid_sizes ** 2))  # [R, n, 10]
    R, n, _ = feats.shape
    # pre-apply the erf weights (fused by XLA with the erf); the sample axis is
    # flattened into the lane axis (free row-major view) so the kernel sees one
    # lane-dense (TR, n*40) bf16 operand and the mean is folded into W0.
    fw = (feats.reshape(R, n, GRID_NUM_LEVELS, GRID_LEVEL_DIM)
          * wts[..., None]).reshape(R, n * ENC_OUT_DIM)                # [R, 320]
    feats_w = fw.astype(jnp.bfloat16)
    coord = jnp.mean(means_c, axis=1)                                  # [R, 3]
    direnc = pos_enc(viewdirs, 0, DEG_VIEW)                            # [R, 27]
    direnc = jnp.pad(direnc, ((0, 0), (0, DIR_ENC_PAD - DIM_DIR_ENC))
                     ).astype(jnp.bfloat16)                            # [R, 32] bf16
    return feats_w, direnc, coord


def pack_weights(params, n_samples):
    """Consolidate / pad the MLP weights for the kernel.

    The sample mean is folded into a replicated, 1/n-scaled first-layer matrix.
    Concat-weight matrices are stored whole (dir-enc rows zero-padded 27->32);
    the rgb head is zero-padded to OUT_PACK output lanes.  Matrices -> bf16
    (matmul operands), biases stay f32.
    """
    f32, bf16 = jnp.float32, jnp.bfloat16
    pad_d = DIR_ENC_PAD - DIM_DIR_ENC
    n = int(n_samples)
    W0 = (jnp.tile(params["W0"], (n, 1)) / n).astype(bf16)             # (n*40, 64)
    b0 = params["b0"].reshape(1, -1).astype(f32)                       # (1, 64)
    W1 = params["W1"].astype(bf16)                                     # (64, 128)
    b1 = params["b1"].reshape(1, -1).astype(f32)                       # (1, 128)
    Wv0 = jnp.pad(params["Wv0"], ((0, pad_d), (0, 0))).astype(bf16)    # (160, 128) rows [x; d]
    bv0 = params["bv0"].reshape(1, -1).astype(f32)                     # (1, 128)
    Wv1 = jnp.pad(params["Wv1"], ((0, pad_d), (0, 0))).astype(bf16)    # (288, 128) rows [h0; x; d]
    bv1 = params["bv1"].reshape(1, -1).astype(f32)                     # (1, 128)
    Wr = jnp.pad(params["Wr"],
                 ((0, 0), (0, OUT_PACK - NUM_RGB_CHANNELS))).astype(bf16)   # (128, 4)
    br = jnp.pad(params["br"].reshape(1, -1),
                 ((0, 0), (0, OUT_PACK - NUM_RGB_CHANNELS))).astype(f32)    # (1, 4)
    return [W0, b0, W1, b1, Wv0, bv0, Wv1, bv1, Wr, br]


# ------------------------------- Pallas kernel --------------------------------
def _softplus(x):
    return jnp.maximum(x, 0.0) + jnp.log1p(jnp.exp(-jnp.abs(x)))


def zipnerf_mlp_kernel(feats_ref, direnc_ref,
                       w0_ref, b0_ref, w1_ref, b1_ref,
                       wv0_ref, bv0_ref, wv1_ref, bv1_ref,
                       wr_ref, br_ref,
                       out_ref, cat_ref):
    f32, bf16 = jnp.float32, jnp.bfloat16
    BW = BOTTLENECK_WIDTH
    NW = NET_WIDTH_VIEWDIRS

    # density MLP: the per-sample mean is folded into w0 (replicated, 1/n
    # scaled), so the first dot consumes the (TR, n*40) bf16 feature slab
    # directly with f32 accumulation (no separate reduction).
    h = jnp.dot(feats_ref[...], w0_ref[...], preferred_element_type=f32) + b0_ref[...]
    h = jnp.maximum(h, 0.0)
    x = jnp.dot(h.astype(bf16), w1_ref[...], preferred_element_type=f32) + b1_ref[...]
    density = _softplus(x[:, 0:1] + DENSITY_BIAS)                       # (TR, 1)

    # view-dir MLP with skip connection via a single bf16 concat scratch laid
    # out [h0 | bottleneck | dir_enc]; every store is 128-lane-tile aligned.
    cat_ref[:, NW:NW + BW] = x.astype(bf16)
    cat_ref[:, NW + BW:] = direnc_ref[...]
    h0 = jnp.dot(cat_ref[:, NW:], wv0_ref[...],
                 preferred_element_type=f32) + bv0_ref[...]             # K = 160
    h0 = jnp.maximum(h0, 0.0)
    cat_ref[:, 0:NW] = h0.astype(bf16)
    h1 = jnp.dot(cat_ref[...], wv1_ref[...],
                 preferred_element_type=f32) + bv1_ref[...]             # K = 288
    h1 = jnp.maximum(h1, 0.0)

    rgb = jnp.dot(h1.astype(bf16), wr_ref[...],
                  preferred_element_type=f32) + br_ref[...]             # (TR, 4)
    rgb = jax.nn.sigmoid(RGB_PREMULT * rgb + RGB_BIAS)
    rgb = rgb * (1.0 + 2.0 * RGB_PADDING) - RGB_PADDING

    # lane-packed output: [r, g, b, density]
    lane = jax.lax.broadcasted_iota(jnp.int32, rgb.shape, 1)
    out_ref[...] = jnp.where(lane < NUM_RGB_CHANNELS, rgb, density).astype(out_ref.dtype)


def _padded_tile_bytes(shape, dtype):
    """Lane-padding-aware VMEM footprint of one buffer of `shape`/`dtype`."""
    itemsize = jnp.dtype(dtype).itemsize
    if len(shape) == 1:
        return (-(-int(shape[0]) // 128) * 128) * itemsize * 8
    r, c = int(shape[-2]), int(shape[-1])
    rp = -(-r // 8) * 8
    cp = -(-c // 128) * 128
    lead = int(np.prod(shape[:-2])) if len(shape) > 2 else 1
    return lead * rp * cp * itemsize


def zipnerf_mlp_pallas(feats_w, direnc, weight_args, ray_tile=512):
    """Run the fused post-encoder MLP.  Returns packed (R_pad, 4) bf16 output."""
    R, NF = feats_w.shape
    TR = int(ray_tile)
    assert TR % 8 == 0

    # pad the ray axis to a multiple of the tile (padded rows are discarded)
    R_pad = ((R + TR - 1) // TR) * TR
    if R_pad != R:
        feats_w = jnp.pad(feats_w, ((0, R_pad - R), (0, 0)))
        direnc = jnp.pad(direnc, ((0, R_pad - R), (0, 0)))

    data_specs = [
        pl.BlockSpec((TR, NF), lambda i: (i, 0)),
        pl.BlockSpec((TR, DIR_ENC_PAD), lambda i: (i, 0)),
    ]
    weight_specs = [pl.BlockSpec(w.shape, lambda i: (0, 0)) for w in weight_args]
    out_spec = pl.BlockSpec((TR, OUT_PACK), lambda i: (i, 0))
    out_shape = jax.ShapeDtypeStruct((R_pad, OUT_PACK), jnp.bfloat16)

    # lane-padding-aware VMEM budget: double-buffered activation tiles,
    # (conservatively) double-buffered weights, the concat scratch, plus
    # headroom for f32 intermediates.
    tile_bytes = 2 * (_padded_tile_bytes((TR, NF), jnp.bfloat16)
                      + _padded_tile_bytes((TR, DIR_ENC_PAD), jnp.bfloat16)
                      + _padded_tile_bytes((TR, OUT_PACK), jnp.bfloat16))
    weight_bytes = 2 * sum(_padded_tile_bytes(w.shape, w.dtype) for w in weight_args)
    scratch_bytes = _padded_tile_bytes((TR, CAT_WIDTH), jnp.bfloat16)
    interm_bytes = 6 * TR * 128 * 4
    vmem_est = tile_bytes + weight_bytes + scratch_bytes + interm_bytes + (1 << 20)

    cp_kwargs = {"dimension_semantics": ("parallel",)}
    if vmem_est > 12 * 1024 * 1024:
        # keep well below v7x's 64 MiB physical per-TensorCore VMEM
        cp_kwargs["vmem_limit_bytes"] = int(min(int(1.5 * vmem_est), 48 * 1024 * 1024))

    packed = pl.pallas_call(
        zipnerf_mlp_kernel,
        out_shape=out_shape,
        grid=(R_pad // TR,),
        in_specs=data_specs + weight_specs,
        out_specs=out_spec,
        scratch_shapes=[pltpu.VMEM((TR, CAT_WIDTH), jnp.bfloat16)],
        compiler_params=pltpu.CompilerParams(**cp_kwargs),
    )(feats_w, direnc, *weight_args)
    return packed


def zipnerf_mlp_forward(means, stds, viewdirs, params, ray_tile=512):
    """Full ZipNeRFMLP.forward(rand=False, means, stds, viewdirs)."""
    feats_w, direnc, coord = precompute_inputs(means, stds, viewdirs, params)
    n = means.shape[1]
    packed = zipnerf_mlp_pallas(feats_w, direnc, pack_weights(params, n),
                                ray_tile=ray_tile)
    R = means.shape[0]
    rgb = packed[:R, :NUM_RGB_CHANNELS].astype(jnp.float32)
    density = packed[:R, NUM_RGB_CHANNELS].astype(jnp.float32)
    return dict(coord=coord, density=density, rgb=rgb,
                raw_grad_density=None, grad_pred=None)


# --------------------------- pure-JAX reference --------------------------------
def reference_forward(means, stds, viewdirs, params):
    means_c, stds_c = contract_mean_std(means, stds)
    means_c = means_c / 2.0
    stds_c = stds_c / 2.0
    feats = hash_grid_encode(means_c, params["embeddings"])
    grid_sizes = jnp.asarray(RESOLUTIONS, jnp.float32)
    wts = jax.scipy.special.erf(
        1.0 / jnp.sqrt(8.0 * (stds_c[..., None] ** 2) * grid_sizes ** 2))
    wts_rep = jnp.repeat(wts, GRID_LEVEL_DIM, axis=-1)
    features = jnp.mean(feats * wts_rep, axis=1)
    h = jax.nn.relu(features @ params["W0"] + params["b0"])
    x = h @ params["W1"] + params["b1"]
    density = jax.nn.softplus(x[:, 0] + DENSITY_BIAS)
    direnc = pos_enc(viewdirs, 0, DEG_VIEW)
    inputs = jnp.concatenate([x, direnc], axis=-1)
    h0 = jax.nn.relu(inputs @ params["Wv0"] + params["bv0"])
    x1 = jnp.concatenate([h0, inputs], axis=-1)
    h1 = jax.nn.relu(x1 @ params["Wv1"] + params["bv1"])
    rgb = jax.nn.sigmoid(RGB_PREMULT * (h1 @ params["Wr"] + params["br"]) + RGB_BIAS)
    rgb = rgb * (1.0 + 2.0 * RGB_PADDING) - RGB_PADDING
    coord = jnp.mean(means_c, axis=1)
    return rgb, density, coord


# --------------------------- deterministic init --------------------------------
def init_params(key):
    ks = jax.random.split(key, 8)
    emb = 0.1 * (2.0 * jax.random.uniform(
        ks[0], (GRID_NUM_LEVELS, TABLE_SIZE, GRID_LEVEL_DIM), jnp.float32) - 1.0)

    def lin(k, fan_in, fan_out, kaiming=False):
        kw, kb = jax.random.split(k)
        bw = math.sqrt(6.0 / fan_in) if kaiming else 1.0 / math.sqrt(fan_in)
        bb = 1.0 / math.sqrt(fan_in)
        W = jax.random.uniform(kw, (fan_in, fan_out), jnp.float32, -bw, bw)
        b = jax.random.uniform(kb, (fan_out,), jnp.float32, -bb, bb)
        return W, b

    in_rgb = BOTTLENECK_WIDTH + DIM_DIR_ENC                       # 155
    W0, b0 = lin(ks[1], ENC_OUT_DIM, 64)                          # density_layer[0]
    W1, b1 = lin(ks[2], 64, BOTTLENECK_WIDTH)                     # density_layer[2]
    Wv0, bv0 = lin(ks[3], in_rgb, NET_WIDTH_VIEWDIRS, kaiming=True)          # lin_second_stage_0
    Wv1, bv1 = lin(ks[4], NET_WIDTH_VIEWDIRS + in_rgb, NET_WIDTH_VIEWDIRS,
                   kaiming=True)                                              # lin_second_stage_1
    Wr, br = lin(ks[5], NET_WIDTH_VIEWDIRS, NUM_RGB_CHANNELS)                 # rgb_layer
    return dict(embeddings=emb, W0=W0, b0=b0, W1=W1, b1=b1,
                Wv0=Wv0, bv0=bv0, Wv1=Wv1, bv1=bv1, Wr=Wr, br=br)


# ------------------------------------ main --------------------------------------
if __name__ == "__main__":
    key = jax.random.PRNGKey(0)
    k_means, k_stds, k_dirs, k_params = jax.random.split(key, 4)

    R, N_SAMPLES = 64, 8
    means = 0.8 * jax.random.normal(k_means, (R, N_SAMPLES, 3), jnp.float32)
    stds = 0.05 + 0.2 * jax.random.uniform(k_stds, (R, N_SAMPLES), jnp.float32)
    viewdirs = jax.random.normal(k_dirs, (R, 3), jnp.float32)
    viewdirs = viewdirs / jnp.linalg.norm(viewdirs, axis=-1, keepdims=True)

    params = init_params(k_params)

    out = zipnerf_mlp_forward(means, stds, viewdirs, params)
    jax.block_until_ready(out)

    # correctness check against a pure-JAX f32 reference of the full forward
    rgb_ref, dens_ref, coord_ref = reference_forward(means, stds, viewdirs, params)
    np.testing.assert_allclose(np.asarray(out["rgb"]), np.asarray(rgb_ref),
                               rtol=1e-2, atol=1e-2)
    np.testing.assert_allclose(np.asarray(out["density"]), np.asarray(dens_ref),
                               rtol=1e-2, atol=1e-2)
    np.testing.assert_allclose(np.asarray(out["coord"]), np.asarray(coord_ref),
                               rtol=1e-4, atol=1e-5)

    print("KERNEL_OK")
</pallas_src>

<mosaic_0001>
module attributes {stable_mosaic.version = 11 : i64} {
  func.func @zipnerf_mlp_kernel(%arg0: i32, %arg1: memref<512x320xbf16, #tpu.memory_space<vmem>>, %arg2: memref<512x32xbf16, #tpu.memory_space<vmem>>, %arg3: memref<320x64xbf16, #tpu.memory_space<vmem>>, %arg4: memref<1x64xf32, #tpu.memory_space<vmem>>, %arg5: memref<64x128xbf16, #tpu.memory_space<vmem>>, %arg6: memref<1x128xf32, #tpu.memory_space<vmem>>, %arg7: memref<160x128xbf16, #tpu.memory_space<vmem>>, %arg8: memref<1x128xf32, #tpu.memory_space<vmem>>, %arg9: memref<288x128xbf16, #tpu.memory_space<vmem>>, %arg10: memref<1x128xf32, #tpu.memory_space<vmem>>, %arg11: memref<128x4xbf16, #tpu.memory_space<vmem>>, %arg12: memref<1x4xf32, #tpu.memory_space<vmem>>, %arg13: memref<512x4xbf16, #tpu.memory_space<vmem>>, %arg14: memref<512x288xbf16, #tpu.memory_space<vmem>>) attributes {dimension_semantics = [#tpu.dimension_semantics<parallel>], iteration_bounds = array<i64: 1>, scalar_prefetch = 0 : i64, scratch_operands = 1 : i64, tpu.core_type = #tpu.core_type<tc>, window_params = [{transform_indices = @transform_0, window_bounds = array<i64: 512, 320>}, {transform_indices = @transform_1, window_bounds = array<i64: 512, 32>}, {pipeline_mode = #tpu.pipeline_mode<synchronous>, transform_indices = @transform_2, window_bounds = array<i64: 320, 64>}, {pipeline_mode = #tpu.pipeline_mode<synchronous>, transform_indices = @transform_3, window_bounds = array<i64: 1, 64>}, {pipeline_mode = #tpu.pipeline_mode<synchronous>, transform_indices = @transform_4, window_bounds = array<i64: 64, 128>}, {pipeline_mode = #tpu.pipeline_mode<synchronous>, transform_indices = @transform_5, window_bounds = array<i64: 1, 128>}, {pipeline_mode = #tpu.pipeline_mode<synchronous>, transform_indices = @transform_6, window_bounds = array<i64: 160, 128>}, {pipeline_mode = #tpu.pipeline_mode<synchronous>, transform_indices = @transform_7, window_bounds = array<i64: 1, 128>}, {pipeline_mode = #tpu.pipeline_mode<synchronous>, transform_indices = @transform_8, window_bounds = array<i64: 288, 128>}, {pipeline_mode = #tpu.pipeline_mode<synchronous>, transform_indices = @transform_9, window_bounds = array<i64: 1, 128>}, {pipeline_mode = #tpu.pipeline_mode<synchronous>, transform_indices = @transform_10, window_bounds = array<i64: 128, 4>}, {pipeline_mode = #tpu.pipeline_mode<synchronous>, transform_indices = @transform_11, window_bounds = array<i64: 1, 4>}, {transform_indices = @transform_12, window_bounds = array<i64: 512, 4>}]} {
    %c0 = arith.constant 0 : index
    %c0_0 = arith.constant 0 : index
    %0 = vector.load %arg1[%c0, %c0_0] : memref<512x320xbf16, #tpu.memory_space<vmem>>, vector<512x320xbf16>
    %c0_1 = arith.constant 0 : index
    %c0_2 = arith.constant 0 : index
    %1 = vector.load %arg3[%c0_1, %c0_2] : memref<320x64xbf16, #tpu.memory_space<vmem>>, vector<320x64xbf16>
    %cst = arith.constant dense<0.000000e+00> : vector<512x64xf32>
    %2 = tpu.matmul %0, %1, %cst {dimension_numbers = #tpu.dot_dimension_numbers<[1], [0], [0], [1], [0, 0, 1, 1], [], []>} : vector<512x320xbf16>, vector<320x64xbf16>, vector<512x64xf32> -> vector<512x64xf32>
    %c0_3 = arith.constant 0 : index
    %c0_4 = arith.constant 0 : index
    %3 = vector.load %arg4[%c0_3, %c0_4] : memref<1x64xf32, #tpu.memory_space<vmem>>, vector<1x64xf32>
    %4 = vector.broadcast %3 : vector<1x64xf32> to vector<512x64xf32>
    %5 = arith.addf %2, %4 : vector<512x64xf32>
    %cst_5 = arith.constant 0.000000e+00 : f32
    %6 = vector.broadcast %cst_5 : f32 to vector<512x64xf32>
    %7 = arith.maximumf %5, %6 : vector<512x64xf32>
    %8 = arith.truncf %7 : vector<512x64xf32> to vector<512x64xbf16>
    %c0_6 = arith.constant 0 : index
    %c0_7 = arith.constant 0 : index
    %9 = vector.load %arg5[%c0_6, %c0_7] : memref<64x128xbf16, #tpu.memory_space<vmem>>, vector<64x128xbf16>
    %cst_8 = arith.constant dense<0.000000e+00> : vector<512x128xf32>
    %10 = tpu.matmul %8, %9, %cst_8 {dimension_numbers = #tpu.dot_dimension_numbers<[1], [0], [0], [1], [0, 0, 1, 1], [], []>} : vector<512x64xbf16>, vector<64x128xbf16>, vector<512x128xf32> -> vector<512x128xf32>
    %c0_9 = arith.constant 0 : index
    %c0_10 = arith.constant 0 : index
    %11 = vector.load %arg6[%c0_9, %c0_10] : memref<1x128xf32, #tpu.memory_space<vmem>>, vector<1x128xf32>
    %12 = vector.broadcast %11 : vector<1x128xf32> to vector<512x128xf32>
    %13 = arith.addf %10, %12 : vector<512x128xf32>
    %14 = vector.extract_strided_slice %13 {offsets = [0, 0], sizes = [512, 1], strides = [1, 1]} : vector<512x128xf32> to vector<512x1xf32>
    %cst_11 = arith.constant -1.000000e+00 : f32
    %15 = vector.broadcast %cst_11 : f32 to vector<512x1xf32>
    %16 = arith.addf %14, %15 : vector<512x1xf32>
    %cst_12 = arith.constant 0.000000e+00 : f32
    %17 = vector.broadcast %cst_12 : f32 to vector<512x1xf32>
    %18 = arith.maximumf %16, %17 : vector<512x1xf32>
    %19 = math.absf %16 : vector<512x1xf32>
    %cst_13 = arith.constant 0.000000e+00 : f32
    %20 = vector.broadcast %cst_13 : f32 to vector<512x1xf32>
    %21 = arith.subf %20, %19 : vector<512x1xf32>
    %22 = math.exp %21 : vector<512x1xf32>
    %23 = math.log1p %22 : vector<512x1xf32>
    %24 = arith.addf %18, %23 : vector<512x1xf32>
    %25 = arith.truncf %13 : vector<512x128xf32> to vector<512x128xbf16>
    %c0_14 = arith.constant 0 : index
    %c128 = arith.constant 128 : index
    %26 = vector.load %arg14[%c0_14, %c128] : memref<512x288xbf16, #tpu.memory_space<vmem>>, vector<512x128xbf16>
    tpu.vector_store %arg14[%c0_14, %c128], %25 {strides = array<i32>} : memref<512x288xbf16, #tpu.memory_space<vmem>>, vector<512x128xbf16>,
    %c0_15 = arith.constant 0 : index
    %c0_16 = arith.constant 0 : index
    %27 = vector.load %arg2[%c0_15, %c0_16] : memref<512x32xbf16, #tpu.memory_space<vmem>>, vector<512x32xbf16>
    %c0_17 = arith.constant 0 : index
    %c256 = arith.constant 256 : index
    %28 = vector.load %arg14[%c0_17, %c256] : memref<512x288xbf16, #tpu.memory_space<vmem>>, vector<512x32xbf16>
    tpu.vector_store %arg14[%c0_17, %c256], %27 {strides = array<i32>} : memref<512x288xbf16, #tpu.memory_space<vmem>>, vector<512x32xbf16>,
    %c0_18 = arith.constant 0 : index
    %c128_19 = arith.constant 128 : index
    %29 = vector.load %arg14[%c0_18, %c128_19] : memref<512x288xbf16, #tpu.memory_space<vmem>>, vector<512x160xbf16>
    %c0_20 = arith.constant 0 : index
    %c0_21 = arith.constant 0 : index
    %30 = vector.load %arg7[%c0_20, %c0_21] : memref<160x128xbf16, #tpu.memory_space<vmem>>, vector<160x128xbf16>
    %cst_22 = arith.constant dense<0.000000e+00> : vector<512x128xf32>
    %31 = tpu.matmul %29, %30, %cst_22 {dimension_numbers = #tpu.dot_dimension_numbers<[1], [0], [0], [1], [0, 0, 1, 1], [], []>} : vector<512x160xbf16>, vector<160x128xbf16>, vector<512x128xf32> -> vector<512x128xf32>
    %c0_23 = arith.constant 0 : index
    %c0_24 = arith.constant 0 : index
    %32 = vector.load %arg8[%c0_23, %c0_24] : memref<1x128xf32, #tpu.memory_space<vmem>>, vector<1x128xf32>
    %33 = vector.broadcast %32 : vector<1x128xf32> to vector<512x128xf32>
    %34 = arith.addf %31, %33 : vector<512x128xf32>
    %cst_25 = arith.constant 0.000000e+00 : f32
    %35 = vector.broadcast %cst_25 : f32 to vector<512x128xf32>
    %36 = arith.maximumf %34, %35 : vector<512x128xf32>
    %37 = arith.truncf %36 : vector<512x128xf32> to vector<512x128xbf16>
    %c0_26 = arith.constant 0 : index
    %c0_27 = arith.constant 0 : index
    %38 = vector.load %arg14[%c0_26, %c0_27] : memref<512x288xbf16, #tpu.memory_space<vmem>>, vector<512x128xbf16>
    tpu.vector_store %arg14[%c0_26, %c0_27], %37 {strides = array<i32>} : memref<512x288xbf16, #tpu.memory_space<vmem>>, vector<512x128xbf16>,
    %c0_28 = arith.constant 0 : index
    %c0_29 = arith.constant 0 : index
    %39 = vector.load %arg14[%c0_28, %c0_29] : memref<512x288xbf16, #tpu.memory_space<vmem>>, vector<512x288xbf16>
    %c0_30 = arith.constant 0 : index
    %c0_31 = arith.constant 0 : index
    %40 = vector.load %arg9[%c0_30, %c0_31] : memref<288x128xbf16, #tpu.memory_space<vmem>>, vector<288x128xbf16>
    %cst_32 = arith.constant dense<0.000000e+00> : vector<512x128xf32>
    %41 = tpu.matmul %39, %40, %cst_32 {dimension_numbers = #tpu.dot_dimension_numbers<[1], [0], [0], [1], [0, 0, 1, 1], [], []>} : vector<512x288xbf16>, vector<288x128xbf16>, vector<512x128xf32> -> vector<512x128xf32>
    %c0_33 = arith.constant 0 : index
    %c0_34 = arith.constant 0 : index
    %42 = vector.load %arg10[%c0_33, %c0_34] : memref<1x128xf32, #tpu.memory_space<vmem>>, vector<1x128xf32>
    %43 = vector.broadcast %42 : vector<1x128xf32> to vector<512x128xf32>
    %44 = arith.addf %41, %43 : vector<512x128xf32>
    %cst_35 = arith.constant 0.000000e+00 : f32
    %45 = vector.broadcast %cst_35 : f32 to vector<512x128xf32>
    %46 = arith.maximumf %44, %45 : vector<512x128xf32>
    %47 = arith.truncf %46 : vector<512x128xf32> to vector<512x128xbf16>
    %c0_36 = arith.constant 0 : index
    %c0_37 = arith.constant 0 : index
    %48 = vector.load %arg11[%c0_36, %c0_37] : memref<128x4xbf16, #tpu.memory_space<vmem>>, vector<128x4xbf16>
    %cst_38 = arith.constant dense<0.000000e+00> : vector<512x4xf32>
    %49 = tpu.matmul %47, %48, %cst_38 {dimension_numbers = #tpu.dot_dimension_numbers<[1], [0], [0], [1], [0, 0, 1, 1], [], []>} : vector<512x128xbf16>, vector<128x4xbf16>, vector<512x4xf32> -> vector<512x4xf32>
    %c0_39 = arith.constant 0 : index
    %c0_40 = arith.constant 0 : index
    %50 = vector.load %arg12[%c0_39, %c0_40] : memref<1x4xf32, #tpu.memory_space<vmem>>, vector<1x4xf32>
    %51 = vector.broadcast %50 : vector<1x4xf32> to vector<512x4xf32>
    %52 = arith.addf %49, %51 : vector<512x4xf32>
    %cst_41 = arith.constant 1.000000e+00 : f32
    %53 = vector.broadcast %cst_41 : f32 to vector<512x4xf32>
    %54 = arith.mulf %53, %52 : vector<512x4xf32>
    %cst_42 = arith.constant 0.000000e+00 : f32
    %55 = vector.broadcast %cst_42 : f32 to vector<512x4xf32>
    %56 = arith.addf %54, %55 : vector<512x4xf32>
    %57 = arith.negf %56 : vector<512x4xf32>
    %58 = math.exp %57 : vector<512x4xf32>
    %cst_43 = arith.constant 1.000000e+00 : f32
    %59 = vector.broadcast %cst_43 : f32 to vector<512x4xf32>
    %60 = arith.addf %59, %58 : vector<512x4xf32>
    %61 = arith.divf %59, %60 : vector<512x4xf32>
    %cst_44 = arith.constant 1.002000e+00 : f32
    %62 = vector.broadcast %cst_44 : f32 to vector<512x4xf32>
    %63 = arith.mulf %61, %62 : vector<512x4xf32>
    %cst_45 = arith.constant 1.000000e-03 : f32
    %64 = vector.broadcast %cst_45 : f32 to vector<512x4xf32>
    %65 = arith.subf %63, %64 : vector<512x4xf32>
    %66 = tpu.iota {dimensions = array<i32: 1>} : vector<512x4xi32>
    %c3_i32 = arith.constant 3 : i32
    %67 = vector.broadcast %c3_i32 : i32 to vector<512x4xi32>
    %68 = arith.cmpi slt, %66, %67 : vector<512x4xi32>
    %69 = vector.shape_cast %24 : vector<512x1xf32> to vector<512x1xf32>
    %70 = vector.broadcast %69 : vector<512x1xf32> to vector<512x4xf32>
    %71 = arith.select %68, %65, %70 : vector<512x4xi1>, vector<512x4xf32>
    %72 = arith.truncf %71 : vector<512x4xf32> to vector<512x4xbf16>
    %c0_46 = arith.constant 0 : index
    %c0_47 = arith.constant 0 : index
    %73 = vector.load %arg13[%c0_46, %c0_47] : memref<512x4xbf16, #tpu.memory_space<vmem>>, vector<512x4xbf16>
    tpu.vector_store %arg13[%c0_46, %c0_47], %72 {strides = array<i32>} : memref<512x4xbf16, #tpu.memory_space<vmem>>, vector<512x4xbf16>,
    return
  }
  func.func @transform_0(%arg0: i32) -> (i32, i32) {
    %c0_i32 = arith.constant 0 : i32
    %c0_i32_0 = arith.constant 0 : i32
    return %arg0, %c0_i32 : i32, i32
  }
  func.func @transform_1(%arg0: i32) -> (i32, i32) {
    %c0_i32 = arith.constant 0 : i32
    %c0_i32_0 = arith.constant 0 : i32
    return %arg0, %c0_i32 : i32, i32
  }
  func.func @transform_2(%arg0: i32) -> (i32, i32) {
    %c0_i32 = arith.constant 0 : i32
    %c0_i32_0 = arith.constant 0 : i32
    %c0_i32_1 = arith.constant 0 : i32
    return %c0_i32, %c0_i32_0 : i32, i32
  }
  func.func @transform_3(%arg0: i32) -> (i32, i32) {
    %c0_i32 = arith.constant 0 : i32
    %c0_i32_0 = arith.constant 0 : i32
    %c0_i32_1 = arith.constant 0 : i32
    return %c0_i32, %c0_i32_0 : i32, i32
  }
  func.func @transform_4(%arg0: i32) -> (i32, i32) {
    %c0_i32 = arith.constant 0 : i32
    %c0_i32_0 = arith.constant 0 : i32
    %c0_i32_1 = arith.constant 0 : i32
    return %c0_i32, %c0_i32_0 : i32, i32
  }
  func.func @transform_5(%arg0: i32) -> (i32, i32) {
    %c0_i32 = arith.constant 0 : i32
    %c0_i32_0 = arith.constant 0 : i32
    %c0_i32_1 = arith.constant 0 : i32
    return %c0_i32, %c0_i32_0 : i32, i32
  }
  func.func @transform_6(%arg0: i32) -> (i32, i32) {
    %c0_i32 = arith.constant 0 : i32
    %c0_i32_0 = arith.constant 0 : i32
    %c0_i32_1 = arith.constant 0 : i32
    return %c0_i32, %c0_i32_0 : i32, i32
  }
  func.func @transform_7(%arg0: i32) -> (i32, i32) {
    %c0_i32 = arith.constant 0 : i32
    %c0_i32_0 = arith.constant 0 : i32
    %c0_i32_1 = arith.constant 0 : i32
    return %c0_i32, %c0_i32_0 : i32, i32
  }
  func.func @transform_8(%arg0: i32) -> (i32, i32) {
    %c0_i32 = arith.constant 0 : i32
    %c0_i32_0 = arith.constant 0 : i32
    %c0_i32_1 = arith.constant 0 : i32
    return %c0_i32, %c0_i32_0 : i32, i32
  }
  func.func @transform_9(%arg0: i32) -> (i32, i32) {
    %c0_i32 = arith.constant 0 : i32
    %c0_i32_0 = arith.constant 0 : i32
    %c0_i32_1 = arith.constant 0 : i32
    return %c0_i32, %c0_i32_0 : i32, i32
  }
  func.func @transform_10(%arg0: i32) -> (i32, i32) {
    %c0_i32 = arith.constant 0 : i32
    %c0_i32_0 = arith.constant 0 : i32
    %c0_i32_1 = arith.constant 0 : i32
    return %c0_i32, %c0_i32_0 : i32, i32
  }
  func.func @transform_11(%arg0: i32) -> (i32, i32) {
    %c0_i32 = arith.constant 0 : i32
    %c0_i32_0 = arith.constant 0 : i32
    %c0_i32_1 = arith.constant 0 : i32
    return %c0_i32, %c0_i32_0 : i32, i32
  }
  func.func @transform_12(%arg0: i32) -> (i32, i32) {
    %c0_i32 = arith.constant 0 : i32
    %c0_i32_0 = arith.constant 0 : i32
    return %arg0, %c0_i32 : i32, i32
  }
}

</mosaic_0001>

<llo_original>
// kernel: tpu_custom_call.1
$region0: #{tpu_custom_call.1}
  #allocation0 [shape = 'u32[]', space=smem, size = 0x4, offset = 0x4, fixed_abs, tag = 'smem constant byte address 0x4 - core index']
  #allocation1 [shape = 'u32[144,128]{1,0:T(1,128)}', space=vmem, size = 0x12000, scoped, tag = 'internal scratch']
  #allocation2 [shape = 'bf16[512,288]{1,0:T(16,128)(2,1)}', space=vmem, size = 0x60000, scoped, tag = 'scratch operand']
  %s0 = inlined_call_operand.vmem [shape: bf16[512,320], index: 0, kind: input, shape index: {}]
  %s1 = inlined_call_operand.vmem [shape: bf16[512,32], index: 1, kind: input, shape index: {}]
  %s2 = inlined_call_operand.vmem [shape: bf16[320,64], index: 2, kind: input, shape index: {}]
  %s3 = inlined_call_operand.vmem [shape: f32[1,64], index: 3, kind: input, shape index: {}]
  %s4 = inlined_call_operand.vmem [shape: bf16[64,128], index: 4, kind: input, shape index: {}]
  %s5 = inlined_call_operand.vmem [shape: f32[1,128], index: 5, kind: input, shape index: {}]
  %s6 = inlined_call_operand.vmem [shape: bf16[160,128], index: 6, kind: input, shape index: {}]
  %s7 = inlined_call_operand.vmem [shape: f32[1,128], index: 7, kind: input, shape index: {}]
  %s8 = inlined_call_operand.vmem [shape: bf16[288,128], index: 8, kind: input, shape index: {}]
  %s9 = inlined_call_operand.vmem [shape: f32[1,128], index: 9, kind: input, shape index: {}]
  %s10 = inlined_call_operand.vmem [shape: bf16[128,4], index: 10, kind: input, shape index: {}]
  %s11 = inlined_call_operand.vmem [shape: f32[1,4], index: 11, kind: input, shape index: {}]
  %s12 = inlined_call_operand.vmem [shape: bf16[512,4], index: 12, kind: output, shape index: {}]
  %s13 = sld [smem:[#allocation0]]
  $region58: #{tpu_custom_call.1} parent=0
    _
  %s15 = ssub.s32 1, %s13
  %s16 = scalar_select 0, %s15, %s13
  // Predicated region
  $region2: #{tpu_custom_call.1} parent=0 // pred_check
    _
  $region3: #{tpu_custom_call.1} parent=0 // pred_check_branch
    %18 = sbr.rel (0) target = $region5
  $region4: #{tpu_custom_call.1} parent=0 // pred_region
    _
  $region5: #{tpu_custom_call.1} parent=0 // pred_fallthru
    _
  // Predicated region
  $region6: #{tpu_custom_call.1} parent=0 // pred_check
    _
  $region7: #{tpu_custom_call.1} parent=0 // pred_check_branch
    %20 = sbr.rel (0) target = $region9
  $region8: #{tpu_custom_call.1} parent=0 // pred_region
    _
  $region9: #{tpu_custom_call.1} parent=0 // pred_fallthru
    _
  // Predicated region
  $region10: #{tpu_custom_call.1} parent=0 // pred_check
    _
  $region11: #{tpu_custom_call.1} parent=0 // pred_check_branch
    %22 = sbr.rel (0) target = $region13
  $region12: #{tpu_custom_call.1} parent=0 // pred_region
    _
  $region13: #{tpu_custom_call.1} parent=0 // pred_fallthru
    _
  // Predicated region
  $region14: #{tpu_custom_call.1} parent=0 // pred_check
    _
  $region15: #{tpu_custom_call.1} parent=0 // pred_check_branch
    %24 = sbr.rel (0) target = $region17
  $region16: #{tpu_custom_call.1} parent=0 // pred_region
    _
  $region17: #{tpu_custom_call.1} parent=0 // pred_fallthru
    _
  // Predicated region
  $region18: #{tpu_custom_call.1} parent=0 // pred_check
    _
  $region19: #{tpu_custom_call.1} parent=0 // pred_check_branch
    %26 = sbr.rel (0) target = $region21
  $region20: #{tpu_custom_call.1} parent=0 // pred_region
    _
  $region21: #{tpu_custom_call.1} parent=0 // pred_fallthru
    _
  // Predicated region
  $region22: #{tpu_custom_call.1} parent=0 // pred_check
    _
  $region23: #{tpu_custom_call.1} parent=0 // pred_check_branch
    %28 = sbr.rel (0) target = $region25
  $region24: #{tpu_custom_call.1} parent=0 // pred_region
    _
  $region25: #{tpu_custom_call.1} parent=0 // pred_fallthru
    _
  // Predicated region
  $region26: #{tpu_custom_call.1} parent=0 // pred_check
    _
  $region27: #{tpu_custom_call.1} parent=0 // pred_check_branch
    %30 = sbr.rel (0) target = $region29
  $region28: #{tpu_custom_call.1} parent=0 // pred_region
    _
  $region29: #{tpu_custom_call.1} parent=0 // pred_fallthru
    _
  // Predicated region
  $region30: #{tpu_custom_call.1} parent=0 // pred_check
    _
  $region31: #{tpu_custom_call.1} parent=0 // pred_check_branch
    %32 = sbr.rel (0) target = $region33
  $region32: #{tpu_custom_call.1} parent=0 // pred_region
    _
  $region33: #{tpu_custom_call.1} parent=0 // pred_fallthru
    _
  // Predicated region
  $region34: #{tpu_custom_call.1} parent=0 // pred_check
    _
  $region35: #{tpu_custom_call.1} parent=0 // pred_check_branch
    %34 = sbr.rel (0) target = $region37
  $region36: #{tpu_custom_call.1} parent=0 // pred_region
    _
  $region37: #{tpu_custom_call.1} parent=0 // pred_fallthru
    _
  // Predicated region
  $region38: #{tpu_custom_call.1} parent=0 // pred_check
    _
  $region39: #{tpu_custom_call.1} parent=0 // pred_check_branch
    %36 = sbr.rel (0) target = $region41
  $region40: #{tpu_custom_call.1} parent=0 // pred_region
    _
  $region41: #{tpu_custom_call.1} parent=0 // pred_fallthru
    _
  // Predicated region
  $region42: #{tpu_custom_call.1} parent=0 // pred_check
    _
  $region43: #{tpu_custom_call.1} parent=0 // pred_check_branch
    %38 = sbr.rel (0) target = $region45
  $region44: #{tpu_custom_call.1} parent=0 // pred_region
    _
  $region45: #{tpu_custom_call.1} parent=0 // pred_fallthru
    _
  // Predicated region
  $region46: #{tpu_custom_call.1} parent=0 // pred_check
    _
  $region47: #{tpu_custom_call.1} parent=0 // pred_check_branch
    %40 = sbr.rel (0) target = $region49
  $region48: #{tpu_custom_call.1} parent=0 // pred_region
    _
  $region49: #{tpu_custom_call.1} parent=0 // pred_fallthru
    _
  %v42 = vld [vmem:[%s0] sm:$0xff]
  %v43 = vld [vmem:[%s0 + $0x8] sm:$0xf]
  %v44 = vld [vmem:[%s0 + $0xc] sm:$0xff]
  %v45 = vld [vmem:[%s0 + $0x14] sm:$0xf]
  %v46 = vld [vmem:[%s0 + $0x18] sm:$0xff]
  %v47 = vld [vmem:[%s0 + $0x20] sm:$0xf]
  %v48 = vld [vmem:[%s0 + $0x24] sm:$0xff]
  %v49 = vld [vmem:[%s0 + $0x2c] sm:$0xf]
  %v50 = vld [vmem:[%s0 + $0x30] sm:$0xff]
  %v51 = vld [vmem:[%s0 + $0x38] sm:$0xf]
  %v52 = vld [vmem:[%s0 + $0x3c] sm:$0xff]
  %v53 = vld [vmem:[%s0 + $0x44] sm:$0xf]
  %v54 = vld [vmem:[%s0 + $0x48] sm:$0xff]
  %v55 = vld [vmem:[%s0 + $0x50] sm:$0xf]
  %v56 = vld [vmem:[%s0 + $0x54] sm:$0xff]
  %v57 = vld [vmem:[%s0 + $0x5c] sm:$0xf]
  %v58 = vld [vmem:[%s0 + $0x60] sm:$0xff]
  %v59 = vld [vmem:[%s0 + $0x68] sm:$0xf]
  %v60 = vld [vmem:[%s0 + $0x6c] sm:$0xff]
  %v61 = vld [vmem:[%s0 + $0x74] sm:$0xf]
  %v62 = vld [vmem:[%s0 + $0x78] sm:$0xff]
  %v63 = vld [vmem:[%s0 + $0x80] sm:$0xf]
  %v64 = vld [vmem:[%s0 + $0x84] sm:$0xff]
  %v65 = vld [vmem:[%s0 + $0x8c] sm:$0xf]
  %v66 = vld [vmem:[%s0 + $0x90] sm:$0xff]
  %v67 = vld [vmem:[%s0 + $0x98] sm:$0xf]
  %v68 = vld [vmem:[%s0 + $0x9c] sm:$0xff]
  %v69 = vld [vmem:[%s0 + $0xa4] sm:$0xf]
  %v70 = vld [vmem:[%s0 + $0xa8] sm:$0xff]
  %v71 = vld [vmem:[%s0 + $0xb0] sm:$0xf]
  %v72 = vld [vmem:[%s0 + $0xb4] sm:$0xff]
  %v73 = vld [vmem:[%s0 + $0xbc] sm:$0xf]
  %v74 = vld [vmem:[%s0 + $0xc0] sm:$0xff]
  %v75 = vld [vmem:[%s0 + $0xc8] sm:$0xf]
  %v76 = vld [vmem:[%s0 + $0xcc] sm:$0xff]
  %v77 = vld [vmem:[%s0 + $0xd4] sm:$0xf]
  %v78 = vld [vmem:[%s0 + $0xd8] sm:$0xff]
  %v79 = vld [vmem:[%s0 + $0xe0] sm:$0xf]
  %v80 = vld [vmem:[%s0 + $0xe4] sm:$0xff]
  %v81 = vld [vmem:[%s0 + $0xec] sm:$0xf]
  %v82 = vld [vmem:[%s0 + $0xf0] sm:$0xff]
  %v83 = vld [vmem:[%s0 + $0xf8] sm:$0xf]
  %v84 = vld [vmem:[%s0 + $0xfc] sm:$0xff]
  %v85 = vld [vmem:[%s0 + $0x104] sm:$0xf]
  %v86 = vld [vmem:[%s0 + $0x108] sm:$0xff]
  %v87 = vld [vmem:[%s0 + $0x110] sm:$0xf]
  %v88 = vld [vmem:[%s0 + $0x114] sm:$0xff]
  %v89 = vld [vmem:[%s0 + $0x11c] sm:$0xf]
  %v90 = vld [vmem:[%s0 + $0x120] sm:$0xff]
  %v91 = vld [vmem:[%s0 + $0x128] sm:$0xf]
  %v92 = vld [vmem:[%s0 + $0x12c] sm:$0xff]
  %v93 = vld [vmem:[%s0 + $0x134] sm:$0xf]
  %v94 = vld [vmem:[%s0 + $0x138] sm:$0xff]
  %v95 = vld [vmem:[%s0 + $0x140] sm:$0xf]
  %v96 = vld [vmem:[%s0 + $0x144] sm:$0xff]
  %v97 = vld [vmem:[%s0 + $0x14c] sm:$0xf]
  %v98 = vld [vmem:[%s0 + $0x150] sm:$0xff]
  %v99 = vld [vmem:[%s0 + $0x158] sm:$0xf]
  %v100 = vld [vmem:[%s0 + $0x15c] sm:$0xff]
  %v101 = vld [vmem:[%s0 + $0x164] sm:$0xf]
  %v102 = vld [vmem:[%s0 + $0x168] sm:$0xff]
  %v103 = vld [vmem:[%s0 + $0x170] sm:$0xf]
  %v104 = vld [vmem:[%s0 + $0x174] sm:$0xff]
  %v105 = vld [vmem:[%s0 + $0x17c] sm:$0xf]
  %v106 = vld [vmem:[%s0 + $0x180] sm:$0xff]
  %v107 = vld [vmem:[%s0 + $0x188] sm:$0xf]
  %v108 = vld [vmem:[%s0 + $0x18c] sm:$0xff]
  %v109 = vld [vmem:[%s0 + $0x194] sm:$0xf]
  %v110 = vld [vmem:[%s0 + $0x198] sm:$0xff]
  %v111 = vld [vmem:[%s0 + $0x1a0] sm:$0xf]
  %v112 = vld [vmem:[%s0 + $0x1a4] sm:$0xff]
  %v113 = vld [vmem:[%s0 + $0x1ac] sm:$0xf]
  %v114 = vld [vmem:[%s0 + $0x1b0] sm:$0xff]
  %v115 = vld [vmem:[%s0 + $0x1b8] sm:$0xf]
  %v116 = vld [vmem:[%s0 + $0x1bc] sm:$0xff]
  %v117 = vld [vmem:[%s0 + $0x1c4] sm:$0xf]
  %v118 = vld [vmem:[%s0 + $0x1c8] sm:$0xff]
  %v119 = vld [vmem:[%s0 + $0x1d0] sm:$0xf]
  %v120 = vld [vmem:[%s0 + $0x1d4] sm:$0xff]
  %v121 = vld [vmem:[%s0 + $0x1dc] sm:$0xf]
  %v122 = vld [vmem:[%s0 + $0x1e0] sm:$0xff]
  %v123 = vld [vmem:[%s0 + $0x1e8] sm:$0xf]
  %v124 = vld [vmem:[%s0 + $0x1ec] sm:$0xff]
  %v125 = vld [vmem:[%s0 + $0x1f4] sm:$0xf]
  %v126 = vld [vmem:[%s0 + $0x1f8] sm:$0xff]
  %v127 = vld [vmem:[%s0 + $0x200] sm:$0xf]
  %v128 = vld [vmem:[%s0 + $0x204] sm:$0xff]
  %v129 = vld [vmem:[%s0 + $0x20c] sm:$0xf]
  %v130 = vld [vmem:[%s0 + $0x210] sm:$0xff]
  %v131 = vld [vmem:[%s0 + $0x218] sm:$0xf]
  %v132 = vld [vmem:[%s0 + $0x21c] sm:$0xff]
  %v133 = vld [vmem:[%s0 + $0x224] sm:$0xf]
  %v134 = vld [vmem:[%s0 + $0x228] sm:$0xff]
  %v135 = vld [vmem:[%s0 + $0x230] sm:$0xf]
  %v136 = vld [vmem:[%s0 + $0x234] sm:$0xff]
  %v137 = vld [vmem:[%s0 + $0x23c] sm:$0xf]
  %v138 = vld [vmem:[%s0 + $0x240] sm:$0xff]
  %v139 = vld [vmem:[%s0 + $0x248] sm:$0xf]
  %v140 = vld [vmem:[%s0 + $0x24c] sm:$0xff]
  %v141 = vld [vmem:[%s0 + $0x254] sm:$0xf]
  %v142 = vld [vmem:[%s0 + $0x258] sm:$0xff]
  %v143 = vld [vmem:[%s0 + $0x260] sm:$0xf]
  %v144 = vld [vmem:[%s0 + $0x264] sm:$0xff]
  %v145 = vld [vmem:[%s0 + $0x26c] sm:$0xf]
  %v146 = vld [vmem:[%s0 + $0x270] sm:$0xff]
  %v147 = vld [vmem:[%s0 + $0x278] sm:$0xf]
  %v148 = vld [vmem:[%s0 + $0x27c] sm:$0xff]
  %v149 = vld [vmem:[%s0 + $0x284] sm:$0xf]
  %v150 = vld [vmem:[%s0 + $0x288] sm:$0xff]
  %v151 = vld [vmem:[%s0 + $0x290] sm:$0xf]
  %v152 = vld [vmem:[%s0 + $0x294] sm:$0xff]
  %v153 = vld [vmem:[%s0 + $0x29c] sm:$0xf]
  %v154 = vld [vmem:[%s0 + $0x2a0] sm:$0xff]
  %v155 = vld [vmem:[%s0 + $0x2a8] sm:$0xf]
  %v156 = vld [vmem:[%s0 + $0x2ac] sm:$0xff]
  %v157 = vld [vmem:[%s0 + $0x2b4] sm:$0xf]
  %v158 = vld [vmem:[%s0 + $0x2b8] sm:$0xff]
  %v159 = vld [vmem:[%s0 + $0x2c0] sm:$0xf]
  %v160 = vld [vmem:[%s0 + $0x2c4] sm:$0xff]
  %v161 = vld [vmem:[%s0 + $0x2cc] sm:$0xf]
  %v162 = vld [vmem:[%s0 + $0x2d0] sm:$0xff]
  %v163 = vld [vmem:[%s0 + $0x2d8] sm:$0xf]
  %v164 = vld [vmem:[%s0 + $0x2dc] sm:$0xff]
  %v165 = vld [vmem:[%s0 + $0x2e4] sm:$0xf]
  %v166 = vld [vmem:[%s0 + $0x2e8] sm:$0xff]
  %v167 = vld [vmem:[%s0 + $0x2f0] sm:$0xf]
  %v168 = vld [vmem:[%s0 + $0x2f4] sm:$0xff]
  %v169 = vld [vmem:[%s0 + $0x2fc] sm:$0xf]
  %v170 = vld [vmem:[%s2] sm:$0xf]
  %v171 = vld [vmem:[%s2 + $0x4] sm:$0xf]
  %v172 = vld [vmem:[%s2 + $0x8] sm:$0xf]
  %v173 = vld [vmem:[%s2 + $0xc] sm:$0xf]
  %v174 = vld [vmem:[%s2 + $0x10] sm:$0xf]
  %v175 = vld [vmem:[%s2 + $0x14] sm:$0xf]
  %v176 = vld [vmem:[%s2 + $0x18] sm:$0xf]
  %v177 = vld [vmem:[%s2 + $0x1c] sm:$0xf]
  %v178 = vld [vmem:[%s2 + $0x20] sm:$0xf]
  %v179 = vld [vmem:[%s2 + $0x24] sm:$0xf]
  %v180 = vld [vmem:[%s2 + $0x28] sm:$0xf]
  %v181 = vld [vmem:[%s2 + $0x2c] sm:$0xf]
  %v182 = vld [vmem:[%s2 + $0x30] sm:$0xf]
  %v183 = vld [vmem:[%s2 + $0x34] sm:$0xf]
  %v184 = vld [vmem:[%s2 + $0x38] sm:$0xf]
  %v185 = vld [vmem:[%s2 + $0x3c] sm:$0xf]
  %v186 = vld [vmem:[%s2 + $0x40] sm:$0xf]
  %v187 = vld [vmem:[%s2 + $0x44] sm:$0xf]
  %v188 = vld [vmem:[%s2 + $0x48] sm:$0xf]
  %v189 = vld [vmem:[%s2 + $0x4c] sm:$0xf]
  %v190 = vld [vmem:[%s2 + $0x50] sm:$0xf]
  %v191 = vld [vmem:[%s2 + $0x54] sm:$0xf]
  %v192 = vld [vmem:[%s2 + $0x58] sm:$0xf]
  %v193 = vld [vmem:[%s2 + $0x5c] sm:$0xf]
  %v194 = vld [vmem:[%s2 + $0x60] sm:$0xf]
  %v195 = vld [vmem:[%s2 + $0x64] sm:$0xf]
  %v196 = vld [vmem:[%s2 + $0x68] sm:$0xf]
  %v197 = vld [vmem:[%s2 + $0x6c] sm:$0xf]
  %v198 = vld [vmem:[%s2 + $0x70] sm:$0xf]
  %v199 = vld [vmem:[%s2 + $0x74] sm:$0xf]
  %v200 = vld [vmem:[%s2 + $0x78] sm:$0xf]
  %v201 = vld [vmem:[%s2 + $0x7c] sm:$0xf]
  %v202 = vld [vmem:[%s2 + $0x80] sm:$0xf]
  %v203 = vld [vmem:[%s2 + $0x84] sm:$0xf]
  %v204 = vld [vmem:[%s2 + $0x88] sm:$0xf]
  %v205 = vld [vmem:[%s2 + $0x8c] sm:$0xf]
  %v206 = vld [vmem:[%s2 + $0x90] sm:$0xf]
  %v207 = vld [vmem:[%s2 + $0x94] sm:$0xf]
  %v208 = vld [vmem:[%s2 + $0x98] sm:$0xf]
  %v209 = vld [vmem:[%s2 + $0x9c] sm:$0xf]
  %v210 = vld [vmem:[%s3] sm:$0x1]
  %v212 = vlaneseq
  %v213 = vshrl.u32 %v212, 7
  %v214 = vsub.s32 0, %v213
  %v215 = vrot.slane %v210, %v214
  %v345 = vunpack.c.l.b16 %v42
  %v346 = vunpack.c.h.b16 %v42
  %v347 = vunpack.c.l.b16 %v43
  %v348 = vunpack.c.l.b16 %v44
  %v349 = vunpack.c.h.b16 %v44
  %v350 = vunpack.c.l.b16 %v45
  %v351 = vunpack.c.l.b16 %v46
  %v352 = vunpack.c.h.b16 %v46
  %v353 = vunpack.c.l.b16 %v47
  %v354 = vunpack.c.l.b16 %v48
  %v355 = vunpack.c.h.b16 %v48
  %v356 = vunpack.c.l.b16 %v49
  %v357 = vunpack.c.l.b16 %v50
  %v358 = vunpack.c.h.b16 %v50
  %v359 = vunpack.c.l.b16 %v51
  %v360 = vunpack.c.l.b16 %v52
  %v361 = vunpack.c.h.b16 %v52
  %v362 = vunpack.c.l.b16 %v53
  %v363 = vunpack.c.l.b16 %v54
  %v364 = vunpack.c.h.b16 %v54
  %v365 = vunpack.c.l.b16 %v55
  %v366 = vunpack.c.l.b16 %v56
  %v367 = vunpack.c.h.b16 %v56
  %v368 = vunpack.c.l.b16 %v57
  %v369 = vunpack.c.l.b16 %v58
  %v370 = vunpack.c.h.b16 %v58
  %v371 = vunpack.c.l.b16 %v59
  %v372 = vunpack.c.l.b16 %v60
  %v373 = vunpack.c.h.b16 %v60
  %v374 = vunpack.c.l.b16 %v61
  %v375 = vunpack.c.l.b16 %v62
  %v376 = vunpack.c.h.b16 %v62
  %v377 = vunpack.c.l.b16 %v63
  %v378 = vunpack.c.l.b16 %v64
  %v379 = vunpack.c.h.b16 %v64
  %v380 = vunpack.c.l.b16 %v65
  %v381 = vunpack.c.l.b16 %v66
  %v382 = vunpack.c.h.b16 %v66
  %v383 = vunpack.c.l.b16 %v67
  %v384 = vunpack.c.l.b16 %v68
  %v385 = vunpack.c.h.b16 %v68
  %v386 = vunpack.c.l.b16 %v69
  %v387 = vunpack.c.l.b16 %v70
  %v388 = vunpack.c.h.b16 %v70
  %v389 = vunpack.c.l.b16 %v71
  %v390 = vunpack.c.l.b16 %v72
  %v391 = vunpack.c.h.b16 %v72
  %v392 = vunpack.c.l.b16 %v73
  %v393 = vunpack.c.l.b16 %v74
  %v394 = vunpack.c.h.b16 %v74
  %v395 = vunpack.c.l.b16 %v75
  %v396 = vunpack.c.l.b16 %v76
  %v397 = vunpack.c.h.b16 %v76
  %v398 = vunpack.c.l.b16 %v77
  %v399 = vunpack.c.l.b16 %v78
  %v400 = vunpack.c.h.b16 %v78
  %v401 = vunpack.c.l.b16 %v79
  %v402 = vunpack.c.l.b16 %v80
  %v403 = vunpack.c.h.b16 %v80
  %v404 = vunpack.c.l.b16 %v81
  %v405 = vunpack.c.l.b16 %v82
  %v406 = vunpack.c.h.b16 %v82
  %v407 = vunpack.c.l.b16 %v83
  %v408 = vunpack.c.l.b16 %v84
  %v409 = vunpack.c.h.b16 %v84
  %v410 = vunpack.c.l.b16 %v85
  %v411 = vunpack.c.l.b16 %v86
  %v412 = vunpack.c.h.b16 %v86
  %v413 = vunpack.c.l.b16 %v87
  %v414 = vunpack.c.l.b16 %v88
  %v415 = vunpack.c.h.b16 %v88
  %v416 = vunpack.c.l.b16 %v89
  %v417 = vunpack.c.l.b16 %v90
  %v418 = vunpack.c.h.b16 %v90
  %v419 = vunpack.c.l.b16 %v91
  %v420 = vunpack.c.l.b16 %v92
  %v421 = vunpack.c.h.b16 %v92
  %v422 = vunpack.c.l.b16 %v93
  %v423 = vunpack.c.l.b16 %v94
  %v424 = vunpack.c.h.b16 %v94
  %v425 = vunpack.c.l.b16 %v95
  %v426 = vunpack.c.l.b16 %v96
  %v427 = vunpack.c.h.b16 %v96
  %v428 = vunpack.c.l.b16 %v97
  %v429 = vunpack.c.l.b16 %v98
  %v430 = vunpack.c.h.b16 %v98
  %v431 = vunpack.c.l.b16 %v99
  %v432 = vunpack.c.l.b16 %v100
  %v433 = vunpack.c.h.b16 %v100
  %v434 = vunpack.c.l.b16 %v101
  %v435 = vunpack.c.l.b16 %v102
  %v436 = vunpack.c.h.b16 %v102
  %v437 = vunpack.c.l.b16 %v103
  %v438 = vunpack.c.l.b16 %v104
  %v439 = vunpack.c.h.b16 %v104
  %v440 = vunpack.c.l.b16 %v105
  %v441 = vunpack.c.l.b16 %v106
  %v442 = vunpack.c.h.b16 %v106
  %v443 = vunpack.c.l.b16 %v107
  %v444 = vunpack.c.l.b16 %v108
  %v445 = vunpack.c.h.b16 %v108
  %v446 = vunpack.c.l.b16 %v109
  %v447 = vunpack.c.l.b16 %v110
  %v448 = vunpack.c.h.b16 %v110
  %v449 = vunpack.c.l.b16 %v111
  %v450 = vunpack.c.l.b16 %v112
  %v451 = vunpack.c.h.b16 %v112
  %v452 = vunpack.c.l.b16 %v113
  %v453 = vunpack.c.l.b16 %v114
  %v454 = vunpack.c.h.b16 %v114
  %v455 = vunpack.c.l.b16 %v115
  %v456 = vunpack.c.l.b16 %v116
  %v457 = vunpack.c.h.b16 %v116
  %v458 = vunpack.c.l.b16 %v117
  %v459 = vunpack.c.l.b16 %v118
  %v460 = vunpack.c.h.b16 %v118
  %v461 = vunpack.c.l.b16 %v119
  %v462 = vunpack.c.l.b16 %v120
  %v463 = vunpack.c.h.b16 %v120
  %v464 = vunpack.c.l.b16 %v121
  %v465 = vunpack.c.l.b16 %v122
  %v466 = vunpack.c.h.b16 %v122
  %v467 = vunpack.c.l.b16 %v123
  %v468 = vunpack.c.l.b16 %v124
  %v469 = vunpack.c.h.b16 %v124
  %v470 = vunpack.c.l.b16 %v125
  %v471 = vunpack.c.l.b16 %v126
  %v472 = vunpack.c.h.b16 %v126
  %v473 = vunpack.c.l.b16 %v127
  %v474 = vunpack.c.l.b16 %v128
  %v475 = vunpack.c.h.b16 %v128
  %v476 = vunpack.c.l.b16 %v129
  %v477 = vunpack.c.l.b16 %v130
  %v478 = vunpack.c.h.b16 %v130
  %v479 = vunpack.c.l.b16 %v131
  %v480 = vunpack.c.l.b16 %v132
  %v481 = vunpack.c.h.b16 %v132
  %v482 = vunpack.c.l.b16 %v133
  %v483 = vunpack.c.l.b16 %v134
  %v484 = vunpack.c.h.b16 %v134
  %v485 = vunpack.c.l.b16 %v135
  %v486 = vunpack.c.l.b16 %v136
  %v487 = vunpack.c.h.b16 %v136
  %v488 = vunpack.c.l.b16 %v137
  %v489 = vunpack.c.l.b16 %v138
  %v490 = vunpack.c.h.b16 %v138
  %v491 = vunpack.c.l.b16 %v139
  %v492 = vunpack.c.l.b16 %v140
  %v493 = vunpack.c.h.b16 %v140
  %v494 = vunpack.c.l.b16 %v141
  %v495 = vunpack.c.l.b16 %v142
  %v496 = vunpack.c.h.b16 %v142
  %v497 = vunpack.c.l.b16 %v143
  %v498 = vunpack.c.l.b16 %v144
  %v499 = vunpack.c.h.b16 %v144
  %v500 = vunpack.c.l.b16 %v145
  %v501 = vunpack.c.l.b16 %v146
  %v502 = vunpack.c.h.b16 %v146
  %v503 = vunpack.c.l.b16 %v147
  %v504 = vunpack.c.l.b16 %v148
  %v505 = vunpack.c.h.b16 %v148
  %v506 = vunpack.c.l.b16 %v149
  %v507 = vunpack.c.l.b16 %v150
  %v508 = vunpack.c.h.b16 %v150
  %v509 = vunpack.c.l.b16 %v151
  %v510 = vunpack.c.l.b16 %v152
  %v511 = vunpack.c.h.b16 %v152
  %v512 = vunpack.c.l.b16 %v153
  %v513 = vunpack.c.l.b16 %v154
  %v514 = vunpack.c.h.b16 %v154
  %v515 = vunpack.c.l.b16 %v155
  %v516 = vunpack.c.l.b16 %v156
  %v517 = vunpack.c.h.b16 %v156
  %v518 = vunpack.c.l.b16 %v157
  %v519 = vunpack.c.l.b16 %v158
  %v520 = vunpack.c.h.b16 %v158
  %v521 = vunpack.c.l.b16 %v159
  %v522 = vunpack.c.l.b16 %v160
  %v523 = vunpack.c.h.b16 %v160
  %v524 = vunpack.c.l.b16 %v161
  %v525 = vunpack.c.l.b16 %v162
  %v526 = vunpack.c.h.b16 %v162
  %v527 = vunpack.c.l.b16 %v163
  %v528 = vunpack.c.l.b16 %v164
  %v529 = vunpack.c.h.b16 %v164
  %v530 = vunpack.c.l.b16 %v165
  %v531 = vunpack.c.l.b16 %v166
  %v532 = vunpack.c.h.b16 %v166
  %v533 = vunpack.c.l.b16 %v167
  %v534 = vunpack.c.l.b16 %v168
  %v535 = vunpack.c.h.b16 %v168
  %v536 = vunpack.c.l.b16 %v169
  %v537 = vpack.c.b16 %v348, %v345
  %v538 = vpack.c.b16 %v349, %v346
  %v539 = vpack.c.b16 %v350, %v347
  %v540 = vpack.c.b16 %v354, %v351
  %v541 = vpack.c.b16 %v355, %v352
  %v542 = vpack.c.b16 %v356, %v353
  %v543 = vpack.c.b16 %v360, %v357
  %v544 = vpack.c.b16 %v361, %v358
  %v545 = vpack.c.b16 %v362, %v359
  %v546 = vpack.c.b16 %v366, %v363
  %v547 = vpack.c.b16 %v367, %v364
  %v548 = vpack.c.b16 %v368, %v365
  %v549 = vpack.c.b16 %v372, %v369
  %v550 = vpack.c.b16 %v373, %v370
  %v551 = vpack.c.b16 %v374, %v371
  %v552 = vpack.c.b16 %v378, %v375
  %v553 = vpack.c.b16 %v379, %v376
  %v554 = vpack.c.b16 %v380, %v377
  %v555 = vpack.c.b16 %v384, %v381
  %v556 = vpack.c.b16 %v385, %v382
  %v557 = vpack.c.b16 %v386, %v383
  %v558 = vpack.c.b16 %v390, %v387
  %v559 = vpack.c.b16 %v391, %v388
  %v560 = vpack.c.b16 %v392, %v389
  %v561 = vpack.c.b16 %v396, %v393
  %v562 = vpack.c.b16 %v397, %v394
  %v563 = vpack.c.b16 %v398, %v395
  %v564 = vpack.c.b16 %v402, %v399
  %v565 = vpack.c.b16 %v403, %v400
  %v566 = vpack.c.b16 %v404, %v401
  %v567 = vpack.c.b16 %v408, %v405
  %v568 = vpack.c.b16 %v409, %v406
  %v569 = vpack.c.b16 %v410, %v407
  %v570 = vpack.c.b16 %v414, %v411
  %v571 = vpack.c.b16 %v415, %v412
  %v572 = vpack.c.b16 %v416, %v413
  %v573 = vpack.c.b16 %v420, %v417
  %v574 = vpack.c.b16 %v421, %v418
  %v575 = vpack.c.b16 %v422, %v419
  %v576 = vpack.c.b16 %v426, %v423
  %v577 = vpack.c.b16 %v427, %v424
  %v578 = vpack.c.b16 %v428, %v425
  %v579 = vpack.c.b16 %v432, %v429
  %v580 = vpack.c.b16 %v433, %v430
  %v581 = vpack.c.b16 %v434, %v431
  %v582 = vpack.c.b16 %v438, %v435
  %v583 = vpack.c.b16 %v439, %v436
  %v584 = vpack.c.b16 %v440, %v437
  %v585 = vpack.c.b16 %v444, %v441
  %v586 = vpack.c.b16 %v445, %v442
  %v587 = vpack.c.b16 %v446, %v443
  %v588 = vpack.c.b16 %v450, %v447
  %v589 = vpack.c.b16 %v451, %v448
  %v590 = vpack.c.b16 %v452, %v449
  %v591 = vpack.c.b16 %v456, %v453
  %v592 = vpack.c.b16 %v457, %v454
  %v593 = vpack.c.b16 %v458, %v455
  %v594 = vpack.c.b16 %v462, %v459
  %v595 = vpack.c.b16 %v463, %v460
  %v596 = vpack.c.b16 %v464, %v461
  %v597 = vpack.c.b16 %v468, %v465
  %v598 = vpack.c.b16 %v469, %v466
  %v599 = vpack.c.b16 %v470, %v467
  %v600 = vpack.c.b16 %v474, %v471
  %v601 = vpack.c.b16 %v475, %v472
  %v602 = vpack.c.b16 %v476, %v473
  %v603 = vpack.c.b16 %v480, %v477
  %v604 = vpack.c.b16 %v481, %v478
  %v605 = vpack.c.b16 %v482, %v479
  %v606 = vpack.c.b16 %v486, %v483
  %v607 = vpack.c.b16 %v487, %v484
  %v608 = vpack.c.b16 %v488, %v485
  %v609 = vpack.c.b16 %v492, %v489
  %v610 = vpack.c.b16 %v493, %v490
  %v611 = vpack.c.b16 %v494, %v491
  %v612 = vpack.c.b16 %v498, %v495
  %v613 = vpack.c.b16 %v499, %v496
  %v614 = vpack.c.b16 %v500, %v497
  %v615 = vpack.c.b16 %v504, %v501
  %v616 = vpack.c.b16 %v505, %v502
  %v617 = vpack.c.b16 %v506, %v503
  %v618 = vpack.c.b16 %v510, %v507
  %v619 = vpack.c.b16 %v511, %v508
  %v620 = vpack.c.b16 %v512, %v509
  %v621 = vpack.c.b16 %v516, %v513
  %v622 = vpack.c.b16 %v517, %v514
  %v623 = vpack.c.b16 %v518, %v515
  %v624 = vpack.c.b16 %v522, %v519
  %v625 = vpack.c.b16 %v523, %v520
  %v626 = vpack.c.b16 %v524, %v521
  %v627 = vpack.c.b16 %v528, %v525
  %v628 = vpack.c.b16 %v529, %v526
  %v629 = vpack.c.b16 %v530, %v527
  %v630 = vpack.c.b16 %v534, %v531
  %v631 = vpack.c.b16 %v535, %v532
  %v632 = vpack.c.b16 %v536, %v533
  %v737 = vunpack.c.l.b16 %v170
  %v738 = vunpack.c.l.b16 %v171
  %v739 = vunpack.c.l.b16 %v172
  %v740 = vunpack.c.l.b16 %v173
  %v741 = vunpack.c.l.b16 %v174
  %v742 = vunpack.c.l.b16 %v175
  %v743 = vunpack.c.l.b16 %v176
  %v744 = vunpack.c.l.b16 %v177
  %v745 = vunpack.c.l.b16 %v178
  %v746 = vunpack.c.l.b16 %v179
  %v747 = vunpack.c.l.b16 %v180
  %v748 = vunpack.c.l.b16 %v181
  %v749 = vunpack.c.l.b16 %v182
  %v750 = vunpack.c.l.b16 %v183
  %v751 = vunpack.c.l.b16 %v184
  %v752 = vunpack.c.l.b16 %v185
  %v753 = vunpack.c.l.b16 %v186
  %v754 = vunpack.c.l.b16 %v187
  %v755 = vunpack.c.l.b16 %v188
  %v756 = vunpack.c.l.b16 %v189
  %v757 = vunpack.c.l.b16 %v190
  %v758 = vunpack.c.l.b16 %v191
  %v759 = vunpack.c.l.b16 %v192
  %v760 = vunpack.c.l.b16 %v193
  %v761 = vunpack.c.l.b16 %v194
  %v762 = vunpack.c.l.b16 %v195
  %v763 = vunpack.c.l.b16 %v196
  %v764 = vunpack.c.l.b16 %v197
  %v765 = vunpack.c.l.b16 %v198
  %v766 = vunpack.c.l.b16 %v199
  %v767 = vunpack.c.l.b16 %v200
  %v768 = vunpack.c.l.b16 %v201
  %v769 = vunpack.c.l.b16 %v202
  %v770 = vunpack.c.l.b16 %v203
  %v771 = vunpack.c.l.b16 %v204
  %v772 = vunpack.c.l.b16 %v205
  %v773 = vunpack.c.l.b16 %v206
  %v774 = vunpack.c.l.b16 %v207
  %v775 = vunpack.c.l.b16 %v208
  %v776 = vunpack.c.l.b16 %v209
  %v777 = vpack.c.b16 %v738, %v737
  %v778 = vpack.c.b16 %v740, %v739
  %v779 = vpack.c.b16 %v742, %v741
  %v780 = vpack.c.b16 %v744, %v743
  %v781 = vpack.c.b16 %v746, %v745
  %v782 = vpack.c.b16 %v748, %v747
  %v783 = vpack.c.b16 %v750, %v749
  %v784 = vpack.c.b16 %v752, %v751
  %v785 = vpack.c.b16 %v754, %v753
  %v786 = vpack.c.b16 %v756, %v755
  %v787 = vpack.c.b16 %v758, %v757
  %v788 = vpack.c.b16 %v760, %v759
  %v789 = vpack.c.b16 %v762, %v761
  %v790 = vpack.c.b16 %v764, %v763
  %v791 = vpack.c.b16 %v766, %v765
  %v792 = vpack.c.b16 %v768, %v767
  %v793 = vpack.c.b16 %v770, %v769
  %v794 = vpack.c.b16 %v772, %v771
  %v795 = vpack.c.b16 %v774, %v773
  %v796 = vpack.c.b16 %v776, %v775
  %vm817 = vcmask 523264
  %v819 = vsel %vm817, %v539, 0
  %v822 = vsel %vm817, %v542, 0
  %v825 = vsel %vm817, %v545, 0
  %v828 = vsel %vm817, %v548, 0
  %v831 = vsel %vm817, %v551, 0
  %v834 = vsel %vm817, %v554, 0
  %v837 = vsel %vm817, %v557, 0
  %v840 = vsel %vm817, %v560, 0
  %v843 = vsel %vm817, %v563, 0
  %v846 = vsel %vm817, %v566, 0
  %v849 = vsel %vm817, %v569, 0
  %v852 = vsel %vm817, %v572, 0
  %v855 = vsel %vm817, %v575, 0
  %v858 = vsel %vm817, %v578, 0
  %v861 = vsel %vm817, %v581, 0
  %v864 = vsel %vm817, %v584, 0
  %v867 = vsel %vm817, %v587, 0
  %v870 = vsel %vm817, %v590, 0
  %v873 = vsel %vm817, %v593, 0
  %v876 = vsel %vm817, %v596, 0
  %v879 = vsel %vm817, %v599, 0
  %v882 = vsel %vm817, %v602, 0
  %v885 = vsel %vm817, %v605, 0
  %v888 = vsel %vm817, %v608, 0
  %v891 = vsel %vm817, %v611, 0
  %v894 = vsel %vm817, %v614, 0
  %v897 = vsel %vm817, %v617, 0
  %v900 = vsel %vm817, %v620, 0
  %v903 = vsel %vm817, %v623, 0
  %v906 = vsel %vm817, %v626, 0
  %v909 = vsel %vm817, %v629, 0
  %v912 = vsel %vm817, %v632, 0
  %914 = vmatprep.subr.bf16.mxu0 0
  %915 = vmatpush1.bf16.msra.mxu0 %v777
  %916 = vmatprep.subr.bf16.mxu0 0
  %917 = vmatpush1.bf16.msra.mxu0 %v778
  %918 = vmatprep.subr.bf16.mxu0 0
  %919 = vmatpush1.bf16.msra.mxu0 %v779
  %920 = vmatprep.subr.bf16.mxu0 0
  %921 = vmatpush1.bf16.msra.mxu0 %v780
  %922 = vmatprep.subr.bf16.mxu0 0
  %923 = vmatpush1.bf16.msra.mxu0 %v781
  %924 = vmatprep.subr.bf16.mxu0 0
  %925 = vmatpush1.bf16.msra.mxu0 %v782
  %926 = vmatprep.subr.bf16.mxu0 0
  %927 = vmatpush1.bf16.msra.mxu0 %v783
  %928 = vmatprep.subr.bf16.mxu0 0
  %929 = vmatpush1.bf16.msra.mxu0 %v784
  %930 = vmatprep.subr.bf16.mxu0 0
  %931 = vmatpush1.bf16.msra.mxu0 %v785
  %932 = vmatprep.subr.bf16.mxu0 0
  %933 = vmatpush1.bf16.msra.mxu0 %v786
  %934 = vmatprep.subr.bf16.mxu0 0
  %935 = vmatpush1.bf16.msra.mxu0 %v787
  %936 = vmatprep.subr.bf16.mxu0 0
  %937 = vmatpush1.bf16.msra.mxu0 %v788
  %938 = vmatprep.subr.bf16.mxu0 0
  %939 = vmatpush1.bf16.msra.mxu0 %v789
  %940 = vmatprep.subr.bf16.mxu0 0
  %941 = vmatpush1.bf16.msra.mxu0 %v790
  %942 = vmatprep.subr.bf16.mxu0 0
  %943 = vmatpush1.bf16.msra.mxu0 %v791
  %944 = vmatprep.subr.bf16.mxu0 0
  %945 = vmatpush1.bf16.msra.mxu0 %v792
  %946 = vmatprep.mubr.bf16.mxu0 %v538
  %947 = vmatmul.mubr.bf16.gmra.mrb[0].mxu0 %v537
  %v948 = vpop.f32.mrb[0].mxu0
  %v949 = vadd.f32 %v215, %v948
  %v950 = vpop.f32.mrb[0].mxu0
  %v951 = vpop.f32.mrb[0].mxu0
  %v952 = vadd.f32 %v215, %v951
  %v953 = vpop.f32.mrb[0].mxu0
  %954 = vmatprep.mubr.bf16.mxu0 %v541
  %955 = vmatmul.mubr.bf16.gmra.mrb[0].mxu0 %v540
  %v956 = vpop.f32.mrb[0].mxu0
  %v957 = vadd.f32 %v215, %v956
  %v958 = vpop.f32.mrb[0].mxu0
  %v959 = vpop.f32.mrb[0].mxu0
  %v960 = vadd.f32 %v215, %v959
  %v961 = vpop.f32.mrb[0].mxu0
  %962 = vmatprep.mubr.bf16.mxu0 %v544
  %963 = vmatmul.mubr.bf16.gmra.mrb[0].mxu0 %v543
  %v964 = vpop.f32.mrb[0].mxu0
  %v965 = vadd.f32 %v215, %v964
  %v966 = vpop.f32.mrb[0].mxu0
  %v967 = vpop.f32.mrb[0].mxu0
  %v968 = vadd.f32 %v215, %v967
  %v969 = vpop.f32.mrb[0].mxu0
  %970 = vmatprep.mubr.bf16.mxu0 %v547
  %971 = vmatmul.mubr.bf16.gmra.mrb[0].mxu0 %v546
  %v972 = vpop.f32.mrb[0].mxu0
  %v973 = vadd.f32 %v215, %v972
  %v974 = vpop.f32.mrb[0].mxu0
  %v975 = vpop.f32.mrb[0].mxu0
  %v976 = vadd.f32 %v215, %v975
  %v977 = vpop.f32.mrb[0].mxu0
  %978 = vmatprep.mubr.bf16.mxu0 %v550
  %979 = vmatmul.mubr.bf16.gmra.mrb[0].mxu0 %v549
  %v980 = vpop.f32.mrb[0].mxu0
  %v981 = vadd.f32 %v215, %v980
  %v982 = vpop.f32.mrb[0].mxu0
  %v983 = vpop.f32.mrb[0].mxu0
  %v984 = vadd.f32 %v215, %v983
  %v985 = vpop.f32.mrb[0].mxu0
  %986 = vmatprep.mubr.bf16.mxu0 %v553
  %987 = vmatmul.mubr.bf16.gmra.mrb[0].mxu0 %v552
  %v988 = vpop.f32.mrb[0].mxu0
  %v989 = vadd.f32 %v215, %v988
  %v990 = vpop.f32.mrb[0].mxu0
  %v991 = vpop.f32.mrb[0].mxu0
  %v992 = vadd.f32 %v215, %v991
  %v993 = vpop.f32.mrb[0].mxu0
  %994 = vmatprep.mubr.bf16.mxu0 %v556
  %995 = vmatmul.mubr.bf16.gmra.mrb[0].mxu0 %v555
  %v996 = vpop.f32.mrb[0].mxu0
  %v997 = vadd.f32 %v215, %v996
  %v998 = vpop.f32.mrb[0].mxu0
  %v999 = vpop.f32.mrb[0].mxu0
  %v1000 = vadd.f32 %v215, %v999
  %v1001 = vpop.f32.mrb[0].mxu0
  %1002 = vmatprep.mubr.bf16.mxu0 %v559
  %1003 = vmatmul.mubr.bf16.gmra.mrb[0].mxu0 %v558
  %v1004 = vpop.f32.mrb[0].mxu0
  %v1005 = vadd.f32 %v215, %v1004
  %v1006 = vpop.f32.mrb[0].mxu0
  %v1007 = vpop.f32.mrb[0].mxu0
  %v1008 = vadd.f32 %v215, %v1007
  %v1009 = vpop.f32.mrb[0].mxu0
  %1010 = vmatprep.mubr.bf16.mxu0 %v562
  %1011 = vmatmul.mubr.bf16.gmra.mrb[0].mxu0 %v561
  %v1012 = vpop.f32.mrb[0].mxu0
  %v1013 = vadd.f32 %v215, %v1012
  %v1014 = vpop.f32.mrb[0].mxu0
  %v1015 = vpop.f32.mrb[0].mxu0
  %v1016 = vadd.f32 %v215, %v1015
  %v1017 = vpop.f32.mrb[0].mxu0
  %1018 = vmatprep.mubr.bf16.mxu0 %v565
  %1019 = vmatmul.mubr.bf16.gmra.mrb[0].mxu0 %v564
  %v1020 = vpop.f32.mrb[0].mxu0
  %v1021 = vadd.f32 %v215, %v1020
  %v1022 = vpop.f32.mrb[0].mxu0
  %v1023 = vpop.f32.mrb[0].mxu0
  %v1024 = vadd.f32 %v215, %v1023
  %v1025 = vpop.f32.mrb[0].mxu0
  %1026 = vmatprep.mubr.bf16.mxu0 %v568
  %1027 = vmatmul.mubr.bf16.gmra.mrb[0].mxu0 %v567
  %v1028 = vpop.f32.mrb[0].mxu0
  %v1029 = vadd.f32 %v215, %v1028
  %v1030 = vpop.f32.mrb[0].mxu0
  %v1031 = vpop.f32.mrb[0].mxu0
  %v1032 = vadd.f32 %v215, %v1031
  %v1033 = vpop.f32.mrb[0].mxu0
  %1034 = vmatprep.mubr.bf16.mxu0 %v571
  %1035 = vmatmul.mubr.bf16.gmra.mrb[0].mxu0 %v570
  %v1036 = vpop.f32.mrb[0].mxu0
  %v1037 = vadd.f32 %v215, %v1036
  %v1038 = vpop.f32.mrb[0].mxu0
  %v1039 = vpop.f32.mrb[0].mxu0
  %v1040 = vadd.f32 %v215, %v1039
  %v1041 = vpop.f32.mrb[0].mxu0
  %1042 = vmatprep.mubr.bf16.mxu0 %v574
  %1043 = vmatmul.mubr.bf16.gmra.mrb[0].mxu0 %v573
  %v1044 = vpop.f32.mrb[0].mxu0
  %v1045 = vadd.f32 %v215, %v1044
  %v1046 = vpop.f32.mrb[0].mxu0
  %v1047 = vpop.f32.mrb[0].mxu0
  %v1048 = vadd.f32 %v215, %v1047
  %v1049 = vpop.f32.mrb[0].mxu0
  %1050 = vmatprep.mubr.bf16.mxu0 %v577
  %1051 = vmatmul.mubr.bf16.gmra.mrb[0].mxu0 %v576
  %v1052 = vpop.f32.mrb[0].mxu0
  %v1053 = vadd.f32 %v215, %v1052
  %v1054 = vpop.f32.mrb[0].mxu0
  %v1055 = vpop.f32.mrb[0].mxu0
  %v1056 = vadd.f32 %v215, %v1055
  %v1057 = vpop.f32.mrb[0].mxu0
  %1058 = vmatprep.mubr.bf16.mxu0 %v580
  %1059 = vmatmul.mubr.bf16.gmra.mrb[0].mxu0 %v579
  %v1060 = vpop.f32.mrb[0].mxu0
  %v1061 = vadd.f32 %v215, %v1060
  %v1062 = vpop.f32.mrb[0].mxu0
  %v1063 = vpop.f32.mrb[0].mxu0
  %v1064 = vadd.f32 %v215, %v1063
  %v1065 = vpop.f32.mrb[0].mxu0
  %1066 = vmatprep.mubr.bf16.mxu0 %v583
  %1067 = vmatmul.mubr.bf16.gmra.mrb[0].mxu0 %v582
  %v1068 = vpop.f32.mrb[0].mxu0
  %v1069 = vadd.f32 %v215, %v1068
  %v1070 = vpop.f32.mrb[0].mxu0
  %v1071 = vpop.f32.mrb[0].mxu0
  %v1072 = vadd.f32 %v215, %v1071
  %v1073 = vpop.f32.mrb[0].mxu0
  %1074 = vmatprep.mubr.bf16.mxu0 %v586
  %1075 = vmatmul.mubr.bf16.gmra.mrb[0].mxu0 %v585
  %v1076 = vpop.f32.mrb[0].mxu0
  %v1077 = vadd.f32 %v215, %v1076
  %v1078 = vpop.f32.mrb[0].mxu0
  %v1079 = vpop.f32.mrb[0].mxu0
  %v1080 = vadd.f32 %v215, %v1079
  %v1081 = vpop.f32.mrb[0].mxu0
  %1082 = vmatprep.mubr.bf16.mxu0 %v589
  %1083 = vmatmul.mubr.bf16.gmra.mrb[0].mxu0 %v588
  %v1084 = vpop.f32.mrb[0].mxu0
  %v1085 = vadd.f32 %v215, %v1084
  %v1086 = vpop.f32.mrb[0].mxu0
  %v1087 = vpop.f32.mrb[0].mxu0
  %v1088 = vadd.f32 %v215, %v1087
  %v1089 = vpop.f32.mrb[0].mxu0
  %1090 = vmatprep.mubr.bf16.mxu0 %v592
  %1091 = vmatmul.mubr.bf16.gmra.mrb[0].mxu0 %v591
  %v1092 = vpop.f32.mrb[0].mxu0
  %v1093 = vadd.f32 %v215, %v1092
  %v1094 = vpop.f32.mrb[0].mxu0
  %v1095 = vpop.f32.mrb[0].mxu0
  %v1096 = vadd.f32 %v215, %v1095
  %v1097 = vpop.f32.mrb[0].mxu0
  %1098 = vmatprep.mubr.bf16.mxu0 %v595
  %1099 = vmatmul.mubr.bf16.gmra.mrb[0].mxu0 %v594
  %v1100 = vpop.f32.mrb[0].mxu0
  %v1101 = vadd.f32 %v215, %v1100
  %v1102 = vpop.f32.mrb[0].mxu0
  %v1103 = vpop.f32.mrb[0].mxu0
  %v1104 = vadd.f32 %v215, %v1103
  %v1105 = vpop.f32.mrb[0].mxu0
  %1106 = vmatprep.mubr.bf16.mxu0 %v598
  %1107 = vmatmul.mubr.bf16.gmra.mrb[0].mxu0 %v597
  %v1108 = vpop.f32.mrb[0].mxu0
  %v1109 = vadd.f32 %v215, %v1108
  %v1110 = vpop.f32.mrb[0].mxu0
  %v1111 = vpop.f32.mrb[0].mxu0
  %v1112 = vadd.f32 %v215, %v1111
  %v1113 = vpop.f32.mrb[0].mxu0
  %1114 = vmatprep.mubr.bf16.mxu0 %v601
  %1115 = vmatmul.mubr.bf16.gmra.mrb[0].mxu0 %v600
  %v1116 = vpop.f32.mrb[0].mxu0
  %v1117 = vadd.f32 %v215, %v1116
  %v1118 = vpop.f32.mrb[0].mxu0
  %v1119 = vpop.f32.mrb[0].mxu0
  %v1120 = vadd.f32 %v215, %v1119
  %v1121 = vpop.f32.mrb[0].mxu0
  %1122 = vmatprep.mubr.bf16.mxu0 %v604
  %1123 = vmatmul.mubr.bf16.gmra.mrb[0].mxu0 %v603
  %v1124 = vpop.f32.mrb[0].mxu0
  %v1125 = vadd.f32 %v215, %v1124
  %v1126 = vpop.f32.mrb[0].mxu0
  %v1127 = vpop.f32.mrb[0].mxu0
  %v1128 = vadd.f32 %v215, %v1127
  %v1129 = vpop.f32.mrb[0].mxu0
  %1130 = vmatprep.mubr.bf16.mxu0 %v607
  %1131 = vmatmul.mubr.bf16.gmra.mrb[0].mxu0 %v606
  %v1132 = vpop.f32.mrb[0].mxu0
  %v1133 = vadd.f32 %v215, %v1132
  %v1134 = vpop.f32.mrb[0].mxu0
  %v1135 = vpop.f32.mrb[0].mxu0
  %v1136 = vadd.f32 %v215, %v1135
  %v1137 = vpop.f32.mrb[0].mxu0
  %1138 = vmatprep.mubr.bf16.mxu0 %v610
  %1139 = vmatmul.mubr.bf16.gmra.mrb[0].mxu0 %v609
  %v1140 = vpop.f32.mrb[0].mxu0
  %v1141 = vadd.f32 %v215, %v1140
  %v1142 = vpop.f32.mrb[0].mxu0
  %v1143 = vpop.f32.mrb[0].mxu0
  %v1144 = vadd.f32 %v215, %v1143
  %v1145 = vpop.f32.mrb[0].mxu0
  %1146 = vmatprep.mubr.bf16.mxu0 %v613
  %1147 = vmatmul.mubr.bf16.gmra.mrb[0].mxu0 %v612
  %v1148 = vpop.f32.mrb[0].mxu0
  %v1149 = vadd.f32 %v215, %v1148
  %v1150 = vpop.f32.mrb[0].mxu0
  %v1151 = vpop.f32.mrb[0].mxu0
  %v1152 = vadd.f32 %v215, %v1151
  %v1153 = vpop.f32.mrb[0].mxu0
  %1154 = vmatprep.mubr.bf16.mxu0 %v616
  %1155 = vmatmul.mubr.bf16.gmra.mrb[0].mxu0 %v615
  %v1156 = vpop.f32.mrb[0].mxu0
  %v1157 = vadd.f32 %v215, %v1156
  %v1158 = vpop.f32.mrb[0].mxu0
  %v1159 = vpop.f32.mrb[0].mxu0
  %v1160 = vadd.f32 %v215, %v1159
  %v1161 = vpop.f32.mrb[0].mxu0
  %1162 = vmatprep.mubr.bf16.mxu0 %v619
  %1163 = vmatmul.mubr.bf16.gmra.mrb[0].mxu0 %v618
  %v1164 = vpop.f32.mrb[0].mxu0
  %v1165 = vadd.f32 %v215, %v1164
  %v1166 = vpop.f32.mrb[0].mxu0
  %v1167 = vpop.f32.mrb[0].mxu0
  %v1168 = vadd.f32 %v215, %v1167
  %v1169 = vpop.f32.mrb[0].mxu0
  %1170 = vmatprep.mubr.bf16.mxu0 %v622
  %1171 = vmatmul.mubr.bf16.gmra.mrb[0].mxu0 %v621
  %v1172 = vpop.f32.mrb[0].mxu0
  %v1173 = vadd.f32 %v215, %v1172
  %v1174 = vpop.f32.mrb[0].mxu0
  %v1175 = vpop.f32.mrb[0].mxu0
  %v1176 = vadd.f32 %v215, %v1175
  %v1177 = vpop.f32.mrb[0].mxu0
  %1178 = vmatprep.mubr.bf16.mxu0 %v625
  %1179 = vmatmul.mubr.bf16.gmra.mrb[0].mxu0 %v624
  %v1180 = vpop.f32.mrb[0].mxu0
  %v1181 = vadd.f32 %v215, %v1180
  %v1182 = vpop.f32.mrb[0].mxu0
  %v1183 = vpop.f32.mrb[0].mxu0
  %v1184 = vadd.f32 %v215, %v1183
  %v1185 = vpop.f32.mrb[0].mxu0
  %1186 = vmatprep.mubr.bf16.mxu0 %v628
  %1187 = vmatmul.mubr.bf16.gmra.mrb[0].mxu0 %v627
  %v1188 = vpop.f32.mrb[0].mxu0
  %v1189 = vadd.f32 %v215, %v1188
  %v1190 = vpop.f32.mrb[0].mxu0
  %v1191 = vpop.f32.mrb[0].mxu0
  %v1192 = vadd.f32 %v215, %v1191
  %v1193 = vpop.f32.mrb[0].mxu0
  %1194 = vmatprep.mubr.bf16.mxu0 %v631
  %1195 = vmatmul.mubr.bf16.gmra.mrb[0].mxu0 %v630
  %v1196 = vpop.f32.mrb[0].mxu0
  %v1197 = vadd.f32 %v215, %v1196
  %v1198 = vpop.f32.mrb[0].mxu0
  %v1199 = vpop.f32.mrb[0].mxu0
  %v1200 = vadd.f32 %v215, %v1199
  %v1201 = vpop.f32.mrb[0].mxu0
  %1202 = vdwg.mxu0
  %1203 = vmatprep.subr.bf16.mxu0 0
  %1204 = vmatpush1.bf16.msra.mxu0 %v793
  %1205 = vmatprep.subr.bf16.mxu0 0
  %1206 = vmatpush1.bf16.msra.mxu0 %v794
  %1207 = vmatprep.subr.bf16.mxu0 0
  %1208 = vmatpush1.bf16.msra.mxu0 %v795
  %1209 = vmatprep.subr.bf16.mxu0 0
  %1210 = vmatpush1.bf16.msra.mxu0 %v796
  %1211 = vmatprep.subr.bf16.mxu0 0
  %1212 = vmatpush1.bf16.msra.mxu0 0
  %1213 = vmatprep.subr.bf16.mxu0 0
  %1214 = vmatpush1.bf16.msra.mxu0 0
  %1215 = vmatprep.subr.bf16.mxu0 0
  %1216 = vmatpush1.bf16.msra.mxu0 0
  %1217 = vmatprep.subr.bf16.mxu0 0
  %1218 = vmatpush1.bf16.msra.mxu0 0
  %1219 = vmatprep.subr.bf16.mxu0 0
  %1220 = vmatpush1.bf16.msra.mxu0 0
  %1221 = vmatprep.subr.bf16.mxu0 0
  %1222 = vmatpush1.bf16.msra.mxu0 0
  %1223 = vmatprep.subr.bf16.mxu0 0
  %1224 = vmatpush1.bf16.msra.mxu0 0
  %1225 = vmatprep.subr.bf16.mxu0 0
  %1226 = vmatpush1.bf16.msra.mxu0 0
  %1227 = vmatprep.subr.bf16.mxu0 0
  %1228 = vmatpush1.bf16.msra.mxu0 0
  %1229 = vmatprep.subr.bf16.mxu0 0
  %1230 = vmatpush1.bf16.msra.mxu0 0
  %1231 = vmatprep.subr.bf16.mxu0 0
  %1232 = vmatpush1.bf16.msra.mxu0 0
  %1233 = vmatprep.subr.bf16.mxu0 0
  %1234 = vmatpush1.bf16.msra.mxu0 0
  %1235 = vmatprep.mubr.bf16.mxu0 0
  %1236 = vmatmul.mubr.bf16.gmra.mrb[0].mxu0 %v819
  %v1237 = vpop.f32.mrb[0].mxu0
  %v1238 = vadd.f32 %v949, %v1237
  %v1239 = vpop.f32.mrb[0].mxu0
  %v1240 = vpop.f32.mrb[0].mxu0
  %v1241 = vadd.f32 %v952, %v1240
  %v1242 = vpop.f32.mrb[0].mxu0
  %1243 = vmatprep.mubr.bf16.mxu0 0
  %1244 = vmatmul.mubr.bf16.gmra.mrb[0].mxu0 %v822
  %v1245 = vpop.f32.mrb[0].mxu0
  %v1246 = vadd.f32 %v957, %v1245
  %v1247 = vpop.f32.mrb[0].mxu0
  %v1248 = vpop.f32.mrb[0].mxu0
  %v1249 = vadd.f32 %v960, %v1248
  %v1250 = vpop.f32.mrb[0].mxu0
  %1251 = vmatprep.mubr.bf16.mxu0 0
  %1252 = vmatmul.mubr.bf16.gmra.mrb[0].mxu0 %v825
  %v1253 = vpop.f32.mrb[0].mxu0
  %v1254 = vadd.f32 %v965, %v1253
  %v1255 = vpop.f32.mrb[0].mxu0
  %v1256 = vpop.f32.mrb[0].mxu0
  %v1257 = vadd.f32 %v968, %v1256
  %v1258 = vpop.f32.mrb[0].mxu0
  %1259 = vmatprep.mubr.bf16.mxu0 0
  %1260 = vmatmul.mubr.bf16.gmra.mrb[0].mxu0 %v828
  %v1261 = vpop.f32.mrb[0].mxu0
  %v1262 = vadd.f32 %v973, %v1261
  %v1263 = vpop.f32.mrb[0].mxu0
  %v1264 = vpop.f32.mrb[0].mxu0
  %v1265 = vadd.f32 %v976, %v1264
  %v1266 = vpop.f32.mrb[0].mxu0
  %1267 = vmatprep.mubr.bf16.mxu0 0
  %1268 = vmatmul.mubr.bf16.gmra.mrb[0].mxu0 %v831
  %v1269 = vpop.f32.mrb[0].mxu0
  %v1270 = vadd.f32 %v981, %v1269
  %v1271 = vpop.f32.mrb[0].mxu0
  %v1272 = vpop.f32.mrb[0].mxu0
  %v1273 = vadd.f32 %v984, %v1272
  %v1274 = vpop.f32.mrb[0].mxu0
  %1275 = vmatprep.mubr.bf16.mxu0 0
  %1276 = vmatmul.mubr.bf16.gmra.mrb[0].mxu0 %v834
  %v1277 = vpop.f32.mrb[0].mxu0
  %v1278 = vadd.f32 %v989, %v1277
  %v1279 = vpop.f32.mrb[0].mxu0
  %v1280 = vpop.f32.mrb[0].mxu0
  %v1281 = vadd.f32 %v992, %v1280
  %v1282 = vpop.f32.mrb[0].mxu0
  %1283 = vmatprep.mubr.bf16.mxu0 0
  %1284 = vmatmul.mubr.bf16.gmra.mrb[0].mxu0 %v837
  %v1285 = vpop.f32.mrb[0].mxu0
  %v1286 = vadd.f32 %v997, %v1285
  %v1287 = vpop.f32.mrb[0].mxu0
  %v1288 = vpop.f32.mrb[0].mxu0
  %v1289 = vadd.f32 %v1000, %v1288
  %v1290 = vpop.f32.mrb[0].mxu0
  %1291 = vmatprep.mubr.bf16.mxu0 0
  %1292 = vmatmul.mubr.bf16.gmra.mrb[0].mxu0 %v840
  %v1293 = vpop.f32.mrb[0].mxu0
  %v1294 = vadd.f32 %v1005, %v1293
  %v1295 = vpop.f32.mrb[0].mxu0
  %v1296 = vpop.f32.mrb[0].mxu0
  %v1297 = vadd.f32 %v1008, %v1296
  %v1298 = vpop.f32.mrb[0].mxu0
  %1299 = vmatprep.mubr.bf16.mxu0 0
  %1300 = vmatmul.mubr.bf16.gmra.mrb[0].mxu0 %v843
  %v1301 = vpop.f32.mrb[0].mxu0
  %v1302 = vadd.f32 %v1013, %v1301
  %v1303 = vpop.f32.mrb[0].mxu0
  %v1304 = vpop.f32.mrb[0].mxu0
  %v1305 = vadd.f32 %v1016, %v1304
  %v1306 = vpop.f32.mrb[0].mxu0
  %1307 = vmatprep.mubr.bf16.mxu0 0
  %1308 = vmatmul.mubr.bf16.gmra.mrb[0].mxu0 %v846
  %v1309 = vpop.f32.mrb[0].mxu0
  %v1310 = vadd.f32 %v1021, %v1309
  %v1311 = vpop.f32.mrb[0].mxu0
  %v1312 = vpop.f32.mrb[0].mxu0
  %v1313 = vadd.f32 %v1024, %v1312
  %v1314 = vpop.f32.mrb[0].mxu0
  %1315 = vmatprep.mubr.bf16.mxu0 0
  %1316 = vmatmul.mubr.bf16.gmra.mrb[0].mxu0 %v849
  %v1317 = vpop.f32.mrb[0].mxu0
  %v1318 = vadd.f32 %v1029, %v1317
  %v1319 = vpop.f32.mrb[0].mxu0
  %v1320 = vpop.f32.mrb[0].mxu0
  %v1321 = vadd.f32 %v1032, %v1320
  %v1322 = vpop.f32.mrb[0].mxu0
  %1323 = vmatprep.mubr.bf16.mxu0 0
  %1324 = vmatmul.mubr.bf16.gmra.mrb[0].mxu0 %v852
  %v1325 = vpop.f32.mrb[0].mxu0
  %v1326 = vadd.f32 %v1037, %v1325
  %v1327 = vpop.f32.mrb[0].mxu0
  %v1328 = vpop.f32.mrb[0].mxu0
  %v1329 = vadd.f32 %v1040, %v1328
  %v1330 = vpop.f32.mrb[0].mxu0
  %1331 = vmatprep.mubr.bf16.mxu0 0
  %1332 = vmatmul.mubr.bf16.gmra.mrb[0].mxu0 %v855
  %v1333 = vpop.f32.mrb[0].mxu0
  %v1334 = vadd.f32 %v1045, %v1333
  %v1335 = vpop.f32.mrb[0].mxu0
  %v1336 = vpop.f32.mrb[0].mxu0
  %v1337 = vadd.f32 %v1048, %v1336
  %v1338 = vpop.f32.mrb[0].mxu0
  %1339 = vmatprep.mubr.bf16.mxu0 0
  %1340 = vmatmul.mubr.bf16.gmra.mrb[0].mxu0 %v858
  %v1341 = vpop.f32.mrb[0].mxu0
  %v1342 = vadd.f32 %v1053, %v1341
  %v1343 = vpop.f32.mrb[0].mxu0
  %v1344 = vpop.f32.mrb[0].mxu0
  %v1345 = vadd.f32 %v1056, %v1344
  %v1346 = vpop.f32.mrb[0].mxu0
  %1347 = vmatprep.mubr.bf16.mxu0 0
  %1348 = vmatmul.mubr.bf16.gmra.mrb[0].mxu0 %v861
  %v1349 = vpop.f32.mrb[0].mxu0
  %v1350 = vadd.f32 %v1061, %v1349
  %v1351 = vpop.f32.mrb[0].mxu0
  %v1352 = vpop.f32.mrb[0].mxu0
  %v1353 = vadd.f32 %v1064, %v1352
  %v1354 = vpop.f32.mrb[0].mxu0
  %1355 = vmatprep.mubr.bf16.mxu0 0
  %1356 = vmatmul.mubr.bf16.gmra.mrb[0].mxu0 %v864
  %v1357 = vpop.f32.mrb[0].mxu0
  %v1358 = vadd.f32 %v1069, %v1357
  %v1359 = vpop.f32.mrb[0].mxu0
  %v1360 = vpop.f32.mrb[0].mxu0
  %v1361 = vadd.f32 %v1072, %v1360
  %v1362 = vpop.f32.mrb[0].mxu0
  %1363 = vmatprep.mubr.bf16.mxu0 0
  %1364 = vmatmul.mubr.bf16.gmra.mrb[0].mxu0 %v867
  %v1365 = vpop.f32.mrb[0].mxu0
  %v1366 = vadd.f32 %v1077, %v1365
  %v1367 = vpop.f32.mrb[0].mxu0
  %v1368 = vpop.f32.mrb[0].mxu0
  %v1369 = vadd.f32 %v1080, %v1368
  %v1370 = vpop.f32.mrb[0].mxu0
  %1371 = vmatprep.mubr.bf16.mxu0 0
  %1372 = vmatmul.mubr.bf16.gmra.mrb[0].mxu0 %v870
  %v1373 = vpop.f32.mrb[0].mxu0
  %v1374 = vadd.f32 %v1085, %v1373
  %v1375 = vpop.f32.mrb[0].mxu0
  %v1376 = vpop.f32.mrb[0].mxu0
  %v1377 = vadd.f32 %v1088, %v1376
  %v1378 = vpop.f32.mrb[0].mxu0
  %1379 = vmatprep.mubr.bf16.mxu0 0
  %1380 = vmatmul.mubr.bf16.gmra.mrb[0].mxu0 %v873
  %v1381 = vpop.f32.mrb[0].mxu0
  %v1382 = vadd.f32 %v1093, %v1381
  %v1383 = vpop.f32.mrb[0].mxu0
  %v1384 = vpop.f32.mrb[0].mxu0
  %v1385 = vadd.f32 %v1096, %v1384
  %v1386 = vpop.f32.mrb[0].mxu0
  %1387 = vmatprep.mubr.bf16.mxu0 0
  %1388 = vmatmul.mubr.bf16.gmra.mrb[0].mxu0 %v876
  %v1389 = vpop.f32.mrb[0].mxu0
  %v1390 = vadd.f32 %v1101, %v1389
  %v1391 = vpop.f32.mrb[0].mxu0
  %v1392 = vpop.f32.mrb[0].mxu0
  %v1393 = vadd.f32 %v1104, %v1392
  %v1394 = vpop.f32.mrb[0].mxu0
  %1395 = vmatprep.mubr.bf16.mxu0 0
  %1396 = vmatmul.mubr.bf16.gmra.mrb[0].mxu0 %v879
  %v1397 = vpop.f32.mrb[0].mxu0
  %v1398 = vadd.f32 %v1109, %v1397
  %v1399 = vpop.f32.mrb[0].mxu0
  %v1400 = vpop.f32.mrb[0].mxu0
  %v1401 = vadd.f32 %v1112, %v1400
  %v1402 = vpop.f32.mrb[0].mxu0
  %1403 = vmatprep.mubr.bf16.mxu0 0
  %1404 = vmatmul.mubr.bf16.gmra.mrb[0].mxu0 %v882
  %v1405 = vpop.f32.mrb[0].mxu0
  %v1406 = vadd.f32 %v1117, %v1405
  %v1407 = vpop.f32.mrb[0].mxu0
  %v1408 = vpop.f32.mrb[0].mxu0
  %v1409 = vadd.f32 %v1120, %v1408
  %v1410 = vpop.f32.mrb[0].mxu0
  %1411 = vmatprep.mubr.bf16.mxu0 0
  %1412 = vmatmul.mubr.bf16.gmra.mrb[0].mxu0 %v885
  %v1413 = vpop.f32.mrb[0].mxu0
  %v1414 = vadd.f32 %v1125, %v1413
  %v1415 = vpop.f32.mrb[0].mxu0
  %v1416 = vpop.f32.mrb[0].mxu0
  %v1417 = vadd.f32 %v1128, %v1416
  %v1418 = vpop.f32.mrb[0].mxu0
  %1419 = vmatprep.mubr.bf16.mxu0 0
  %1420 = vmatmul.mubr.bf16.gmra.mrb[0].mxu0 %v888
  %v1421 = vpop.f32.mrb[0].mxu0
  %v1422 = vadd.f32 %v1133, %v1421
  %v1423 = vpop.f32.mrb[0].mxu0
  %v1424 = vpop.f32.mrb[0].mxu0
  %v1425 = vadd.f32 %v1136, %v1424
  %v1426 = vpop.f32.mrb[0].mxu0
  %1427 = vmatprep.mubr.bf16.mxu0 0
  %1428 = vmatmul.mubr.bf16.gmra.mrb[0].mxu0 %v891
  %v1429 = vpop.f32.mrb[0].mxu0
  %v1430 = vadd.f32 %v1141, %v1429
  %v1431 = vpop.f32.mrb[0].mxu0
  %v1432 = vpop.f32.mrb[0].mxu0
  %v1433 = vadd.f32 %v1144, %v1432
  %v1434 = vpop.f32.mrb[0].mxu0
  %1435 = vmatprep.mubr.bf16.mxu0 0
  %1436 = vmatmul.mubr.bf16.gmra.mrb[0].mxu0 %v894
  %v1437 = vpop.f32.mrb[0].mxu0
  %v1438 = vadd.f32 %v1149, %v1437
  %v1439 = vpop.f32.mrb[0].mxu0
  %v1440 = vpop.f32.mrb[0].mxu0
  %v1441 = vadd.f32 %v1152, %v1440
  %v1442 = vpop.f32.mrb[0].mxu0
  %1443 = vmatprep.mubr.bf16.mxu0 0
  %1444 = vmatmul.mubr.bf16.gmra.mrb[0].mxu0 %v897
  %v1445 = vpop.f32.mrb[0].mxu0
  %v1446 = vadd.f32 %v1157, %v1445
  %v1447 = vpop.f32.mrb[0].mxu0
  %v1448 = vpop.f32.mrb[0].mxu0
  %v1449 = vadd.f32 %v1160, %v1448
  %v1450 = vpop.f32.mrb[0].mxu0
  %1451 = vmatprep.mubr.bf16.mxu0 0
  %1452 = vmatmul.mubr.bf16.gmra.mrb[0].mxu0 %v900
  %v1453 = vpop.f32.mrb[0].mxu0
  %v1454 = vadd.f32 %v1165, %v1453
  %v1455 = vpop.f32.mrb[0].mxu0
  %v1456 = vpop.f32.mrb[0].mxu0
  %v1457 = vadd.f32 %v1168, %v1456
  %v1458 = vpop.f32.mrb[0].mxu0
  %1459 = vmatprep.mubr.bf16.mxu0 0
  %1460 = vmatmul.mubr.bf16.gmra.mrb[0].mxu0 %v903
  %v1461 = vpop.f32.mrb[0].mxu0
  %v1462 = vadd.f32 %v1173, %v1461
  %v1463 = vpop.f32.mrb[0].mxu0
  %v1464 = vpop.f32.mrb[0].mxu0
  %v1465 = vadd.f32 %v1176, %v1464
  %v1466 = vpop.f32.mrb[0].mxu0
  %1467 = vmatprep.mubr.bf16.mxu0 0
  %1468 = vmatmul.mubr.bf16.gmra.mrb[0].mxu0 %v906
  %v1469 = vpop.f32.mrb[0].mxu0
  %v1470 = vadd.f32 %v1181, %v1469
  %v1471 = vpop.f32.mrb[0].mxu0
  %v1472 = vpop.f32.mrb[0].mxu0
  %v1473 = vadd.f32 %v1184, %v1472
  %v1474 = vpop.f32.mrb[0].mxu0
  %1475 = vmatprep.mubr.bf16.mxu0 0
  %1476 = vmatmul.mubr.bf16.gmra.mrb[0].mxu0 %v909
  %v1477 = vpop.f32.mrb[0].mxu0
  %v1478 = vadd.f32 %v1189, %v1477
  %v1479 = vpop.f32.mrb[0].mxu0
  %v1480 = vpop.f32.mrb[0].mxu0
  %v1481 = vadd.f32 %v1192, %v1480
  %v1482 = vpop.f32.mrb[0].mxu0
  %1483 = vmatprep.mubr.bf16.mxu0 0
  %1484 = vmatmul.mubr.bf16.gmra.mrb[0].mxu0 %v912
  %v1485 = vpop.f32.mrb[0].mxu0
  %v1486 = vadd.f32 %v1197, %v1485
  %v1487 = vpop.f32.mrb[0].mxu0
  %v1488 = vpop.f32.mrb[0].mxu0
  %v1489 = vadd.f32 %v1200, %v1488
  %v1490 = vpop.f32.mrb[0].mxu0
  %1491 = vdwg.mxu0
  %v1492 = vmax.f32 %v1238, 0.0
  %v1493 = vmax.f32 %v1241, 0.0
  %v1494 = vmax.f32 %v1246, 0.0
  %v1495 = vmax.f32 %v1249, 0.0
  %v1496 = vmax.f32 %v1254, 0.0
  %v1497 = vmax.f32 %v1257, 0.0
  %v1498 = vmax.f32 %v1262, 0.0
  %v1499 = vmax.f32 %v1265, 0.0
  %v1500 = vmax.f32 %v1270, 0.0
  %v1501 = vmax.f32 %v1273, 0.0
  %v1502 = vmax.f32 %v1278, 0.0
  %v1503 = vmax.f32 %v1281, 0.0
  %v1504 = vmax.f32 %v1286, 0.0
  %v1505 = vmax.f32 %v1289, 0.0
  %v1506 = vmax.f32 %v1294, 0.0
  %v1507 = vmax.f32 %v1297, 0.0
  %v1508 = vmax.f32 %v1302, 0.0
  %v1509 = vmax.f32 %v1305, 0.0
  %v1510 = vmax.f32 %v1310, 0.0
  %v1511 = vmax.f32 %v1313, 0.0
  %v1512 = vmax.f32 %v1318, 0.0
  %v1513 = vmax.f32 %v1321, 0.0
  %v1514 = vmax.f32 %v1326, 0.0
  %v1515 = vmax.f32 %v1329, 0.0
  %v1516 = vmax.f32 %v1334, 0.0
  %v1517 = vmax.f32 %v1337, 0.0
  %v1518 = vmax.f32 %v1342, 0.0
  %v1519 = vmax.f32 %v1345, 0.0
  %v1520 = vmax.f32 %v1350, 0.0
  %v1521 = vmax.f32 %v1353, 0.0
  %v1522 = vmax.f32 %v1358, 0.0
  %v1523 = vmax.f32 %v1361, 0.0
  %v1524 = vmax.f32 %v1366, 0.0
  %v1525 = vmax.f32 %v1369, 0.0
  %v1526 = vmax.f32 %v1374, 0.0
  %v1527 = vmax.f32 %v1377, 0.0
  %v1528 = vmax.f32 %v1382, 0.0
  %v1529 = vmax.f32 %v1385, 0.0
  %v1530 = vmax.f32 %v1390, 0.0
  %v1531 = vmax.f32 %v1393, 0.0
  %v1532 = vmax.f32 %v1398, 0.0
  %v1533 = vmax.f32 %v1401, 0.0
  %v1534 = vmax.f32 %v1406, 0.0
  %v1535 = vmax.f32 %v1409, 0.0
  %v1536 = vmax.f32 %v1414, 0.0
  %v1537 = vmax.f32 %v1417, 0.0
  %v1538 = vmax.f32 %v1422, 0.0
  %v1539 = vmax.f32 %v1425, 0.0
  %v1540 = vmax.f32 %v1430, 0.0
  %v1541 = vmax.f32 %v1433, 0.0
  %v1542 = vmax.f32 %v1438, 0.0
  %v1543 = vmax.f32 %v1441, 0.0
  %v1544 = vmax.f32 %v1446, 0.0
  %v1545 = vmax.f32 %v1449, 0.0
  %v1546 = vmax.f32 %v1454, 0.0
  %v1547 = vmax.f32 %v1457, 0.0
  %v1548 = vmax.f32 %v1462, 0.0
  %v1549 = vmax.f32 %v1465, 0.0
  %v1550 = vmax.f32 %v1470, 0.0
  %v1551 = vmax.f32 %v1473, 0.0
  %v1552 = vmax.f32 %v1478, 0.0
  %v1553 = vmax.f32 %v1481, 0.0
  %v1554 = vmax.f32 %v1486, 0.0
  %v1555 = vmax.f32 %v1489, 0.0
  %v1556 = vpack.c.bf16 %v1493, %v1492
  %v1557 = vpack.c.bf16 %v1495, %v1494
  %v1558 = vpack.c.bf16 %v1497, %v1496
  %v1559 = vpack.c.bf16 %v1499, %v1498
  %v1560 = vpack.c.bf16 %v1501, %v1500
  %v1561 = vpack.c.bf16 %v1503, %v1502
  %v1562 = vpack.c.bf16 %v1505, %v1504
  %v1563 = vpack.c.bf16 %v1507, %v1506
  %v1564 = vpack.c.bf16 %v1509, %v1508
  %v1565 = vpack.c.bf16 %v1511, %v1510
  %v1566 = vpack.c.bf16 %v1513, %v1512
  %v1567 = vpack.c.bf16 %v1515, %v1514
  %v1568 = vpack.c.bf16 %v1517, %v1516
  %v1569 = vpack.c.bf16 %v1519, %v1518
  %v1570 = vpack.c.bf16 %v1521, %v1520
  %v1571 = vpack.c.bf16 %v1523, %v1522
  %v1572 = vpack.c.bf16 %v1525, %v1524
  %v1573 = vpack.c.bf16 %v1527, %v1526
  %v1574 = vpack.c.bf16 %v1529, %v1528
  %v1575 = vpack.c.bf16 %v1531, %v1530
  %v1576 = vpack.c.bf16 %v1533, %v1532
  %v1577 = vpack.c.bf16 %v1535, %v1534
  %v1578 = vpack.c.bf16 %v1537, %v1536
  %v1579 = vpack.c.bf16 %v1539, %v1538
  %v1580 = vpack.c.bf16 %v1541, %v1540
  %v1581 = vpack.c.bf16 %v1543, %v1542
  %v1582 = vpack.c.bf16 %v1545, %v1544
  %v1583 = vpack.c.bf16 %v1547, %v1546
  %v1584 = vpack.c.bf16 %v1549, %v1548
  %v1585 = vpack.c.bf16 %v1551, %v1550
  %v1586 = vpack.c.bf16 %v1553, %v1552
  %v1587 = vpack.c.bf16 %v1555, %v1554
  %v1588 = vld [vmem:[%s4] sm:$0xf]
  %v1589 = vld [vmem:[%s4 + $0x4] sm:$0xf]
  %v1590 = vld [vmem:[%s4 + $0x8] sm:$0xf]
  %v1591 = vld [vmem:[%s4 + $0xc] sm:$0xf]
  %v1592 = vld [vmem:[%s4 + $0x10] sm:$0xf]
  %v1593 = vld [vmem:[%s4 + $0x14] sm:$0xf]
  %v1594 = vld [vmem:[%s4 + $0x18] sm:$0xf]
  %v1595 = vld [vmem:[%s4 + $0x1c] sm:$0xf]
  %v1596 = vld [vmem:[%s5] sm:$0x1]
  %v1598 = vlaneseq
  %v1599 = vshrl.u32 %v1598, 7
  %v1600 = vsub.s32 0, %v1599
  %v1601 = vrot.slane %v1596, %v1600
  %v1611 = vunpack.c.l.b16 %v1588
  %v1612 = vunpack.c.l.b16 %v1589
  %v1613 = vunpack.c.l.b16 %v1590
  %v1614 = vunpack.c.l.b16 %v1591
  %v1615 = vunpack.c.l.b16 %v1592
  %v1616 = vunpack.c.l.b16 %v1593
  %v1617 = vunpack.c.l.b16 %v1594
  %v1618 = vunpack.c.l.b16 %v1595
  %v1619 = vpack.c.b16 %v1612, %v1611
  %v1620 = vpack.c.b16 %v1614, %v1613
  %v1621 = vpack.c.b16 %v1616, %v1615
  %v1622 = vpack.c.b16 %v1618, %v1617
  %v1628 = vsel %vm817, %v1556, 0
  %v1631 = vsel %vm817, %v1557, 0
  %v1634 = vsel %vm817, %v1558, 0
  %v1637 = vsel %vm817, %v1559, 0
  %v1640 = vsel %vm817, %v1560, 0
  %v1643 = vsel %vm817, %v1561, 0
  %v1646 = vsel %vm817, %v1562, 0
  %v1649 = vsel %vm817, %v1563, 0
  %v1652 = vsel %vm817, %v1564, 0
  %v1655 = vsel %vm817, %v1565, 0
  %v1658 = vsel %vm817, %v1566, 0
  %v1661 = vsel %vm817, %v1567, 0
  %v1664 = vsel %vm817, %v1568, 0
  %v1667 = vsel %vm817, %v1569, 0
  %v1670 = vsel %vm817, %v1570, 0
  %v1673 = vsel %vm817, %v1571, 0
  %v1676 = vsel %vm817, %v1572, 0
  %v1679 = vsel %vm817, %v1573, 0
  %v1682 = vsel %vm817, %v1574, 0
  %v1685 = vsel %vm817, %v1575, 0
  %v1688 = vsel %vm817, %v1576, 0
  %v1691 = vsel %vm817, %v1577, 0
  %v1694 = vsel %vm817, %v1578, 0
  %v1697 = vsel %vm817, %v1579, 0
  %v1700 = vsel %vm817, %v1580, 0
  %v1703 = vsel %vm817, %v1581, 0
  %v1706 = vsel %vm817, %v1582, 0
  %v1709 = vsel %vm817, %v1583, 0
  %v1712 = vsel %vm817, %v1584, 0
  %v1715 = vsel %vm817, %v1585, 0
  %v1718 = vsel %vm817, %v1586, 0
  %v1721 = vsel %vm817, %v1587, 0
  %1723 = vmatprep.subr.bf16.mxu0 0
  %1724 = vmatpush1.bf16.msra.mxu0 %v1619
  %1725 = vmatprep.subr.bf16.mxu0 0
  %1726 = vmatpush1.bf16.msra.mxu0 %v1620
  %1727 = vmatprep.subr.bf16.mxu0 0
  %1728 = vmatpush1.bf16.msra.mxu0 %v1621
  %1729 = vmatprep.subr.bf16.mxu0 0
  %1730 = vmatpush1.bf16.msra.mxu0 %v1622
  %1731 = vmatprep.subr.bf16.mxu0 0
  %1732 = vmatpush1.bf16.msra.mxu0 0
  %1733 = vmatprep.subr.bf16.mxu0 0
  %1734 = vmatpush1.bf16.msra.mxu0 0
  %1735 = vmatprep.subr.bf16.mxu0 0
  %1736 = vmatpush1.bf16.msra.mxu0 0
  %1737 = vmatprep.subr.bf16.mxu0 0
  %1738 = vmatpush1.bf16.msra.mxu0 0
  %1739 = vmatprep.subr.bf16.mxu0 0
  %1740 = vmatpush1.bf16.msra.mxu0 0
  %1741 = vmatprep.subr.bf16.mxu0 0
  %1742 = vmatpush1.bf16.msra.mxu0 0
  %1743 = vmatprep.subr.bf16.mxu0 0
  %1744 = vmatpush1.bf16.msra.mxu0 0
  %1745 = vmatprep.subr.bf16.mxu0 0
  %1746 = vmatpush1.bf16.msra.mxu0 0
  %1747 = vmatprep.subr.bf16.mxu0 0
  %1748 = vmatpush1.bf16.msra.mxu0 0
  %1749 = vmatprep.subr.bf16.mxu0 0
  %1750 = vmatpush1.bf16.msra.mxu0 0
  %1751 = vmatprep.subr.bf16.mxu0 0
  %1752 = vmatpush1.bf16.msra.mxu0 0
  %1753 = vmatprep.subr.bf16.mxu0 0
  %1754 = vmatpush1.bf16.msra.mxu0 0
  %1755 = vmatprep.mubr.bf16.mxu0 0
  %1756 = vmatmul.mubr.bf16.gmra.mrb[0].mxu0 %v1628
  %v1757 = vpop.f32.mrb[0].mxu0
  %v1758 = vadd.f32 %v1601, %v1757
  %v1759 = vpop.f32.mrb[0].mxu0
  %v1760 = vpop.f32.mrb[0].mxu0
  %v1761 = vadd.f32 %v1601, %v1760
  %v1762 = vpop.f32.mrb[0].mxu0
  %1763 = vmatprep.mubr.bf16.mxu0 0
  %1764 = vmatmul.mubr.bf16.gmra.mrb[0].mxu0 %v1631
  %v1765 = vpop.f32.mrb[0].mxu0
  %v1766 = vadd.f32 %v1601, %v1765
  %v1767 = vpop.f32.mrb[0].mxu0
  %v1768 = vpop.f32.mrb[0].mxu0
  %v1769 = vadd.f32 %v1601, %v1768
  %v1770 = vpop.f32.mrb[0].mxu0
  %1771 = vmatprep.mubr.bf16.mxu0 0
  %1772 = vmatmul.mubr.bf16.gmra.mrb[0].mxu0 %v1634
  %v1773 = vpop.f32.mrb[0].mxu0
  %v1774 = vadd.f32 %v1601, %v1773
  %v1775 = vpop.f32.mrb[0].mxu0
  %v1776 = vpop.f32.mrb[0].mxu0
  %v1777 = vadd.f32 %v1601, %v1776
  %v1778 = vpop.f32.mrb[0].mxu0
  %1779 = vmatprep.mubr.bf16.mxu0 0
  %1780 = vmatmul.mubr.bf16.gmra.mrb[0].mxu0 %v1637
  %v1781 = vpop.f32.mrb[0].mxu0
  %v1782 = vadd.f32 %v1601, %v1781
  %v1783 = vpop.f32.mrb[0].mxu0
  %v1784 = vpop.f32.mrb[0].mxu0
  %v1785 = vadd.f32 %v1601, %v1784
  %v1786 = vpop.f32.mrb[0].mxu0
  %1787 = vmatprep.mubr.bf16.mxu0 0
  %1788 = vmatmul.mubr.bf16.gmra.mrb[0].mxu0 %v1640
  %v1789 = vpop.f32.mrb[0].mxu0
  %v1790 = vadd.f32 %v1601, %v1789
  %v1791 = vpop.f32.mrb[0].mxu0
  %v1792 = vpop.f32.mrb[0].mxu0
  %v1793 = vadd.f32 %v1601, %v1792
  %v1794 = vpop.f32.mrb[0].mxu0
  %1795 = vmatprep.mubr.bf16.mxu0 0
  %1796 = vmatmul.mubr.bf16.gmra.mrb[0].mxu0 %v1643
  %v1797 = vpop.f32.mrb[0].mxu0
  %v1798 = vadd.f32 %v1601, %v1797
  %v1799 = vpop.f32.mrb[0].mxu0
  %v1800 = vpop.f32.mrb[0].mxu0
  %v1801 = vadd.f32 %v1601, %v1800
  %v1802 = vpop.f32.mrb[0].mxu0
  %1803 = vmatprep.mubr.bf16.mxu0 0
  %1804 = vmatmul.mubr.bf16.gmra.mrb[0].mxu0 %v1646
  %v1805 = vpop.f32.mrb[0].mxu0
  %v1806 = vadd.f32 %v1601, %v1805
  %v1807 = vpop.f32.mrb[0].mxu0
  %v1808 = vpop.f32.mrb[0].mxu0
  %v1809 = vadd.f32 %v1601, %v1808
  %v1810 = vpop.f32.mrb[0].mxu0
  %1811 = vmatprep.mubr.bf16.mxu0 0
  %1812 = vmatmul.mubr.bf16.gmra.mrb[0].mxu0 %v1649
  %v1813 = vpop.f32.mrb[0].mxu0
  %v1814 = vadd.f32 %v1601, %v1813
  %v1815 = vpop.f32.mrb[0].mxu0
  %v1816 = vpop.f32.mrb[0].mxu0
  %v1817 = vadd.f32 %v1601, %v1816
  %v1818 = vpop.f32.mrb[0].mxu0
  %1819 = vmatprep.mubr.bf16.mxu0 0
  %1820 = vmatmul.mubr.bf16.gmra.mrb[0].mxu0 %v1652
  %v1821 = vpop.f32.mrb[0].mxu0
  %v1822 = vadd.f32 %v1601, %v1821
  %v1823 = vpop.f32.mrb[0].mxu0
  %v1824 = vpop.f32.mrb[0].mxu0
  %v1825 = vadd.f32 %v1601, %v1824
  %v1826 = vpop.f32.mrb[0].mxu0
  %1827 = vmatprep.mubr.bf16.mxu0 0
  %1828 = vmatmul.mubr.bf16.gmra.mrb[0].mxu0 %v1655
  %v1829 = vpop.f32.mrb[0].mxu0
  %v1830 = vadd.f32 %v1601, %v1829
  %v1831 = vpop.f32.mrb[0].mxu0
  %v1832 = vpop.f32.mrb[0].mxu0
  %v1833 = vadd.f32 %v1601, %v1832
  %v1834 = vpop.f32.mrb[0].mxu0
  %1835 = vmatprep.mubr.bf16.mxu0 0
  %1836 = vmatmul.mubr.bf16.gmra.mrb[0].mxu0 %v1658
  %v1837 = vpop.f32.mrb[0].mxu0
  %v1838 = vadd.f32 %v1601, %v1837
  %v1839 = vpop.f32.mrb[0].mxu0
  %v1840 = vpop.f32.mrb[0].mxu0
  %v1841 = vadd.f32 %v1601, %v1840
  %v1842 = vpop.f32.mrb[0].mxu0
  %1843 = vmatprep.mubr.bf16.mxu0 0
  %1844 = vmatmul.mubr.bf16.gmra.mrb[0].mxu0 %v1661
  %v1845 = vpop.f32.mrb[0].mxu0
  %v1846 = vadd.f32 %v1601, %v1845
  %v1847 = vpop.f32.mrb[0].mxu0
  %v1848 = vpop.f32.mrb[0].mxu0
  %v1849 = vadd.f32 %v1601, %v1848
  %v1850 = vpop.f32.mrb[0].mxu0
  %1851 = vmatprep.mubr.bf16.mxu0 0
  %1852 = vmatmul.mubr.bf16.gmra.mrb[0].mxu0 %v1664
  %v1853 = vpop.f32.mrb[0].mxu0
  %v1854 = vadd.f32 %v1601, %v1853
  %v1855 = vpop.f32.mrb[0].mxu0
  %v1856 = vpop.f32.mrb[0].mxu0
  %v1857 = vadd.f32 %v1601, %v1856
  %v1858 = vpop.f32.mrb[0].mxu0
  %1859 = vmatprep.mubr.bf16.mxu0 0
  %1860 = vmatmul.mubr.bf16.gmra.mrb[0].mxu0 %v1667
  %v1861 = vpop.f32.mrb[0].mxu0
  %v1862 = vadd.f32 %v1601, %v1861
  %v1863 = vpop.f32.mrb[0].mxu0
  %v1864 = vpop.f32.mrb[0].mxu0
  %v1865 = vadd.f32 %v1601, %v1864
  %v1866 = vpop.f32.mrb[0].mxu0
  %1867 = vmatprep.mubr.bf16.mxu0 0
  %1868 = vmatmul.mubr.bf16.gmra.mrb[0].mxu0 %v1670
  %v1869 = vpop.f32.mrb[0].mxu0
  %v1870 = vadd.f32 %v1601, %v1869
  %v1871 = vpop.f32.mrb[0].mxu0
  %v1872 = vpop.f32.mrb[0].mxu0
  %v1873 = vadd.f32 %v1601, %v1872
  %v1874 = vpop.f32.mrb[0].mxu0
  %1875 = vmatprep.mubr.bf16.mxu0 0
  %1876 = vmatmul.mubr.bf16.gmra.mrb[0].mxu0 %v1673
  %v1877 = vpop.f32.mrb[0].mxu0
  %v1878 = vadd.f32 %v1601, %v1877
  %v1879 = vpop.f32.mrb[0].mxu0
  %v1880 = vpop.f32.mrb[0].mxu0
  %v1881 = vadd.f32 %v1601, %v1880
  %v1882 = vpop.f32.mrb[0].mxu0
  %1883 = vmatprep.mubr.bf16.mxu0 0
  %1884 = vmatmul.mubr.bf16.gmra.mrb[0].mxu0 %v1676
  %v1885 = vpop.f32.mrb[0].mxu0
  %v1886 = vadd.f32 %v1601, %v1885
  %v1887 = vpop.f32.mrb[0].mxu0
  %v1888 = vpop.f32.mrb[0].mxu0
  %v1889 = vadd.f32 %v1601, %v1888
  %v1890 = vpop.f32.mrb[0].mxu0
  %1891 = vmatprep.mubr.bf16.mxu0 0
  %1892 = vmatmul.mubr.bf16.gmra.mrb[0].mxu0 %v1679
  %v1893 = vpop.f32.mrb[0].mxu0
  %v1894 = vadd.f32 %v1601, %v1893
  %v1895 = vpop.f32.mrb[0].mxu0
  %v1896 = vpop.f32.mrb[0].mxu0
  %v1897 = vadd.f32 %v1601, %v1896
  %v1898 = vpop.f32.mrb[0].mxu0
  %1899 = vmatprep.mubr.bf16.mxu0 0
  %1900 = vmatmul.mubr.bf16.gmra.mrb[0].mxu0 %v1682
  %v1901 = vpop.f32.mrb[0].mxu0
  %v1902 = vadd.f32 %v1601, %v1901
  %v1903 = vpop.f32.mrb[0].mxu0
  %v1904 = vpop.f32.mrb[0].mxu0
  %v1905 = vadd.f32 %v1601, %v1904
  %v1906 = vpop.f32.mrb[0].mxu0
  %1907 = vmatprep.mubr.bf16.mxu0 0
  %1908 = vmatmul.mubr.bf16.gmra.mrb[0].mxu0 %v1685
  %v1909 = vpop.f32.mrb[0].mxu0
  %v1910 = vadd.f32 %v1601, %v1909
  %v1911 = vpop.f32.mrb[0].mxu0
  %v1912 = vpop.f32.mrb[0].mxu0
  %v1913 = vadd.f32 %v1601, %v1912
  %v1914 = vpop.f32.mrb[0].mxu0
  %1915 = vmatprep.mubr.bf16.mxu0 0
  %1916 = vmatmul.mubr.bf16.gmra.mrb[0].mxu0 %v1688
  %v1917 = vpop.f32.mrb[0].mxu0
  %v1918 = vadd.f32 %v1601, %v1917
  %v1919 = vpop.f32.mrb[0].mxu0
  %v1920 = vpop.f32.mrb[0].mxu0
  %v1921 = vadd.f32 %v1601, %v1920
  %v1922 = vpop.f32.mrb[0].mxu0
  %1923 = vmatprep.mubr.bf16.mxu0 0
  %1924 = vmatmul.mubr.bf16.gmra.mrb[0].mxu0 %v1691
  %v1925 = vpop.f32.mrb[0].mxu0
  %v1926 = vadd.f32 %v1601, %v1925
  %v1927 = vpop.f32.mrb[0].mxu0
  %v1928 = vpop.f32.mrb[0].mxu0
  %v1929 = vadd.f32 %v1601, %v1928
  %v1930 = vpop.f32.mrb[0].mxu0
  %1931 = vmatprep.mubr.bf16.mxu0 0
  %1932 = vmatmul.mubr.bf16.gmra.mrb[0].mxu0 %v1694
  %v1933 = vpop.f32.mrb[0].mxu0
  %v1934 = vadd.f32 %v1601, %v1933
  %v1935 = vpop.f32.mrb[0].mxu0
  %v1936 = vpop.f32.mrb[0].mxu0
  %v1937 = vadd.f32 %v1601, %v1936
  %v1938 = vpop.f32.mrb[0].mxu0
  %1939 = vmatprep.mubr.bf16.mxu0 0
  %1940 = vmatmul.mubr.bf16.gmra.mrb[0].mxu0 %v1697
  %v1941 = vpop.f32.mrb[0].mxu0
  %v1942 = vadd.f32 %v1601, %v1941
  %v1943 = vpop.f32.mrb[0].mxu0
  %v1944 = vpop.f32.mrb[0].mxu0
  %v1945 = vadd.f32 %v1601, %v1944
  %v1946 = vpop.f32.mrb[0].mxu0
  %1947 = vmatprep.mubr.bf16.mxu0 0
  %1948 = vmatmul.mubr.bf16.gmra.mrb[0].mxu0 %v1700
  %v1949 = vpop.f32.mrb[0].mxu0
  %v1950 = vadd.f32 %v1601, %v1949
  %v1951 = vpop.f32.mrb[0].mxu0
  %v1952 = vpop.f32.mrb[0].mxu0
  %v1953 = vadd.f32 %v1601, %v1952
  %v1954 = vpop.f32.mrb[0].mxu0
  %1955 = vmatprep.mubr.bf16.mxu0 0
  %1956 = vmatmul.mubr.bf16.gmra.mrb[0].mxu0 %v1703
  %v1957 = vpop.f32.mrb[0].mxu0
  %v1958 = vadd.f32 %v1601, %v1957
  %v1959 = vpop.f32.mrb[0].mxu0
  %v1960 = vpop.f32.mrb[0].mxu0
  %v1961 = vadd.f32 %v1601, %v1960
  %v1962 = vpop.f32.mrb[0].mxu0
  %1963 = vmatprep.mubr.bf16.mxu0 0
  %1964 = vmatmul.mubr.bf16.gmra.mrb[0].mxu0 %v1706
  %v1965 = vpop.f32.mrb[0].mxu0
  %v1966 = vadd.f32 %v1601, %v1965
  %v1967 = vpop.f32.mrb[0].mxu0
  %v1968 = vpop.f32.mrb[0].mxu0
  %v1969 = vadd.f32 %v1601, %v1968
  %v1970 = vpop.f32.mrb[0].mxu0
  %1971 = vmatprep.mubr.bf16.mxu0 0
  %1972 = vmatmul.mubr.bf16.gmra.mrb[0].mxu0 %v1709
  %v1973 = vpop.f32.mrb[0].mxu0
  %v1974 = vadd.f32 %v1601, %v1973
  %v1975 = vpop.f32.mrb[0].mxu0
  %v1976 = vpop.f32.mrb[0].mxu0
  %v1977 = vadd.f32 %v1601, %v1976
  %v1978 = vpop.f32.mrb[0].mxu0
  %1979 = vmatprep.mubr.bf16.mxu0 0
  %1980 = vmatmul.mubr.bf16.gmra.mrb[0].mxu0 %v1712
  %v1981 = vpop.f32.mrb[0].mxu0
  %v1982 = vadd.f32 %v1601, %v1981
  %v1983 = vpop.f32.mrb[0].mxu0
  %v1984 = vpop.f32.mrb[0].mxu0
  %v1985 = vadd.f32 %v1601, %v1984
  %v1986 = vpop.f32.mrb[0].mxu0
  %1987 = vmatprep.mubr.bf16.mxu0 0
  %1988 = vmatmul.mubr.bf16.gmra.mrb[0].mxu0 %v1715
  %v1989 = vpop.f32.mrb[0].mxu0
  %v1990 = vadd.f32 %v1601, %v1989
  %v1991 = vpop.f32.mrb[0].mxu0
  %v1992 = vpop.f32.mrb[0].mxu0
  %v1993 = vadd.f32 %v1601, %v1992
  %v1994 = vpop.f32.mrb[0].mxu0
  %1995 = vmatprep.mubr.bf16.mxu0 0
  %1996 = vmatmul.mubr.bf16.gmra.mrb[0].mxu0 %v1718
  %v1997 = vpop.f32.mrb[0].mxu0
  %v1998 = vadd.f32 %v1601, %v1997
  %v1999 = vpop.f32.mrb[0].mxu0
  %v2000 = vpop.f32.mrb[0].mxu0
  %v2001 = vadd.f32 %v1601, %v2000
  %v2002 = vpop.f32.mrb[0].mxu0
  %2003 = vmatprep.mubr.bf16.mxu0 0
  %2004 = vmatmul.mubr.bf16.gmra.mrb[0].mxu0 %v1721
  %v2005 = vpop.f32.mrb[0].mxu0
  %v2006 = vadd.f32 %v1601, %v2005
  %v2007 = vpop.f32.mrb[0].mxu0
  %v2008 = vpop.f32.mrb[0].mxu0
  %v2009 = vadd.f32 %v1601, %v2008
  %v2010 = vpop.f32.mrb[0].mxu0
  %2011 = vdwg.mxu0
  %v2012 = vadd.f32 %v1758, -1.0
  %v2013 = vadd.f32 %v1761, -1.0
  %v2014 = vadd.f32 %v1766, -1.0
  %v2015 = vadd.f32 %v1769, -1.0
  %v2016 = vadd.f32 %v1774, -1.0
  %v2017 = vadd.f32 %v1777, -1.0
  %v2018 = vadd.f32 %v1782, -1.0
  %v2019 = vadd.f32 %v1785, -1.0
  %v2020 = vadd.f32 %v1790, -1.0
  %v2021 = vadd.f32 %v1793, -1.0
  %v2022 = vadd.f32 %v1798, -1.0
  %v2023 = vadd.f32 %v1801, -1.0
  %v2024 = vadd.f32 %v1806, -1.0
  %v2025 = vadd.f32 %v1809, -1.0
  %v2026 = vadd.f32 %v1814, -1.0
  %v2027 = vadd.f32 %v1817, -1.0
  %v2028 = vadd.f32 %v1822, -1.0
  %v2029 = vadd.f32 %v1825, -1.0
  %v2030 = vadd.f32 %v1830, -1.0
  %v2031 = vadd.f32 %v1833, -1.0
  %v2032 = vadd.f32 %v1838, -1.0
  %v2033 = vadd.f32 %v1841, -1.0
  %v2034 = vadd.f32 %v1846, -1.0
  %v2035 = vadd.f32 %v1849, -1.0
  %v2036 = vadd.f32 %v1854, -1.0
  %v2037 = vadd.f32 %v1857, -1.0
  %v2038 = vadd.f32 %v1862, -1.0
  %v2039 = vadd.f32 %v1865, -1.0
  %v2040 = vadd.f32 %v1870, -1.0
  %v2041 = vadd.f32 %v1873, -1.0
  %v2042 = vadd.f32 %v1878, -1.0
  %v2043 = vadd.f32 %v1881, -1.0
  %v2044 = vadd.f32 %v1886, -1.0
  %v2045 = vadd.f32 %v1889, -1.0
  %v2046 = vadd.f32 %v1894, -1.0
  %v2047 = vadd.f32 %v1897, -1.0
  %v2048 = vadd.f32 %v1902, -1.0
  %v2049 = vadd.f32 %v1905, -1.0
  %v2050 = vadd.f32 %v1910, -1.0
  %v2051 = vadd.f32 %v1913, -1.0
  %v2052 = vadd.f32 %v1918, -1.0
  %v2053 = vadd.f32 %v1921, -1.0
  %v2054 = vadd.f32 %v1926, -1.0
  %v2055 = vadd.f32 %v1929, -1.0
  %v2056 = vadd.f32 %v1934, -1.0
  %v2057 = vadd.f32 %v1937, -1.0
  %v2058 = vadd.f32 %v1942, -1.0
  %v2059 = vadd.f32 %v1945, -1.0
  %v2060 = vadd.f32 %v1950, -1.0
  %v2061 = vadd.f32 %v1953, -1.0
  %v2062 = vadd.f32 %v1958, -1.0
  %v2063 = vadd.f32 %v1961, -1.0
  %v2064 = vadd.f32 %v1966, -1.0
  %v2065 = vadd.f32 %v1969, -1.0
  %v2066 = vadd.f32 %v1974, -1.0
  %v2067 = vadd.f32 %v1977, -1.0
  %v2068 = vadd.f32 %v1982, -1.0
  %v2069 = vadd.f32 %v1985, -1.0
  %v2070 = vadd.f32 %v1990, -1.0
  %v2071 = vadd.f32 %v1993, -1.0
  %v2072 = vadd.f32 %v1998, -1.0
  %v2073 = vadd.f32 %v2001, -1.0
  %v2074 = vadd.f32 %v2006, -1.0
  %v2075 = vadd.f32 %v2009, -1.0
  %v2076 = vmax.f32 %v2012, 0.0
  %v2077 = vmax.f32 %v2013, 0.0
  %v2078 = vmax.f32 %v2014, 0.0
  %v2079 = vmax.f32 %v2015, 0.0
  %v2080 = vmax.f32 %v2016, 0.0
  %v2081 = vmax.f32 %v2017, 0.0
  %v2082 = vmax.f32 %v2018, 0.0
  %v2083 = vmax.f32 %v2019, 0.0
  %v2084 = vmax.f32 %v2020, 0.0
  %v2085 = vmax.f32 %v2021, 0.0
  %v2086 = vmax.f32 %v2022, 0.0
  %v2087 = vmax.f32 %v2023, 0.0
  %v2088 = vmax.f32 %v2024, 0.0
  %v2089 = vmax.f32 %v2025, 0.0
  %v2090 = vmax.f32 %v2026, 0.0
  %v2091 = vmax.f32 %v2027, 0.0
  %v2092 = vmax.f32 %v2028, 0.0
  %v2093 = vmax.f32 %v2029, 0.0
  %v2094 = vmax.f32 %v2030, 0.0
  %v2095 = vmax.f32 %v2031, 0.0
  %v2096 = vmax.f32 %v2032, 0.0
  %v2097 = vmax.f32 %v2033, 0.0
  %v2098 = vmax.f32 %v2034, 0.0
  %v2099 = vmax.f32 %v2035, 0.0
  %v2100 = vmax.f32 %v2036, 0.0
  %v2101 = vmax.f32 %v2037, 0.0
  %v2102 = vmax.f32 %v2038, 0.0
  %v2103 = vmax.f32 %v2039, 0.0
  %v2104 = vmax.f32 %v2040, 0.0
  %v2105 = vmax.f32 %v2041, 0.0
  %v2106 = vmax.f32 %v2042, 0.0
  %v2107 = vmax.f32 %v2043, 0.0
  %v2108 = vmax.f32 %v2044, 0.0
  %v2109 = vmax.f32 %v2045, 0.0
  %v2110 = vmax.f32 %v2046, 0.0
  %v2111 = vmax.f32 %v2047, 0.0
  %v2112 = vmax.f32 %v2048, 0.0
  %v2113 = vmax.f32 %v2049, 0.0
  %v2114 = vmax.f32 %v2050, 0.0
  %v2115 = vmax.f32 %v2051, 0.0
  %v2116 = vmax.f32 %v2052, 0.0
  %v2117 = vmax.f32 %v2053, 0.0
  %v2118 = vmax.f32 %v2054, 0.0
  %v2119 = vmax.f32 %v2055, 0.0
  %v2120 = vmax.f32 %v2056, 0.0
  %v2121 = vmax.f32 %v2057, 0.0
  %v2122 = vmax.f32 %v2058, 0.0
  %v2123 = vmax.f32 %v2059, 0.0
  %v2124 = vmax.f32 %v2060, 0.0
  %v2125 = vmax.f32 %v2061, 0.0
  %v2126 = vmax.f32 %v2062, 0.0
  %v2127 = vmax.f32 %v2063, 0.0
  %v2128 = vmax.f32 %v2064, 0.0
  %v2129 = vmax.f32 %v2065, 0.0
  %v2130 = vmax.f32 %v2066, 0.0
  %v2131 = vmax.f32 %v2067, 0.0
  %v2132 = vmax.f32 %v2068, 0.0
  %v2133 = vmax.f32 %v2069, 0.0
  %v2134 = vmax.f32 %v2070, 0.0
  %v2135 = vmax.f32 %v2071, 0.0
  %v2136 = vmax.f32 %v2072, 0.0
  %v2137 = vmax.f32 %v2073, 0.0
  %v2138 = vmax.f32 %v2074, 0.0
  %v2139 = vmax.f32 %v2075, 0.0
  %v2140 = vand.u32 2147483647, %v2012
  %v2141 = vand.u32 2147483647, %v2013
  %v2142 = vand.u32 2147483647, %v2014
  %v2143 = vand.u32 2147483647, %v2015
  %v2144 = vand.u32 2147483647, %v2016
  %v2145 = vand.u32 2147483647, %v2017
  %v2146 = vand.u32 2147483647, %v2018
  %v2147 = vand.u32 2147483647, %v2019
  %v2148 = vand.u32 2147483647, %v2020
  %v2149 = vand.u32 2147483647, %v2021
  %v2150 = vand.u32 2147483647, %v2022
  %v2151 = vand.u32 2147483647, %v2023
  %v2152 = vand.u32 2147483647, %v2024
  %v2153 = vand.u32 2147483647, %v2025
  %v2154 = vand.u32 2147483647, %v2026
  %v2155 = vand.u32 2147483647, %v2027
  %v2156 = vand.u32 2147483647, %v2028
  %v2157 = vand.u32 2147483647, %v2029
  %v2158 = vand.u32 2147483647, %v2030
  %v2159 = vand.u32 2147483647, %v2031
  %v2160 = vand.u32 2147483647, %v2032
  %v2161 = vand.u32 2147483647, %v2033
  %v2162 = vand.u32 2147483647, %v2034
  %v2163 = vand.u32 2147483647, %v2035
  %v2164 = vand.u32 2147483647, %v2036
  %v2165 = vand.u32 2147483647, %v2037
  %v2166 = vand.u32 2147483647, %v2038
  %v2167 = vand.u32 2147483647, %v2039
  %v2168 = vand.u32 2147483647, %v2040
  %v2169 = vand.u32 2147483647, %v2041
  %v2170 = vand.u32 2147483647, %v2042
  %v2171 = vand.u32 2147483647, %v2043
  %v2172 = vand.u32 2147483647, %v2044
  %v2173 = vand.u32 2147483647, %v2045
  %v2174 = vand.u32 2147483647, %v2046
  %v2175 = vand.u32 2147483647, %v2047
  %v2176 = vand.u32 2147483647, %v2048
  %v2177 = vand.u32 2147483647, %v2049
  %v2178 = vand.u32 2147483647, %v2050
  %v2179 = vand.u32 2147483647, %v2051
  %v2180 = vand.u32 2147483647, %v2052
  %v2181 = vand.u32 2147483647, %v2053
  %v2182 = vand.u32 2147483647, %v2054
  %v2183 = vand.u32 2147483647, %v2055
  %v2184 = vand.u32 2147483647, %v2056
  %v2185 = vand.u32 2147483647, %v2057
  %v2186 = vand.u32 2147483647, %v2058
  %v2187 = vand.u32 2147483647, %v2059
  %v2188 = vand.u32 2147483647, %v2060
  %v2189 = vand.u32 2147483647, %v2061
  %v2190 = vand.u32 2147483647, %v2062
  %v2191 = vand.u32 2147483647, %v2063
  %v2192 = vand.u32 2147483647, %v2064
  %v2193 = vand.u32 2147483647, %v2065
  %v2194 = vand.u32 2147483647, %v2066
  %v2195 = vand.u32 2147483647, %v2067
  %v2196 = vand.u32 2147483647, %v2068
  %v2197 = vand.u32 2147483647, %v2069
  %v2198 = vand.u32 2147483647, %v2070
  %v2199 = vand.u32 2147483647, %v2071
  %v2200 = vand.u32 2147483647, %v2072
  %v2201 = vand.u32 2147483647, %v2073
  %v2202 = vand.u32 2147483647, %v2074
  %v2203 = vand.u32 2147483647, %v2075
  %v2204 = vsub.f32 0.0, %v2140
  %v2205 = vsub.f32 0.0, %v2141
  %v2206 = vsub.f32 0.0, %v2142
  %v2207 = vsub.f32 0.0, %v2143
  %v2208 = vsub.f32 0.0, %v2144
  %v2209 = vsub.f32 0.0, %v2145
  %v2210 = vsub.f32 0.0, %v2146
  %v2211 = vsub.f32 0.0, %v2147
  %v2212 = vsub.f32 0.0, %v2148
  %v2213 = vsub.f32 0.0, %v2149
  %v2214 = vsub.f32 0.0, %v2150
  %v2215 = vsub.f32 0.0, %v2151
  %v2216 = vsub.f32 0.0, %v2152
  %v2217 = vsub.f32 0.0, %v2153
  %v2218 = vsub.f32 0.0, %v2154
  %v2219 = vsub.f32 0.0, %v2155
  %v2220 = vsub.f32 0.0, %v2156
  %v2221 = vsub.f32 0.0, %v2157
  %v2222 = vsub.f32 0.0, %v2158
  %v2223 = vsub.f32 0.0, %v2159
  %v2224 = vsub.f32 0.0, %v2160
  %v2225 = vsub.f32 0.0, %v2161
  %v2226 = vsub.f32 0.0, %v2162
  %v2227 = vsub.f32 0.0, %v2163
  %v2228 = vsub.f32 0.0, %v2164
  %v2229 = vsub.f32 0.0, %v2165
  %v2230 = vsub.f32 0.0, %v2166
  %v2231 = vsub.f32 0.0, %v2167
  %v2232 = vsub.f32 0.0, %v2168
  %v2233 = vsub.f32 0.0, %v2169
  %v2234 = vsub.f32 0.0, %v2170
  %v2235 = vsub.f32 0.0, %v2171
  %v2236 = vsub.f32 0.0, %v2172
  %v2237 = vsub.f32 0.0, %v2173
  %v2238 = vsub.f32 0.0, %v2174
  %v2239 = vsub.f32 0.0, %v2175
  %v2240 = vsub.f32 0.0, %v2176
  %v2241 = vsub.f32 0.0, %v2177
  %v2242 = vsub.f32 0.0, %v2178
  %v2243 = vsub.f32 0.0, %v2179
  %v2244 = vsub.f32 0.0, %v2180
  %v2245 = vsub.f32 0.0, %v2181
  %v2246 = vsub.f32 0.0, %v2182
  %v2247 = vsub.f32 0.0, %v2183
  %v2248 = vsub.f32 0.0, %v2184
  %v2249 = vsub.f32 0.0, %v2185
  %v2250 = vsub.f32 0.0, %v2186
  %v2251 = vsub.f32 0.0, %v2187
  %v2252 = vsub.f32 0.0, %v2188
  %v2253 = vsub.f32 0.0, %v2189
  %v2254 = vsub.f32 0.0, %v2190
  %v2255 = vsub.f32 0.0, %v2191
  %v2256 = vsub.f32 0.0, %v2192
  %v2257 = vsub.f32 0.0, %v2193
  %v2258 = vsub.f32 0.0, %v2194
  %v2259 = vsub.f32 0.0, %v2195
  %v2260 = vsub.f32 0.0, %v2196
  %v2261 = vsub.f32 0.0, %v2197
  %v2262 = vsub.f32 0.0, %v2198
  %v2263 = vsub.f32 0.0, %v2199
  %v2264 = vsub.f32 0.0, %v2200
  %v2265 = vsub.f32 0.0, %v2201
  %v2266 = vsub.f32 0.0, %v2202
  %v2267 = vsub.f32 0.0, %v2203
  %v2268 = vmul.f32 %v2204, 1.442695
  %v2269 = vpow.pop %v2268
  %v2270 = vmul.f32 %v2205, 1.442695
  %v2271 = vpow.pop %v2270
  %v2272 = vmul.f32 %v2206, 1.442695
  %v2273 = vpow.pop %v2272
  %v2274 = vmul.f32 %v2207, 1.442695
  %v2275 = vpow.pop %v2274
  %v2276 = vmul.f32 %v2208, 1.442695
  %v2277 = vpow.pop %v2276
  %v2278 = vmul.f32 %v2209, 1.442695
  %v2279 = vpow.pop %v2278
  %v2280 = vmul.f32 %v2210, 1.442695
  %v2281 = vpow.pop %v2280
  %v2282 = vmul.f32 %v2211, 1.442695
  %v2283 = vpow.pop %v2282
  %v2284 = vmul.f32 %v2212, 1.442695
  %v2285 = vpow.pop %v2284
  %v2286 = vmul.f32 %v2213, 1.442695
  %v2287 = vpow.pop %v2286
  %v2288 = vmul.f32 %v2214, 1.442695
  %v2289 = vpow.pop %v2288
  %v2290 = vmul.f32 %v2215, 1.442695
  %v2291 = vpow.pop %v2290
  %v2292 = vmul.f32 %v2216, 1.442695
  %v2293 = vpow.pop %v2292
  %v2294 = vmul.f32 %v2217, 1.442695
  %v2295 = vpow.pop %v2294
  %v2296 = vmul.f32 %v2218, 1.442695
  %v2297 = vpow.pop %v2296
  %v2298 = vmul.f32 %v2219, 1.442695
  %v2299 = vpow.pop %v2298
  %v2300 = vmul.f32 %v2220, 1.442695
  %v2301 = vpow.pop %v2300
  %v2302 = vmul.f32 %v2221, 1.442695
  %v2303 = vpow.pop %v2302
  %v2304 = vmul.f32 %v2222, 1.442695
  %v2305 = vpow.pop %v2304
  %v2306 = vmul.f32 %v2223, 1.442695
  %v2307 = vpow.pop %v2306
  %v2308 = vmul.f32 %v2224, 1.442695
  %v2309 = vpow.pop %v2308
  %v2310 = vmul.f32 %v2225, 1.442695
  %v2311 = vpow.pop %v2310
  %v2312 = vmul.f32 %v2226, 1.442695
  %v2313 = vpow.pop %v2312
  %v2314 = vmul.f32 %v2227, 1.442695
  %v2315 = vpow.pop %v2314
  %v2316 = vmul.f32 %v2228, 1.442695
  %v2317 = vpow.pop %v2316
  %v2318 = vmul.f32 %v2229, 1.442695
  %v2319 = vpow.pop %v2318
  %v2320 = vmul.f32 %v2230, 1.442695
  %v2321 = vpow.pop %v2320
  %v2322 = vmul.f32 %v2231, 1.442695
  %v2323 = vpow.pop %v2322
  %v2324 = vmul.f32 %v2232, 1.442695
  %v2325 = vpow.pop %v2324
  %v2326 = vmul.f32 %v2233, 1.442695
  %v2327 = vpow.pop %v2326
  %v2328 = vmul.f32 %v2234, 1.442695
  %v2329 = vpow.pop %v2328
  %v2330 = vmul.f32 %v2235, 1.442695
  %v2331 = vpow.pop %v2330
  %v2332 = vmul.f32 %v2236, 1.442695
  %v2333 = vpow.pop %v2332
  %v2334 = vmul.f32 %v2237, 1.442695
  %v2335 = vpow.pop %v2334
  %v2336 = vmul.f32 %v2238, 1.442695
  %v2337 = vpow.pop %v2336
  %v2338 = vmul.f32 %v2239, 1.442695
  %v2339 = vpow.pop %v2338
  %v2340 = vmul.f32 %v2240, 1.442695
  %v2341 = vpow.pop %v2340
  %v2342 = vmul.f32 %v2241, 1.442695
  %v2343 = vpow.pop %v2342
  %v2344 = vmul.f32 %v2242, 1.442695
  %v2345 = vpow.pop %v2344
  %v2346 = vmul.f32 %v2243, 1.442695
  %v2347 = vpow.pop %v2346
  %v2348 = vmul.f32 %v2244, 1.442695
  %v2349 = vpow.pop %v2348
  %v2350 = vmul.f32 %v2245, 1.442695
  %v2351 = vpow.pop %v2350
  %v2352 = vmul.f32 %v2246, 1.442695
  %v2353 = vpow.pop %v2352
  %v2354 = vmul.f32 %v2247, 1.442695
  %v2355 = vpow.pop %v2354
  %v2356 = vmul.f32 %v2248, 1.442695
  %v2357 = vpow.pop %v2356
  %v2358 = vmul.f32 %v2249, 1.442695
  %v2359 = vpow.pop %v2358
  %v2360 = vmul.f32 %v2250, 1.442695
  %v2361 = vpow.pop %v2360
  %v2362 = vmul.f32 %v2251, 1.442695
  %v2363 = vpow.pop %v2362
  %v2364 = vmul.f32 %v2252, 1.442695
  %v2365 = vpow.pop %v2364
  %v2366 = vmul.f32 %v2253, 1.442695
  %v2367 = vpow.pop %v2366
  %v2368 = vmul.f32 %v2254, 1.442695
  %v2369 = vpow.pop %v2368
  %v2370 = vmul.f32 %v2255, 1.442695
  %v2371 = vpow.pop %v2370
  %v2372 = vmul.f32 %v2256, 1.442695
  %v2373 = vpow.pop %v2372
  %v2374 = vmul.f32 %v2257, 1.442695
  %v2375 = vpow.pop %v2374
  %v2376 = vmul.f32 %v2258, 1.442695
  %v2377 = vpow.pop %v2376
  %v2378 = vmul.f32 %v2259, 1.442695
  %v2379 = vpow.pop %v2378
  %v2380 = vmul.f32 %v2260, 1.442695
  %v2381 = vpow.pop %v2380
  %v2382 = vmul.f32 %v2261, 1.442695
  %v2383 = vpow.pop %v2382
  %v2384 = vmul.f32 %v2262, 1.442695
  %v2385 = vpow.pop %v2384
  %v2386 = vmul.f32 %v2263, 1.442695
  %v2387 = vpow.pop %v2386
  %v2388 = vmul.f32 %v2264, 1.442695
  %v2389 = vpow.pop %v2388
  %v2390 = vmul.f32 %v2265, 1.442695
  %v2391 = vpow.pop %v2390
  %v2392 = vmul.f32 %v2266, 1.442695
  %v2393 = vpow.pop %v2392
  %v2394 = vmul.f32 %v2267, 1.442695
  %v2395 = vpow.pop %v2394
  %v2396 = vadd.f32 %v2269, 1.0
  %v2397 = vlog2.pop %v2396
  %v2398 = vmul.f32 %v2397, 0.6931472
  %v2399 = vmul.f32 -0.5, %v2269
  %v2400 = vadd.f32 %v2399, 1.0
  %v2401 = vmul.f32 %v2400, %v2269
  %v2402 = vand.u32 2147483647, %v2269
  %vm2403 = vcmp.lt.f32.partialorder %v2402, 0.0004427343
  %v2404 = vsel %vm2403, %v2401, %v2398
  %v2405 = vadd.f32 %v2271, 1.0
  %v2406 = vlog2.pop %v2405
  %v2407 = vmul.f32 %v2406, 0.6931472
  %v2408 = vmul.f32 -0.5, %v2271
  %v2409 = vadd.f32 %v2408, 1.0
  %v2410 = vmul.f32 %v2409, %v2271
  %v2411 = vand.u32 2147483647, %v2271
  %vm2412 = vcmp.lt.f32.partialorder %v2411, 0.0004427343
  %v2413 = vsel %vm2412, %v2410, %v2407
  %v2414 = vadd.f32 %v2273, 1.0
  %v2415 = vlog2.pop %v2414
  %v2416 = vmul.f32 %v2415, 0.6931472
  %v2417 = vmul.f32 -0.5, %v2273
  %v2418 = vadd.f32 %v2417, 1.0
  %v2419 = vmul.f32 %v2418, %v2273
  %v2420 = vand.u32 2147483647, %v2273
  %vm2421 = vcmp.lt.f32.partialorder %v2420, 0.0004427343
  %v2422 = vsel %vm2421, %v2419, %v2416
  %v2423 = vadd.f32 %v2275, 1.0
  %v2424 = vlog2.pop %v2423
  %v2425 = vmul.f32 %v2424, 0.6931472
  %v2426 = vmul.f32 -0.5, %v2275
  %v2427 = vadd.f32 %v2426, 1.0
  %v2428 = vmul.f32 %v2427, %v2275
  %v2429 = vand.u32 2147483647, %v2275
  %vm2430 = vcmp.lt.f32.partialorder %v2429, 0.0004427343
  %v2431 = vsel %vm2430, %v2428, %v2425
  %v2432 = vadd.f32 %v2277, 1.0
  %v2433 = vlog2.pop %v2432
  %v2434 = vmul.f32 %v2433, 0.6931472
  %v2435 = vmul.f32 -0.5, %v2277
  %v2436 = vadd.f32 %v2435, 1.0
  %v2437 = vmul.f32 %v2436, %v2277
  %v2438 = vand.u32 2147483647, %v2277
  %vm2439 = vcmp.lt.f32.partialorder %v2438, 0.0004427343
  %v2440 = vsel %vm2439, %v2437, %v2434
  %v2441 = vadd.f32 %v2279, 1.0
  %v2442 = vlog2.pop %v2441
  %v2443 = vmul.f32 %v2442, 0.6931472
  %v2444 = vmul.f32 -0.5, %v2279
  %v2445 = vadd.f32 %v2444, 1.0
  %v2446 = vmul.f32 %v2445, %v2279
  %v2447 = vand.u32 2147483647, %v2279
  %vm2448 = vcmp.lt.f32.partialorder %v2447, 0.0004427343
  %v2449 = vsel %vm2448, %v2446, %v2443
  %v2450 = vadd.f32 %v2281, 1.0
  %v2451 = vlog2.pop %v2450
  %v2452 = vmul.f32 %v2451, 0.6931472
  %v2453 = vmul.f32 -0.5, %v2281
  %v2454 = vadd.f32 %v2453, 1.0
  %v2455 = vmul.f32 %v2454, %v2281
  %v2456 = vand.u32 2147483647, %v2281
  %vm2457 = vcmp.lt.f32.partialorder %v2456, 0.0004427343
  %v2458 = vsel %vm2457, %v2455, %v2452
  %v2459 = vadd.f32 %v2283, 1.0
  %v2460 = vlog2.pop %v2459
  %v2461 = vmul.f32 %v2460, 0.6931472
  %v2462 = vmul.f32 -0.5, %v2283
  %v2463 = vadd.f32 %v2462, 1.0
  %v2464 = vmul.f32 %v2463, %v2283
  %v2465 = vand.u32 2147483647, %v2283
  %vm2466 = vcmp.lt.f32.partialorder %v2465, 0.0004427343
  %v2467 = vsel %vm2466, %v2464, %v2461
  %v2468 = vadd.f32 %v2285, 1.0
  %v2469 = vlog2.pop %v2468
  %v2470 = vmul.f32 %v2469, 0.6931472
  %v2471 = vmul.f32 -0.5, %v2285
  %v2472 = vadd.f32 %v2471, 1.0
  %v2473 = vmul.f32 %v2472, %v2285
  %v2474 = vand.u32 2147483647, %v2285
  %vm2475 = vcmp.lt.f32.partialorder %v2474, 0.0004427343
  %v2476 = vsel %vm2475, %v2473, %v2470
  %v2477 = vadd.f32 %v2287, 1.0
  %v2478 = vlog2.pop %v2477
  %v2479 = vmul.f32 %v2478, 0.6931472
  %v2480 = vmul.f32 -0.5, %v2287
  %v2481 = vadd.f32 %v2480, 1.0
  %v2482 = vmul.f32 %v2481, %v2287
  %v2483 = vand.u32 2147483647, %v2287
  %vm2484 = vcmp.lt.f32.partialorder %v2483, 0.0004427343
  %v2485 = vsel %vm2484, %v2482, %v2479
  %v2486 = vadd.f32 %v2289, 1.0
  %v2487 = vlog2.pop %v2486
  %v2488 = vmul.f32 %v2487, 0.6931472
  %v2489 = vmul.f32 -0.5, %v2289
  %v2490 = vadd.f32 %v2489, 1.0
  %v2491 = vmul.f32 %v2490, %v2289
  %v2492 = vand.u32 2147483647, %v2289
  %vm2493 = vcmp.lt.f32.partialorder %v2492, 0.0004427343
  %v2494 = vsel %vm2493, %v2491, %v2488
  %v2495 = vadd.f32 %v2291, 1.0
  %v2496 = vlog2.pop %v2495
  %v2497 = vmul.f32 %v2496, 0.6931472
  %v2498 = vmul.f32 -0.5, %v2291
  %v2499 = vadd.f32 %v2498, 1.0
  %v2500 = vmul.f32 %v2499, %v2291
  %v2501 = vand.u32 2147483647, %v2291
  %vm2502 = vcmp.lt.f32.partialorder %v2501, 0.0004427343
  %v2503 = vsel %vm2502, %v2500, %v2497
  %v2504 = vadd.f32 %v2293, 1.0
  %v2505 = vlog2.pop %v2504
  %v2506 = vmul.f32 %v2505, 0.6931472
  %v2507 = vmul.f32 -0.5, %v2293
  %v2508 = vadd.f32 %v2507, 1.0
  %v2509 = vmul.f32 %v2508, %v2293
  %v2510 = vand.u32 2147483647, %v2293
  %vm2511 = vcmp.lt.f32.partialorder %v2510, 0.0004427343
  %v2512 = vsel %vm2511, %v2509, %v2506
  %v2513 = vadd.f32 %v2295, 1.0
  %v2514 = vlog2.pop %v2513
  %v2515 = vmul.f32 %v2514, 0.6931472
  %v2516 = vmul.f32 -0.5, %v2295
  %v2517 = vadd.f32 %v2516, 1.0
  %v2518 = vmul.f32 %v2517, %v2295
  %v2519 = vand.u32 2147483647, %v2295
  %vm2520 = vcmp.lt.f32.partialorder %v2519, 0.0004427343
  %v2521 = vsel %vm2520, %v2518, %v2515
  %v2522 = vadd.f32 %v2297, 1.0
  %v2523 = vlog2.pop %v2522
  %v2524 = vmul.f32 %v2523, 0.6931472
  %v2525 = vmul.f32 -0.5, %v2297
  %v2526 = vadd.f32 %v2525, 1.0
  %v2527 = vmul.f32 %v2526, %v2297
  %v2528 = vand.u32 2147483647, %v2297
  %vm2529 = vcmp.lt.f32.partialorder %v2528, 0.0004427343
  %v2530 = vsel %vm2529, %v2527, %v2524
  %v2531 = vadd.f32 %v2299, 1.0
  %v2532 = vlog2.pop %v2531
  %v2533 = vmul.f32 %v2532, 0.6931472
  %v2534 = vmul.f32 -0.5, %v2299
  %v2535 = vadd.f32 %v2534, 1.0
  %v2536 = vmul.f32 %v2535, %v2299
  %v2537 = vand.u32 2147483647, %v2299
  %vm2538 = vcmp.lt.f32.partialorder %v2537, 0.0004427343
  %v2539 = vsel %vm2538, %v2536, %v2533
  %v2540 = vadd.f32 %v2301, 1.0
  %v2541 = vlog2.pop %v2540
  %v2542 = vmul.f32 %v2541, 0.6931472
  %v2543 = vmul.f32 -0.5, %v2301
  %v2544 = vadd.f32 %v2543, 1.0
  %v2545 = vmul.f32 %v2544, %v2301
  %v2546 = vand.u32 2147483647, %v2301
  %vm2547 = vcmp.lt.f32.partialorder %v2546, 0.0004427343
  %v2548 = vsel %vm2547, %v2545, %v2542
  %v2549 = vadd.f32 %v2303, 1.0
  %v2550 = vlog2.pop %v2549
  %v2551 = vmul.f32 %v2550, 0.6931472
  %v2552 = vmul.f32 -0.5, %v2303
  %v2553 = vadd.f32 %v2552, 1.0
  %v2554 = vmul.f32 %v2553, %v2303
  %v2555 = vand.u32 2147483647, %v2303
  %vm2556 = vcmp.lt.f32.partialorder %v2555, 0.0004427343
  %v2557 = vsel %vm2556, %v2554, %v2551
  %v2558 = vadd.f32 %v2305, 1.0
  %v2559 = vlog2.pop %v2558
  %v2560 = vmul.f32 %v2559, 0.6931472
  %v2561 = vmul.f32 -0.5, %v2305
  %v2562 = vadd.f32 %v2561, 1.0
  %v2563 = vmul.f32 %v2562, %v2305
  %v2564 = vand.u32 2147483647, %v2305
  %vm2565 = vcmp.lt.f32.partialorder %v2564, 0.0004427343
  %v2566 = vsel %vm2565, %v2563, %v2560
  %v2567 = vadd.f32 %v2307, 1.0
  %v2568 = vlog2.pop %v2567
  %v2569 = vmul.f32 %v2568, 0.6931472
  %v2570 = vmul.f32 -0.5, %v2307
  %v2571 = vadd.f32 %v2570, 1.0
  %v2572 = vmul.f32 %v2571, %v2307
  %v2573 = vand.u32 2147483647, %v2307
  %vm2574 = vcmp.lt.f32.partialorder %v2573, 0.0004427343
  %v2575 = vsel %vm2574, %v2572, %v2569
  %v2576 = vadd.f32 %v2309, 1.0
  %v2577 = vlog2.pop %v2576
  %v2578 = vmul.f32 %v2577, 0.6931472
  %v2579 = vmul.f32 -0.5, %v2309
  %v2580 = vadd.f32 %v2579, 1.0
  %v2581 = vmul.f32 %v2580, %v2309
  %v2582 = vand.u32 2147483647, %v2309
  %vm2583 = vcmp.lt.f32.partialorder %v2582, 0.0004427343
  %v2584 = vsel %vm2583, %v2581, %v2578
  %v2585 = vadd.f32 %v2311, 1.0
  %v2586 = vlog2.pop %v2585
  %v2587 = vmul.f32 %v2586, 0.6931472
  %v2588 = vmul.f32 -0.5, %v2311
  %v2589 = vadd.f32 %v2588, 1.0
  %v2590 = vmul.f32 %v2589, %v2311
  %v2591 = vand.u32 2147483647, %v2311
  %vm2592 = vcmp.lt.f32.partialorder %v2591, 0.0004427343
  %v2593 = vsel %vm2592, %v2590, %v2587
  %v2594 = vadd.f32 %v2313, 1.0
  %v2595 = vlog2.pop %v2594
  %v2596 = vmul.f32 %v2595, 0.6931472
  %v2597 = vmul.f32 -0.5, %v2313
  %v2598 = vadd.f32 %v2597, 1.0
  %v2599 = vmul.f32 %v2598, %v2313
  %v2600 = vand.u32 2147483647, %v2313
  %vm2601 = vcmp.lt.f32.partialorder %v2600, 0.0004427343
  %v2602 = vsel %vm2601, %v2599, %v2596
  %v2603 = vadd.f32 %v2315, 1.0
  %v2604 = vlog2.pop %v2603
  %v2605 = vmul.f32 %v2604, 0.6931472
  %v2606 = vmul.f32 -0.5, %v2315
  %v2607 = vadd.f32 %v2606, 1.0
  %v2608 = vmul.f32 %v2607, %v2315
  %v2609 = vand.u32 2147483647, %v2315
  %vm2610 = vcmp.lt.f32.partialorder %v2609, 0.0004427343
  %v2611 = vsel %vm2610, %v2608, %v2605
  %v2612 = vadd.f32 %v2317, 1.0
  %v2613 = vlog2.pop %v2612
  %v2614 = vmul.f32 %v2613, 0.6931472
  %v2615 = vmul.f32 -0.5, %v2317
  %v2616 = vadd.f32 %v2615, 1.0
  %v2617 = vmul.f32 %v2616, %v2317
  %v2618 = vand.u32 2147483647, %v2317
  %vm2619 = vcmp.lt.f32.partialorder %v2618, 0.0004427343
  %v2620 = vsel %vm2619, %v2617, %v2614
  %v2621 = vadd.f32 %v2319, 1.0
  %v2622 = vlog2.pop %v2621
  %v2623 = vmul.f32 %v2622, 0.6931472
  %v2624 = vmul.f32 -0.5, %v2319
  %v2625 = vadd.f32 %v2624, 1.0
  %v2626 = vmul.f32 %v2625, %v2319
  %v2627 = vand.u32 2147483647, %v2319
  %vm2628 = vcmp.lt.f32.partialorder %v2627, 0.0004427343
  %v2629 = vsel %vm2628, %v2626, %v2623
  %v2630 = vadd.f32 %v2321, 1.0
  %v2631 = vlog2.pop %v2630
  %v2632 = vmul.f32 %v2631, 0.6931472
  %v2633 = vmul.f32 -0.5, %v2321
  %v2634 = vadd.f32 %v2633, 1.0
  %v2635 = vmul.f32 %v2634, %v2321
  %v2636 = vand.u32 2147483647, %v2321
  %vm2637 = vcmp.lt.f32.partialorder %v2636, 0.0004427343
  %v2638 = vsel %vm2637, %v2635, %v2632
  %v2639 = vadd.f32 %v2323, 1.0
  %v2640 = vlog2.pop %v2639
  %v2641 = vmul.f32 %v2640, 0.6931472
  %v2642 = vmul.f32 -0.5, %v2323
  %v2643 = vadd.f32 %v2642, 1.0
  %v2644 = vmul.f32 %v2643, %v2323
  %v2645 = vand.u32 2147483647, %v2323
  %vm2646 = vcmp.lt.f32.partialorder %v2645, 0.0004427343
  %v2647 = vsel %vm2646, %v2644, %v2641
  %v2648 = vadd.f32 %v2325, 1.0
  %v2649 = vlog2.pop %v2648
  %v2650 = vmul.f32 %v2649, 0.6931472
  %v2651 = vmul.f32 -0.5, %v2325
  %v2652 = vadd.f32 %v2651, 1.0
  %v2653 = vmul.f32 %v2652, %v2325
  %v2654 = vand.u32 2147483647, %v2325
  %vm2655 = vcmp.lt.f32.partialorder %v2654, 0.0004427343
  %v2656 = vsel %vm2655, %v2653, %v2650
  %v2657 = vadd.f32 %v2327, 1.0
  %v2658 = vlog2.pop %v2657
  %v2659 = vmul.f32 %v2658, 0.6931472
  %v2660 = vmul.f32 -0.5, %v2327
  %v2661 = vadd.f32 %v2660, 1.0
  %v2662 = vmul.f32 %v2661, %v2327
  %v2663 = vand.u32 2147483647, %v2327
  %vm2664 = vcmp.lt.f32.partialorder %v2663, 0.0004427343
  %v2665 = vsel %vm2664, %v2662, %v2659
  %v2666 = vadd.f32 %v2329, 1.0
  %v2667 = vlog2.pop %v2666
  %v2668 = vmul.f32 %v2667, 0.6931472
  %v2669 = vmul.f32 -0.5, %v2329
  %v2670 = vadd.f32 %v2669, 1.0
  %v2671 = vmul.f32 %v2670, %v2329
  %v2672 = vand.u32 2147483647, %v2329
  %vm2673 = vcmp.lt.f32.partialorder %v2672, 0.0004427343
  %v2674 = vsel %vm2673, %v2671, %v2668
  %v2675 = vadd.f32 %v2331, 1.0
  %v2676 = vlog2.pop %v2675
  %v2677 = vmul.f32 %v2676, 0.6931472
  %v2678 = vmul.f32 -0.5, %v2331
  %v2679 = vadd.f32 %v2678, 1.0
  %v2680 = vmul.f32 %v2679, %v2331
  %v2681 = vand.u32 2147483647, %v2331
  %vm2682 = vcmp.lt.f32.partialorder %v2681, 0.0004427343
  %v2683 = vsel %vm2682, %v2680, %v2677
  %v2684 = vadd.f32 %v2333, 1.0
  %v2685 = vlog2.pop %v2684
  %v2686 = vmul.f32 %v2685, 0.6931472
  %v2687 = vmul.f32 -0.5, %v2333
  %v2688 = vadd.f32 %v2687, 1.0
  %v2689 = vmul.f32 %v2688, %v2333
  %v2690 = vand.u32 2147483647, %v2333
  %vm2691 = vcmp.lt.f32.partialorder %v2690, 0.0004427343
  %v2692 = vsel %vm2691, %v2689, %v2686
  %v2693 = vadd.f32 %v2335, 1.0
  %v2694 = vlog2.pop %v2693
  %v2695 = vmul.f32 %v2694, 0.6931472
  %v2696 = vmul.f32 -0.5, %v2335
  %v2697 = vadd.f32 %v2696, 1.0
  %v2698 = vmul.f32 %v2697, %v2335
  %v2699 = vand.u32 2147483647, %v2335
  %vm2700 = vcmp.lt.f32.partialorder %v2699, 0.0004427343
  %v2701 = vsel %vm2700, %v2698, %v2695
  %v2702 = vadd.f32 %v2337, 1.0
  %v2703 = vlog2.pop %v2702
  %v2704 = vmul.f32 %v2703, 0.6931472
  %v2705 = vmul.f32 -0.5, %v2337
  %v2706 = vadd.f32 %v2705, 1.0
  %v2707 = vmul.f32 %v2706, %v2337
  %v2708 = vand.u32 2147483647, %v2337
  %vm2709 = vcmp.lt.f32.partialorder %v2708, 0.0004427343
  %v2710 = vsel %vm2709, %v2707, %v2704
  %v2711 = vadd.f32 %v2339, 1.0
  %v2712 = vlog2.pop %v2711
  %v2713 = vmul.f32 %v2712, 0.6931472
  %v2714 = vmul.f32 -0.5, %v2339
  %v2715 = vadd.f32 %v2714, 1.0
  %v2716 = vmul.f32 %v2715, %v2339
  %v2717 = vand.u32 2147483647, %v2339
  %vm2718 = vcmp.lt.f32.partialorder %v2717, 0.0004427343
  %v2719 = vsel %vm2718, %v2716, %v2713
  %v2720 = vadd.f32 %v2341, 1.0
  %v2721 = vlog2.pop %v2720
  %v2722 = vmul.f32 %v2721, 0.6931472
  %v2723 = vmul.f32 -0.5, %v2341
  %v2724 = vadd.f32 %v2723, 1.0
  %v2725 = vmul.f32 %v2724, %v2341
  %v2726 = vand.u32 2147483647, %v2341
  %vm2727 = vcmp.lt.f32.partialorder %v2726, 0.0004427343
  %v2728 = vsel %vm2727, %v2725, %v2722
  %v2729 = vadd.f32 %v2343, 1.0
  %v2730 = vlog2.pop %v2729
  %v2731 = vmul.f32 %v2730, 0.6931472
  %v2732 = vmul.f32 -0.5, %v2343
  %v2733 = vadd.f32 %v2732, 1.0
  %v2734 = vmul.f32 %v2733, %v2343
  %v2735 = vand.u32 2147483647, %v2343
  %vm2736 = vcmp.lt.f32.partialorder %v2735, 0.0004427343
  %v2737 = vsel %vm2736, %v2734, %v2731
  %v2738 = vadd.f32 %v2345, 1.0
  %v2739 = vlog2.pop %v2738
  %v2740 = vmul.f32 %v2739, 0.6931472
  %v2741 = vmul.f32 -0.5, %v2345
  %v2742 = vadd.f32 %v2741, 1.0
  %v2743 = vmul.f32 %v2742, %v2345
  %v2744 = vand.u32 2147483647, %v2345
  %vm2745 = vcmp.lt.f32.partialorder %v2744, 0.0004427343
  %v2746 = vsel %vm2745, %v2743, %v2740
  %v2747 = vadd.f32 %v2347, 1.0
  %v2748 = vlog2.pop %v2747
  %v2749 = vmul.f32 %v2748, 0.6931472
  %v2750 = vmul.f32 -0.5, %v2347
  %v2751 = vadd.f32 %v2750, 1.0
  %v2752 = vmul.f32 %v2751, %v2347
  %v2753 = vand.u32 2147483647, %v2347
  %vm2754 = vcmp.lt.f32.partialorder %v2753, 0.0004427343
  %v2755 = vsel %vm2754, %v2752, %v2749
  %v2756 = vadd.f32 %v2349, 1.0
  %v2757 = vlog2.pop %v2756
  %v2758 = vmul.f32 %v2757, 0.6931472
  %v2759 = vmul.f32 -0.5, %v2349
  %v2760 = vadd.f32 %v2759, 1.0
  %v2761 = vmul.f32 %v2760, %v2349
  %v2762 = vand.u32 2147483647, %v2349
  %vm2763 = vcmp.lt.f32.partialorder %v2762, 0.0004427343
  %v2764 = vsel %vm2763, %v2761, %v2758
  %v2765 = vadd.f32 %v2351, 1.0
  %v2766 = vlog2.pop %v2765
  %v2767 = vmul.f32 %v2766, 0.6931472
  %v2768 = vmul.f32 -0.5, %v2351
  %v2769 = vadd.f32 %v2768, 1.0
  %v2770 = vmul.f32 %v2769, %v2351
  %v2771 = vand.u32 2147483647, %v2351
  %vm2772 = vcmp.lt.f32.partialorder %v2771, 0.0004427343
  %v2773 = vsel %vm2772, %v2770, %v2767
  %v2774 = vadd.f32 %v2353, 1.0
  %v2775 = vlog2.pop %v2774
  %v2776 = vmul.f32 %v2775, 0.6931472
  %v2777 = vmul.f32 -0.5, %v2353
  %v2778 = vadd.f32 %v2777, 1.0
  %v2779 = vmul.f32 %v2778, %v2353
  %v2780 = vand.u32 2147483647, %v2353
  %vm2781 = vcmp.lt.f32.partialorder %v2780, 0.0004427343
  %v2782 = vsel %vm2781, %v2779, %v2776
  %v2783 = vadd.f32 %v2355, 1.0
  %v2784 = vlog2.pop %v2783
  %v2785 = vmul.f32 %v2784, 0.6931472
  %v2786 = vmul.f32 -0.5, %v2355
  %v2787 = vadd.f32 %v2786, 1.0
  %v2788 = vmul.f32 %v2787, %v2355
  %v2789 = vand.u32 2147483647, %v2355
  %vm2790 = vcmp.lt.f32.partialorder %v2789, 0.0004427343
  %v2791 = vsel %vm2790, %v2788, %v2785
  %v2792 = vadd.f32 %v2357, 1.0
  %v2793 = vlog2.pop %v2792
  %v2794 = vmul.f32 %v2793, 0.6931472
  %v2795 = vmul.f32 -0.5, %v2357
  %v2796 = vadd.f32 %v2795, 1.0
  %v2797 = vmul.f32 %v2796, %v2357
  %v2798 = vand.u32 2147483647, %v2357
  %vm2799 = vcmp.lt.f32.partialorder %v2798, 0.0004427343
  %v2800 = vsel %vm2799, %v2797, %v2794
  %v2801 = vadd.f32 %v2359, 1.0
  %v2802 = vlog2.pop %v2801
  %v2803 = vmul.f32 %v2802, 0.6931472
  %v2804 = vmul.f32 -0.5, %v2359
  %v2805 = vadd.f32 %v2804, 1.0
  %v2806 = vmul.f32 %v2805, %v2359
  %v2807 = vand.u32 2147483647, %v2359
  %vm2808 = vcmp.lt.f32.partialorder %v2807, 0.0004427343
  %v2809 = vsel %vm2808, %v2806, %v2803
  %v2810 = vadd.f32 %v2361, 1.0
  %v2811 = vlog2.pop %v2810
  %v2812 = vmul.f32 %v2811, 0.6931472
  %v2813 = vmul.f32 -0.5, %v2361
  %v2814 = vadd.f32 %v2813, 1.0
  %v2815 = vmul.f32 %v2814, %v2361
  %v2816 = vand.u32 2147483647, %v2361
  %vm2817 = vcmp.lt.f32.partialorder %v2816, 0.0004427343
  %v2818 = vsel %vm2817, %v2815, %v2812
  %v2819 = vadd.f32 %v2363, 1.0
  %v2820 = vlog2.pop %v2819
  %v2821 = vmul.f32 %v2820, 0.6931472
  %v2822 = vmul.f32 -0.5, %v2363
  %v2823 = vadd.f32 %v2822, 1.0
  %v2824 = vmul.f32 %v2823, %v2363
  %v2825 = vand.u32 2147483647, %v2363
  %vm2826 = vcmp.lt.f32.partialorder %v2825, 0.0004427343
  %v2827 = vsel %vm2826, %v2824, %v2821
  %v2828 = vadd.f32 %v2365, 1.0
  %v2829 = vlog2.pop %v2828
  %v2830 = vmul.f32 %v2829, 0.6931472
  %v2831 = vmul.f32 -0.5, %v2365
  %v2832 = vadd.f32 %v2831, 1.0
  %v2833 = vmul.f32 %v2832, %v2365
  %v2834 = vand.u32 2147483647, %v2365
  %vm2835 = vcmp.lt.f32.partialorder %v2834, 0.0004427343
  %v2836 = vsel %vm2835, %v2833, %v2830
  %v2837 = vadd.f32 %v2367, 1.0
  %v2838 = vlog2.pop %v2837
  %v2839 = vmul.f32 %v2838, 0.6931472
  %v2840 = vmul.f32 -0.5, %v2367
  %v2841 = vadd.f32 %v2840, 1.0
  %v2842 = vmul.f32 %v2841, %v2367
  %v2843 = vand.u32 2147483647, %v2367
  %vm2844 = vcmp.lt.f32.partialorder %v2843, 0.0004427343
  %v2845 = vsel %vm2844, %v2842, %v2839
  %v2846 = vadd.f32 %v2369, 1.0
  %v2847 = vlog2.pop %v2846
  %v2848 = vmul.f32 %v2847, 0.6931472
  %v2849 = vmul.f32 -0.5, %v2369
  %v2850 = vadd.f32 %v2849, 1.0
  %v2851 = vmul.f32 %v2850, %v2369
  %v2852 = vand.u32 2147483647, %v2369
  %vm2853 = vcmp.lt.f32.partialorder %v2852, 0.0004427343
  %v2854 = vsel %vm2853, %v2851, %v2848
  %v2855 = vadd.f32 %v2371, 1.0
  %v2856 = vlog2.pop %v2855
  %v2857 = vmul.f32 %v2856, 0.6931472
  %v2858 = vmul.f32 -0.5, %v2371
  %v2859 = vadd.f32 %v2858, 1.0
  %v2860 = vmul.f32 %v2859, %v2371
  %v2861 = vand.u32 2147483647, %v2371
  %vm2862 = vcmp.lt.f32.partialorder %v2861, 0.0004427343
  %v2863 = vsel %vm2862, %v2860, %v2857
  %v2864 = vadd.f32 %v2373, 1.0
  %v2865 = vlog2.pop %v2864
  %v2866 = vmul.f32 %v2865, 0.6931472
  %v2867 = vmul.f32 -0.5, %v2373
  %v2868 = vadd.f32 %v2867, 1.0
  %v2869 = vmul.f32 %v2868, %v2373
  %v2870 = vand.u32 2147483647, %v2373
  %vm2871 = vcmp.lt.f32.partialorder %v2870, 0.0004427343
  %v2872 = vsel %vm2871, %v2869, %v2866
  %v2873 = vadd.f32 %v2375, 1.0
  %v2874 = vlog2.pop %v2873
  %v2875 = vmul.f32 %v2874, 0.6931472
  %v2876 = vmul.f32 -0.5, %v2375
  %v2877 = vadd.f32 %v2876, 1.0
  %v2878 = vmul.f32 %v2877, %v2375
  %v2879 = vand.u32 2147483647, %v2375
  %vm2880 = vcmp.lt.f32.partialorder %v2879, 0.0004427343
  %v2881 = vsel %vm2880, %v2878, %v2875
  %v2882 = vadd.f32 %v2377, 1.0
  %v2883 = vlog2.pop %v2882
  %v2884 = vmul.f32 %v2883, 0.6931472
  %v2885 = vmul.f32 -0.5, %v2377
  %v2886 = vadd.f32 %v2885, 1.0
  %v2887 = vmul.f32 %v2886, %v2377
  %v2888 = vand.u32 2147483647, %v2377
  %vm2889 = vcmp.lt.f32.partialorder %v2888, 0.0004427343
  %v2890 = vsel %vm2889, %v2887, %v2884
  %v2891 = vadd.f32 %v2379, 1.0
  %v2892 = vlog2.pop %v2891
  %v2893 = vmul.f32 %v2892, 0.6931472
  %v2894 = vmul.f32 -0.5, %v2379
  %v2895 = vadd.f32 %v2894, 1.0
  %v2896 = vmul.f32 %v2895, %v2379
  %v2897 = vand.u32 2147483647, %v2379
  %vm2898 = vcmp.lt.f32.partialorder %v2897, 0.0004427343
  %v2899 = vsel %vm2898, %v2896, %v2893
  %v2900 = vadd.f32 %v2381, 1.0
  %v2901 = vlog2.pop %v2900
  %v2902 = vmul.f32 %v2901, 0.6931472
  %v2903 = vmul.f32 -0.5, %v2381
  %v2904 = vadd.f32 %v2903, 1.0
  %v2905 = vmul.f32 %v2904, %v2381
  %v2906 = vand.u32 2147483647, %v2381
  %vm2907 = vcmp.lt.f32.partialorder %v2906, 0.0004427343
  %v2908 = vsel %vm2907, %v2905, %v2902
  %v2909 = vadd.f32 %v2383, 1.0
  %v2910 = vlog2.pop %v2909
  %v2911 = vmul.f32 %v2910, 0.6931472
  %v2912 = vmul.f32 -0.5, %v2383
  %v2913 = vadd.f32 %v2912, 1.0
  %v2914 = vmul.f32 %v2913, %v2383
  %v2915 = vand.u32 2147483647, %v2383
  %vm2916 = vcmp.lt.f32.partialorder %v2915, 0.0004427343
  %v2917 = vsel %vm2916, %v2914, %v2911
  %v2918 = vadd.f32 %v2385, 1.0
  %v2919 = vlog2.pop %v2918
  %v2920 = vmul.f32 %v2919, 0.6931472
  %v2921 = vmul.f32 -0.5, %v2385
  %v2922 = vadd.f32 %v2921, 1.0
  %v2923 = vmul.f32 %v2922, %v2385
  %v2924 = vand.u32 2147483647, %v2385
  %vm2925 = vcmp.lt.f32.partialorder %v2924, 0.0004427343
  %v2926 = vsel %vm2925, %v2923, %v2920
  %v2927 = vadd.f32 %v2387, 1.0
  %v2928 = vlog2.pop %v2927
  %v2929 = vmul.f32 %v2928, 0.6931472
  %v2930 = vmul.f32 -0.5, %v2387
  %v2931 = vadd.f32 %v2930, 1.0
  %v2932 = vmul.f32 %v2931, %v2387
  %v2933 = vand.u32 2147483647, %v2387
  %vm2934 = vcmp.lt.f32.partialorder %v2933, 0.0004427343
  %v2935 = vsel %vm2934, %v2932, %v2929
  %v2936 = vadd.f32 %v2389, 1.0
  %v2937 = vlog2.pop %v2936
  %v2938 = vmul.f32 %v2937, 0.6931472
  %v2939 = vmul.f32 -0.5, %v2389
  %v2940 = vadd.f32 %v2939, 1.0
  %v2941 = vmul.f32 %v2940, %v2389
  %v2942 = vand.u32 2147483647, %v2389
  %vm2943 = vcmp.lt.f32.partialorder %v2942, 0.0004427343
  %v2944 = vsel %vm2943, %v2941, %v2938
  %v2945 = vadd.f32 %v2391, 1.0
  %v2946 = vlog2.pop %v2945
  %v2947 = vmul.f32 %v2946, 0.6931472
  %v2948 = vmul.f32 -0.5, %v2391
  %v2949 = vadd.f32 %v2948, 1.0
  %v2950 = vmul.f32 %v2949, %v2391
  %v2951 = vand.u32 2147483647, %v2391
  %vm2952 = vcmp.lt.f32.partialorder %v2951, 0.0004427343
  %v2953 = vsel %vm2952, %v2950, %v2947
  %v2954 = vadd.f32 %v2393, 1.0
  %v2955 = vlog2.pop %v2954
  %v2956 = vmul.f32 %v2955, 0.6931472
  %v2957 = vmul.f32 -0.5, %v2393
  %v2958 = vadd.f32 %v2957, 1.0
  %v2959 = vmul.f32 %v2958, %v2393
  %v2960 = vand.u32 2147483647, %v2393
  %vm2961 = vcmp.lt.f32.partialorder %v2960, 0.0004427343
  %v2962 = vsel %vm2961, %v2959, %v2956
  %v2963 = vadd.f32 %v2395, 1.0
  %v2964 = vlog2.pop %v2963
  %v2965 = vmul.f32 %v2964, 0.6931472
  %v2966 = vmul.f32 -0.5, %v2395
  %v2967 = vadd.f32 %v2966, 1.0
  %v2968 = vmul.f32 %v2967, %v2395
  %v2969 = vand.u32 2147483647, %v2395
  %vm2970 = vcmp.lt.f32.partialorder %v2969, 0.0004427343
  %v2971 = vsel %vm2970, %v2968, %v2965
  %v2972 = vadd.f32 %v2076, %v2404
  %v2973 = vadd.f32 %v2077, %v2413
  %v2974 = vadd.f32 %v2078, %v2422
  %v2975 = vadd.f32 %v2079, %v2431
  %v2976 = vadd.f32 %v2080, %v2440
  %v2977 = vadd.f32 %v2081, %v2449
  %v2978 = vadd.f32 %v2082, %v2458
  %v2979 = vadd.f32 %v2083, %v2467
  %v2980 = vadd.f32 %v2084, %v2476
  %v2981 = vadd.f32 %v2085, %v2485
  %v2982 = vadd.f32 %v2086, %v2494
  %v2983 = vadd.f32 %v2087, %v2503
  %v2984 = vadd.f32 %v2088, %v2512
  %v2985 = vadd.f32 %v2089, %v2521
  %v2986 = vadd.f32 %v2090, %v2530
  %v2987 = vadd.f32 %v2091, %v2539
  %v2988 = vadd.f32 %v2092, %v2548
  %v2989 = vadd.f32 %v2093, %v2557
  %v2990 = vadd.f32 %v2094, %v2566
  %v2991 = vadd.f32 %v2095, %v2575
  %v2992 = vadd.f32 %v2096, %v2584
  %v2993 = vadd.f32 %v2097, %v2593
  %v2994 = vadd.f32 %v2098, %v2602
  %v2995 = vadd.f32 %v2099, %v2611
  %v2996 = vadd.f32 %v2100, %v2620
  %v2997 = vadd.f32 %v2101, %v2629
  %v2998 = vadd.f32 %v2102, %v2638
  %v2999 = vadd.f32 %v2103, %v2647
  %v3000 = vadd.f32 %v2104, %v2656
  %v3001 = vadd.f32 %v2105, %v2665
  %v3002 = vadd.f32 %v2106, %v2674
  %v3003 = vadd.f32 %v2107, %v2683
  %v3004 = vadd.f32 %v2108, %v2692
  %v3005 = vadd.f32 %v2109, %v2701
  %v3006 = vadd.f32 %v2110, %v2710
  %v3007 = vadd.f32 %v2111, %v2719
  %v3008 = vadd.f32 %v2112, %v2728
  %v3009 = vadd.f32 %v2113, %v2737
  %v3010 = vadd.f32 %v2114, %v2746
  %v3011 = vadd.f32 %v2115, %v2755
  %v3012 = vadd.f32 %v2116, %v2764
  %v3013 = vadd.f32 %v2117, %v2773
  %v3014 = vadd.f32 %v2118, %v2782
  %v3015 = vadd.f32 %v2119, %v2791
  %v3016 = vadd.f32 %v2120, %v2800
  %v3017 = vadd.f32 %v2121, %v2809
  %v3018 = vadd.f32 %v2122, %v2818
  %v3019 = vadd.f32 %v2123, %v2827
  %v3020 = vadd.f32 %v2124, %v2836
  %v3021 = vadd.f32 %v2125, %v2845
  %v3022 = vadd.f32 %v2126, %v2854
  %v3023 = vadd.f32 %v2127, %v2863
  %v3024 = vadd.f32 %v2128, %v2872
  %v3025 = vadd.f32 %v2129, %v2881
  %v3026 = vadd.f32 %v2130, %v2890
  %v3027 = vadd.f32 %v2131, %v2899
  %v3028 = vadd.f32 %v2132, %v2908
  %v3029 = vadd.f32 %v2133, %v2917
  %v3030 = vadd.f32 %v2134, %v2926
  %v3031 = vadd.f32 %v2135, %v2935
  %v3032 = vadd.f32 %v2136, %v2944
  %v3033 = vadd.f32 %v2137, %v2953
  %v3034 = vadd.f32 %v2138, %v2962
  %v3035 = vadd.f32 %v2139, %v2971
  %v3036 = vpack.c.bf16 %v1761, %v1758
  %v3037 = vpack.c.bf16 %v1769, %v1766
  %v3038 = vpack.c.bf16 %v1777, %v1774
  %v3039 = vpack.c.bf16 %v1785, %v1782
  %v3040 = vpack.c.bf16 %v1793, %v1790
  %v3041 = vpack.c.bf16 %v1801, %v1798
  %v3042 = vpack.c.bf16 %v1809, %v1806
  %v3043 = vpack.c.bf16 %v1817, %v1814
  %v3044 = vpack.c.bf16 %v1825, %v1822
  %v3045 = vpack.c.bf16 %v1833, %v1830
  %v3046 = vpack.c.bf16 %v1841, %v1838
  %v3047 = vpack.c.bf16 %v1849, %v1846
  %v3048 = vpack.c.bf16 %v1857, %v1854
  %v3049 = vpack.c.bf16 %v1865, %v1862
  %v3050 = vpack.c.bf16 %v1873, %v1870
  %v3051 = vpack.c.bf16 %v1881, %v1878
  %v3052 = vpack.c.bf16 %v1889, %v1886
  %v3053 = vpack.c.bf16 %v1897, %v1894
  %v3054 = vpack.c.bf16 %v1905, %v1902
  %v3055 = vpack.c.bf16 %v1913, %v1910
  %v3056 = vpack.c.bf16 %v1921, %v1918
  %v3057 = vpack.c.bf16 %v1929, %v1926
  %v3058 = vpack.c.bf16 %v1937, %v1934
  %v3059 = vpack.c.bf16 %v1945, %v1942
  %v3060 = vpack.c.bf16 %v1953, %v1950
  %v3061 = vpack.c.bf16 %v1961, %v1958
  %v3062 = vpack.c.bf16 %v1969, %v1966
  %v3063 = vpack.c.bf16 %v1977, %v1974
  %v3064 = vpack.c.bf16 %v1985, %v1982
  %v3065 = vpack.c.bf16 %v1993, %v1990
  %v3066 = vpack.c.bf16 %v2001, %v1998
  %v3067 = vpack.c.bf16 %v2009, %v2006
  %3068 = vst [vmem:[#allocation2 + $0x8] sm:$0xff] %v3036
  %3069 = vst [vmem:[#allocation2 + $0x20] sm:$0xff] %v3037
  %3070 = vst [vmem:[#allocation2 + $0x38] sm:$0xff] %v3038
  %3071 = vst [vmem:[#allocation2 + $0x50] sm:$0xff] %v3039
  %3072 = vst [vmem:[#allocation2 + $0x68] sm:$0xff] %v3040
  %3073 = vst [vmem:[#allocation2 + $0x80] sm:$0xff] %v3041
  %3074 = vst [vmem:[#allocation2 + $0x98] sm:$0xff] %v3042
  %3075 = vst [vmem:[#allocation2 + $0xb0] sm:$0xff] %v3043
  %3076 = vst [vmem:[#allocation2 + $0xc8] sm:$0xff] %v3044
  %3077 = vst [vmem:[#allocation2 + $0xe0] sm:$0xff] %v3045
  %3078 = vst [vmem:[#allocation2 + $0xf8] sm:$0xff] %v3046
  %3079 = vst [vmem:[#allocation2 + $0x110] sm:$0xff] %v3047
  %3080 = vst [vmem:[#allocation2 + $0x128] sm:$0xff] %v3048
  %3081 = vst [vmem:[#allocation2 + $0x140] sm:$0xff] %v3049
  %3082 = vst [vmem:[#allocation2 + $0x158] sm:$0xff] %v3050
  %3083 = vst [vmem:[#allocation2 + $0x170] sm:$0xff] %v3051
  %3084 = vst [vmem:[#allocation2 + $0x188] sm:$0xff] %v3052
  %3085 = vst [vmem:[#allocation2 + $0x1a0] sm:$0xff] %v3053
  %3086 = vst [vmem:[#allocation2 + $0x1b8] sm:$0xff] %v3054
  %3087 = vst [vmem:[#allocation2 + $0x1d0] sm:$0xff] %v3055
  %3088 = vst [vmem:[#allocation2 + $0x1e8] sm:$0xff] %v3056
  %3089 = vst [vmem:[#allocation2 + $0x200] sm:$0xff] %v3057
  %3090 = vst [vmem:[#allocation2 + $0x218] sm:$0xff] %v3058
  %3091 = vst [vmem:[#allocation2 + $0x230] sm:$0xff] %v3059
  %3092 = vst [vmem:[#allocation2 + $0x248] sm:$0xff] %v3060
  %3093 = vst [vmem:[#allocation2 + $0x260] sm:$0xff] %v3061
  %3094 = vst [vmem:[#allocation2 + $0x278] sm:$0xff] %v3062
  %3095 = vst [vmem:[#allocation2 + $0x290] sm:$0xff] %v3063
  %3096 = vst [vmem:[#allocation2 + $0x2a8] sm:$0xff] %v3064
  %3097 = vst [vmem:[#allocation2 + $0x2c0] sm:$0xff] %v3065
  %3098 = vst [vmem:[#allocation2 + $0x2d8] sm:$0xff] %v3066
  %3099 = vst [vmem:[#allocation2 + $0x2f0] sm:$0xff] %v3067
  %v3100 = vld [vmem:[%s1] sm:$0xf]
  %v3101 = vld [vmem:[%s1 + $0x4] sm:$0xf]
  %v3102 = vld [vmem:[%s1 + $0x8] sm:$0xf]
  %v3103 = vld [vmem:[%s1 + $0xc] sm:$0xf]
  %v3104 = vld [vmem:[%s1 + $0x10] sm:$0xf]
  %v3105 = vld [vmem:[%s1 + $0x14] sm:$0xf]
  %v3106 = vld [vmem:[%s1 + $0x18] sm:$0xf]
  %v3107 = vld [vmem:[%s1 + $0x1c] sm:$0xf]
  %v3108 = vld [vmem:[%s1 + $0x20] sm:$0xf]
  %v3109 = vld [vmem:[%s1 + $0x24] sm:$0xf]
  %v3110 = vld [vmem:[%s1 + $0x28] sm:$0xf]
  %v3111 = vld [vmem:[%s1 + $0x2c] sm:$0xf]
  %v3112 = vld [vmem:[%s1 + $0x30] sm:$0xf]
  %v3113 = vld [vmem:[%s1 + $0x34] sm:$0xf]
  %v3114 = vld [vmem:[%s1 + $0x38] sm:$0xf]
  %v3115 = vld [vmem:[%s1 + $0x3c] sm:$0xf]
  %v3116 = vld [vmem:[%s1 + $0x40] sm:$0xf]
  %v3117 = vld [vmem:[%s1 + $0x44] sm:$0xf]
  %v3118 = vld [vmem:[%s1 + $0x48] sm:$0xf]
  %v3119 = vld [vmem:[%s1 + $0x4c] sm:$0xf]
  %v3120 = vld [vmem:[%s1 + $0x50] sm:$0xf]
  %v3121 = vld [vmem:[%s1 + $0x54] sm:$0xf]
  %v3122 = vld [vmem:[%s1 + $0x58] sm:$0xf]
  %v3123 = vld [vmem:[%s1 + $0x5c] sm:$0xf]
  %v3124 = vld [vmem:[%s1 + $0x60] sm:$0xf]
  %v3125 = vld [vmem:[%s1 + $0x64] sm:$0xf]
  %v3126 = vld [vmem:[%s1 + $0x68] sm:$0xf]
  %v3127 = vld [vmem:[%s1 + $0x6c] sm:$0xf]
  %v3128 = vld [vmem:[%s1 + $0x70] sm:$0xf]
  %v3129 = vld [vmem:[%s1 + $0x74] sm:$0xf]
  %v3130 = vld [vmem:[%s1 + $0x78] sm:$0xf]
  %v3131 = vld [vmem:[%s1 + $0x7c] sm:$0xf]
  %v3132 = vld [vmem:[%s1 + $0x80] sm:$0xf]
  %v3133 = vld [vmem:[%s1 + $0x84] sm:$0xf]
  %v3134 = vld [vmem:[%s1 + $0x88] sm:$0xf]
  %v3135 = vld [vmem:[%s1 + $0x8c] sm:$0xf]
  %v3136 = vld [vmem:[%s1 + $0x90] sm:$0xf]
  %v3137 = vld [vmem:[%s1 + $0x94] sm:$0xf]
  %v3138 = vld [vmem:[%s1 + $0x98] sm:$0xf]
  %v3139 = vld [vmem:[%s1 + $0x9c] sm:$0xf]
  %v3140 = vld [vmem:[%s1 + $0xa0] sm:$0xf]
  %v3141 = vld [vmem:[%s1 + $0xa4] sm:$0xf]
  %v3142 = vld [vmem:[%s1 + $0xa8] sm:$0xf]
  %v3143 = vld [vmem:[%s1 + $0xac] sm:$0xf]
  %v3144 = vld [vmem:[%s1 + $0xb0] sm:$0xf]
  %v3145 = vld [vmem:[%s1 + $0xb4] sm:$0xf]
  %v3146 = vld [vmem:[%s1 + $0xb8] sm:$0xf]
  %v3147 = vld [vmem:[%s1 + $0xbc] sm:$0xf]
  %v3148 = vld [vmem:[%s1 + $0xc0] sm:$0xf]
  %v3149 = vld [vmem:[%s1 + $0xc4] sm:$0xf]
  %v3150 = vld [vmem:[%s1 + $0xc8] sm:$0xf]
  %v3151 = vld [vmem:[%s1 + $0xcc] sm:$0xf]
  %v3152 = vld [vmem:[%s1 + $0xd0] sm:$0xf]
  %v3153 = vld [vmem:[%s1 + $0xd4] sm:$0xf]
  %v3154 = vld [vmem:[%s1 + $0xd8] sm:$0xf]
  %v3155 = vld [vmem:[%s1 + $0xdc] sm:$0xf]
  %v3156 = vld [vmem:[%s1 + $0xe0] sm:$0xf]
  %v3157 = vld [vmem:[%s1 + $0xe4] sm:$0xf]
  %v3158 = vld [vmem:[%s1 + $0xe8] sm:$0xf]
  %v3159 = vld [vmem:[%s1 + $0xec] sm:$0xf]
  %v3160 = vld [vmem:[%s1 + $0xf0] sm:$0xf]
  %v3161 = vld [vmem:[%s1 + $0xf4] sm:$0xf]
  %v3162 = vld [vmem:[%s1 + $0xf8] sm:$0xf]
  %v3163 = vld [vmem:[%s1 + $0xfc] sm:$0xf]
  %v3228 = vunpack.c.l.b16 %v3100
  %v3229 = vunpack.c.l.b16 %v3101
  %v3230 = vunpack.c.l.b16 %v3102
  %v3231 = vunpack.c.l.b16 %v3103
  %v3232 = vunpack.c.l.b16 %v3104
  %v3233 = vunpack.c.l.b16 %v3105
  %v3234 = vunpack.c.l.b16 %v3106
  %v3235 = vunpack.c.l.b16 %v3107
  %v3236 = vunpack.c.l.b16 %v3108
  %v3237 = vunpack.c.l.b16 %v3109
  %v3238 = vunpack.c.l.b16 %v3110
  %v3239 = vunpack.c.l.b16 %v3111
  %v3240 = vunpack.c.l.b16 %v3112
  %v3241 = vunpack.c.l.b16 %v3113
  %v3242 = vunpack.c.l.b16 %v3114
  %v3243 = vunpack.c.l.b16 %v3115
  %v3244 = vunpack.c.l.b16 %v3116
  %v3245 = vunpack.c.l.b16 %v3117
  %v3246 = vunpack.c.l.b16 %v3118
  %v3247 = vunpack.c.l.b16 %v3119
  %v3248 = vunpack.c.l.b16 %v3120
  %v3249 = vunpack.c.l.b16 %v3121
  %v3250 = vunpack.c.l.b16 %v3122
  %v3251 = vunpack.c.l.b16 %v3123
  %v3252 = vunpack.c.l.b16 %v3124
  %v3253 = vunpack.c.l.b16 %v3125
  %v3254 = vunpack.c.l.b16 %v3126
  %v3255 = vunpack.c.l.b16 %v3127
  %v3256 = vunpack.c.l.b16 %v3128
  %v3257 = vunpack.c.l.b16 %v3129
  %v3258 = vunpack.c.l.b16 %v3130
  %v3259 = vunpack.c.l.b16 %v3131
  %v3260 = vunpack.c.l.b16 %v3132
  %v3261 = vunpack.c.l.b16 %v3133
  %v3262 = vunpack.c.l.b16 %v3134
  %v3263 = vunpack.c.l.b16 %v3135
  %v3264 = vunpack.c.l.b16 %v3136
  %v3265 = vunpack.c.l.b16 %v3137
  %v3266 = vunpack.c.l.b16 %v3138
  %v3267 = vunpack.c.l.b16 %v3139
  %v3268 = vunpack.c.l.b16 %v3140
  %v3269 = vunpack.c.l.b16 %v3141
  %v3270 = vunpack.c.l.b16 %v3142
  %v3271 = vunpack.c.l.b16 %v3143
  %v3272 = vunpack.c.l.b16 %v3144
  %v3273 = vunpack.c.l.b16 %v3145
  %v3274 = vunpack.c.l.b16 %v3146
  %v3275 = vunpack.c.l.b16 %v3147
  %v3276 = vunpack.c.l.b16 %v3148
  %v3277 = vunpack.c.l.b16 %v3149
  %v3278 = vunpack.c.l.b16 %v3150
  %v3279 = vunpack.c.l.b16 %v3151
  %v3280 = vunpack.c.l.b16 %v3152
  %v3281 = vunpack.c.l.b16 %v3153
  %v3282 = vunpack.c.l.b16 %v3154
  %v3283 = vunpack.c.l.b16 %v3155
  %v3284 = vunpack.c.l.b16 %v3156
  %v3285 = vunpack.c.l.b16 %v3157
  %v3286 = vunpack.c.l.b16 %v3158
  %v3287 = vunpack.c.l.b16 %v3159
  %v3288 = vunpack.c.l.b16 %v3160
  %v3289 = vunpack.c.l.b16 %v3161
  %v3290 = vunpack.c.l.b16 %v3162
  %v3291 = vunpack.c.l.b16 %v3163
  %v3292 = vpack.c.b16 %v3229, %v3228
  %v3293 = vpack.c.b16 %v3231, %v3230
  %v3294 = vpack.c.b16 %v3233, %v3232
  %v3295 = vpack.c.b16 %v3235, %v3234
  %v3296 = vpack.c.b16 %v3237, %v3236
  %v3297 = vpack.c.b16 %v3239, %v3238
  %v3298 = vpack.c.b16 %v3241, %v3240
  %v3299 = vpack.c.b16 %v3243, %v3242
  %v3300 = vpack.c.b16 %v3245, %v3244
  %v3301 = vpack.c.b16 %v3247, %v3246
  %v3302 = vpack.c.b16 %v3249, %v3248
  %v3303 = vpack.c.b16 %v3251, %v3250
  %v3304 = vpack.c.b16 %v3253, %v3252
  %v3305 = vpack.c.b16 %v3255, %v3254
  %v3306 = vpack.c.b16 %v3257, %v3256
  %v3307 = vpack.c.b16 %v3259, %v3258
  %v3308 = vpack.c.b16 %v3261, %v3260
  %v3309 = vpack.c.b16 %v3263, %v3262
  %v3310 = vpack.c.b16 %v3265, %v3264
  %v3311 = vpack.c.b16 %v3267, %v3266
  %v3312 = vpack.c.b16 %v3269, %v3268
  %v3313 = vpack.c.b16 %v3271, %v3270
  %v3314 = vpack.c.b16 %v3273, %v3272
  %v3315 = vpack.c.b16 %v3275, %v3274
  %v3316 = vpack.c.b16 %v3277, %v3276
  %v3317 = vpack.c.b16 %v3279, %v3278
  %v3318 = vpack.c.b16 %v3281, %v3280
  %v3319 = vpack.c.b16 %v3283, %v3282
  %v3320 = vpack.c.b16 %v3285, %v3284
  %v3321 = vpack.c.b16 %v3287, %v3286
  %v3322 = vpack.c.b16 %v3289, %v3288
  %v3323 = vpack.c.b16 %v3291, %v3290
  %vm3356 = vcmask 261120
  %3357 = vst.msk [vmem:[#allocation2 + $0x10] sm:$0xff] %vm3356, %v3292
  %3358 = vst.msk [vmem:[#allocation2 + $0x28] sm:$0xff] %vm3356, %v3293
  %3359 = vst.msk [vmem:[#allocation2 + $0x40] sm:$0xff] %vm3356, %v3294
  %3360 = vst.msk [vmem:[#allocation2 + $0x58] sm:$0xff] %vm3356, %v3295
  %3361 = vst.msk [vmem:[#allocation2 + $0x70] sm:$0xff] %vm3356, %v3296
  %3362 = vst.msk [vmem:[#allocation2 + $0x88] sm:$0xff] %vm3356, %v3297
  %3363 = vst.msk [vmem:[#allocation2 + $0xa0] sm:$0xff] %vm3356, %v3298
  %3364 = vst.msk [vmem:[#allocation2 + $0xb8] sm:$0xff] %vm3356, %v3299
  %3365 = vst.msk [vmem:[#allocation2 + $0xd0] sm:$0xff] %vm3356, %v3300
  %3366 = vst.msk [vmem:[#allocation2 + $0xe8] sm:$0xff] %vm3356, %v3301
  %3367 = vst.msk [vmem:[#allocation2 + $0x100] sm:$0xff] %vm3356, %v3302
  %3368 = vst.msk [vmem:[#allocation2 + $0x118] sm:$0xff] %vm3356, %v3303
  %3369 = vst.msk [vmem:[#allocation2 + $0x130] sm:$0xff] %vm3356, %v3304
  %3370 = vst.msk [vmem:[#allocation2 + $0x148] sm:$0xff] %vm3356, %v3305
  %3371 = vst.msk [vmem:[#allocation2 + $0x160] sm:$0xff] %vm3356, %v3306
  %3372 = vst.msk [vmem:[#allocation2 + $0x178] sm:$0xff] %vm3356, %v3307
  %3373 = vst.msk [vmem:[#allocation2 + $0x190] sm:$0xff] %vm3356, %v3308
  %3374 = vst.msk [vmem:[#allocation2 + $0x1a8] sm:$0xff] %vm3356, %v3309
  %3375 = vst.msk [vmem:[#allocation2 + $0x1c0] sm:$0xff] %vm3356, %v3310
  %3376 = vst.msk [vmem:[#allocation2 + $0x1d8] sm:$0xff] %vm3356, %v3311
  %3377 = vst.msk [vmem:[#allocation2 + $0x1f0] sm:$0xff] %vm3356, %v3312
  %3378 = vst.msk [vmem:[#allocation2 + $0x208] sm:$0xff] %vm3356, %v3313
  %3379 = vst.msk [vmem:[#allocation2 + $0x220] sm:$0xff] %vm3356, %v3314
  %3380 = vst.msk [vmem:[#allocation2 + $0x238] sm:$0xff] %vm3356, %v3315
  %3381 = vst.msk [vmem:[#allocation2 + $0x250] sm:$0xff] %vm3356, %v3316
  %3382 = vst.msk [vmem:[#allocation2 + $0x268] sm:$0xff] %vm3356, %v3317
  %3383 = vst.msk [vmem:[#allocation2 + $0x280] sm:$0xff] %vm3356, %v3318
  %3384 = vst.msk [vmem:[#allocation2 + $0x298] sm:$0xff] %vm3356, %v3319
  %3385 = vst.msk [vmem:[#allocation2 + $0x2b0] sm:$0xff] %vm3356, %v3320
  %3386 = vst.msk [vmem:[#allocation2 + $0x2c8] sm:$0xff] %vm3356, %v3321
  %3387 = vst.msk [vmem:[#allocation2 + $0x2e0] sm:$0xff] %vm3356, %v3322
  %3388 = vst.msk [vmem:[#allocation2 + $0x2f8] sm:$0xff] %vm3356, %v3323
  %v3389 = vld [vmem:[#allocation2 + $0x8] sm:$0xff]
  %v3390 = vld [vmem:[#allocation2 + $0x10] sm:$0xff]
  %v3391 = vld [vmem:[#allocation2 + $0x20] sm:$0xff]
  %v3392 = vld [vmem:[#allocation2 + $0x28] sm:$0xff]
  %v3393 = vld [vmem:[#allocation2 + $0x38] sm:$0xff]
  %v3394 = vld [vmem:[#allocation2 + $0x40] sm:$0xff]
  %v3395 = vld [vmem:[#allocation2 + $0x50] sm:$0xff]
  %v3396 = vld [vmem:[#allocation2 + $0x58] sm:$0xff]
  %v3397 = vld [vmem:[#allocation2 + $0x68] sm:$0xff]
  %v3398 = vld [vmem:[#allocation2 + $0x70] sm:$0xff]
  %v3399 = vld [vmem:[#allocation2 + $0x80] sm:$0xff]
  %v3400 = vld [vmem:[#allocation2 + $0x88] sm:$0xff]
  %v3401 = vld [vmem:[#allocation2 + $0x98] sm:$0xff]
  %v3402 = vld [vmem:[#allocation2 + $0xa0] sm:$0xff]
  %v3403 = vld [vmem:[#allocation2 + $0xb0] sm:$0xff]
  %v3404 = vld [vmem:[#allocation2 + $0xb8] sm:$0xff]
  %v3405 = vld [vmem:[#allocation2 + $0xc8] sm:$0xff]
  %v3406 = vld [vmem:[#allocation2 + $0xd0] sm:$0xff]
  %v3407 = vld [vmem:[#allocation2 + $0xe0] sm:$0xff]
  %v3408 = vld [vmem:[#allocation2 + $0xe8] sm:$0xff]
  %v3409 = vld [vmem:[#allocation2 + $0xf8] sm:$0xff]
  %v3410 = vld [vmem:[#allocation2 + $0x100] sm:$0xff]
  %v3411 = vld [vmem:[#allocation2 + $0x110] sm:$0xff]
  %v3412 = vld [vmem:[#allocation2 + $0x118] sm:$0xff]
  %v3413 = vld [vmem:[#allocation2 + $0x128] sm:$0xff]
  %v3414 = vld [vmem:[#allocation2 + $0x130] sm:$0xff]
  %v3415 = vld [vmem:[#allocation2 + $0x140] sm:$0xff]
  %v3416 = vld [vmem:[#allocation2 + $0x148] sm:$0xff]
  %v3417 = vld [vmem:[#allocation2 + $0x158] sm:$0xff]
  %v3418 = vld [vmem:[#allocation2 + $0x160] sm:$0xff]
  %v3419 = vld [vmem:[#allocation2 + $0x170] sm:$0xff]
  %v3420 = vld [vmem:[#allocation2 + $0x178] sm:$0xff]
  %v3421 = vld [vmem:[#allocation2 + $0x188] sm:$0xff]
  %v3422 = vld [vmem:[#allocation2 + $0x190] sm:$0xff]
  %v3423 = vld [vmem:[#allocation2 + $0x1a0] sm:$0xff]
  %v3424 = vld [vmem:[#allocation2 + $0x1a8] sm:$0xff]
  %v3425 = vld [vmem:[#allocation2 + $0x1b8] sm:$0xff]
  %v3426 = vld [vmem:[#allocation2 + $0x1c0] sm:$0xff]
  %v3427 = vld [vmem:[#allocation2 + $0x1d0] sm:$0xff]
  %v3428 = vld [vmem:[#allocation2 + $0x1d8] sm:$0xff]
  %v3429 = vld [vmem:[#allocation2 + $0x1e8] sm:$0xff]
  %v3430 = vld [vmem:[#allocation2 + $0x1f0] sm:$0xff]
  %v3431 = vld [vmem:[#allocation2 + $0x200] sm:$0xff]
  %v3432 = vld [vmem:[#allocation2 + $0x208] sm:$0xff]
  %v3433 = vld [vmem:[#allocation2 + $0x218] sm:$0xff]
  %v3434 = vld [vmem:[#allocation2 + $0x220] sm:$0xff]
  %v3435 = vld [vmem:[#allocation2 + $0x230] sm:$0xff]
  %v3436 = vld [vmem:[#allocation2 + $0x238] sm:$0xff]
  %v3437 = vld [vmem:[#allocation2 + $0x248] sm:$0xff]
  %v3438 = vld [vmem:[#allocation2 + $0x250] sm:$0xff]
  %v3439 = vld [vmem:[#allocation2 + $0x260] sm:$0xff]
  %v3440 = vld [vmem:[#allocation2 + $0x268] sm:$0xff]
  %v3441 = vld [vmem:[#allocation2 + $0x278] sm:$0xff]
  %v3442 = vld [vmem:[#allocation2 + $0x280] sm:$0xff]
  %v3443 = vld [vmem:[#allocation2 + $0x290] sm:$0xff]
  %v3444 = vld [vmem:[#allocation2 + $0x298] sm:$0xff]
  %v3445 = vld [vmem:[#allocation2 + $0x2a8] sm:$0xff]
  %v3446 = vld [vmem:[#allocation2 + $0x2b0] sm:$0xff]
  %v3447 = vld [vmem:[#allocation2 + $0x2c0] sm:$0xff]
  %v3448 = vld [vmem:[#allocation2 + $0x2c8] sm:$0xff]
  %v3449 = vld [vmem:[#allocation2 + $0x2d8] sm:$0xff]
  %v3450 = vld [vmem:[#allocation2 + $0x2e0] sm:$0xff]
  %v3451 = vld [vmem:[#allocation2 + $0x2f0] sm:$0xff]
  %v3452 = vld [vmem:[#allocation2 + $0x2f8] sm:$0xff]
  %v3453 = vld [vmem:[%s6] sm:$0xf]
  %v3454 = vld [vmem:[%s6 + $0x4] sm:$0xf]
  %v3455 = vld [vmem:[%s6 + $0x8] sm:$0xf]
  %v3456 = vld [vmem:[%s6 + $0xc] sm:$0xf]
  %v3457 = vld [vmem:[%s6 + $0x10] sm:$0xf]
  %v3458 = vld [vmem:[%s6 + $0x14] sm:$0xf]
  %v3459 = vld [vmem:[%s6 + $0x18] sm:$0xf]
  %v3460 = vld [vmem:[%s6 + $0x1c] sm:$0xf]
  %v3461 = vld [vmem:[%s6 + $0x20] sm:$0xf]
  %v3462 = vld [vmem:[%s6 + $0x24] sm:$0xf]
  %v3463 = vld [vmem:[%s6 + $0x28] sm:$0xf]
  %v3464 = vld [vmem:[%s6 + $0x2c] sm:$0xf]
  %v3465 = vld [vmem:[%s6 + $0x30] sm:$0xf]
  %v3466 = vld [vmem:[%s6 + $0x34] sm:$0xf]
  %v3467 = vld [vmem:[%s6 + $0x38] sm:$0xf]
  %v3468 = vld [vmem:[%s6 + $0x3c] sm:$0xf]
  %v3469 = vld [vmem:[%s6 + $0x40] sm:$0xf]
  %v3470 = vld [vmem:[%s6 + $0x44] sm:$0xf]
  %v3471 = vld [vmem:[%s6 + $0x48] sm:$0xf]
  %v3472 = vld [vmem:[%s6 + $0x4c] sm:$0xf]
  %v3473 = vld [vmem:[%s7] sm:$0x1]
  %v3475 = vlaneseq
  %v3476 = vshrl.u32 %v3475, 7
  %v3477 = vsub.s32 0, %v3476
  %v3478 = vrot.slane %v3473, %v3477
  %v3500 = vunpack.c.l.b16 %v3453
  %v3501 = vunpack.c.l.b16 %v3454
  %v3502 = vunpack.c.l.b16 %v3455
  %v3503 = vunpack.c.l.b16 %v3456
  %v3504 = vunpack.c.l.b16 %v3457
  %v3505 = vunpack.c.l.b16 %v3458
  %v3506 = vunpack.c.l.b16 %v3459
  %v3507 = vunpack.c.l.b16 %v3460
  %v3508 = vunpack.c.l.b16 %v3461
  %v3509 = vunpack.c.l.b16 %v3462
  %v3510 = vunpack.c.l.b16 %v3463
  %v3511 = vunpack.c.l.b16 %v3464
  %v3512 = vunpack.c.l.b16 %v3465
  %v3513 = vunpack.c.l.b16 %v3466
  %v3514 = vunpack.c.l.b16 %v3467
  %v3515 = vunpack.c.l.b16 %v3468
  %v3516 = vunpack.c.l.b16 %v3469
  %v3517 = vunpack.c.l.b16 %v3470
  %v3518 = vunpack.c.l.b16 %v3471
  %v3519 = vunpack.c.l.b16 %v3472
  %v3520 = vpack.c.b16 %v3501, %v3500
  %v3521 = vpack.c.b16 %v3503, %v3502
  %v3522 = vpack.c.b16 %v3505, %v3504
  %v3523 = vpack.c.b16 %v3507, %v3506
  %v3524 = vpack.c.b16 %v3509, %v3508
  %v3525 = vpack.c.b16 %v3511, %v3510
  %v3526 = vpack.c.b16 %v3513, %v3512
  %v3527 = vpack.c.b16 %v3515, %v3514
  %v3528 = vpack.c.b16 %v3517, %v3516
  %v3529 = vpack.c.b16 %v3519, %v3518
  %v3541 = vsel %vm3356, %v3390, 0
  %v3544 = vsel %vm3356, %v3392, 0
  %v3547 = vsel %vm3356, %v3394, 0
  %v3550 = vsel %vm3356, %v3396, 0
  %v3553 = vsel %vm3356, %v3398, 0
  %v3556 = vsel %vm3356, %v3400, 0
  %v3559 = vsel %vm3356, %v3402, 0
  %v3562 = vsel %vm3356, %v3404, 0
  %v3565 = vsel %vm3356, %v3406, 0
  %v3568 = vsel %vm3356, %v3408, 0
  %v3571 = vsel %vm3356, %v3410, 0
  %v3574 = vsel %vm3356, %v3412, 0
  %v3577 = vsel %vm3356, %v3414, 0
  %v3580 = vsel %vm3356, %v3416, 0
  %v3583 = vsel %vm3356, %v3418, 0
  %v3586 = vsel %vm3356, %v3420, 0
  %v3589 = vsel %vm3356, %v3422, 0
  %v3592 = vsel %vm3356, %v3424, 0
  %v3595 = vsel %vm3356, %v3426, 0
  %v3598 = vsel %vm3356, %v3428, 0
  %v3601 = vsel %vm3356, %v3430, 0
  %v3604 = vsel %vm3356, %v3432, 0
  %v3607 = vsel %vm3356, %v3434, 0
  %v3610 = vsel %vm3356, %v3436, 0
  %v3613 = vsel %vm3356, %v3438, 0
  %v3616 = vsel %vm3356, %v3440, 0
  %v3619 = vsel %vm3356, %v3442, 0
  %v3622 = vsel %vm3356, %v3444, 0
  %v3625 = vsel %vm3356, %v3446, 0
  %v3628 = vsel %vm3356, %v3448, 0
  %v3631 = vsel %vm3356, %v3450, 0
  %v3634 = vsel %vm3356, %v3452, 0
  %3636 = vmatprep.subr.bf16.mxu0 0
  %3637 = vmatpush1.bf16.msra.mxu0 %v3520
  %3638 = vmatprep.subr.bf16.mxu0 0
  %3639 = vmatpush1.bf16.msra.mxu0 %v3521
  %3640 = vmatprep.subr.bf16.mxu0 0
  %3641 = vmatpush1.bf16.msra.mxu0 %v3522
  %3642 = vmatprep.subr.bf16.mxu0 0
  %3643 = vmatpush1.bf16.msra.mxu0 %v3523
  %3644 = vmatprep.subr.bf16.mxu0 0
  %3645 = vmatpush1.bf16.msra.mxu0 %v3524
  %3646 = vmatprep.subr.bf16.mxu0 0
  %3647 = vmatpush1.bf16.msra.mxu0 %v3525
  %3648 = vmatprep.subr.bf16.mxu0 0
  %3649 = vmatpush1.bf16.msra.mxu0 %v3526
  %3650 = vmatprep.subr.bf16.mxu0 0
  %3651 = vmatpush1.bf16.msra.mxu0 %v3527
  %3652 = vmatprep.subr.bf16.mxu0 0
  %3653 = vmatpush1.bf16.msra.mxu0 %v3528
  %3654 = vmatprep.subr.bf16.mxu0 0
  %3655 = vmatpush1.bf16.msra.mxu0 %v3529
  %3656 = vmatprep.subr.bf16.mxu0 0
  %3657 = vmatpush1.bf16.msra.mxu0 0
  %3658 = vmatprep.subr.bf16.mxu0 0
  %3659 = vmatpush1.bf16.msra.mxu0 0
  %3660 = vmatprep.subr.bf16.mxu0 0
  %3661 = vmatpush1.bf16.msra.mxu0 0
  %3662 = vmatprep.subr.bf16.mxu0 0
  %3663 = vmatpush1.bf16.msra.mxu0 0
  %3664 = vmatprep.subr.bf16.mxu0 0
  %3665 = vmatpush1.bf16.msra.mxu0 0
  %3666 = vmatprep.subr.bf16.mxu0 0
  %3667 = vmatpush1.bf16.msra.mxu0 0
  %3668 = vmatprep.mubr.bf16.mxu0 %v3541
  %3669 = vmatmul.mubr.bf16.gmra.mrb[0].mxu0 %v3389
  %v3670 = vpop.f32.mrb[0].mxu0
  %v3671 = vadd.f32 %v3478, %v3670
  %v3672 = vpop.f32.mrb[0].mxu0
  %v3673 = vpop.f32.mrb[0].mxu0
  %v3674 = vadd.f32 %v3478, %v3673
  %v3675 = vpop.f32.mrb[0].mxu0
  %3676 = vmatprep.mubr.bf16.mxu0 %v3544
  %3677 = vmatmul.mubr.bf16.gmra.mrb[0].mxu0 %v3391
  %v3678 = vpop.f32.mrb[0].mxu0
  %v3679 = vadd.f32 %v3478, %v3678
  %v3680 = vpop.f32.mrb[0].mxu0
  %v3681 = vpop.f32.mrb[0].mxu0
  %v3682 = vadd.f32 %v3478, %v3681
  %v3683 = vpop.f32.mrb[0].mxu0
  %3684 = vmatprep.mubr.bf16.mxu0 %v3547
  %3685 = vmatmul.mubr.bf16.gmra.mrb[0].mxu0 %v3393
  %v3686 = vpop.f32.mrb[0].mxu0
  %v3687 = vadd.f32 %v3478, %v3686
  %v3688 = vpop.f32.mrb[0].mxu0
  %v3689 = vpop.f32.mrb[0].mxu0
  %v3690 = vadd.f32 %v3478, %v3689
  %v3691 = vpop.f32.mrb[0].mxu0
  %3692 = vmatprep.mubr.bf16.mxu0 %v3550
  %3693 = vmatmul.mubr.bf16.gmra.mrb[0].mxu0 %v3395
  %v3694 = vpop.f32.mrb[0].mxu0
  %v3695 = vadd.f32 %v3478, %v3694
  %v3696 = vpop.f32.mrb[0].mxu0
  %v3697 = vpop.f32.mrb[0].mxu0
  %v3698 = vadd.f32 %v3478, %v3697
  %v3699 = vpop.f32.mrb[0].mxu0
  %3700 = vmatprep.mubr.bf16.mxu0 %v3553
  %3701 = vmatmul.mubr.bf16.gmra.mrb[0].mxu0 %v3397
  %v3702 = vpop.f32.mrb[0].mxu0
  %v3703 = vadd.f32 %v3478, %v3702
  %v3704 = vpop.f32.mrb[0].mxu0
  %v3705 = vpop.f32.mrb[0].mxu0
  %v3706 = vadd.f32 %v3478, %v3705
  %v3707 = vpop.f32.mrb[0].mxu0
  %3708 = vmatprep.mubr.bf16.mxu0 %v3556
  %3709 = vmatmul.mubr.bf16.gmra.mrb[0].mxu0 %v3399
  %v3710 = vpop.f32.mrb[0].mxu0
  %v3711 = vadd.f32 %v3478, %v3710
  %v3712 = vpop.f32.mrb[0].mxu0
  %v3713 = vpop.f32.mrb[0].mxu0
  %v3714 = vadd.f32 %v3478, %v3713
  %v3715 = vpop.f32.mrb[0].mxu0
  %3716 = vmatprep.mubr.bf16.mxu0 %v3559
  %3717 = vmatmul.mubr.bf16.gmra.mrb[0].mxu0 %v3401
  %v3718 = vpop.f32.mrb[0].mxu0
  %v3719 = vadd.f32 %v3478, %v3718
  %v3720 = vpop.f32.mrb[0].mxu0
  %v3721 = vpop.f32.mrb[0].mxu0
  %v3722 = vadd.f32 %v3478, %v3721
  %v3723 = vpop.f32.mrb[0].mxu0
  %3724 = vmatprep.mubr.bf16.mxu0 %v3562
  %3725 = vmatmul.mubr.bf16.gmra.mrb[0].mxu0 %v3403
  %v3726 = vpop.f32.mrb[0].mxu0
  %v3727 = vadd.f32 %v3478, %v3726
  %v3728 = vpop.f32.mrb[0].mxu0
  %v3729 = vpop.f32.mrb[0].mxu0
  %v3730 = vadd.f32 %v3478, %v3729
  %v3731 = vpop.f32.mrb[0].mxu0
  %3732 = vmatprep.mubr.bf16.mxu0 %v3565
  %3733 = vmatmul.mubr.bf16.gmra.mrb[0].mxu0 %v3405
  %v3734 = vpop.f32.mrb[0].mxu0
  %v3735 = vadd.f32 %v3478, %v3734
  %v3736 = vpop.f32.mrb[0].mxu0
  %v3737 = vpop.f32.mrb[0].mxu0
  %v3738 = vadd.f32 %v3478, %v3737
  %v3739 = vpop.f32.mrb[0].mxu0
  %3740 = vmatprep.mubr.bf16.mxu0 %v3568
  %3741 = vmatmul.mubr.bf16.gmra.mrb[0].mxu0 %v3407
  %v3742 = vpop.f32.mrb[0].mxu0
  %v3743 = vadd.f32 %v3478, %v3742
  %v3744 = vpop.f32.mrb[0].mxu0
  %v3745 = vpop.f32.mrb[0].mxu0
  %v3746 = vadd.f32 %v3478, %v3745
  %v3747 = vpop.f32.mrb[0].mxu0
  %3748 = vmatprep.mubr.bf16.mxu0 %v3571
  %3749 = vmatmul.mubr.bf16.gmra.mrb[0].mxu0 %v3409
  %v3750 = vpop.f32.mrb[0].mxu0
  %v3751 = vadd.f32 %v3478, %v3750
  %v3752 = vpop.f32.mrb[0].mxu0
  %v3753 = vpop.f32.mrb[0].mxu0
  %v3754 = vadd.f32 %v3478, %v3753
  %v3755 = vpop.f32.mrb[0].mxu0
  %3756 = vmatprep.mubr.bf16.mxu0 %v3574
  %3757 = vmatmul.mubr.bf16.gmra.mrb[0].mxu0 %v3411
  %v3758 = vpop.f32.mrb[0].mxu0
  %v3759 = vadd.f32 %v3478, %v3758
  %v3760 = vpop.f32.mrb[0].mxu0
  %v3761 = vpop.f32.mrb[0].mxu0
  %v3762 = vadd.f32 %v3478, %v3761
  %v3763 = vpop.f32.mrb[0].mxu0
  %3764 = vmatprep.mubr.bf16.mxu0 %v3577
  %3765 = vmatmul.mubr.bf16.gmra.mrb[0].mxu0 %v3413
  %v3766 = vpop.f32.mrb[0].mxu0
  %v3767 = vadd.f32 %v3478, %v3766
  %v3768 = vpop.f32.mrb[0].mxu0
  %v3769 = vpop.f32.mrb[0].mxu0
  %v3770 = vadd.f32 %v3478, %v3769
  %v3771 = vpop.f32.mrb[0].mxu0
  %3772 = vmatprep.mubr.bf16.mxu0 %v3580
  %3773 = vmatmul.mubr.bf16.gmra.mrb[0].mxu0 %v3415
  %v3774 = vpop.f32.mrb[0].mxu0
  %v3775 = vadd.f32 %v3478, %v3774
  %v3776 = vpop.f32.mrb[0].mxu0
  %v3777 = vpop.f32.mrb[0].mxu0
  %v3778 = vadd.f32 %v3478, %v3777
  %v3779 = vpop.f32.mrb[0].mxu0
  %3780 = vmatprep.mubr.bf16.mxu0 %v3583
  %3781 = vmatmul.mubr.bf16.gmra.mrb[0].mxu0 %v3417
  %v3782 = vpop.f32.mrb[0].mxu0
  %v3783 = vadd.f32 %v3478, %v3782
  %v3784 = vpop.f32.mrb[0].mxu0
  %v3785 = vpop.f32.mrb[0].mxu0
  %v3786 = vadd.f32 %v3478, %v3785
  %v3787 = vpop.f32.mrb[0].mxu0
  %3788 = vmatprep.mubr.bf16.mxu0 %v3586
  %3789 = vmatmul.mubr.bf16.gmra.mrb[0].mxu0 %v3419
  %v3790 = vpop.f32.mrb[0].mxu0
  %v3791 = vadd.f32 %v3478, %v3790
  %v3792 = vpop.f32.mrb[0].mxu0
  %v3793 = vpop.f32.mrb[0].mxu0
  %v3794 = vadd.f32 %v3478, %v3793
  %v3795 = vpop.f32.mrb[0].mxu0
  %3796 = vmatprep.mubr.bf16.mxu0 %v3589
  %3797 = vmatmul.mubr.bf16.gmra.mrb[0].mxu0 %v3421
  %v3798 = vpop.f32.mrb[0].mxu0
  %v3799 = vadd.f32 %v3478, %v3798
  %v3800 = vpop.f32.mrb[0].mxu0
  %v3801 = vpop.f32.mrb[0].mxu0
  %v3802 = vadd.f32 %v3478, %v3801
  %v3803 = vpop.f32.mrb[0].mxu0
  %3804 = vmatprep.mubr.bf16.mxu0 %v3592
  %3805 = vmatmul.mubr.bf16.gmra.mrb[0].mxu0 %v3423
  %v3806 = vpop.f32.mrb[0].mxu0
  %v3807 = vadd.f32 %v3478, %v3806
  %v3808 = vpop.f32.mrb[0].mxu0
  %v3809 = vpop.f32.mrb[0].mxu0
  %v3810 = vadd.f32 %v3478, %v3809
  %v3811 = vpop.f32.mrb[0].mxu0
  %3812 = vmatprep.mubr.bf16.mxu0 %v3595
  %3813 = vmatmul.mubr.bf16.gmra.mrb[0].mxu0 %v3425
  %v3814 = vpop.f32.mrb[0].mxu0
  %v3815 = vadd.f32 %v3478, %v3814
  %v3816 = vpop.f32.mrb[0].mxu0
  %v3817 = vpop.f32.mrb[0].mxu0
  %v3818 = vadd.f32 %v3478, %v3817
  %v3819 = vpop.f32.mrb[0].mxu0
  %3820 = vmatprep.mubr.bf16.mxu0 %v3598
  %3821 = vmatmul.mubr.bf16.gmra.mrb[0].mxu0 %v3427
  %v3822 = vpop.f32.mrb[0].mxu0
  %v3823 = vadd.f32 %v3478, %v3822
  %v3824 = vpop.f32.mrb[0].mxu0
  %v3825 = vpop.f32.mrb[0].mxu0
  %v3826 = vadd.f32 %v3478, %v3825
  %v3827 = vpop.f32.mrb[0].mxu0
  %3828 = vmatprep.mubr.bf16.mxu0 %v3601
  %3829 = vmatmul.mubr.bf16.gmra.mrb[0].mxu0 %v3429
  %v3830 = vpop.f32.mrb[0].mxu0
  %v3831 = vadd.f32 %v3478, %v3830
  %v3832 = vpop.f32.mrb[0].mxu0
  %v3833 = vpop.f32.mrb[0].mxu0
  %v3834 = vadd.f32 %v3478, %v3833
  %v3835 = vpop.f32.mrb[0].mxu0
  %3836 = vmatprep.mubr.bf16.mxu0 %v3604
  %3837 = vmatmul.mubr.bf16.gmra.mrb[0].mxu0 %v3431
  %v3838 = vpop.f32.mrb[0].mxu0
  %v3839 = vadd.f32 %v3478, %v3838
  %v3840 = vpop.f32.mrb[0].mxu0
  %v3841 = vpop.f32.mrb[0].mxu0
  %v3842 = vadd.f32 %v3478, %v3841
  %v3843 = vpop.f32.mrb[0].mxu0
  %3844 = vmatprep.mubr.bf16.mxu0 %v3607
  %3845 = vmatmul.mubr.bf16.gmra.mrb[0].mxu0 %v3433
  %v3846 = vpop.f32.mrb[0].mxu0
  %v3847 = vadd.f32 %v3478, %v3846
  %v3848 = vpop.f32.mrb[0].mxu0
  %v3849 = vpop.f32.mrb[0].mxu0
  %v3850 = vadd.f32 %v3478, %v3849
  %v3851 = vpop.f32.mrb[0].mxu0
  %3852 = vmatprep.mubr.bf16.mxu0 %v3610
  %3853 = vmatmul.mubr.bf16.gmra.mrb[0].mxu0 %v3435
  %v3854 = vpop.f32.mrb[0].mxu0
  %v3855 = vadd.f32 %v3478, %v3854
  %v3856 = vpop.f32.mrb[0].mxu0
  %v3857 = vpop.f32.mrb[0].mxu0
  %v3858 = vadd.f32 %v3478, %v3857
  %v3859 = vpop.f32.mrb[0].mxu0
  %3860 = vmatprep.mubr.bf16.mxu0 %v3613
  %3861 = vmatmul.mubr.bf16.gmra.mrb[0].mxu0 %v3437
  %v3862 = vpop.f32.mrb[0].mxu0
  %v3863 = vadd.f32 %v3478, %v3862
  %v3864 = vpop.f32.mrb[0].mxu0
  %v3865 = vpop.f32.mrb[0].mxu0
  %v3866 = vadd.f32 %v3478, %v3865
  %v3867 = vpop.f32.mrb[0].mxu0
  %3868 = vmatprep.mubr.bf16.mxu0 %v3616
  %3869 = vmatmul.mubr.bf16.gmra.mrb[0].mxu0 %v3439
  %v3870 = vpop.f32.mrb[0].mxu0
  %v3871 = vadd.f32 %v3478, %v3870
  %v3872 = vpop.f32.mrb[0].mxu0
  %v3873 = vpop.f32.mrb[0].mxu0
  %v3874 = vadd.f32 %v3478, %v3873
  %v3875 = vpop.f32.mrb[0].mxu0
  %3876 = vmatprep.mubr.bf16.mxu0 %v3619
  %3877 = vmatmul.mubr.bf16.gmra.mrb[0].mxu0 %v3441
  %v3878 = vpop.f32.mrb[0].mxu0
  %v3879 = vadd.f32 %v3478, %v3878
  %v3880 = vpop.f32.mrb[0].mxu0
  %v3881 = vpop.f32.mrb[0].mxu0
  %v3882 = vadd.f32 %v3478, %v3881
  %v3883 = vpop.f32.mrb[0].mxu0
  %3884 = vmatprep.mubr.bf16.mxu0 %v3622
  %3885 = vmatmul.mubr.bf16.gmra.mrb[0].mxu0 %v3443
  %v3886 = vpop.f32.mrb[0].mxu0
  %v3887 = vadd.f32 %v3478, %v3886
  %v3888 = vpop.f32.mrb[0].mxu0
  %v3889 = vpop.f32.mrb[0].mxu0
  %v3890 = vadd.f32 %v3478, %v3889
  %v3891 = vpop.f32.mrb[0].mxu0
  %3892 = vmatprep.mubr.bf16.mxu0 %v3625
  %3893 = vmatmul.mubr.bf16.gmra.mrb[0].mxu0 %v3445
  %v3894 = vpop.f32.mrb[0].mxu0
  %v3895 = vadd.f32 %v3478, %v3894
  %v3896 = vpop.f32.mrb[0].mxu0
  %v3897 = vpop.f32.mrb[0].mxu0
  %v3898 = vadd.f32 %v3478, %v3897
  %v3899 = vpop.f32.mrb[0].mxu0
  %3900 = vmatprep.mubr.bf16.mxu0 %v3628
  %3901 = vmatmul.mubr.bf16.gmra.mrb[0].mxu0 %v3447
  %v3902 = vpop.f32.mrb[0].mxu0
  %v3903 = vadd.f32 %v3478, %v3902
  %v3904 = vpop.f32.mrb[0].mxu0
  %v3905 = vpop.f32.mrb[0].mxu0
  %v3906 = vadd.f32 %v3478, %v3905
  %v3907 = vpop.f32.mrb[0].mxu0
  %3908 = vmatprep.mubr.bf16.mxu0 %v3631
  %3909 = vmatmul.mubr.bf16.gmra.mrb[0].mxu0 %v3449
  %v3910 = vpop.f32.mrb[0].mxu0
  %v3911 = vadd.f32 %v3478, %v3910
  %v3912 = vpop.f32.mrb[0].mxu0
  %v3913 = vpop.f32.mrb[0].mxu0
  %v3914 = vadd.f32 %v3478, %v3913
  %v3915 = vpop.f32.mrb[0].mxu0
  %3916 = vmatprep.mubr.bf16.mxu0 %v3634
  %3917 = vmatmul.mubr.bf16.gmra.mrb[0].mxu0 %v3451
  %v3918 = vpop.f32.mrb[0].mxu0
  %v3919 = vadd.f32 %v3478, %v3918
  %v3920 = vpop.f32.mrb[0].mxu0
  %v3921 = vpop.f32.mrb[0].mxu0
  %v3922 = vadd.f32 %v3478, %v3921
  %v3923 = vpop.f32.mrb[0].mxu0
  %3924 = vdwg.mxu0
  %v3925 = vmax.f32 %v3671, 0.0
  %v3926 = vmax.f32 %v3674, 0.0
  %v3927 = vmax.f32 %v3679, 0.0
  %v3928 = vmax.f32 %v3682, 0.0
  %v3929 = vmax.f32 %v3687, 0.0
  %v3930 = vmax.f32 %v3690, 0.0
  %v3931 = vmax.f32 %v3695, 0.0
  %v3932 = vmax.f32 %v3698, 0.0
  %v3933 = vmax.f32 %v3703, 0.0
  %v3934 = vmax.f32 %v3706, 0.0
  %v3935 = vmax.f32 %v3711, 0.0
  %v3936 = vmax.f32 %v3714, 0.0
  %v3937 = vmax.f32 %v3719, 0.0
  %v3938 = vmax.f32 %v3722, 0.0
  %v3939 = vmax.f32 %v3727, 0.0
  %v3940 = vmax.f32 %v3730, 0.0
  %v3941 = vmax.f32 %v3735, 0.0
  %v3942 = vmax.f32 %v3738, 0.0
  %v3943 = vmax.f32 %v3743, 0.0
  %v3944 = vmax.f32 %v3746, 0.0
  %v3945 = vmax.f32 %v3751, 0.0
  %v3946 = vmax.f32 %v3754, 0.0
  %v3947 = vmax.f32 %v3759, 0.0
  %v3948 = vmax.f32 %v3762, 0.0
  %v3949 = vmax.f32 %v3767, 0.0
  %v3950 = vmax.f32 %v3770, 0.0
  %v3951 = vmax.f32 %v3775, 0.0
  %v3952 = vmax.f32 %v3778, 0.0
  %v3953 = vmax.f32 %v3783, 0.0
  %v3954 = vmax.f32 %v3786, 0.0
  %v3955 = vmax.f32 %v3791, 0.0
  %v3956 = vmax.f32 %v3794, 0.0
  %v3957 = vmax.f32 %v3799, 0.0
  %v3958 = vmax.f32 %v3802, 0.0
  %v3959 = vmax.f32 %v3807, 0.0
  %v3960 = vmax.f32 %v3810, 0.0
  %v3961 = vmax.f32 %v3815, 0.0
  %v3962 = vmax.f32 %v3818, 0.0
  %v3963 = vmax.f32 %v3823, 0.0
  %v3964 = vmax.f32 %v3826, 0.0
  %v3965 = vmax.f32 %v3831, 0.0
  %v3966 = vmax.f32 %v3834, 0.0
  %v3967 = vmax.f32 %v3839, 0.0
  %v3968 = vmax.f32 %v3842, 0.0
  %v3969 = vmax.f32 %v3847, 0.0
  %v3970 = vmax.f32 %v3850, 0.0
  %v3971 = vmax.f32 %v3855, 0.0
  %v3972 = vmax.f32 %v3858, 0.0
  %v3973 = vmax.f32 %v3863, 0.0
  %v3974 = vmax.f32 %v3866, 0.0
  %v3975 = vmax.f32 %v3871, 0.0
  %v3976 = vmax.f32 %v3874, 0.0
  %v3977 = vmax.f32 %v3879, 0.0
  %v3978 = vmax.f32 %v3882, 0.0
  %v3979 = vmax.f32 %v3887, 0.0
  %v3980 = vmax.f32 %v3890, 0.0
  %v3981 = vmax.f32 %v3895, 0.0
  %v3982 = vmax.f32 %v3898, 0.0
  %v3983 = vmax.f32 %v3903, 0.0
  %v3984 = vmax.f32 %v3906, 0.0
  %v3985 = vmax.f32 %v3911, 0.0
  %v3986 = vmax.f32 %v3914, 0.0
  %v3987 = vmax.f32 %v3919, 0.0
  %v3988 = vmax.f32 %v3922, 0.0
  %v3989 = vpack.c.bf16 %v3926, %v3925
  %v3990 = vpack.c.bf16 %v3928, %v3927
  %v3991 = vpack.c.bf16 %v3930, %v3929
  %v3992 = vpack.c.bf16 %v3932, %v3931
  %v3993 = vpack.c.bf16 %v3934, %v3933
  %v3994 = vpack.c.bf16 %v3936, %v3935
  %v3995 = vpack.c.bf16 %v3938, %v3937
  %v3996 = vpack.c.bf16 %v3940, %v3939
  %v3997 = vpack.c.bf16 %v3942, %v3941
  %v3998 = vpack.c.bf16 %v3944, %v3943
  %v3999 = vpack.c.bf16 %v3946, %v3945
  %v4000 = vpack.c.bf16 %v3948, %v3947
  %v4001 = vpack.c.bf16 %v3950, %v3949
  %v4002 = vpack.c.bf16 %v3952, %v3951
  %v4003 = vpack.c.bf16 %v3954, %v3953
  %v4004 = vpack.c.bf16 %v3956, %v3955
  %v4005 = vpack.c.bf16 %v3958, %v3957
  %v4006 = vpack.c.bf16 %v3960, %v3959
  %v4007 = vpack.c.bf16 %v3962, %v3961
  %v4008 = vpack.c.bf16 %v3964, %v3963
  %v4009 = vpack.c.bf16 %v3966, %v3965
  %v4010 = vpack.c.bf16 %v3968, %v3967
  %v4011 = vpack.c.bf16 %v3970, %v3969
  %v4012 = vpack.c.bf16 %v3972, %v3971
  %v4013 = vpack.c.bf16 %v3974, %v3973
  %v4014 = vpack.c.bf16 %v3976, %v3975
  %v4015 = vpack.c.bf16 %v3978, %v3977
  %v4016 = vpack.c.bf16 %v3980, %v3979
  %v4017 = vpack.c.bf16 %v3982, %v3981
  %v4018 = vpack.c.bf16 %v3984, %v3983
  %v4019 = vpack.c.bf16 %v3986, %v3985
  %v4020 = vpack.c.bf16 %v3988, %v3987
  %4021 = vst [vmem:[#allocation2] sm:$0xff] %v3989
  %4022 = vst [vmem:[#allocation2 + $0x18] sm:$0xff] %v3990
  %4023 = vst [vmem:[#allocation2 + $0x30] sm:$0xff] %v3991
  %4024 = vst [vmem:[#allocation2 + $0x48] sm:$0xff] %v3992
  %4025 = vst [vmem:[#allocation2 + $0x60] sm:$0xff] %v3993
  %4026 = vst [vmem:[#allocation2 + $0x78] sm:$0xff] %v3994
  %4027 = vst [vmem:[#allocation2 + $0x90] sm:$0xff] %v3995
  %4028 = vst [vmem:[#allocation2 + $0xa8] sm:$0xff] %v3996
  %4029 = vst [vmem:[#allocation2 + $0xc0] sm:$0xff] %v3997
  %4030 = vst [vmem:[#allocation2 + $0xd8] sm:$0xff] %v3998
  %4031 = vst [vmem:[#allocation2 + $0xf0] sm:$0xff] %v3999
  %4032 = vst [vmem:[#allocation2 + $0x108] sm:$0xff] %v4000
  %4033 = vst [vmem:[#allocation2 + $0x120] sm:$0xff] %v4001
  %4034 = vst [vmem:[#allocation2 + $0x138] sm:$0xff] %v4002
  %4035 = vst [vmem:[#allocation2 + $0x150] sm:$0xff] %v4003
  %4036 = vst [vmem:[#allocation2 + $0x168] sm:$0xff] %v4004
  %4037 = vst [vmem:[#allocation2 + $0x180] sm:$0xff] %v4005
  %4038 = vst [vmem:[#allocation2 + $0x198] sm:$0xff] %v4006
  %4039 = vst [vmem:[#allocation2 + $0x1b0] sm:$0xff] %v4007
  %4040 = vst [vmem:[#allocation2 + $0x1c8] sm:$0xff] %v4008
  %4041 = vst [vmem:[#allocation2 + $0x1e0] sm:$0xff] %v4009
  %4042 = vst [vmem:[#allocation2 + $0x1f8] sm:$0xff] %v4010
  %4043 = vst [vmem:[#allocation2 + $0x210] sm:$0xff] %v4011
  %4044 = vst [vmem:[#allocation2 + $0x228] sm:$0xff] %v4012
  %4045 = vst [vmem:[#allocation2 + $0x240] sm:$0xff] %v4013
  %4046 = vst [vmem:[#allocation2 + $0x258] sm:$0xff] %v4014
  %4047 = vst [vmem:[#allocation2 + $0x270] sm:$0xff] %v4015
  %4048 = vst [vmem:[#allocation2 + $0x288] sm:$0xff] %v4016
  %4049 = vst [vmem:[#allocation2 + $0x2a0] sm:$0xff] %v4017
  %4050 = vst [vmem:[#allocation2 + $0x2b8] sm:$0xff] %v4018
  %4051 = vst [vmem:[#allocation2 + $0x2d0] sm:$0xff] %v4019
  %4052 = vst [vmem:[#allocation2 + $0x2e8] sm:$0xff] %v4020
  %v4053 = vld [vmem:[#allocation2] sm:$0xff]
  %v4054 = vld [vmem:[#allocation2 + $0x8] sm:$0xff]
  %v4055 = vld [vmem:[#allocation2 + $0x10] sm:$0xff]
  %v4056 = vld [vmem:[#allocation2 + $0x18] sm:$0xff]
  %v4057 = vld [vmem:[#allocation2 + $0x20] sm:$0xff]
  %v4058 = vld [vmem:[#allocation2 + $0x28] sm:$0xff]
  %v4059 = vld [vmem:[#allocation2 + $0x30] sm:$0xff]
  %v4060 = vld [vmem:[#allocation2 + $0x38] sm:$0xff]
  %v4061 = vld [vmem:[#allocation2 + $0x40] sm:$0xff]
  %v4062 = vld [vmem:[#allocation2 + $0x48] sm:$0xff]
  %v4063 = vld [vmem:[#allocation2 + $0x50] sm:$0xff]
  %v4064 = vld [vmem:[#allocation2 + $0x58] sm:$0xff]
  %v4065 = vld [vmem:[#allocation2 + $0x60] sm:$0xff]
  %v4066 = vld [vmem:[#allocation2 + $0x68] sm:$0xff]
  %v4067 = vld [vmem:[#allocation2 + $0x70] sm:$0xff]
  %v4068 = vld [vmem:[#allocation2 + $0x78] sm:$0xff]
  %v4069 = vld [vmem:[#allocation2 + $0x80] sm:$0xff]
  %v4070 = vld [vmem:[#allocation2 + $0x88] sm:$0xff]
  %v4071 = vld [vmem:[#allocation2 + $0x90] sm:$0xff]
  %v4072 = vld [vmem:[#allocation2 + $0x98] sm:$0xff]
  %v4073 = vld [vmem:[#allocation2 + $0xa0] sm:$0xff]
  %v4074 = vld [vmem:[#allocation2 + $0xa8] sm:$0xff]
  %v4075 = vld [vmem:[#allocation2 + $0xb0] sm:$0xff]
  %v4076 = vld [vmem:[#allocation2 + $0xb8] sm:$0xff]
  %v4077 = vld [vmem:[#allocation2 + $0xc0] sm:$0xff]
  %v4078 = vld [vmem:[#allocation2 + $0xc8] sm:$0xff]
  %v4079 = vld [vmem:[#allocation2 + $0xd0] sm:$0xff]
  %v4080 = vld [vmem:[#allocation2 + $0xd8] sm:$0xff]
  %v4081 = vld [vmem:[#allocation2 + $0xe0] sm:$0xff]
  %v4082 = vld [vmem:[#allocation2 + $0xe8] sm:$0xff]
  %v4083 = vld [vmem:[#allocation2 + $0xf0] sm:$0xff]
  %v4084 = vld [vmem:[#allocation2 + $0xf8] sm:$0xff]
  %v4085 = vld [vmem:[#allocation2 + $0x100] sm:$0xff]
  %v4086 = vld [vmem:[#allocation2 + $0x108] sm:$0xff]
  %v4087 = vld [vmem:[#allocation2 + $0x110] sm:$0xff]
  %v4088 = vld [vmem:[#allocation2 + $0x118] sm:$0xff]
  %v4089 = vld [vmem:[#allocation2 + $0x120] sm:$0xff]
  %v4090 = vld [vmem:[#allocation2 + $0x128] sm:$0xff]
  %v4091 = vld [vmem:[#allocation2 + $0x130] sm:$0xff]
  %v4092 = vld [vmem:[#allocation2 + $0x138] sm:$0xff]
  %v4093 = vld [vmem:[#allocation2 + $0x140] sm:$0xff]
  %v4094 = vld [vmem:[#allocation2 + $0x148] sm:$0xff]
  %v4095 = vld [vmem:[#allocation2 + $0x150] sm:$0xff]
  %v4096 = vld [vmem:[#allocation2 + $0x158] sm:$0xff]
  %v4097 = vld [vmem:[#allocation2 + $0x160] sm:$0xff]
  %v4098 = vld [vmem:[#allocation2 + $0x168] sm:$0xff]
  %v4099 = vld [vmem:[#allocation2 + $0x170] sm:$0xff]
  %v4100 = vld [vmem:[#allocation2 + $0x178] sm:$0xff]
  %v4101 = vld [vmem:[#allocation2 + $0x180] sm:$0xff]
  %v4102 = vld [vmem:[#allocation2 + $0x188] sm:$0xff]
  %v4103 = vld [vmem:[#allocation2 + $0x190] sm:$0xff]
  %v4104 = vld [vmem:[#allocation2 + $0x198] sm:$0xff]
  %v4105 = vld [vmem:[#allocation2 + $0x1a0] sm:$0xff]
  %v4106 = vld [vmem:[#allocation2 + $0x1a8] sm:$0xff]
  %v4107 = vld [vmem:[#allocation2 + $0x1b0] sm:$0xff]
  %v4108 = vld [vmem:[#allocation2 + $0x1b8] sm:$0xff]
  %v4109 = vld [vmem:[#allocation2 + $0x1c0] sm:$0xff]
  %v4110 = vld [vmem:[#allocation2 + $0x1c8] sm:$0xff]
  %v4111 = vld [vmem:[#allocation2 + $0x1d0] sm:$0xff]
  %v4112 = vld [vmem:[#allocation2 + $0x1d8] sm:$0xff]
  %v4113 = vld [vmem:[#allocation2 + $0x1e0] sm:$0xff]
  %v4114 = vld [vmem:[#allocation2 + $0x1e8] sm:$0xff]
  %v4115 = vld [vmem:[#allocation2 + $0x1f0] sm:$0xff]
  %v4116 = vld [vmem:[#allocation2 + $0x1f8] sm:$0xff]
  %v4117 = vld [vmem:[#allocation2 + $0x200] sm:$0xff]
  %v4118 = vld [vmem:[#allocation2 + $0x208] sm:$0xff]
  %v4119 = vld [vmem:[#allocation2 + $0x210] sm:$0xff]
  %v4120 = vld [vmem:[#allocation2 + $0x218] sm:$0xff]
  %v4121 = vld [vmem:[#allocation2 + $0x220] sm:$0xff]
  %v4122 = vld [vmem:[#allocation2 + $0x228] sm:$0xff]
  %v4123 = vld [vmem:[#allocation2 + $0x230] sm:$0xff]
  %v4124 = vld [vmem:[#allocation2 + $0x238] sm:$0xff]
  %v4125 = vld [vmem:[#allocation2 + $0x240] sm:$0xff]
  %v4126 = vld [vmem:[#allocation2 + $0x248] sm:$0xff]
  %v4127 = vld [vmem:[#allocation2 + $0x250] sm:$0xff]
  %v4128 = vld [vmem:[#allocation2 + $0x258] sm:$0xff]
  %v4129 = vld [vmem:[#allocation2 + $0x260] sm:$0xff]
  %v4130 = vld [vmem:[#allocation2 + $0x268] sm:$0xff]
  %v4131 = vld [vmem:[#allocation2 + $0x270] sm:$0xff]
  %v4132 = vld [vmem:[#allocation2 + $0x278] sm:$0xff]
  %v4133 = vld [vmem:[#allocation2 + $0x280] sm:$0xff]
  %v4134 = vld [vmem:[#allocation2 + $0x288] sm:$0xff]
  %v4135 = vld [vmem:[#allocation2 + $0x290] sm:$0xff]
  %v4136 = vld [vmem:[#allocation2 + $0x298] sm:$0xff]
  %v4137 = vld [vmem:[#allocation2 + $0x2a0] sm:$0xff]
  %v4138 = vld [vmem:[#allocation2 + $0x2a8] sm:$0xff]
  %v4139 = vld [vmem:[#allocation2 + $0x2b0] sm:$0xff]
  %v4140 = vld [vmem:[#allocation2 + $0x2b8] sm:$0xff]
  %v4141 = vld [vmem:[#allocation2 + $0x2c0] sm:$0xff]
  %v4142 = vld [vmem:[#allocation2 + $0x2c8] sm:$0xff]
  %v4143 = vld [vmem:[#allocation2 + $0x2d0] sm:$0xff]
  %v4144 = vld [vmem:[#allocation2 + $0x2d8] sm:$0xff]
  %v4145 = vld [vmem:[#allocation2 + $0x2e0] sm:$0xff]
  %v4146 = vld [vmem:[#allocation2 + $0x2e8] sm:$0xff]
  %v4147 = vld [vmem:[#allocation2 + $0x2f0] sm:$0xff]
  %v4148 = vld [vmem:[#allocation2 + $0x2f8] sm:$0xff]
  %v4149 = vld [vmem:[%s8] sm:$0xf]
  %v4150 = vld [vmem:[%s8 + $0x4] sm:$0xf]
  %v4151 = vld [vmem:[%s8 + $0x8] sm:$0xf]
  %v4152 = vld [vmem:[%s8 + $0xc] sm:$0xf]
  %v4153 = vld [vmem:[%s8 + $0x10] sm:$0xf]
  %v4154 = vld [vmem:[%s8 + $0x14] sm:$0xf]
  %v4155 = vld [vmem:[%s8 + $0x18] sm:$0xf]
  %v4156 = vld [vmem:[%s8 + $0x1c] sm:$0xf]
  %v4157 = vld [vmem:[%s8 + $0x20] sm:$0xf]
  %v4158 = vld [vmem:[%s8 + $0x24] sm:$0xf]
  %v4159 = vld [vmem:[%s8 + $0x28] sm:$0xf]
  %v4160 = vld [vmem:[%s8 + $0x2c] sm:$0xf]
  %v4161 = vld [vmem:[%s8 + $0x30] sm:$0xf]
  %v4162 = vld [vmem:[%s8 + $0x34] sm:$0xf]
  %v4163 = vld [vmem:[%s8 + $0x38] sm:$0xf]
  %v4164 = vld [vmem:[%s8 + $0x3c] sm:$0xf]
  %v4165 = vld [vmem:[%s8 + $0x40] sm:$0xf]
  %v4166 = vld [vmem:[%s8 + $0x44] sm:$0xf]
  %v4167 = vld [vmem:[%s8 + $0x48] sm:$0xf]
  %v4168 = vld [vmem:[%s8 + $0x4c] sm:$0xf]
  %v4169 = vld [vmem:[%s8 + $0x50] sm:$0xf]
  %v4170 = vld [vmem:[%s8 + $0x54] sm:$0xf]
  %v4171 = vld [vmem:[%s8 + $0x58] sm:$0xf]
  %v4172 = vld [vmem:[%s8 + $0x5c] sm:$0xf]
  %v4173 = vld [vmem:[%s8 + $0x60] sm:$0xf]
  %v4174 = vld [vmem:[%s8 + $0x64] sm:$0xf]
  %v4175 = vld [vmem:[%s8 + $0x68] sm:$0xf]
  %v4176 = vld [vmem:[%s8 + $0x6c] sm:$0xf]
  %v4177 = vld [vmem:[%s8 + $0x70] sm:$0xf]
  %v4178 = vld [vmem:[%s8 + $0x74] sm:$0xf]
  %v4179 = vld [vmem:[%s8 + $0x78] sm:$0xf]
  %v4180 = vld [vmem:[%s8 + $0x7c] sm:$0xf]
  %v4181 = vld [vmem:[%s8 + $0x80] sm:$0xf]
  %v4182 = vld [vmem:[%s8 + $0x84] sm:$0xf]
  %v4183 = vld [vmem:[%s8 + $0x88] sm:$0xf]
  %v4184 = vld [vmem:[%s8 + $0x8c] sm:$0xf]
  %v4185 = vld [vmem:[%s9] sm:$0x1]
  %v4187 = vlaneseq
  %v4188 = vshrl.u32 %v4187, 7
  %v4189 = vsub.s32 0, %v4188
  %v4190 = vrot.slane %v4185, %v4189
  %v4228 = vunpack.c.l.b16 %v4149
  %v4229 = vunpack.c.l.b16 %v4150
  %v4230 = vunpack.c.l.b16 %v4151
  %v4231 = vunpack.c.l.b16 %v4152
  %v4232 = vunpack.c.l.b16 %v4153
  %v4233 = vunpack.c.l.b16 %v4154
  %v4234 = vunpack.c.l.b16 %v4155
  %v4235 = vunpack.c.l.b16 %v4156
  %v4236 = vunpack.c.l.b16 %v4157
  %v4237 = vunpack.c.l.b16 %v4158
  %v4238 = vunpack.c.l.b16 %v4159
  %v4239 = vunpack.c.l.b16 %v4160
  %v4240 = vunpack.c.l.b16 %v4161
  %v4241 = vunpack.c.l.b16 %v4162
  %v4242 = vunpack.c.l.b16 %v4163
  %v4243 = vunpack.c.l.b16 %v4164
  %v4244 = vunpack.c.l.b16 %v4165
  %v4245 = vunpack.c.l.b16 %v4166
  %v4246 = vunpack.c.l.b16 %v4167
  %v4247 = vunpack.c.l.b16 %v4168
  %v4248 = vunpack.c.l.b16 %v4169
  %v4249 = vunpack.c.l.b16 %v4170
  %v4250 = vunpack.c.l.b16 %v4171
  %v4251 = vunpack.c.l.b16 %v4172
  %v4252 = vunpack.c.l.b16 %v4173
  %v4253 = vunpack.c.l.b16 %v4174
  %v4254 = vunpack.c.l.b16 %v4175
  %v4255 = vunpack.c.l.b16 %v4176
  %v4256 = vunpack.c.l.b16 %v4177
  %v4257 = vunpack.c.l.b16 %v4178
  %v4258 = vunpack.c.l.b16 %v4179
  %v4259 = vunpack.c.l.b16 %v4180
  %v4260 = vunpack.c.l.b16 %v4181
  %v4261 = vunpack.c.l.b16 %v4182
  %v4262 = vunpack.c.l.b16 %v4183
  %v4263 = vunpack.c.l.b16 %v4184
  %v4264 = vpack.c.b16 %v4229, %v4228
  %v4265 = vpack.c.b16 %v4231, %v4230
  %v4266 = vpack.c.b16 %v4233, %v4232
  %v4267 = vpack.c.b16 %v4235, %v4234
  %v4268 = vpack.c.b16 %v4237, %v4236
  %v4269 = vpack.c.b16 %v4239, %v4238
  %v4270 = vpack.c.b16 %v4241, %v4240
  %v4271 = vpack.c.b16 %v4243, %v4242
  %v4272 = vpack.c.b16 %v4245, %v4244
  %v4273 = vpack.c.b16 %v4247, %v4246
  %v4274 = vpack.c.b16 %v4249, %v4248
  %v4275 = vpack.c.b16 %v4251, %v4250
  %v4276 = vpack.c.b16 %v4253, %v4252
  %v4277 = vpack.c.b16 %v4255, %v4254
  %v4278 = vpack.c.b16 %v4257, %v4256
  %v4279 = vpack.c.b16 %v4259, %v4258
  %v4280 = vpack.c.b16 %v4261, %v4260
  %v4281 = vpack.c.b16 %v4263, %v4262
  %v4301 = vsel %vm3356, %v4055, 0
  %v4304 = vsel %vm3356, %v4058, 0
  %v4307 = vsel %vm3356, %v4061, 0
  %v4310 = vsel %vm3356, %v4064, 0
  %v4313 = vsel %vm3356, %v4067, 0
  %v4316 = vsel %vm3356, %v4070, 0
  %v4319 = vsel %vm3356, %v4073, 0
  %v4322 = vsel %vm3356, %v4076, 0
  %v4325 = vsel %vm3356, %v4079, 0
  %v4328 = vsel %vm3356, %v4082, 0
  %v4331 = vsel %vm3356, %v4085, 0
  %v4334 = vsel %vm3356, %v4088, 0
  %v4337 = vsel %vm3356, %v4091, 0
  %v4340 = vsel %vm3356, %v4094, 0
  %v4343 = vsel %vm3356, %v4097, 0
  %v4346 = vsel %vm3356, %v4100, 0
  %v4349 = vsel %vm3356, %v4103, 0
  %v4352 = vsel %vm3356, %v4106, 0
  %v4355 = vsel %vm3356, %v4109, 0
  %v4358 = vsel %vm3356, %v4112, 0
  %v4361 = vsel %vm3356, %v4115, 0
  %v4364 = vsel %vm3356, %v4118, 0
  %v4367 = vsel %vm3356, %v4121, 0
  %v4370 = vsel %vm3356, %v4124, 0
  %v4373 = vsel %vm3356, %v4127, 0
  %v4376 = vsel %vm3356, %v4130, 0
  %v4379 = vsel %vm3356, %v4133, 0
  %v4382 = vsel %vm3356, %v4136, 0
  %v4385 = vsel %vm3356, %v4139, 0
  %v4388 = vsel %vm3356, %v4142, 0
  %v4391 = vsel %vm3356, %v4145, 0
  %v4394 = vsel %vm3356, %v4148, 0
  %4396 = vmatprep.subr.bf16.mxu0 0
  %4397 = vmatpush1.bf16.msra.mxu0 %v4264
  %4398 = vmatprep.subr.bf16.mxu0 0
  %4399 = vmatpush1.bf16.msra.mxu0 %v4265
  %4400 = vmatprep.subr.bf16.mxu0 0
  %4401 = vmatpush1.bf16.msra.mxu0 %v4266
  %4402 = vmatprep.subr.bf16.mxu0 0
  %4403 = vmatpush1.bf16.msra.mxu0 %v4267
  %4404 = vmatprep.subr.bf16.mxu0 0
  %4405 = vmatpush1.bf16.msra.mxu0 %v4268
  %4406 = vmatprep.subr.bf16.mxu0 0
  %4407 = vmatpush1.bf16.msra.mxu0 %v4269
  %4408 = vmatprep.subr.bf16.mxu0 0
  %4409 = vmatpush1.bf16.msra.mxu0 %v4270
  %4410 = vmatprep.subr.bf16.mxu0 0
  %4411 = vmatpush1.bf16.msra.mxu0 %v4271
  %4412 = vmatprep.subr.bf16.mxu0 0
  %4413 = vmatpush1.bf16.msra.mxu0 %v4272
  %4414 = vmatprep.subr.bf16.mxu0 0
  %4415 = vmatpush1.bf16.msra.mxu0 %v4273
  %4416 = vmatprep.subr.bf16.mxu0 0
  %4417 = vmatpush1.bf16.msra.mxu0 %v4274
  %4418 = vmatprep.subr.bf16.mxu0 0
  %4419 = vmatpush1.bf16.msra.mxu0 %v4275
  %4420 = vmatprep.subr.bf16.mxu0 0
  %4421 = vmatpush1.bf16.msra.mxu0 %v4276
  %4422 = vmatprep.subr.bf16.mxu0 0
  %4423 = vmatpush1.bf16.msra.mxu0 %v4277
  %4424 = vmatprep.subr.bf16.mxu0 0
  %4425 = vmatpush1.bf16.msra.mxu0 %v4278
  %4426 = vmatprep.subr.bf16.mxu0 0
  %4427 = vmatpush1.bf16.msra.mxu0 %v4279
  %4428 = vmatprep.mubr.bf16.mxu0 %v4054
  %4429 = vmatmul.mubr.bf16.gmra.mrb[0].mxu0 %v4053
  %v4430 = vpop.f32.mrb[0].mxu0
  %v4431 = vadd.f32 %v4190, %v4430
  %v4432 = vpop.f32.mrb[0].mxu0
  %v4433 = vpop.f32.mrb[0].mxu0
  %v4434 = vadd.f32 %v4190, %v4433
  %v4435 = vpop.f32.mrb[0].mxu0
  %4436 = vmatprep.mubr.bf16.mxu0 %v4057
  %4437 = vmatmul.mubr.bf16.gmra.mrb[0].mxu0 %v4056
  %v4438 = vpop.f32.mrb[0].mxu0
  %v4439 = vadd.f32 %v4190, %v4438
  %v4440 = vpop.f32.mrb[0].mxu0
  %v4441 = vpop.f32.mrb[0].mxu0
  %v4442 = vadd.f32 %v4190, %v4441
  %v4443 = vpop.f32.mrb[0].mxu0
  %4444 = vmatprep.mubr.bf16.mxu0 %v4060
  %4445 = vmatmul.mubr.bf16.gmra.mrb[0].mxu0 %v4059
  %v4446 = vpop.f32.mrb[0].mxu0
  %v4447 = vadd.f32 %v4190, %v4446
  %v4448 = vpop.f32.mrb[0].mxu0
  %v4449 = vpop.f32.mrb[0].mxu0
  %v4450 = vadd.f32 %v4190, %v4449
  %v4451 = vpop.f32.mrb[0].mxu0
  %4452 = vmatprep.mubr.bf16.mxu0 %v4063
  %4453 = vmatmul.mubr.bf16.gmra.mrb[0].mxu0 %v4062
  %v4454 = vpop.f32.mrb[0].mxu0
  %v4455 = vadd.f32 %v4190, %v4454
  %v4456 = vpop.f32.mrb[0].mxu0
  %v4457 = vpop.f32.mrb[0].mxu0
  %v4458 = vadd.f32 %v4190, %v4457
  %v4459 = vpop.f32.mrb[0].mxu0
  %4460 = vmatprep.mubr.bf16.mxu0 %v4066
  %4461 = vmatmul.mubr.bf16.gmra.mrb[0].mxu0 %v4065
  %v4462 = vpop.f32.mrb[0].mxu0
  %v4463 = vadd.f32 %v4190, %v4462
  %v4464 = vpop.f32.mrb[0].mxu0
  %v4465 = vpop.f32.mrb[0].mxu0
  %v4466 = vadd.f32 %v4190, %v4465
  %v4467 = vpop.f32.mrb[0].mxu0
  %4468 = vmatprep.mubr.bf16.mxu0 %v4069
  %4469 = vmatmul.mubr.bf16.gmra.mrb[0].mxu0 %v4068
  %v4470 = vpop.f32.mrb[0].mxu0
  %v4471 = vadd.f32 %v4190, %v4470
  %v4472 = vpop.f32.mrb[0].mxu0
  %v4473 = vpop.f32.mrb[0].mxu0
  %v4474 = vadd.f32 %v4190, %v4473
  %v4475 = vpop.f32.mrb[0].mxu0
  %4476 = vmatprep.mubr.bf16.mxu0 %v4072
  %4477 = vmatmul.mubr.bf16.gmra.mrb[0].mxu0 %v4071
  %v4478 = vpop.f32.mrb[0].mxu0
  %v4479 = vadd.f32 %v4190, %v4478
  %v4480 = vpop.f32.mrb[0].mxu0
  %v4481 = vpop.f32.mrb[0].mxu0
  %v4482 = vadd.f32 %v4190, %v4481
  %v4483 = vpop.f32.mrb[0].mxu0
  %4484 = vmatprep.mubr.bf16.mxu0 %v4075
  %4485 = vmatmul.mubr.bf16.gmra.mrb[0].mxu0 %v4074
  %v4486 = vpop.f32.mrb[0].mxu0
  %v4487 = vadd.f32 %v4190, %v4486
  %v4488 = vpop.f32.mrb[0].mxu0
  %v4489 = vpop.f32.mrb[0].mxu0
  %v4490 = vadd.f32 %v4190, %v4489
  %v4491 = vpop.f32.mrb[0].mxu0
  %4492 = vmatprep.mubr.bf16.mxu0 %v4078
  %4493 = vmatmul.mubr.bf16.gmra.mrb[0].mxu0 %v4077
  %v4494 = vpop.f32.mrb[0].mxu0
  %v4495 = vadd.f32 %v4190, %v4494
  %v4496 = vpop.f32.mrb[0].mxu0
  %v4497 = vpop.f32.mrb[0].mxu0
  %v4498 = vadd.f32 %v4190, %v4497
  %v4499 = vpop.f32.mrb[0].mxu0
  %4500 = vmatprep.mubr.bf16.mxu0 %v4081
  %4501 = vmatmul.mubr.bf16.gmra.mrb[0].mxu0 %v4080
  %v4502 = vpop.f32.mrb[0].mxu0
  %v4503 = vadd.f32 %v4190, %v4502
  %v4504 = vpop.f32.mrb[0].mxu0
  %v4505 = vpop.f32.mrb[0].mxu0
  %v4506 = vadd.f32 %v4190, %v4505
  %v4507 = vpop.f32.mrb[0].mxu0
  %4508 = vmatprep.mubr.bf16.mxu0 %v4084
  %4509 = vmatmul.mubr.bf16.gmra.mrb[0].mxu0 %v4083
  %v4510 = vpop.f32.mrb[0].mxu0
  %v4511 = vadd.f32 %v4190, %v4510
  %v4512 = vpop.f32.mrb[0].mxu0
  %v4513 = vpop.f32.mrb[0].mxu0
  %v4514 = vadd.f32 %v4190, %v4513
  %v4515 = vpop.f32.mrb[0].mxu0
  %4516 = vmatprep.mubr.bf16.mxu0 %v4087
  %4517 = vmatmul.mubr.bf16.gmra.mrb[0].mxu0 %v4086
  %v4518 = vpop.f32.mrb[0].mxu0
  %v4519 = vadd.f32 %v4190, %v4518
  %v4520 = vpop.f32.mrb[0].mxu0
  %v4521 = vpop.f32.mrb[0].mxu0
  %v4522 = vadd.f32 %v4190, %v4521
  %v4523 = vpop.f32.mrb[0].mxu0
  %4524 = vmatprep.mubr.bf16.mxu0 %v4090
  %4525 = vmatmul.mubr.bf16.gmra.mrb[0].mxu0 %v4089
  %v4526 = vpop.f32.mrb[0].mxu0
  %v4527 = vadd.f32 %v4190, %v4526
  %v4528 = vpop.f32.mrb[0].mxu0
  %v4529 = vpop.f32.mrb[0].mxu0
  %v4530 = vadd.f32 %v4190, %v4529
  %v4531 = vpop.f32.mrb[0].mxu0
  %4532 = vmatprep.mubr.bf16.mxu0 %v4093
  %4533 = vmatmul.mubr.bf16.gmra.mrb[0].mxu0 %v4092
  %v4534 = vpop.f32.mrb[0].mxu0
  %v4535 = vadd.f32 %v4190, %v4534
  %v4536 = vpop.f32.mrb[0].mxu0
  %v4537 = vpop.f32.mrb[0].mxu0
  %v4538 = vadd.f32 %v4190, %v4537
  %v4539 = vpop.f32.mrb[0].mxu0
  %4540 = vmatprep.mubr.bf16.mxu0 %v4096
  %4541 = vmatmul.mubr.bf16.gmra.mrb[0].mxu0 %v4095
  %v4542 = vpop.f32.mrb[0].mxu0
  %v4543 = vadd.f32 %v4190, %v4542
  %v4544 = vpop.f32.mrb[0].mxu0
  %v4545 = vpop.f32.mrb[0].mxu0
  %v4546 = vadd.f32 %v4190, %v4545
  %v4547 = vpop.f32.mrb[0].mxu0
  %4548 = vmatprep.mubr.bf16.mxu0 %v4099
  %4549 = vmatmul.mubr.bf16.gmra.mrb[0].mxu0 %v4098
  %v4550 = vpop.f32.mrb[0].mxu0
  %v4551 = vadd.f32 %v4190, %v4550
  %v4552 = vpop.f32.mrb[0].mxu0
  %v4553 = vpop.f32.mrb[0].mxu0
  %v4554 = vadd.f32 %v4190, %v4553
  %v4555 = vpop.f32.mrb[0].mxu0
  %4556 = vmatprep.mubr.bf16.mxu0 %v4102
  %4557 = vmatmul.mubr.bf16.gmra.mrb[0].mxu0 %v4101
  %v4558 = vpop.f32.mrb[0].mxu0
  %v4559 = vadd.f32 %v4190, %v4558
  %v4560 = vpop.f32.mrb[0].mxu0
  %v4561 = vpop.f32.mrb[0].mxu0
  %v4562 = vadd.f32 %v4190, %v4561
  %v4563 = vpop.f32.mrb[0].mxu0
  %4564 = vmatprep.mubr.bf16.mxu0 %v4105
  %4565 = vmatmul.mubr.bf16.gmra.mrb[0].mxu0 %v4104
  %v4566 = vpop.f32.mrb[0].mxu0
  %v4567 = vadd.f32 %v4190, %v4566
  %v4568 = vpop.f32.mrb[0].mxu0
  %v4569 = vpop.f32.mrb[0].mxu0
  %v4570 = vadd.f32 %v4190, %v4569
  %v4571 = vpop.f32.mrb[0].mxu0
  %4572 = vmatprep.mubr.bf16.mxu0 %v4108
  %4573 = vmatmul.mubr.bf16.gmra.mrb[0].mxu0 %v4107
  %v4574 = vpop.f32.mrb[0].mxu0
  %v4575 = vadd.f32 %v4190, %v4574
  %v4576 = vpop.f32.mrb[0].mxu0
  %v4577 = vpop.f32.mrb[0].mxu0
  %v4578 = vadd.f32 %v4190, %v4577
  %v4579 = vpop.f32.mrb[0].mxu0
  %4580 = vmatprep.mubr.bf16.mxu0 %v4111
  %4581 = vmatmul.mubr.bf16.gmra.mrb[0].mxu0 %v4110
  %v4582 = vpop.f32.mrb[0].mxu0
  %v4583 = vadd.f32 %v4190, %v4582
  %v4584 = vpop.f32.mrb[0].mxu0
  %v4585 = vpop.f32.mrb[0].mxu0
  %v4586 = vadd.f32 %v4190, %v4585
  %v4587 = vpop.f32.mrb[0].mxu0
  %4588 = vmatprep.mubr.bf16.mxu0 %v4114
  %4589 = vmatmul.mubr.bf16.gmra.mrb[0].mxu0 %v4113
  %v4590 = vpop.f32.mrb[0].mxu0
  %v4591 = vadd.f32 %v4190, %v4590
  %v4592 = vpop.f32.mrb[0].mxu0
  %v4593 = vpop.f32.mrb[0].mxu0
  %v4594 = vadd.f32 %v4190, %v4593
  %v4595 = vpop.f32.mrb[0].mxu0
  %4596 = vmatprep.mubr.bf16.mxu0 %v4117
  %4597 = vmatmul.mubr.bf16.gmra.mrb[0].mxu0 %v4116
  %v4598 = vpop.f32.mrb[0].mxu0
  %v4599 = vadd.f32 %v4190, %v4598
  %v4600 = vpop.f32.mrb[0].mxu0
  %v4601 = vpop.f32.mrb[0].mxu0
  %v4602 = vadd.f32 %v4190, %v4601
  %v4603 = vpop.f32.mrb[0].mxu0
  %4604 = vmatprep.mubr.bf16.mxu0 %v4120
  %4605 = vmatmul.mubr.bf16.gmra.mrb[0].mxu0 %v4119
  %v4606 = vpop.f32.mrb[0].mxu0
  %v4607 = vadd.f32 %v4190, %v4606
  %v4608 = vpop.f32.mrb[0].mxu0
  %v4609 = vpop.f32.mrb[0].mxu0
  %v4610 = vadd.f32 %v4190, %v4609
  %v4611 = vpop.f32.mrb[0].mxu0
  %4612 = vmatprep.mubr.bf16.mxu0 %v4123
  %4613 = vmatmul.mubr.bf16.gmra.mrb[0].mxu0 %v4122
  %v4614 = vpop.f32.mrb[0].mxu0
  %v4615 = vadd.f32 %v4190, %v4614
  %v4616 = vpop.f32.mrb[0].mxu0
  %v4617 = vpop.f32.mrb[0].mxu0
  %v4618 = vadd.f32 %v4190, %v4617
  %v4619 = vpop.f32.mrb[0].mxu0
  %4620 = vmatprep.mubr.bf16.mxu0 %v4126
  %4621 = vmatmul.mubr.bf16.gmra.mrb[0].mxu0 %v4125
  %v4622 = vpop.f32.mrb[0].mxu0
  %v4623 = vadd.f32 %v4190, %v4622
  %v4624 = vpop.f32.mrb[0].mxu0
  %v4625 = vpop.f32.mrb[0].mxu0
  %v4626 = vadd.f32 %v4190, %v4625
  %v4627 = vpop.f32.mrb[0].mxu0
  %4628 = vmatprep.mubr.bf16.mxu0 %v4129
  %4629 = vmatmul.mubr.bf16.gmra.mrb[0].mxu0 %v4128
  %v4630 = vpop.f32.mrb[0].mxu0
  %v4631 = vadd.f32 %v4190, %v4630
  %v4632 = vpop.f32.mrb[0].mxu0
  %v4633 = vpop.f32.mrb[0].mxu0
  %v4634 = vadd.f32 %v4190, %v4633
  %v4635 = vpop.f32.mrb[0].mxu0
  %4636 = vmatprep.mubr.bf16.mxu0 %v4132
  %4637 = vmatmul.mubr.bf16.gmra.mrb[0].mxu0 %v4131
  %v4638 = vpop.f32.mrb[0].mxu0
  %v4639 = vadd.f32 %v4190, %v4638
  %v4640 = vpop.f32.mrb[0].mxu0
  %v4641 = vpop.f32.mrb[0].mxu0
  %v4642 = vadd.f32 %v4190, %v4641
  %v4643 = vpop.f32.mrb[0].mxu0
  %4644 = vmatprep.mubr.bf16.mxu0 %v4135
  %4645 = vmatmul.mubr.bf16.gmra.mrb[0].mxu0 %v4134
  %v4646 = vpop.f32.mrb[0].mxu0
  %v4647 = vadd.f32 %v4190, %v4646
  %v4648 = vpop.f32.mrb[0].mxu0
  %v4649 = vpop.f32.mrb[0].mxu0
  %v4650 = vadd.f32 %v4190, %v4649
  %v4651 = vpop.f32.mrb[0].mxu0
  %4652 = vmatprep.mubr.bf16.mxu0 %v4138
  %4653 = vmatmul.mubr.bf16.gmra.mrb[0].mxu0 %v4137
  %v4654 = vpop.f32.mrb[0].mxu0
  %v4655 = vadd.f32 %v4190, %v4654
  %v4656 = vpop.f32.mrb[0].mxu0
  %v4657 = vpop.f32.mrb[0].mxu0
  %v4658 = vadd.f32 %v4190, %v4657
  %v4659 = vpop.f32.mrb[0].mxu0
  %4660 = vmatprep.mubr.bf16.mxu0 %v4141
  %4661 = vmatmul.mubr.bf16.gmra.mrb[0].mxu0 %v4140
  %v4662 = vpop.f32.mrb[0].mxu0
  %v4663 = vadd.f32 %v4190, %v4662
  %v4664 = vpop.f32.mrb[0].mxu0
  %v4665 = vpop.f32.mrb[0].mxu0
  %v4666 = vadd.f32 %v4190, %v4665
  %v4667 = vpop.f32.mrb[0].mxu0
  %4668 = vmatprep.mubr.bf16.mxu0 %v4144
  %4669 = vmatmul.mubr.bf16.gmra.mrb[0].mxu0 %v4143
  %v4670 = vpop.f32.mrb[0].mxu0
  %v4671 = vadd.f32 %v4190, %v4670
  %v4672 = vpop.f32.mrb[0].mxu0
  %v4673 = vpop.f32.mrb[0].mxu0
  %v4674 = vadd.f32 %v4190, %v4673
  %v4675 = vpop.f32.mrb[0].mxu0
  %4676 = vmatprep.mubr.bf16.mxu0 %v4147
  %4677 = vmatmul.mubr.bf16.gmra.mrb[0].mxu0 %v4146
  %v4678 = vpop.f32.mrb[0].mxu0
  %v4679 = vadd.f32 %v4190, %v4678
  %v4680 = vpop.f32.mrb[0].mxu0
  %v4681 = vpop.f32.mrb[0].mxu0
  %v4682 = vadd.f32 %v4190, %v4681
  %v4683 = vpop.f32.mrb[0].mxu0
  %4684 = vdwg.mxu0
  %4685 = vmatprep.subr.bf16.mxu0 0
  %4686 = vmatpush1.bf16.msra.mxu0 %v4280
  %4687 = vmatprep.subr.bf16.mxu0 0
  %4688 = vmatpush1.bf16.msra.mxu0 %v4281
  %4689 = vmatprep.subr.bf16.mxu0 0
  %4690 = vmatpush1.bf16.msra.mxu0 0
  %4691 = vmatprep.subr.bf16.mxu0 0
  %4692 = vmatpush1.bf16.msra.mxu0 0
  %4693 = vmatprep.subr.bf16.mxu0 0
  %4694 = vmatpush1.bf16.msra.mxu0 0
  %4695 = vmatprep.subr.bf16.mxu0 0
  %4696 = vmatpush1.bf16.msra.mxu0 0
  %4697 = vmatprep.subr.bf16.mxu0 0
  %4698 = vmatpush1.bf16.msra.mxu0 0
  %4699 = vmatprep.subr.bf16.mxu0 0
  %4700 = vmatpush1.bf16.msra.mxu0 0
  %4701 = vmatprep.subr.bf16.mxu0 0
  %4702 = vmatpush1.bf16.msra.mxu0 0
  %4703 = vmatprep.subr.bf16.mxu0 0
  %4704 = vmatpush1.bf16.msra.mxu0 0
  %4705 = vmatprep.subr.bf16.mxu0 0
  %4706 = vmatpush1.bf16.msra.mxu0 0
  %4707 = vmatprep.subr.bf16.mxu0 0
  %4708 = vmatpush1.bf16.msra.mxu0 0
  %4709 = vmatprep.subr.bf16.mxu0 0
  %4710 = vmatpush1.bf16.msra.mxu0 0
  %4711 = vmatprep.subr.bf16.mxu0 0
  %4712 = vmatpush1.bf16.msra.mxu0 0
  %4713 = vmatprep.subr.bf16.mxu0 0
  %4714 = vmatpush1.bf16.msra.mxu0 0
  %4715 = vmatprep.subr.bf16.mxu0 0
  %4716 = vmatpush1.bf16.msra.mxu0 0
  %4717 = vmatprep.mubr.bf16.mxu0 0
  %4718 = vmatmul.mubr.bf16.gmra.mrb[0].mxu0 %v4301
  %v4719 = vpop.f32.mrb[0].mxu0
  %v4720 = vadd.f32 %v4431, %v4719
  %v4721 = vpop.f32.mrb[0].mxu0
  %v4722 = vpop.f32.mrb[0].mxu0
  %v4723 = vadd.f32 %v4434, %v4722
  %v4724 = vpop.f32.mrb[0].mxu0
  %4725 = vmatprep.mubr.bf16.mxu0 0
  %4726 = vmatmul.mubr.bf16.gmra.mrb[0].mxu0 %v4304
  %v4727 = vpop.f32.mrb[0].mxu0
  %v4728 = vadd.f32 %v4439, %v4727
  %v4729 = vpop.f32.mrb[0].mxu0
  %v4730 = vpop.f32.mrb[0].mxu0
  %v4731 = vadd.f32 %v4442, %v4730
  %v4732 = vpop.f32.mrb[0].mxu0
  %4733 = vmatprep.mubr.bf16.mxu0 0
  %4734 = vmatmul.mubr.bf16.gmra.mrb[0].mxu0 %v4307
  %v4735 = vpop.f32.mrb[0].mxu0
  %v4736 = vadd.f32 %v4447, %v4735
  %v4737 = vpop.f32.mrb[0].mxu0
  %v4738 = vpop.f32.mrb[0].mxu0
  %v4739 = vadd.f32 %v4450, %v4738
  %v4740 = vpop.f32.mrb[0].mxu0
  %4741 = vmatprep.mubr.bf16.mxu0 0
  %4742 = vmatmul.mubr.bf16.gmra.mrb[0].mxu0 %v4310
  %v4743 = vpop.f32.mrb[0].mxu0
  %v4744 = vadd.f32 %v4455, %v4743
  %v4745 = vpop.f32.mrb[0].mxu0
  %v4746 = vpop.f32.mrb[0].mxu0
  %v4747 = vadd.f32 %v4458, %v4746
  %v4748 = vpop.f32.mrb[0].mxu0
  %4749 = vmatprep.mubr.bf16.mxu0 0
  %4750 = vmatmul.mubr.bf16.gmra.mrb[0].mxu0 %v4313
  %v4751 = vpop.f32.mrb[0].mxu0
  %v4752 = vadd.f32 %v4463, %v4751
  %v4753 = vpop.f32.mrb[0].mxu0
  %v4754 = vpop.f32.mrb[0].mxu0
  %v4755 = vadd.f32 %v4466, %v4754
  %v4756 = vpop.f32.mrb[0].mxu0
  %4757 = vmatprep.mubr.bf16.mxu0 0
  %4758 = vmatmul.mubr.bf16.gmra.mrb[0].mxu0 %v4316
  %v4759 = vpop.f32.mrb[0].mxu0
  %v4760 = vadd.f32 %v4471, %v4759
  %v4761 = vpop.f32.mrb[0].mxu0
  %v4762 = vpop.f32.mrb[0].mxu0
  %v4763 = vadd.f32 %v4474, %v4762
  %v4764 = vpop.f32.mrb[0].mxu0
  %4765 = vmatprep.mubr.bf16.mxu0 0
  %4766 = vmatmul.mubr.bf16.gmra.mrb[0].mxu0 %v4319
  %v4767 = vpop.f32.mrb[0].mxu0
  %v4768 = vadd.f32 %v4479, %v4767
  %v4769 = vpop.f32.mrb[0].mxu0
  %v4770 = vpop.f32.mrb[0].mxu0
  %v4771 = vadd.f32 %v4482, %v4770
  %v4772 = vpop.f32.mrb[0].mxu0
  %4773 = vmatprep.mubr.bf16.mxu0 0
  %4774 = vmatmul.mubr.bf16.gmra.mrb[0].mxu0 %v4322
  %v4775 = vpop.f32.mrb[0].mxu0
  %v4776 = vadd.f32 %v4487, %v4775
  %v4777 = vpop.f32.mrb[0].mxu0
  %v4778 = vpop.f32.mrb[0].mxu0
  %v4779 = vadd.f32 %v4490, %v4778
  %v4780 = vpop.f32.mrb[0].mxu0
  %4781 = vmatprep.mubr.bf16.mxu0 0
  %4782 = vmatmul.mubr.bf16.gmra.mrb[0].mxu0 %v4325
  %v4783 = vpop.f32.mrb[0].mxu0
  %v4784 = vadd.f32 %v4495, %v4783
  %v4785 = vpop.f32.mrb[0].mxu0
  %v4786 = vpop.f32.mrb[0].mxu0
  %v4787 = vadd.f32 %v4498, %v4786
  %v4788 = vpop.f32.mrb[0].mxu0
  %4789 = vmatprep.mubr.bf16.mxu0 0
  %4790 = vmatmul.mubr.bf16.gmra.mrb[0].mxu0 %v4328
  %v4791 = vpop.f32.mrb[0].mxu0
  %v4792 = vadd.f32 %v4503, %v4791
  %v4793 = vpop.f32.mrb[0].mxu0
  %v4794 = vpop.f32.mrb[0].mxu0
  %v4795 = vadd.f32 %v4506, %v4794
  %v4796 = vpop.f32.mrb[0].mxu0
  %4797 = vmatprep.mubr.bf16.mxu0 0
  %4798 = vmatmul.mubr.bf16.gmra.mrb[0].mxu0 %v4331
  %v4799 = vpop.f32.mrb[0].mxu0
  %v4800 = vadd.f32 %v4511, %v4799
  %v4801 = vpop.f32.mrb[0].mxu0
  %v4802 = vpop.f32.mrb[0].mxu0
  %v4803 = vadd.f32 %v4514, %v4802
  %v4804 = vpop.f32.mrb[0].mxu0
  %4805 = vmatprep.mubr.bf16.mxu0 0
  %4806 = vmatmul.mubr.bf16.gmra.mrb[0].mxu0 %v4334
  %v4807 = vpop.f32.mrb[0].mxu0
  %v4808 = vadd.f32 %v4519, %v4807
  %v4809 = vpop.f32.mrb[0].mxu0
  %v4810 = vpop.f32.mrb[0].mxu0
  %v4811 = vadd.f32 %v4522, %v4810
  %v4812 = vpop.f32.mrb[0].mxu0
  %4813 = vmatprep.mubr.bf16.mxu0 0
  %4814 = vmatmul.mubr.bf16.gmra.mrb[0].mxu0 %v4337
  %v4815 = vpop.f32.mrb[0].mxu0
  %v4816 = vadd.f32 %v4527, %v4815
  %v4817 = vpop.f32.mrb[0].mxu0
  %v4818 = vpop.f32.mrb[0].mxu0
  %v4819 = vadd.f32 %v4530, %v4818
  %v4820 = vpop.f32.mrb[0].mxu0
  %4821 = vmatprep.mubr.bf16.mxu0 0
  %4822 = vmatmul.mubr.bf16.gmra.mrb[0].mxu0 %v4340
  %v4823 = vpop.f32.mrb[0].mxu0
  %v4824 = vadd.f32 %v4535, %v4823
  %v4825 = vpop.f32.mrb[0].mxu0
  %v4826 = vpop.f32.mrb[0].mxu0
  %v4827 = vadd.f32 %v4538, %v4826
  %v4828 = vpop.f32.mrb[0].mxu0
  %4829 = vmatprep.mubr.bf16.mxu0 0
  %4830 = vmatmul.mubr.bf16.gmra.mrb[0].mxu0 %v4343
  %v4831 = vpop.f32.mrb[0].mxu0
  %v4832 = vadd.f32 %v4543, %v4831
  %v4833 = vpop.f32.mrb[0].mxu0
  %v4834 = vpop.f32.mrb[0].mxu0
  %v4835 = vadd.f32 %v4546, %v4834
  %v4836 = vpop.f32.mrb[0].mxu0
  %4837 = vmatprep.mubr.bf16.mxu0 0
  %4838 = vmatmul.mubr.bf16.gmra.mrb[0].mxu0 %v4346
  %v4839 = vpop.f32.mrb[0].mxu0
  %v4840 = vadd.f32 %v4551, %v4839
  %v4841 = vpop.f32.mrb[0].mxu0
  %v4842 = vpop.f32.mrb[0].mxu0
  %v4843 = vadd.f32 %v4554, %v4842
  %v4844 = vpop.f32.mrb[0].mxu0
  %4845 = vmatprep.mubr.bf16.mxu0 0
  %4846 = vmatmul.mubr.bf16.gmra.mrb[0].mxu0 %v4349
  %v4847 = vpop.f32.mrb[0].mxu0
  %v4848 = vadd.f32 %v4559, %v4847
  %v4849 = vpop.f32.mrb[0].mxu0
  %v4850 = vpop.f32.mrb[0].mxu0
  %v4851 = vadd.f32 %v4562, %v4850
  %v4852 = vpop.f32.mrb[0].mxu0
  %4853 = vmatprep.mubr.bf16.mxu0 0
  %4854 = vmatmul.mubr.bf16.gmra.mrb[0].mxu0 %v4352
  %v4855 = vpop.f32.mrb[0].mxu0
  %v4856 = vadd.f32 %v4567, %v4855
  %v4857 = vpop.f32.mrb[0].mxu0
  %v4858 = vpop.f32.mrb[0].mxu0
  %v4859 = vadd.f32 %v4570, %v4858
  %v4860 = vpop.f32.mrb[0].mxu0
  %4861 = vmatprep.mubr.bf16.mxu0 0
  %4862 = vmatmul.mubr.bf16.gmra.mrb[0].mxu0 %v4355
  %v4863 = vpop.f32.mrb[0].mxu0
  %v4864 = vadd.f32 %v4575, %v4863
  %v4865 = vpop.f32.mrb[0].mxu0
  %v4866 = vpop.f32.mrb[0].mxu0
  %v4867 = vadd.f32 %v4578, %v4866
  %v4868 = vpop.f32.mrb[0].mxu0
  %4869 = vmatprep.mubr.bf16.mxu0 0
  %4870 = vmatmul.mubr.bf16.gmra.mrb[0].mxu0 %v4358
  %v4871 = vpop.f32.mrb[0].mxu0
  %v4872 = vadd.f32 %v4583, %v4871
  %v4873 = vpop.f32.mrb[0].mxu0
  %v4874 = vpop.f32.mrb[0].mxu0
  %v4875 = vadd.f32 %v4586, %v4874
  %v4876 = vpop.f32.mrb[0].mxu0
  %4877 = vmatprep.mubr.bf16.mxu0 0
  %4878 = vmatmul.mubr.bf16.gmra.mrb[0].mxu0 %v4361
  %v4879 = vpop.f32.mrb[0].mxu0
  %v4880 = vadd.f32 %v4591, %v4879
  %v4881 = vpop.f32.mrb[0].mxu0
  %v4882 = vpop.f32.mrb[0].mxu0
  %v4883 = vadd.f32 %v4594, %v4882
  %v4884 = vpop.f32.mrb[0].mxu0
  %4885 = vmatprep.mubr.bf16.mxu0 0
  %4886 = vmatmul.mubr.bf16.gmra.mrb[0].mxu0 %v4364
  %v4887 = vpop.f32.mrb[0].mxu0
  %v4888 = vadd.f32 %v4599, %v4887
  %v4889 = vpop.f32.mrb[0].mxu0
  %v4890 = vpop.f32.mrb[0].mxu0
  %v4891 = vadd.f32 %v4602, %v4890
  %v4892 = vpop.f32.mrb[0].mxu0
  %4893 = vmatprep.mubr.bf16.mxu0 0
  %4894 = vmatmul.mubr.bf16.gmra.mrb[0].mxu0 %v4367
  %v4895 = vpop.f32.mrb[0].mxu0
  %v4896 = vadd.f32 %v4607, %v4895
  %v4897 = vpop.f32.mrb[0].mxu0
  %v4898 = vpop.f32.mrb[0].mxu0
  %v4899 = vadd.f32 %v4610, %v4898
  %v4900 = vpop.f32.mrb[0].mxu0
  %4901 = vmatprep.mubr.bf16.mxu0 0
  %4902 = vmatmul.mubr.bf16.gmra.mrb[0].mxu0 %v4370
  %v4903 = vpop.f32.mrb[0].mxu0
  %v4904 = vadd.f32 %v4615, %v4903
  %v4905 = vpop.f32.mrb[0].mxu0
  %v4906 = vpop.f32.mrb[0].mxu0
  %v4907 = vadd.f32 %v4618, %v4906
  %v4908 = vpop.f32.mrb[0].mxu0
  %4909 = vmatprep.mubr.bf16.mxu0 0
  %4910 = vmatmul.mubr.bf16.gmra.mrb[0].mxu0 %v4373
  %v4911 = vpop.f32.mrb[0].mxu0
  %v4912 = vadd.f32 %v4623, %v4911
  %v4913 = vpop.f32.mrb[0].mxu0
  %v4914 = vpop.f32.mrb[0].mxu0
  %v4915 = vadd.f32 %v4626, %v4914
  %v4916 = vpop.f32.mrb[0].mxu0
  %4917 = vmatprep.mubr.bf16.mxu0 0
  %4918 = vmatmul.mubr.bf16.gmra.mrb[0].mxu0 %v4376
  %v4919 = vpop.f32.mrb[0].mxu0
  %v4920 = vadd.f32 %v4631, %v4919
  %v4921 = vpop.f32.mrb[0].mxu0
  %v4922 = vpop.f32.mrb[0].mxu0
  %v4923 = vadd.f32 %v4634, %v4922
  %v4924 = vpop.f32.mrb[0].mxu0
  %4925 = vmatprep.mubr.bf16.mxu0 0
  %4926 = vmatmul.mubr.bf16.gmra.mrb[0].mxu0 %v4379
  %v4927 = vpop.f32.mrb[0].mxu0
  %v4928 = vadd.f32 %v4639, %v4927
  %v4929 = vpop.f32.mrb[0].mxu0
  %v4930 = vpop.f32.mrb[0].mxu0
  %v4931 = vadd.f32 %v4642, %v4930
  %v4932 = vpop.f32.mrb[0].mxu0
  %4933 = vmatprep.mubr.bf16.mxu0 0
  %4934 = vmatmul.mubr.bf16.gmra.mrb[0].mxu0 %v4382
  %v4935 = vpop.f32.mrb[0].mxu0
  %v4936 = vadd.f32 %v4647, %v4935
  %v4937 = vpop.f32.mrb[0].mxu0
  %v4938 = vpop.f32.mrb[0].mxu0
  %v4939 = vadd.f32 %v4650, %v4938
  %v4940 = vpop.f32.mrb[0].mxu0
  %4941 = vmatprep.mubr.bf16.mxu0 0
  %4942 = vmatmul.mubr.bf16.gmra.mrb[0].mxu0 %v4385
  %v4943 = vpop.f32.mrb[0].mxu0
  %v4944 = vadd.f32 %v4655, %v4943
  %v4945 = vpop.f32.mrb[0].mxu0
  %v4946 = vpop.f32.mrb[0].mxu0
  %v4947 = vadd.f32 %v4658, %v4946
  %v4948 = vpop.f32.mrb[0].mxu0
  %4949 = vmatprep.mubr.bf16.mxu0 0
  %4950 = vmatmul.mubr.bf16.gmra.mrb[0].mxu0 %v4388
  %v4951 = vpop.f32.mrb[0].mxu0
  %v4952 = vadd.f32 %v4663, %v4951
  %v4953 = vpop.f32.mrb[0].mxu0
  %v4954 = vpop.f32.mrb[0].mxu0
  %v4955 = vadd.f32 %v4666, %v4954
  %v4956 = vpop.f32.mrb[0].mxu0
  %4957 = vmatprep.mubr.bf16.mxu0 0
  %4958 = vmatmul.mubr.bf16.gmra.mrb[0].mxu0 %v4391
  %v4959 = vpop.f32.mrb[0].mxu0
  %v4960 = vadd.f32 %v4671, %v4959
  %v4961 = vpop.f32.mrb[0].mxu0
  %v4962 = vpop.f32.mrb[0].mxu0
  %v4963 = vadd.f32 %v4674, %v4962
  %v4964 = vpop.f32.mrb[0].mxu0
  %4965 = vmatprep.mubr.bf16.mxu0 0
  %4966 = vmatmul.mubr.bf16.gmra.mrb[0].mxu0 %v4394
  %v4967 = vpop.f32.mrb[0].mxu0
  %v4968 = vadd.f32 %v4679, %v4967
  %v4969 = vpop.f32.mrb[0].mxu0
  %v4970 = vpop.f32.mrb[0].mxu0
  %v4971 = vadd.f32 %v4682, %v4970
  %v4972 = vpop.f32.mrb[0].mxu0
  %4973 = vdwg.mxu0
  %v4974 = vmax.f32 %v4720, 0.0
  %v4975 = vmax.f32 %v4723, 0.0
  %v4976 = vmax.f32 %v4728, 0.0
  %v4977 = vmax.f32 %v4731, 0.0
  %v4978 = vmax.f32 %v4736, 0.0
  %v4979 = vmax.f32 %v4739, 0.0
  %v4980 = vmax.f32 %v4744, 0.0
  %v4981 = vmax.f32 %v4747, 0.0
  %v4982 = vmax.f32 %v4752, 0.0
  %v4983 = vmax.f32 %v4755, 0.0
  %v4984 = vmax.f32 %v4760, 0.0
  %v4985 = vmax.f32 %v4763, 0.0
  %v4986 = vmax.f32 %v4768, 0.0
  %v4987 = vmax.f32 %v4771, 0.0
  %v4988 = vmax.f32 %v4776, 0.0
  %v4989 = vmax.f32 %v4779, 0.0
  %v4990 = vmax.f32 %v4784, 0.0
  %v4991 = vmax.f32 %v4787, 0.0
  %v4992 = vmax.f32 %v4792, 0.0
  %v4993 = vmax.f32 %v4795, 0.0
  %v4994 = vmax.f32 %v4800, 0.0
  %v4995 = vmax.f32 %v4803, 0.0
  %v4996 = vmax.f32 %v4808, 0.0
  %v4997 = vmax.f32 %v4811, 0.0
  %v4998 = vmax.f32 %v4816, 0.0
  %v4999 = vmax.f32 %v4819, 0.0
  %v5000 = vmax.f32 %v4824, 0.0
  %v5001 = vmax.f32 %v4827, 0.0
  %v5002 = vmax.f32 %v4832, 0.0
  %v5003 = vmax.f32 %v4835, 0.0
  %v5004 = vmax.f32 %v4840, 0.0
  %v5005 = vmax.f32 %v4843, 0.0
  %v5006 = vmax.f32 %v4848, 0.0
  %v5007 = vmax.f32 %v4851, 0.0
  %v5008 = vmax.f32 %v4856, 0.0
  %v5009 = vmax.f32 %v4859, 0.0
  %v5010 = vmax.f32 %v4864, 0.0
  %v5011 = vmax.f32 %v4867, 0.0
  %v5012 = vmax.f32 %v4872, 0.0
  %v5013 = vmax.f32 %v4875, 0.0
  %v5014 = vmax.f32 %v4880, 0.0
  %v5015 = vmax.f32 %v4883, 0.0
  %v5016 = vmax.f32 %v4888, 0.0
  %v5017 = vmax.f32 %v4891, 0.0
  %v5018 = vmax.f32 %v4896, 0.0
  %v5019 = vmax.f32 %v4899, 0.0
  %v5020 = vmax.f32 %v4904, 0.0
  %v5021 = vmax.f32 %v4907, 0.0
  %v5022 = vmax.f32 %v4912, 0.0
  %v5023 = vmax.f32 %v4915, 0.0
  %v5024 = vmax.f32 %v4920, 0.0
  %v5025 = vmax.f32 %v4923, 0.0
  %v5026 = vmax.f32 %v4928, 0.0
  %v5027 = vmax.f32 %v4931, 0.0
  %v5028 = vmax.f32 %v4936, 0.0
  %v5029 = vmax.f32 %v4939, 0.0
  %v5030 = vmax.f32 %v4944, 0.0
  %v5031 = vmax.f32 %v4947, 0.0
  %v5032 = vmax.f32 %v4952, 0.0
  %v5033 = vmax.f32 %v4955, 0.0
  %v5034 = vmax.f32 %v4960, 0.0
  %v5035 = vmax.f32 %v4963, 0.0
  %v5036 = vmax.f32 %v4968, 0.0
  %v5037 = vmax.f32 %v4971, 0.0
  %v5038 = vpack.c.bf16 %v4975, %v4974
  %v5039 = vpack.c.bf16 %v4977, %v4976
  %v5040 = vpack.c.bf16 %v4979, %v4978
  %v5041 = vpack.c.bf16 %v4981, %v4980
  %v5042 = vpack.c.bf16 %v4983, %v4982
  %v5043 = vpack.c.bf16 %v4985, %v4984
  %v5044 = vpack.c.bf16 %v4987, %v4986
  %v5045 = vpack.c.bf16 %v4989, %v4988
  %v5046 = vpack.c.bf16 %v4991, %v4990
  %v5047 = vpack.c.bf16 %v4993, %v4992
  %v5048 = vpack.c.bf16 %v4995, %v4994
  %v5049 = vpack.c.bf16 %v4997, %v4996
  %v5050 = vpack.c.bf16 %v4999, %v4998
  %v5051 = vpack.c.bf16 %v5001, %v5000
  %v5052 = vpack.c.bf16 %v5003, %v5002
  %v5053 = vpack.c.bf16 %v5005, %v5004
  %v5054 = vpack.c.bf16 %v5007, %v5006
  %v5055 = vpack.c.bf16 %v5009, %v5008
  %v5056 = vpack.c.bf16 %v5011, %v5010
  %v5057 = vpack.c.bf16 %v5013, %v5012
  %v5058 = vpack.c.bf16 %v5015, %v5014
  %v5059 = vpack.c.bf16 %v5017, %v5016
  %v5060 = vpack.c.bf16 %v5019, %v5018
  %v5061 = vpack.c.bf16 %v5021, %v5020
  %v5062 = vpack.c.bf16 %v5023, %v5022
  %v5063 = vpack.c.bf16 %v5025, %v5024
  %v5064 = vpack.c.bf16 %v5027, %v5026
  %v5065 = vpack.c.bf16 %v5029, %v5028
  %v5066 = vpack.c.bf16 %v5031, %v5030
  %v5067 = vpack.c.bf16 %v5033, %v5032
  %v5068 = vpack.c.bf16 %v5035, %v5034
  %v5069 = vpack.c.bf16 %v5037, %v5036
  %v5070 = vld [vmem:[%s10] sm:$0xf]
  %v5071 = vld [vmem:[%s10 + $0x4] sm:$0xf]
  %v5072 = vld [vmem:[%s10 + $0x8] sm:$0xf]
  %v5073 = vld [vmem:[%s10 + $0xc] sm:$0xf]
  %v5074 = vld [vmem:[%s10 + $0x10] sm:$0xf]
  %v5075 = vld [vmem:[%s10 + $0x14] sm:$0xf]
  %v5076 = vld [vmem:[%s10 + $0x18] sm:$0xf]
  %v5077 = vld [vmem:[%s10 + $0x1c] sm:$0xf]
  %v5078 = vld [vmem:[%s10 + $0x20] sm:$0xf]
  %v5079 = vld [vmem:[%s10 + $0x24] sm:$0xf]
  %v5080 = vld [vmem:[%s10 + $0x28] sm:$0xf]
  %v5081 = vld [vmem:[%s10 + $0x2c] sm:$0xf]
  %v5082 = vld [vmem:[%s10 + $0x30] sm:$0xf]
  %v5083 = vld [vmem:[%s10 + $0x34] sm:$0xf]
  %v5084 = vld [vmem:[%s10 + $0x38] sm:$0xf]
  %v5085 = vld [vmem:[%s10 + $0x3c] sm:$0xf]
  %v5086 = vld [vmem:[%s11] sm:$0x1]
  %v5088 = vlaneseq
  %v5089 = vshrl.u32 %v5088, 7
  %v5090 = vsub.s32 0, %v5089
  %v5091 = vrot.slane %v5086, %v5090
  %v5109 = vunpack.c.l.b16 %v5070
  %v5110 = vunpack.c.l.b16 %v5071
  %v5111 = vunpack.c.l.b16 %v5072
  %v5112 = vunpack.c.l.b16 %v5073
  %v5113 = vunpack.c.l.b16 %v5074
  %v5114 = vunpack.c.l.b16 %v5075
  %v5115 = vunpack.c.l.b16 %v5076
  %v5116 = vunpack.c.l.b16 %v5077
  %v5117 = vunpack.c.l.b16 %v5078
  %v5118 = vunpack.c.l.b16 %v5079
  %v5119 = vunpack.c.l.b16 %v5080
  %v5120 = vunpack.c.l.b16 %v5081
  %v5121 = vunpack.c.l.b16 %v5082
  %v5122 = vunpack.c.l.b16 %v5083
  %v5123 = vunpack.c.l.b16 %v5084
  %v5124 = vunpack.c.l.b16 %v5085
  %v5125 = vpack.c.b16 %v5110, %v5109
  %v5126 = vpack.c.b16 %v5112, %v5111
  %v5127 = vpack.c.b16 %v5114, %v5113
  %v5128 = vpack.c.b16 %v5116, %v5115
  %v5129 = vpack.c.b16 %v5118, %v5117
  %v5130 = vpack.c.b16 %v5120, %v5119
  %v5131 = vpack.c.b16 %v5122, %v5121
  %v5132 = vpack.c.b16 %v5124, %v5123
  %5141 = vmatprep.subr.bf16.mxu0 0
  %5142 = vmatpush1.bf16.msra.mxu0 %v5125
  %5143 = vmatprep.subr.bf16.mxu0 0
  %5144 = vmatpush1.bf16.msra.mxu0 %v5126
  %5145 = vmatprep.subr.bf16.mxu0 0
  %5146 = vmatpush1.bf16.msra.mxu0 %v5127
  %5147 = vmatprep.subr.bf16.mxu0 0
  %5148 = vmatpush1.bf16.msra.mxu0 %v5128
  %5149 = vmatprep.subr.bf16.mxu0 0
  %5150 = vmatpush1.bf16.msra.mxu0 %v5129
  %5151 = vmatprep.subr.bf16.mxu0 0
  %5152 = vmatpush1.bf16.msra.mxu0 %v5130
  %5153 = vmatprep.subr.bf16.mxu0 0
  %5154 = vmatpush1.bf16.msra.mxu0 %v5131
  %5155 = vmatprep.subr.bf16.mxu0 0
  %5156 = vmatpush1.bf16.msra.mxu0 %v5132
  %5157 = vmatprep.subr.bf16.mxu0 0
  %5158 = vmatpush1.bf16.msra.mxu0 0
  %5159 = vmatprep.subr.bf16.mxu0 0
  %5160 = vmatpush1.bf16.msra.mxu0 0
  %5161 = vmatprep.subr.bf16.mxu0 0
  %5162 = vmatpush1.bf16.msra.mxu0 0
  %5163 = vmatprep.subr.bf16.mxu0 0
  %5164 = vmatpush1.bf16.msra.mxu0 0
  %5165 = vmatprep.subr.bf16.mxu0 0
  %5166 = vmatpush1.bf16.msra.mxu0 0
  %5167 = vmatprep.subr.bf16.mxu0 0
  %5168 = vmatpush1.bf16.msra.mxu0 0
  %5169 = vmatprep.subr.bf16.mxu0 0
  %5170 = vmatpush1.bf16.msra.mxu0 0
  %5171 = vmatprep.subr.bf16.mxu0 0
  %5172 = vmatpush1.bf16.msra.mxu0 0
  %5173 = vmatprep.mubr.bf16.mxu0 0
  %5174 = vmatmul.mubr.bf16.gmra.mrb[0].mxu0 %v5038
  %v5175 = vpop.f32.mrb[0].mxu0
  %v5176 = vadd.f32 %v5091, %v5175
  %v5177 = vpop.f32.mrb[0].mxu0
  %v5178 = vpop.f32.mrb[0].mxu0
  %v5179 = vadd.f32 %v5091, %v5178
  %v5180 = vpop.f32.mrb[0].mxu0
  %5181 = vmatprep.mubr.bf16.mxu0 0
  %5182 = vmatmul.mubr.bf16.gmra.mrb[0].mxu0 %v5039
  %v5183 = vpop.f32.mrb[0].mxu0
  %v5184 = vadd.f32 %v5091, %v5183
  %v5185 = vpop.f32.mrb[0].mxu0
  %v5186 = vpop.f32.mrb[0].mxu0
  %v5187 = vadd.f32 %v5091, %v5186
  %v5188 = vpop.f32.mrb[0].mxu0
  %5189 = vmatprep.mubr.bf16.mxu0 0
  %5190 = vmatmul.mubr.bf16.gmra.mrb[0].mxu0 %v5040
  %v5191 = vpop.f32.mrb[0].mxu0
  %v5192 = vadd.f32 %v5091, %v5191
  %v5193 = vpop.f32.mrb[0].mxu0
  %v5194 = vpop.f32.mrb[0].mxu0
  %v5195 = vadd.f32 %v5091, %v5194
  %v5196 = vpop.f32.mrb[0].mxu0
  %5197 = vmatprep.mubr.bf16.mxu0 0
  %5198 = vmatmul.mubr.bf16.gmra.mrb[0].mxu0 %v5041
  %v5199 = vpop.f32.mrb[0].mxu0
  %v5200 = vadd.f32 %v5091, %v5199
  %v5201 = vpop.f32.mrb[0].mxu0
  %v5202 = vpop.f32.mrb[0].mxu0
  %v5203 = vadd.f32 %v5091, %v5202
  %v5204 = vpop.f32.mrb[0].mxu0
  %5205 = vmatprep.mubr.bf16.mxu0 0
  %5206 = vmatmul.mubr.bf16.gmra.mrb[0].mxu0 %v5042
  %v5207 = vpop.f32.mrb[0].mxu0
  %v5208 = vadd.f32 %v5091, %v5207
  %v5209 = vpop.f32.mrb[0].mxu0
  %v5210 = vpop.f32.mrb[0].mxu0
  %v5211 = vadd.f32 %v5091, %v5210
  %v5212 = vpop.f32.mrb[0].mxu0
  %5213 = vmatprep.mubr.bf16.mxu0 0
  %5214 = vmatmul.mubr.bf16.gmra.mrb[0].mxu0 %v5043
  %v5215 = vpop.f32.mrb[0].mxu0
  %v5216 = vadd.f32 %v5091, %v5215
  %v5217 = vpop.f32.mrb[0].mxu0
  %v5218 = vpop.f32.mrb[0].mxu0
  %v5219 = vadd.f32 %v5091, %v5218
  %v5220 = vpop.f32.mrb[0].mxu0
  %5221 = vmatprep.mubr.bf16.mxu0 0
  %5222 = vmatmul.mubr.bf16.gmra.mrb[0].mxu0 %v5044
  %v5223 = vpop.f32.mrb[0].mxu0
  %v5224 = vadd.f32 %v5091, %v5223
  %v5225 = vpop.f32.mrb[0].mxu0
  %v5226 = vpop.f32.mrb[0].mxu0
  %v5227 = vadd.f32 %v5091, %v5226
  %v5228 = vpop.f32.mrb[0].mxu0
  %5229 = vmatprep.mubr.bf16.mxu0 0
  %5230 = vmatmul.mubr.bf16.gmra.mrb[0].mxu0 %v5045
  %v5231 = vpop.f32.mrb[0].mxu0
  %v5232 = vadd.f32 %v5091, %v5231
  %v5233 = vpop.f32.mrb[0].mxu0
  %v5234 = vpop.f32.mrb[0].mxu0
  %v5235 = vadd.f32 %v5091, %v5234
  %v5236 = vpop.f32.mrb[0].mxu0
  %5237 = vmatprep.mubr.bf16.mxu0 0
  %5238 = vmatmul.mubr.bf16.gmra.mrb[0].mxu0 %v5046
  %v5239 = vpop.f32.mrb[0].mxu0
  %v5240 = vadd.f32 %v5091, %v5239
  %v5241 = vpop.f32.mrb[0].mxu0
  %v5242 = vpop.f32.mrb[0].mxu0
  %v5243 = vadd.f32 %v5091, %v5242
  %v5244 = vpop.f32.mrb[0].mxu0
  %5245 = vmatprep.mubr.bf16.mxu0 0
  %5246 = vmatmul.mubr.bf16.gmra.mrb[0].mxu0 %v5047
  %v5247 = vpop.f32.mrb[0].mxu0
  %v5248 = vadd.f32 %v5091, %v5247
  %v5249 = vpop.f32.mrb[0].mxu0
  %v5250 = vpop.f32.mrb[0].mxu0
  %v5251 = vadd.f32 %v5091, %v5250
  %v5252 = vpop.f32.mrb[0].mxu0
  %5253 = vmatprep.mubr.bf16.mxu0 0
  %5254 = vmatmul.mubr.bf16.gmra.mrb[0].mxu0 %v5048
  %v5255 = vpop.f32.mrb[0].mxu0
  %v5256 = vadd.f32 %v5091, %v5255
  %v5257 = vpop.f32.mrb[0].mxu0
  %v5258 = vpop.f32.mrb[0].mxu0
  %v5259 = vadd.f32 %v5091, %v5258
  %v5260 = vpop.f32.mrb[0].mxu0
  %5261 = vmatprep.mubr.bf16.mxu0 0
  %5262 = vmatmul.mubr.bf16.gmra.mrb[0].mxu0 %v5049
  %v5263 = vpop.f32.mrb[0].mxu0
  %v5264 = vadd.f32 %v5091, %v5263
  %v5265 = vpop.f32.mrb[0].mxu0
  %v5266 = vpop.f32.mrb[0].mxu0
  %v5267 = vadd.f32 %v5091, %v5266
  %v5268 = vpop.f32.mrb[0].mxu0
  %5269 = vmatprep.mubr.bf16.mxu0 0
  %5270 = vmatmul.mubr.bf16.gmra.mrb[0].mxu0 %v5050
  %v5271 = vpop.f32.mrb[0].mxu0
  %v5272 = vadd.f32 %v5091, %v5271
  %v5273 = vpop.f32.mrb[0].mxu0
  %v5274 = vpop.f32.mrb[0].mxu0
  %v5275 = vadd.f32 %v5091, %v5274
  %v5276 = vpop.f32.mrb[0].mxu0
  %5277 = vmatprep.mubr.bf16.mxu0 0
  %5278 = vmatmul.mubr.bf16.gmra.mrb[0].mxu0 %v5051
  %v5279 = vpop.f32.mrb[0].mxu0
  %v5280 = vadd.f32 %v5091, %v5279
  %v5281 = vpop.f32.mrb[0].mxu0
  %v5282 = vpop.f32.mrb[0].mxu0
  %v5283 = vadd.f32 %v5091, %v5282
  %v5284 = vpop.f32.mrb[0].mxu0
  %5285 = vmatprep.mubr.bf16.mxu0 0
  %5286 = vmatmul.mubr.bf16.gmra.mrb[0].mxu0 %v5052
  %v5287 = vpop.f32.mrb[0].mxu0
  %v5288 = vadd.f32 %v5091, %v5287
  %v5289 = vpop.f32.mrb[0].mxu0
  %v5290 = vpop.f32.mrb[0].mxu0
  %v5291 = vadd.f32 %v5091, %v5290
  %v5292 = vpop.f32.mrb[0].mxu0
  %5293 = vmatprep.mubr.bf16.mxu0 0
  %5294 = vmatmul.mubr.bf16.gmra.mrb[0].mxu0 %v5053
  %v5295 = vpop.f32.mrb[0].mxu0
  %v5296 = vadd.f32 %v5091, %v5295
  %v5297 = vpop.f32.mrb[0].mxu0
  %v5298 = vpop.f32.mrb[0].mxu0
  %v5299 = vadd.f32 %v5091, %v5298
  %v5300 = vpop.f32.mrb[0].mxu0
  %5301 = vmatprep.mubr.bf16.mxu0 0
  %5302 = vmatmul.mubr.bf16.gmra.mrb[0].mxu0 %v5054
  %v5303 = vpop.f32.mrb[0].mxu0
  %v5304 = vadd.f32 %v5091, %v5303
  %v5305 = vpop.f32.mrb[0].mxu0
  %v5306 = vpop.f32.mrb[0].mxu0
  %v5307 = vadd.f32 %v5091, %v5306
  %v5308 = vpop.f32.mrb[0].mxu0
  %5309 = vmatprep.mubr.bf16.mxu0 0
  %5310 = vmatmul.mubr.bf16.gmra.mrb[0].mxu0 %v5055
  %v5311 = vpop.f32.mrb[0].mxu0
  %v5312 = vadd.f32 %v5091, %v5311
  %v5313 = vpop.f32.mrb[0].mxu0
  %v5314 = vpop.f32.mrb[0].mxu0
  %v5315 = vadd.f32 %v5091, %v5314
  %v5316 = vpop.f32.mrb[0].mxu0
  %5317 = vmatprep.mubr.bf16.mxu0 0
  %5318 = vmatmul.mubr.bf16.gmra.mrb[0].mxu0 %v5056
  %v5319 = vpop.f32.mrb[0].mxu0
  %v5320 = vadd.f32 %v5091, %v5319
  %v5321 = vpop.f32.mrb[0].mxu0
  %v5322 = vpop.f32.mrb[0].mxu0
  %v5323 = vadd.f32 %v5091, %v5322
  %v5324 = vpop.f32.mrb[0].mxu0
  %5325 = vmatprep.mubr.bf16.mxu0 0
  %5326 = vmatmul.mubr.bf16.gmra.mrb[0].mxu0 %v5057
  %v5327 = vpop.f32.mrb[0].mxu0
  %v5328 = vadd.f32 %v5091, %v5327
  %v5329 = vpop.f32.mrb[0].mxu0
  %v5330 = vpop.f32.mrb[0].mxu0
  %v5331 = vadd.f32 %v5091, %v5330
  %v5332 = vpop.f32.mrb[0].mxu0
  %5333 = vmatprep.mubr.bf16.mxu0 0
  %5334 = vmatmul.mubr.bf16.gmra.mrb[0].mxu0 %v5058
  %v5335 = vpop.f32.mrb[0].mxu0
  %v5336 = vadd.f32 %v5091, %v5335
  %v5337 = vpop.f32.mrb[0].mxu0
  %v5338 = vpop.f32.mrb[0].mxu0
  %v5339 = vadd.f32 %v5091, %v5338
  %v5340 = vpop.f32.mrb[0].mxu0
  %5341 = vmatprep.mubr.bf16.mxu0 0
  %5342 = vmatmul.mubr.bf16.gmra.mrb[0].mxu0 %v5059
  %v5343 = vpop.f32.mrb[0].mxu0
  %v5344 = vadd.f32 %v5091, %v5343
  %v5345 = vpop.f32.mrb[0].mxu0
  %v5346 = vpop.f32.mrb[0].mxu0
  %v5347 = vadd.f32 %v5091, %v5346
  %v5348 = vpop.f32.mrb[0].mxu0
  %5349 = vmatprep.mubr.bf16.mxu0 0
  %5350 = vmatmul.mubr.bf16.gmra.mrb[0].mxu0 %v5060
  %v5351 = vpop.f32.mrb[0].mxu0
  %v5352 = vadd.f32 %v5091, %v5351
  %v5353 = vpop.f32.mrb[0].mxu0
  %v5354 = vpop.f32.mrb[0].mxu0
  %v5355 = vadd.f32 %v5091, %v5354
  %v5356 = vpop.f32.mrb[0].mxu0
  %5357 = vmatprep.mubr.bf16.mxu0 0
  %5358 = vmatmul.mubr.bf16.gmra.mrb[0].mxu0 %v5061
  %v5359 = vpop.f32.mrb[0].mxu0
  %v5360 = vadd.f32 %v5091, %v5359
  %v5361 = vpop.f32.mrb[0].mxu0
  %v5362 = vpop.f32.mrb[0].mxu0
  %v5363 = vadd.f32 %v5091, %v5362
  %v5364 = vpop.f32.mrb[0].mxu0
  %5365 = vmatprep.mubr.bf16.mxu0 0
  %5366 = vmatmul.mubr.bf16.gmra.mrb[0].mxu0 %v5062
  %v5367 = vpop.f32.mrb[0].mxu0
  %v5368 = vadd.f32 %v5091, %v5367
  %v5369 = vpop.f32.mrb[0].mxu0
  %v5370 = vpop.f32.mrb[0].mxu0
  %v5371 = vadd.f32 %v5091, %v5370
  %v5372 = vpop.f32.mrb[0].mxu0
  %5373 = vmatprep.mubr.bf16.mxu0 0
  %5374 = vmatmul.mubr.bf16.gmra.mrb[0].mxu0 %v5063
  %v5375 = vpop.f32.mrb[0].mxu0
  %v5376 = vadd.f32 %v5091, %v5375
  %v5377 = vpop.f32.mrb[0].mxu0
  %v5378 = vpop.f32.mrb[0].mxu0
  %v5379 = vadd.f32 %v5091, %v5378
  %v5380 = vpop.f32.mrb[0].mxu0
  %5381 = vmatprep.mubr.bf16.mxu0 0
  %5382 = vmatmul.mubr.bf16.gmra.mrb[0].mxu0 %v5064
  %v5383 = vpop.f32.mrb[0].mxu0
  %v5384 = vadd.f32 %v5091, %v5383
  %v5385 = vpop.f32.mrb[0].mxu0
  %v5386 = vpop.f32.mrb[0].mxu0
  %v5387 = vadd.f32 %v5091, %v5386
  %v5388 = vpop.f32.mrb[0].mxu0
  %5389 = vmatprep.mubr.bf16.mxu0 0
  %5390 = vmatmul.mubr.bf16.gmra.mrb[0].mxu0 %v5065
  %v5391 = vpop.f32.mrb[0].mxu0
  %v5392 = vadd.f32 %v5091, %v5391
  %v5393 = vpop.f32.mrb[0].mxu0
  %v5394 = vpop.f32.mrb[0].mxu0
  %v5395 = vadd.f32 %v5091, %v5394
  %v5396 = vpop.f32.mrb[0].mxu0
  %5397 = vmatprep.mubr.bf16.mxu0 0
  %5398 = vmatmul.mubr.bf16.gmra.mrb[0].mxu0 %v5066
  %v5399 = vpop.f32.mrb[0].mxu0
  %v5400 = vadd.f32 %v5091, %v5399
  %v5401 = vpop.f32.mrb[0].mxu0
  %v5402 = vpop.f32.mrb[0].mxu0
  %v5403 = vadd.f32 %v5091, %v5402
  %v5404 = vpop.f32.mrb[0].mxu0
  %5405 = vmatprep.mubr.bf16.mxu0 0
  %5406 = vmatmul.mubr.bf16.gmra.mrb[0].mxu0 %v5067
  %v5407 = vpop.f32.mrb[0].mxu0
  %v5408 = vadd.f32 %v5091, %v5407
  %v5409 = vpop.f32.mrb[0].mxu0
  %v5410 = vpop.f32.mrb[0].mxu0
  %v5411 = vadd.f32 %v5091, %v5410
  %v5412 = vpop.f32.mrb[0].mxu0
  %5413 = vmatprep.mubr.bf16.mxu0 0
  %5414 = vmatmul.mubr.bf16.gmra.mrb[0].mxu0 %v5068
  %v5415 = vpop.f32.mrb[0].mxu0
  %v5416 = vadd.f32 %v5091, %v5415
  %v5417 = vpop.f32.mrb[0].mxu0
  %v5418 = vpop.f32.mrb[0].mxu0
  %v5419 = vadd.f32 %v5091, %v5418
  %v5420 = vpop.f32.mrb[0].mxu0
  %5421 = vmatprep.mubr.bf16.mxu0 0
  %5422 = vmatmul.mubr.bf16.gmra.mrb[0].mxu0 %v5069
  %v5423 = vpop.f32.mrb[0].mxu0
  %v5424 = vadd.f32 %v5091, %v5423
  %v5425 = vpop.f32.mrb[0].mxu0
  %v5426 = vpop.f32.mrb[0].mxu0
  %v5427 = vadd.f32 %v5091, %v5426
  %v5428 = vpop.f32.mrb[0].mxu0
  %5429 = vdwg.mxu0
  %v5430 = vadd.f32 %v5176, 0.0
  %v5431 = vadd.f32 %v5179, 0.0
  %v5432 = vadd.f32 %v5184, 0.0
  %v5433 = vadd.f32 %v5187, 0.0
  %v5434 = vadd.f32 %v5192, 0.0
  %v5435 = vadd.f32 %v5195, 0.0
  %v5436 = vadd.f32 %v5200, 0.0
  %v5437 = vadd.f32 %v5203, 0.0
  %v5438 = vadd.f32 %v5208, 0.0
  %v5439 = vadd.f32 %v5211, 0.0
  %v5440 = vadd.f32 %v5216, 0.0
  %v5441 = vadd.f32 %v5219, 0.0
  %v5442 = vadd.f32 %v5224, 0.0
  %v5443 = vadd.f32 %v5227, 0.0
  %v5444 = vadd.f32 %v5232, 0.0
  %v5445 = vadd.f32 %v5235, 0.0
  %v5446 = vadd.f32 %v5240, 0.0
  %v5447 = vadd.f32 %v5243, 0.0
  %v5448 = vadd.f32 %v5248, 0.0
  %v5449 = vadd.f32 %v5251, 0.0
  %v5450 = vadd.f32 %v5256, 0.0
  %v5451 = vadd.f32 %v5259, 0.0
  %v5452 = vadd.f32 %v5264, 0.0
  %v5453 = vadd.f32 %v5267, 0.0
  %v5454 = vadd.f32 %v5272, 0.0
  %v5455 = vadd.f32 %v5275, 0.0
  %v5456 = vadd.f32 %v5280, 0.0
  %v5457 = vadd.f32 %v5283, 0.0
  %v5458 = vadd.f32 %v5288, 0.0
  %v5459 = vadd.f32 %v5291, 0.0
  %v5460 = vadd.f32 %v5296, 0.0
  %v5461 = vadd.f32 %v5299, 0.0
  %v5462 = vadd.f32 %v5304, 0.0
  %v5463 = vadd.f32 %v5307, 0.0
  %v5464 = vadd.f32 %v5312, 0.0
  %v5465 = vadd.f32 %v5315, 0.0
  %v5466 = vadd.f32 %v5320, 0.0
  %v5467 = vadd.f32 %v5323, 0.0
  %v5468 = vadd.f32 %v5328, 0.0
  %v5469 = vadd.f32 %v5331, 0.0
  %v5470 = vadd.f32 %v5336, 0.0
  %v5471 = vadd.f32 %v5339, 0.0
  %v5472 = vadd.f32 %v5344, 0.0
  %v5473 = vadd.f32 %v5347, 0.0
  %v5474 = vadd.f32 %v5352, 0.0
  %v5475 = vadd.f32 %v5355, 0.0
  %v5476 = vadd.f32 %v5360, 0.0
  %v5477 = vadd.f32 %v5363, 0.0
  %v5478 = vadd.f32 %v5368, 0.0
  %v5479 = vadd.f32 %v5371, 0.0
  %v5480 = vadd.f32 %v5376, 0.0
  %v5481 = vadd.f32 %v5379, 0.0
  %v5482 = vadd.f32 %v5384, 0.0
  %v5483 = vadd.f32 %v5387, 0.0
  %v5484 = vadd.f32 %v5392, 0.0
  %v5485 = vadd.f32 %v5395, 0.0
  %v5486 = vadd.f32 %v5400, 0.0
  %v5487 = vadd.f32 %v5403, 0.0
  %v5488 = vadd.f32 %v5408, 0.0
  %v5489 = vadd.f32 %v5411, 0.0
  %v5490 = vadd.f32 %v5416, 0.0
  %v5491 = vadd.f32 %v5419, 0.0
  %v5492 = vadd.f32 %v5424, 0.0
  %v5493 = vadd.f32 %v5427, 0.0
  %v5494 = vxor.u32 %v5430, 2147483648
  %v5495 = vxor.u32 %v5431, 2147483648
  %v5496 = vxor.u32 %v5432, 2147483648
  %v5497 = vxor.u32 %v5433, 2147483648
  %v5498 = vxor.u32 %v5434, 2147483648
  %v5499 = vxor.u32 %v5435, 2147483648
  %v5500 = vxor.u32 %v5436, 2147483648
  %v5501 = vxor.u32 %v5437, 2147483648
  %v5502 = vxor.u32 %v5438, 2147483648
  %v5503 = vxor.u32 %v5439, 2147483648
  %v5504 = vxor.u32 %v5440, 2147483648
  %v5505 = vxor.u32 %v5441, 2147483648
  %v5506 = vxor.u32 %v5442, 2147483648
  %v5507 = vxor.u32 %v5443, 2147483648
  %v5508 = vxor.u32 %v5444, 2147483648
  %v5509 = vxor.u32 %v5445, 2147483648
  %v5510 = vxor.u32 %v5446, 2147483648
  %v5511 = vxor.u32 %v5447, 2147483648
  %v5512 = vxor.u32 %v5448, 2147483648
  %v5513 = vxor.u32 %v5449, 2147483648
  %v5514 = vxor.u32 %v5450, 2147483648
  %v5515 = vxor.u32 %v5451, 2147483648
  %v5516 = vxor.u32 %v5452, 2147483648
  %v5517 = vxor.u32 %v5453, 2147483648
  %v5518 = vxor.u32 %v5454, 2147483648
  %v5519 = vxor.u32 %v5455, 2147483648
  %v5520 = vxor.u32 %v5456, 2147483648
  %v5521 = vxor.u32 %v5457, 2147483648
  %v5522 = vxor.u32 %v5458, 2147483648
  %v5523 = vxor.u32 %v5459, 2147483648
  %v5524 = vxor.u32 %v5460, 2147483648
  %v5525 = vxor.u32 %v5461, 2147483648
  %v5526 = vxor.u32 %v5462, 2147483648
  %v5527 = vxor.u32 %v5463, 2147483648
  %v5528 = vxor.u32 %v5464, 2147483648
  %v5529 = vxor.u32 %v5465, 2147483648
  %v5530 = vxor.u32 %v5466, 2147483648
  %v5531 = vxor.u32 %v5467, 2147483648
  %v5532 = vxor.u32 %v5468, 2147483648
  %v5533 = vxor.u32 %v5469, 2147483648
  %v5534 = vxor.u32 %v5470, 2147483648
  %v5535 = vxor.u32 %v5471, 2147483648
  %v5536 = vxor.u32 %v5472, 2147483648
  %v5537 = vxor.u32 %v5473, 2147483648
  %v5538 = vxor.u32 %v5474, 2147483648
  %v5539 = vxor.u32 %v5475, 2147483648
  %v5540 = vxor.u32 %v5476, 2147483648
  %v5541 = vxor.u32 %v5477, 2147483648
  %v5542 = vxor.u32 %v5478, 2147483648
  %v5543 = vxor.u32 %v5479, 2147483648
  %v5544 = vxor.u32 %v5480, 2147483648
  %v5545 = vxor.u32 %v5481, 2147483648
  %v5546 = vxor.u32 %v5482, 2147483648
  %v5547 = vxor.u32 %v5483, 2147483648
  %v5548 = vxor.u32 %v5484, 2147483648
  %v5549 = vxor.u32 %v5485, 2147483648
  %v5550 = vxor.u32 %v5486, 2147483648
  %v5551 = vxor.u32 %v5487, 2147483648
  %v5552 = vxor.u32 %v5488, 2147483648
  %v5553 = vxor.u32 %v5489, 2147483648
  %v5554 = vxor.u32 %v5490, 2147483648
  %v5555 = vxor.u32 %v5491, 2147483648
  %v5556 = vxor.u32 %v5492, 2147483648
  %v5557 = vxor.u32 %v5493, 2147483648
  %v5558 = vmul.f32 %v5494, 1.442695
  %v5559 = vpow.pop %v5558
  %v5560 = vmul.f32 %v5495, 1.442695
  %v5561 = vpow.pop %v5560
  %v5562 = vmul.f32 %v5496, 1.442695
  %v5563 = vpow.pop %v5562
  %v5564 = vmul.f32 %v5497, 1.442695
  %v5565 = vpow.pop %v5564
  %v5566 = vmul.f32 %v5498, 1.442695
  %v5567 = vpow.pop %v5566
  %v5568 = vmul.f32 %v5499, 1.442695
  %v5569 = vpow.pop %v5568
  %v5570 = vmul.f32 %v5500, 1.442695
  %v5571 = vpow.pop %v5570
  %v5572 = vmul.f32 %v5501, 1.442695
  %v5573 = vpow.pop %v5572
  %v5574 = vmul.f32 %v5502, 1.442695
  %v5575 = vpow.pop %v5574
  %v5576 = vmul.f32 %v5503, 1.442695
  %v5577 = vpow.pop %v5576
  %v5578 = vmul.f32 %v5504, 1.442695
  %v5579 = vpow.pop %v5578
  %v5580 = vmul.f32 %v5505, 1.442695
  %v5581 = vpow.pop %v5580
  %v5582 = vmul.f32 %v5506, 1.442695
  %v5583 = vpow.pop %v5582
  %v5584 = vmul.f32 %v5507, 1.442695
  %v5585 = vpow.pop %v5584
  %v5586 = vmul.f32 %v5508, 1.442695
  %v5587 = vpow.pop %v5586
  %v5588 = vmul.f32 %v5509, 1.442695
  %v5589 = vpow.pop %v5588
  %v5590 = vmul.f32 %v5510, 1.442695
  %v5591 = vpow.pop %v5590
  %v5592 = vmul.f32 %v5511, 1.442695
  %v5593 = vpow.pop %v5592
  %v5594 = vmul.f32 %v5512, 1.442695
  %v5595 = vpow.pop %v5594
  %v5596 = vmul.f32 %v5513, 1.442695
  %v5597 = vpow.pop %v5596
  %v5598 = vmul.f32 %v5514, 1.442695
  %v5599 = vpow.pop %v5598
  %v5600 = vmul.f32 %v5515, 1.442695
  %v5601 = vpow.pop %v5600
  %v5602 = vmul.f32 %v5516, 1.442695
  %v5603 = vpow.pop %v5602
  %v5604 = vmul.f32 %v5517, 1.442695
  %v5605 = vpow.pop %v5604
  %v5606 = vmul.f32 %v5518, 1.442695
  %v5607 = vpow.pop %v5606
  %v5608 = vmul.f32 %v5519, 1.442695
  %v5609 = vpow.pop %v5608
  %v5610 = vmul.f32 %v5520, 1.442695
  %v5611 = vpow.pop %v5610
  %v5612 = vmul.f32 %v5521, 1.442695
  %v5613 = vpow.pop %v5612
  %v5614 = vmul.f32 %v5522, 1.442695
  %v5615 = vpow.pop %v5614
  %v5616 = vmul.f32 %v5523, 1.442695
  %v5617 = vpow.pop %v5616
  %v5618 = vmul.f32 %v5524, 1.442695
  %v5619 = vpow.pop %v5618
  %v5620 = vmul.f32 %v5525, 1.442695
  %v5621 = vpow.pop %v5620
  %v5622 = vmul.f32 %v5526, 1.442695
  %v5623 = vpow.pop %v5622
  %v5624 = vmul.f32 %v5527, 1.442695
  %v5625 = vpow.pop %v5624
  %v5626 = vmul.f32 %v5528, 1.442695
  %v5627 = vpow.pop %v5626
  %v5628 = vmul.f32 %v5529, 1.442695
  %v5629 = vpow.pop %v5628
  %v5630 = vmul.f32 %v5530, 1.442695
  %v5631 = vpow.pop %v5630
  %v5632 = vmul.f32 %v5531, 1.442695
  %v5633 = vpow.pop %v5632
  %v5634 = vmul.f32 %v5532, 1.442695
  %v5635 = vpow.pop %v5634
  %v5636 = vmul.f32 %v5533, 1.442695
  %v5637 = vpow.pop %v5636
  %v5638 = vmul.f32 %v5534, 1.442695
  %v5639 = vpow.pop %v5638
  %v5640 = vmul.f32 %v5535, 1.442695
  %v5641 = vpow.pop %v5640
  %v5642 = vmul.f32 %v5536, 1.442695
  %v5643 = vpow.pop %v5642
  %v5644 = vmul.f32 %v5537, 1.442695
  %v5645 = vpow.pop %v5644
  %v5646 = vmul.f32 %v5538, 1.442695
  %v5647 = vpow.pop %v5646
  %v5648 = vmul.f32 %v5539, 1.442695
  %v5649 = vpow.pop %v5648
  %v5650 = vmul.f32 %v5540, 1.442695
  %v5651 = vpow.pop %v5650
  %v5652 = vmul.f32 %v5541, 1.442695
  %v5653 = vpow.pop %v5652
  %v5654 = vmul.f32 %v5542, 1.442695
  %v5655 = vpow.pop %v5654
  %v5656 = vmul.f32 %v5543, 1.442695
  %v5657 = vpow.pop %v5656
  %v5658 = vmul.f32 %v5544, 1.442695
  %v5659 = vpow.pop %v5658
  %v5660 = vmul.f32 %v5545, 1.442695
  %v5661 = vpow.pop %v5660
  %v5662 = vmul.f32 %v5546, 1.442695
  %v5663 = vpow.pop %v5662
  %v5664 = vmul.f32 %v5547, 1.442695
  %v5665 = vpow.pop %v5664
  %v5666 = vmul.f32 %v5548, 1.442695
  %v5667 = vpow.pop %v5666
  %v5668 = vmul.f32 %v5549, 1.442695
  %v5669 = vpow.pop %v5668
  %v5670 = vmul.f32 %v5550, 1.442695
  %v5671 = vpow.pop %v5670
  %v5672 = vmul.f32 %v5551, 1.442695
  %v5673 = vpow.pop %v5672
  %v5674 = vmul.f32 %v5552, 1.442695
  %v5675 = vpow.pop %v5674
  %v5676 = vmul.f32 %v5553, 1.442695
  %v5677 = vpow.pop %v5676
  %v5678 = vmul.f32 %v5554, 1.442695
  %v5679 = vpow.pop %v5678
  %v5680 = vmul.f32 %v5555, 1.442695
  %v5681 = vpow.pop %v5680
  %v5682 = vmul.f32 %v5556, 1.442695
  %v5683 = vpow.pop %v5682
  %v5684 = vmul.f32 %v5557, 1.442695
  %v5685 = vpow.pop %v5684
  %v5686 = vadd.f32 %v5559, 1.0
  %v5687 = vadd.f32 %v5561, 1.0
  %v5688 = vadd.f32 %v5563, 1.0
  %v5689 = vadd.f32 %v5565, 1.0
  %v5690 = vadd.f32 %v5567, 1.0
  %v5691 = vadd.f32 %v5569, 1.0
  %v5692 = vadd.f32 %v5571, 1.0
  %v5693 = vadd.f32 %v5573, 1.0
  %v5694 = vadd.f32 %v5575, 1.0
  %v5695 = vadd.f32 %v5577, 1.0
  %v5696 = vadd.f32 %v5579, 1.0
  %v5697 = vadd.f32 %v5581, 1.0
  %v5698 = vadd.f32 %v5583, 1.0
  %v5699 = vadd.f32 %v5585, 1.0
  %v5700 = vadd.f32 %v5587, 1.0
  %v5701 = vadd.f32 %v5589, 1.0
  %v5702 = vadd.f32 %v5591, 1.0
  %v5703 = vadd.f32 %v5593, 1.0
  %v5704 = vadd.f32 %v5595, 1.0
  %v5705 = vadd.f32 %v5597, 1.0
  %v5706 = vadd.f32 %v5599, 1.0
  %v5707 = vadd.f32 %v5601, 1.0
  %v5708 = vadd.f32 %v5603, 1.0
  %v5709 = vadd.f32 %v5605, 1.0
  %v5710 = vadd.f32 %v5607, 1.0
  %v5711 = vadd.f32 %v5609, 1.0
  %v5712 = vadd.f32 %v5611, 1.0
  %v5713 = vadd.f32 %v5613, 1.0
  %v5714 = vadd.f32 %v5615, 1.0
  %v5715 = vadd.f32 %v5617, 1.0
  %v5716 = vadd.f32 %v5619, 1.0
  %v5717 = vadd.f32 %v5621, 1.0
  %v5718 = vadd.f32 %v5623, 1.0
  %v5719 = vadd.f32 %v5625, 1.0
  %v5720 = vadd.f32 %v5627, 1.0
  %v5721 = vadd.f32 %v5629, 1.0
  %v5722 = vadd.f32 %v5631, 1.0
  %v5723 = vadd.f32 %v5633, 1.0
  %v5724 = vadd.f32 %v5635, 1.0
  %v5725 = vadd.f32 %v5637, 1.0
  %v5726 = vadd.f32 %v5639, 1.0
  %v5727 = vadd.f32 %v5641, 1.0
  %v5728 = vadd.f32 %v5643, 1.0
  %v5729 = vadd.f32 %v5645, 1.0
  %v5730 = vadd.f32 %v5647, 1.0
  %v5731 = vadd.f32 %v5649, 1.0
  %v5732 = vadd.f32 %v5651, 1.0
  %v5733 = vadd.f32 %v5653, 1.0
  %v5734 = vadd.f32 %v5655, 1.0
  %v5735 = vadd.f32 %v5657, 1.0
  %v5736 = vadd.f32 %v5659, 1.0
  %v5737 = vadd.f32 %v5661, 1.0
  %v5738 = vadd.f32 %v5663, 1.0
  %v5739 = vadd.f32 %v5665, 1.0
  %v5740 = vadd.f32 %v5667, 1.0
  %v5741 = vadd.f32 %v5669, 1.0
  %v5742 = vadd.f32 %v5671, 1.0
  %v5743 = vadd.f32 %v5673, 1.0
  %v5744 = vadd.f32 %v5675, 1.0
  %v5745 = vadd.f32 %v5677, 1.0
  %v5746 = vadd.f32 %v5679, 1.0
  %v5747 = vadd.f32 %v5681, 1.0
  %v5748 = vadd.f32 %v5683, 1.0
  %v5749 = vadd.f32 %v5685, 1.0
  %v5750 = vrcp.pop %v5686
  %v5751 = vmul.f32 1.0, %v5750
  %v5752 = vrcp.pop %v5687
  %v5753 = vmul.f32 1.0, %v5752
  %v5754 = vrcp.pop %v5688
  %v5755 = vmul.f32 1.0, %v5754
  %v5756 = vrcp.pop %v5689
  %v5757 = vmul.f32 1.0, %v5756
  %v5758 = vrcp.pop %v5690
  %v5759 = vmul.f32 1.0, %v5758
  %v5760 = vrcp.pop %v5691
  %v5761 = vmul.f32 1.0, %v5760
  %v5762 = vrcp.pop %v5692
  %v5763 = vmul.f32 1.0, %v5762
  %v5764 = vrcp.pop %v5693
  %v5765 = vmul.f32 1.0, %v5764
  %v5766 = vrcp.pop %v5694
  %v5767 = vmul.f32 1.0, %v5766
  %v5768 = vrcp.pop %v5695
  %v5769 = vmul.f32 1.0, %v5768
  %v5770 = vrcp.pop %v5696
  %v5771 = vmul.f32 1.0, %v5770
  %v5772 = vrcp.pop %v5697
  %v5773 = vmul.f32 1.0, %v5772
  %v5774 = vrcp.pop %v5698
  %v5775 = vmul.f32 1.0, %v5774
  %v5776 = vrcp.pop %v5699
  %v5777 = vmul.f32 1.0, %v5776
  %v5778 = vrcp.pop %v5700
  %v5779 = vmul.f32 1.0, %v5778
  %v5780 = vrcp.pop %v5701
  %v5781 = vmul.f32 1.0, %v5780
  %v5782 = vrcp.pop %v5702
  %v5783 = vmul.f32 1.0, %v5782
  %v5784 = vrcp.pop %v5703
  %v5785 = vmul.f32 1.0, %v5784
  %v5786 = vrcp.pop %v5704
  %v5787 = vmul.f32 1.0, %v5786
  %v5788 = vrcp.pop %v5705
  %v5789 = vmul.f32 1.0, %v5788
  %v5790 = vrcp.pop %v5706
  %v5791 = vmul.f32 1.0, %v5790
  %v5792 = vrcp.pop %v5707
  %v5793 = vmul.f32 1.0, %v5792
  %v5794 = vrcp.pop %v5708
  %v5795 = vmul.f32 1.0, %v5794
  %v5796 = vrcp.pop %v5709
  %v5797 = vmul.f32 1.0, %v5796
  %v5798 = vrcp.pop %v5710
  %v5799 = vmul.f32 1.0, %v5798
  %v5800 = vrcp.pop %v5711
  %v5801 = vmul.f32 1.0, %v5800
  %v5802 = vrcp.pop %v5712
  %v5803 = vmul.f32 1.0, %v5802
  %v5804 = vrcp.pop %v5713
  %v5805 = vmul.f32 1.0, %v5804
  %v5806 = vrcp.pop %v5714
  %v5807 = vmul.f32 1.0, %v5806
  %v5808 = vrcp.pop %v5715
  %v5809 = vmul.f32 1.0, %v5808
  %v5810 = vrcp.pop %v5716
  %v5811 = vmul.f32 1.0, %v5810
  %v5812 = vrcp.pop %v5717
  %v5813 = vmul.f32 1.0, %v5812
  %v5814 = vrcp.pop %v5718
  %v5815 = vmul.f32 1.0, %v5814
  %v5816 = vrcp.pop %v5719
  %v5817 = vmul.f32 1.0, %v5816
  %v5818 = vrcp.pop %v5720
  %v5819 = vmul.f32 1.0, %v5818
  %v5820 = vrcp.pop %v5721
  %v5821 = vmul.f32 1.0, %v5820
  %v5822 = vrcp.pop %v5722
  %v5823 = vmul.f32 1.0, %v5822
  %v5824 = vrcp.pop %v5723
  %v5825 = vmul.f32 1.0, %v5824
  %v5826 = vrcp.pop %v5724
  %v5827 = vmul.f32 1.0, %v5826
  %v5828 = vrcp.pop %v5725
  %v5829 = vmul.f32 1.0, %v5828
  %v5830 = vrcp.pop %v5726
  %v5831 = vmul.f32 1.0, %v5830
  %v5832 = vrcp.pop %v5727
  %v5833 = vmul.f32 1.0, %v5832
  %v5834 = vrcp.pop %v5728
  %v5835 = vmul.f32 1.0, %v5834
  %v5836 = vrcp.pop %v5729
  %v5837 = vmul.f32 1.0, %v5836
  %v5838 = vrcp.pop %v5730
  %v5839 = vmul.f32 1.0, %v5838
  %v5840 = vrcp.pop %v5731
  %v5841 = vmul.f32 1.0, %v5840
  %v5842 = vrcp.pop %v5732
  %v5843 = vmul.f32 1.0, %v5842
  %v5844 = vrcp.pop %v5733
  %v5845 = vmul.f32 1.0, %v5844
  %v5846 = vrcp.pop %v5734
  %v5847 = vmul.f32 1.0, %v5846
  %v5848 = vrcp.pop %v5735
  %v5849 = vmul.f32 1.0, %v5848
  %v5850 = vrcp.pop %v5736
  %v5851 = vmul.f32 1.0, %v5850
  %v5852 = vrcp.pop %v5737
  %v5853 = vmul.f32 1.0, %v5852
  %v5854 = vrcp.pop %v5738
  %v5855 = vmul.f32 1.0, %v5854
  %v5856 = vrcp.pop %v5739
  %v5857 = vmul.f32 1.0, %v5856
  %v5858 = vrcp.pop %v5740
  %v5859 = vmul.f32 1.0, %v5858
  %v5860 = vrcp.pop %v5741
  %v5861 = vmul.f32 1.0, %v5860
  %v5862 = vrcp.pop %v5742
  %v5863 = vmul.f32 1.0, %v5862
  %v5864 = vrcp.pop %v5743
  %v5865 = vmul.f32 1.0, %v5864
  %v5866 = vrcp.pop %v5744
  %v5867 = vmul.f32 1.0, %v5866
  %v5868 = vrcp.pop %v5745
  %v5869 = vmul.f32 1.0, %v5868
  %v5870 = vrcp.pop %v5746
  %v5871 = vmul.f32 1.0, %v5870
  %v5872 = vrcp.pop %v5747
  %v5873 = vmul.f32 1.0, %v5872
  %v5874 = vrcp.pop %v5748
  %v5875 = vmul.f32 1.0, %v5874
  %v5876 = vrcp.pop %v5749
  %v5877 = vmul.f32 1.0, %v5876
  %v5878 = vmul.f32 %v5751, 1.002
  %v5879 = vmul.f32 %v5753, 1.002
  %v5880 = vmul.f32 %v5755, 1.002
  %v5881 = vmul.f32 %v5757, 1.002
  %v5882 = vmul.f32 %v5759, 1.002
  %v5883 = vmul.f32 %v5761, 1.002
  %v5884 = vmul.f32 %v5763, 1.002
  %v5885 = vmul.f32 %v5765, 1.002
  %v5886 = vmul.f32 %v5767, 1.002
  %v5887 = vmul.f32 %v5769, 1.002
  %v5888 = vmul.f32 %v5771, 1.002
  %v5889 = vmul.f32 %v5773, 1.002
  %v5890 = vmul.f32 %v5775, 1.002
  %v5891 = vmul.f32 %v5777, 1.002
  %v5892 = vmul.f32 %v5779, 1.002
  %v5893 = vmul.f32 %v5781, 1.002
  %v5894 = vmul.f32 %v5783, 1.002
  %v5895 = vmul.f32 %v5785, 1.002
  %v5896 = vmul.f32 %v5787, 1.002
  %v5897 = vmul.f32 %v5789, 1.002
  %v5898 = vmul.f32 %v5791, 1.002
  %v5899 = vmul.f32 %v5793, 1.002
  %v5900 = vmul.f32 %v5795, 1.002
  %v5901 = vmul.f32 %v5797, 1.002
  %v5902 = vmul.f32 %v5799, 1.002
  %v5903 = vmul.f32 %v5801, 1.002
  %v5904 = vmul.f32 %v5803, 1.002
  %v5905 = vmul.f32 %v5805, 1.002
  %v5906 = vmul.f32 %v5807, 1.002
  %v5907 = vmul.f32 %v5809, 1.002
  %v5908 = vmul.f32 %v5811, 1.002
  %v5909 = vmul.f32 %v5813, 1.002
  %v5910 = vmul.f32 %v5815, 1.002
  %v5911 = vmul.f32 %v5817, 1.002
  %v5912 = vmul.f32 %v5819, 1.002
  %v5913 = vmul.f32 %v5821, 1.002
  %v5914 = vmul.f32 %v5823, 1.002
  %v5915 = vmul.f32 %v5825, 1.002
  %v5916 = vmul.f32 %v5827, 1.002
  %v5917 = vmul.f32 %v5829, 1.002
  %v5918 = vmul.f32 %v5831, 1.002
  %v5919 = vmul.f32 %v5833, 1.002
  %v5920 = vmul.f32 %v5835, 1.002
  %v5921 = vmul.f32 %v5837, 1.002
  %v5922 = vmul.f32 %v5839, 1.002
  %v5923 = vmul.f32 %v5841, 1.002
  %v5924 = vmul.f32 %v5843, 1.002
  %v5925 = vmul.f32 %v5845, 1.002
  %v5926 = vmul.f32 %v5847, 1.002
  %v5927 = vmul.f32 %v5849, 1.002
  %v5928 = vmul.f32 %v5851, 1.002
  %v5929 = vmul.f32 %v5853, 1.002
  %v5930 = vmul.f32 %v5855, 1.002
  %v5931 = vmul.f32 %v5857, 1.002
  %v5932 = vmul.f32 %v5859, 1.002
  %v5933 = vmul.f32 %v5861, 1.002
  %v5934 = vmul.f32 %v5863, 1.002
  %v5935 = vmul.f32 %v5865, 1.002
  %v5936 = vmul.f32 %v5867, 1.002
  %v5937 = vmul.f32 %v5869, 1.002
  %v5938 = vmul.f32 %v5871, 1.002
  %v5939 = vmul.f32 %v5873, 1.002
  %v5940 = vmul.f32 %v5875, 1.002
  %v5941 = vmul.f32 %v5877, 1.002
  %v5942 = vsub.f32 %v5878, 0.001
  %v5943 = vsub.f32 %v5879, 0.001
  %v5944 = vsub.f32 %v5880, 0.001
  %v5945 = vsub.f32 %v5881, 0.001
  %v5946 = vsub.f32 %v5882, 0.001
  %v5947 = vsub.f32 %v5883, 0.001
  %v5948 = vsub.f32 %v5884, 0.001
  %v5949 = vsub.f32 %v5885, 0.001
  %v5950 = vsub.f32 %v5886, 0.001
  %v5951 = vsub.f32 %v5887, 0.001
  %v5952 = vsub.f32 %v5888, 0.001
  %v5953 = vsub.f32 %v5889, 0.001
  %v5954 = vsub.f32 %v5890, 0.001
  %v5955 = vsub.f32 %v5891, 0.001
  %v5956 = vsub.f32 %v5892, 0.001
  %v5957 = vsub.f32 %v5893, 0.001
  %v5958 = vsub.f32 %v5894, 0.001
  %v5959 = vsub.f32 %v5895, 0.001
  %v5960 = vsub.f32 %v5896, 0.001
  %v5961 = vsub.f32 %v5897, 0.001
  %v5962 = vsub.f32 %v5898, 0.001
  %v5963 = vsub.f32 %v5899, 0.001
  %v5964 = vsub.f32 %v5900, 0.001
  %v5965 = vsub.f32 %v5901, 0.001
  %v5966 = vsub.f32 %v5902, 0.001
  %v5967 = vsub.f32 %v5903, 0.001
  %v5968 = vsub.f32 %v5904, 0.001
  %v5969 = vsub.f32 %v5905, 0.001
  %v5970 = vsub.f32 %v5906, 0.001
  %v5971 = vsub.f32 %v5907, 0.001
  %v5972 = vsub.f32 %v5908, 0.001
  %v5973 = vsub.f32 %v5909, 0.001
  %v5974 = vsub.f32 %v5910, 0.001
  %v5975 = vsub.f32 %v5911, 0.001
  %v5976 = vsub.f32 %v5912, 0.001
  %v5977 = vsub.f32 %v5913, 0.001
  %v5978 = vsub.f32 %v5914, 0.001
  %v5979 = vsub.f32 %v5915, 0.001
  %v5980 = vsub.f32 %v5916, 0.001
  %v5981 = vsub.f32 %v5917, 0.001
  %v5982 = vsub.f32 %v5918, 0.001
  %v5983 = vsub.f32 %v5919, 0.001
  %v5984 = vsub.f32 %v5920, 0.001
  %v5985 = vsub.f32 %v5921, 0.001
  %v5986 = vsub.f32 %v5922, 0.001
  %v5987 = vsub.f32 %v5923, 0.001
  %v5988 = vsub.f32 %v5924, 0.001
  %v5989 = vsub.f32 %v5925, 0.001
  %v5990 = vsub.f32 %v5926, 0.001
  %v5991 = vsub.f32 %v5927, 0.001
  %v5992 = vsub.f32 %v5928, 0.001
  %v5993 = vsub.f32 %v5929, 0.001
  %v5994 = vsub.f32 %v5930, 0.001
  %v5995 = vsub.f32 %v5931, 0.001
  %v5996 = vsub.f32 %v5932, 0.001
  %v5997 = vsub.f32 %v5933, 0.001
  %v5998 = vsub.f32 %v5934, 0.001
  %v5999 = vsub.f32 %v5935, 0.001
  %v6000 = vsub.f32 %v5936, 0.001
  %v6001 = vsub.f32 %v5937, 0.001
  %v6002 = vsub.f32 %v5938, 0.001
  %v6003 = vsub.f32 %v5939, 0.001
  %v6004 = vsub.f32 %v5940, 0.001
  %v6005 = vsub.f32 %v5941, 0.001
  %v6006 = vlaneseq
  %v6007 = vand.u32 %v6006, 127
  %vm6008 = vcmp.lt.s32.totalorder %v6007, 3
  %6010 = vset.pattern.permute.xlu0 0
  %6011 = vperm.xlu0 %6010, %v2972
  %v6012 = vpop.permute.xlu0 %6011
  %6015 = vset.pattern.permute.xlu0 0
  %6016 = vperm.xlu0 %6015, %v2973
  %v6017 = vpop.permute.xlu0 %6016
  %6020 = vset.pattern.permute.xlu0 0
  %6021 = vperm.xlu0 %6020, %v2974
  %v6022 = vpop.permute.xlu0 %6021
  %6025 = vset.pattern.permute.xlu0 0
  %6026 = vperm.xlu0 %6025, %v2975
  %v6027 = vpop.permute.xlu0 %6026
  %6030 = vset.pattern.permute.xlu0 0
  %6031 = vperm.xlu0 %6030, %v2976
  %v6032 = vpop.permute.xlu0 %6031
  %6035 = vset.pattern.permute.xlu0 0
  %6036 = vperm.xlu0 %6035, %v2977
  %v6037 = vpop.permute.xlu0 %6036
  %6040 = vset.pattern.permute.xlu0 0
  %6041 = vperm.xlu0 %6040, %v2978
  %v6042 = vpop.permute.xlu0 %6041
  %6045 = vset.pattern.permute.xlu0 0
  %6046 = vperm.xlu0 %6045, %v2979
  %v6047 = vpop.permute.xlu0 %6046
  %6050 = vset.pattern.permute.xlu0 0
  %6051 = vperm.xlu0 %6050, %v2980
  %v6052 = vpop.permute.xlu0 %6051
  %6055 = vset.pattern.permute.xlu0 0
  %6056 = vperm.xlu0 %6055, %v2981
  %v6057 = vpop.permute.xlu0 %6056
  %6060 = vset.pattern.permute.xlu0 0
  %6061 = vperm.xlu0 %6060, %v2982
  %v6062 = vpop.permute.xlu0 %6061
  %6065 = vset.pattern.permute.xlu0 0
  %6066 = vperm.xlu0 %6065, %v2983
  %v6067 = vpop.permute.xlu0 %6066
  %6070 = vset.pattern.permute.xlu0 0
  %6071 = vperm.xlu0 %6070, %v2984
  %v6072 = vpop.permute.xlu0 %6071
  %6075 = vset.pattern.permute.xlu0 0
  %6076 = vperm.xlu0 %6075, %v2985
  %v6077 = vpop.permute.xlu0 %6076
  %6080 = vset.pattern.permute.xlu0 0
  %6081 = vperm.xlu0 %6080, %v2986
  %v6082 = vpop.permute.xlu0 %6081
  %6085 = vset.pattern.permute.xlu0 0
  %6086 = vperm.xlu0 %6085, %v2987
  %v6087 = vpop.permute.xlu0 %6086
  %6090 = vset.pattern.permute.xlu0 0
  %6091 = vperm.xlu0 %6090, %v2988
  %v6092 = vpop.permute.xlu0 %6091
  %6095 = vset.pattern.permute.xlu0 0
  %6096 = vperm.xlu0 %6095, %v2989
  %v6097 = vpop.permute.xlu0 %6096
  %6100 = vset.pattern.permute.xlu0 0
  %6101 = vperm.xlu0 %6100, %v2990
  %v6102 = vpop.permute.xlu0 %6101
  %6105 = vset.pattern.permute.xlu0 0
  %6106 = vperm.xlu0 %6105, %v2991
  %v6107 = vpop.permute.xlu0 %6106
  %6110 = vset.pattern.permute.xlu0 0
  %6111 = vperm.xlu0 %6110, %v2992
  %v6112 = vpop.permute.xlu0 %6111
  %6115 = vset.pattern.permute.xlu0 0
  %6116 = vperm.xlu0 %6115, %v2993
  %v6117 = vpop.permute.xlu0 %6116
  %6120 = vset.pattern.permute.xlu0 0
  %6121 = vperm.xlu0 %6120, %v2994
  %v6122 = vpop.permute.xlu0 %6121
  %6125 = vset.pattern.permute.xlu0 0
  %6126 = vperm.xlu0 %6125, %v2995
  %v6127 = vpop.permute.xlu0 %6126
  %6130 = vset.pattern.permute.xlu0 0
  %6131 = vperm.xlu0 %6130, %v2996
  %v6132 = vpop.permute.xlu0 %6131
  %6135 = vset.pattern.permute.xlu0 0
  %6136 = vperm.xlu0 %6135, %v2997
  %v6137 = vpop.permute.xlu0 %6136
  %6140 = vset.pattern.permute.xlu0 0
  %6141 = vperm.xlu0 %6140, %v2998
  %v6142 = vpop.permute.xlu0 %6141
  %6145 = vset.pattern.permute.xlu0 0
  %6146 = vperm.xlu0 %6145, %v2999
  %v6147 = vpop.permute.xlu0 %6146
  %6150 = vset.pattern.permute.xlu0 0
  %6151 = vperm.xlu0 %6150, %v3000
  %v6152 = vpop.permute.xlu0 %6151
  %6155 = vset.pattern.permute.xlu0 0
  %6156 = vperm.xlu0 %6155, %v3001
  %v6157 = vpop.permute.xlu0 %6156
  %6160 = vset.pattern.permute.xlu0 0
  %6161 = vperm.xlu0 %6160, %v3002
  %v6162 = vpop.permute.xlu0 %6161
  %6165 = vset.pattern.permute.xlu0 0
  %6166 = vperm.xlu0 %6165, %v3003
  %v6167 = vpop.permute.xlu0 %6166
  %6170 = vset.pattern.permute.xlu0 0
  %6171 = vperm.xlu0 %6170, %v3004
  %v6172 = vpop.permute.xlu0 %6171
  %6175 = vset.pattern.permute.xlu0 0
  %6176 = vperm.xlu0 %6175, %v3005
  %v6177 = vpop.permute.xlu0 %6176
  %6180 = vset.pattern.permute.xlu0 0
  %6181 = vperm.xlu0 %6180, %v3006
  %v6182 = vpop.permute.xlu0 %6181
  %6185 = vset.pattern.permute.xlu0 0
  %6186 = vperm.xlu0 %6185, %v3007
  %v6187 = vpop.permute.xlu0 %6186
  %6190 = vset.pattern.permute.xlu0 0
  %6191 = vperm.xlu0 %6190, %v3008
  %v6192 = vpop.permute.xlu0 %6191
  %6195 = vset.pattern.permute.xlu0 0
  %6196 = vperm.xlu0 %6195, %v3009
  %v6197 = vpop.permute.xlu0 %6196
  %6200 = vset.pattern.permute.xlu0 0
  %6201 = vperm.xlu0 %6200, %v3010
  %v6202 = vpop.permute.xlu0 %6201
  %6205 = vset.pattern.permute.xlu0 0
  %6206 = vperm.xlu0 %6205, %v3011
  %v6207 = vpop.permute.xlu0 %6206
  %6210 = vset.pattern.permute.xlu0 0
  %6211 = vperm.xlu0 %6210, %v3012
  %v6212 = vpop.permute.xlu0 %6211
  %6215 = vset.pattern.permute.xlu0 0
  %6216 = vperm.xlu0 %6215, %v3013
  %v6217 = vpop.permute.xlu0 %6216
  %6220 = vset.pattern.permute.xlu0 0
  %6221 = vperm.xlu0 %6220, %v3014
  %v6222 = vpop.permute.xlu0 %6221
  %6225 = vset.pattern.permute.xlu0 0
  %6226 = vperm.xlu0 %6225, %v3015
  %v6227 = vpop.permute.xlu0 %6226
  %6230 = vset.pattern.permute.xlu0 0
  %6231 = vperm.xlu0 %6230, %v3016
  %v6232 = vpop.permute.xlu0 %6231
  %6235 = vset.pattern.permute.xlu0 0
  %6236 = vperm.xlu0 %6235, %v3017
  %v6237 = vpop.permute.xlu0 %6236
  %6240 = vset.pattern.permute.xlu0 0
  %6241 = vperm.xlu0 %6240, %v3018
  %v6242 = vpop.permute.xlu0 %6241
  %6245 = vset.pattern.permute.xlu0 0
  %6246 = vperm.xlu0 %6245, %v3019
  %v6247 = vpop.permute.xlu0 %6246
  %6250 = vset.pattern.permute.xlu0 0
  %6251 = vperm.xlu0 %6250, %v3020
  %v6252 = vpop.permute.xlu0 %6251
  %6255 = vset.pattern.permute.xlu0 0
  %6256 = vperm.xlu0 %6255, %v3021
  %v6257 = vpop.permute.xlu0 %6256
  %6260 = vset.pattern.permute.xlu0 0
  %6261 = vperm.xlu0 %6260, %v3022
  %v6262 = vpop.permute.xlu0 %6261
  %6265 = vset.pattern.permute.xlu0 0
  %6266 = vperm.xlu0 %6265, %v3023
  %v6267 = vpop.permute.xlu0 %6266
  %6270 = vset.pattern.permute.xlu0 0
  %6271 = vperm.xlu0 %6270, %v3024
  %v6272 = vpop.permute.xlu0 %6271
  %6275 = vset.pattern.permute.xlu0 0
  %6276 = vperm.xlu0 %6275, %v3025
  %v6277 = vpop.permute.xlu0 %6276
  %6280 = vset.pattern.permute.xlu0 0
  %6281 = vperm.xlu0 %6280, %v3026
  %v6282 = vpop.permute.xlu0 %6281
  %6285 = vset.pattern.permute.xlu0 0
  %6286 = vperm.xlu0 %6285, %v3027
  %v6287 = vpop.permute.xlu0 %6286
  %6290 = vset.pattern.permute.xlu0 0
  %6291 = vperm.xlu0 %6290, %v3028
  %v6292 = vpop.permute.xlu0 %6291
  %6295 = vset.pattern.permute.xlu0 0
  %6296 = vperm.xlu0 %6295, %v3029
  %v6297 = vpop.permute.xlu0 %6296
  %6300 = vset.pattern.permute.xlu0 0
  %6301 = vperm.xlu0 %6300, %v3030
  %v6302 = vpop.permute.xlu0 %6301
  %6305 = vset.pattern.permute.xlu0 0
  %6306 = vperm.xlu0 %6305, %v3031
  %v6307 = vpop.permute.xlu0 %6306
  %6310 = vset.pattern.permute.xlu0 0
  %6311 = vperm.xlu0 %6310, %v3032
  %v6312 = vpop.permute.xlu0 %6311
  %6315 = vset.pattern.permute.xlu0 0
  %6316 = vperm.xlu0 %6315, %v3033
  %v6317 = vpop.permute.xlu0 %6316
  %6320 = vset.pattern.permute.xlu0 0
  %6321 = vperm.xlu0 %6320, %v3034
  %v6322 = vpop.permute.xlu0 %6321
  %6325 = vset.pattern.permute.xlu0 0
  %6326 = vperm.xlu0 %6325, %v3035
  %v6327 = vpop.permute.xlu0 %6326
  %v6329 = vsel %vm6008, %v5942, %v6012
  %v6330 = vsel %vm6008, %v5943, %v6017
  %v6331 = vsel %vm6008, %v5944, %v6022
  %v6332 = vsel %vm6008, %v5945, %v6027
  %v6333 = vsel %vm6008, %v5946, %v6032
  %v6334 = vsel %vm6008, %v5947, %v6037
  %v6335 = vsel %vm6008, %v5948, %v6042
  %v6336 = vsel %vm6008, %v5949, %v6047
  %v6337 = vsel %vm6008, %v5950, %v6052
  %v6338 = vsel %vm6008, %v5951, %v6057
  %v6339 = vsel %vm6008, %v5952, %v6062
  %v6340 = vsel %vm6008, %v5953, %v6067
  %v6341 = vsel %vm6008, %v5954, %v6072
  %v6342 = vsel %vm6008, %v5955, %v6077
  %v6343 = vsel %vm6008, %v5956, %v6082
  %v6344 = vsel %vm6008, %v5957, %v6087
  %v6345 = vsel %vm6008, %v5958, %v6092
  %v6346 = vsel %vm6008, %v5959, %v6097
  %v6347 = vsel %vm6008, %v5960, %v6102
  %v6348 = vsel %vm6008, %v5961, %v6107
  %v6349 = vsel %vm6008, %v5962, %v6112
  %v6350 = vsel %vm6008, %v5963, %v6117
  %v6351 = vsel %vm6008, %v5964, %v6122
  %v6352 = vsel %vm6008, %v5965, %v6127
  %v6353 = vsel %vm6008, %v5966, %v6132
  %v6354 = vsel %vm6008, %v5967, %v6137
  %v6355 = vsel %vm6008, %v5968, %v6142
  %v6356 = vsel %vm6008, %v5969, %v6147
  %v6357 = vsel %vm6008, %v5970, %v6152
  %v6358 = vsel %vm6008, %v5971, %v6157
  %v6359 = vsel %vm6008, %v5972, %v6162
  %v6360 = vsel %vm6008, %v5973, %v6167
  %v6361 = vsel %vm6008, %v5974, %v6172
  %v6362 = vsel %vm6008, %v5975, %v6177
  %v6363 = vsel %vm6008, %v5976, %v6182
  %v6364 = vsel %vm6008, %v5977, %v6187
  %v6365 = vsel %vm6008, %v5978, %v6192
  %v6366 = vsel %vm6008, %v5979, %v6197
  %v6367 = vsel %vm6008, %v5980, %v6202
  %v6368 = vsel %vm6008, %v5981, %v6207
  %v6369 = vsel %vm6008, %v5982, %v6212
  %v6370 = vsel %vm6008, %v5983, %v6217
  %v6371 = vsel %vm6008, %v5984, %v6222
  %v6372 = vsel %vm6008, %v5985, %v6227
  %v6373 = vsel %vm6008, %v5986, %v6232
  %v6374 = vsel %vm6008, %v5987, %v6237
  %v6375 = vsel %vm6008, %v5988, %v6242
  %v6376 = vsel %vm6008, %v5989, %v6247
  %v6377 = vsel %vm6008, %v5990, %v6252
  %v6378 = vsel %vm6008, %v5991, %v6257
  %v6379 = vsel %vm6008, %v5992, %v6262
  %v6380 = vsel %vm6008, %v5993, %v6267
  %v6381 = vsel %vm6008, %v5994, %v6272
  %v6382 = vsel %vm6008, %v5995, %v6277
  %v6383 = vsel %vm6008, %v5996, %v6282
  %v6384 = vsel %vm6008, %v5997, %v6287
  %v6385 = vsel %vm6008, %v5998, %v6292
  %v6386 = vsel %vm6008, %v5999, %v6297
  %v6387 = vsel %vm6008, %v6000, %v6302
  %v6388 = vsel %vm6008, %v6001, %v6307
  %v6389 = vsel %vm6008, %v6002, %v6312
  %v6390 = vsel %vm6008, %v6003, %v6317
  %v6391 = vsel %vm6008, %v6004, %v6322
  %v6392 = vsel %vm6008, %v6005, %v6327
  %v6393 = vpack.c.bf16 %v6330, %v6329
  %v6394 = vpack.c.bf16 %v6332, %v6331
  %v6395 = vpack.c.bf16 %v6334, %v6333
  %v6396 = vpack.c.bf16 %v6336, %v6335
  %v6397 = vpack.c.bf16 %v6338, %v6337
  %v6398 = vpack.c.bf16 %v6340, %v6339
  %v6399 = vpack.c.bf16 %v6342, %v6341
  %v6400 = vpack.c.bf16 %v6344, %v6343
  %v6401 = vpack.c.bf16 %v6346, %v6345
  %v6402 = vpack.c.bf16 %v6348, %v6347
  %v6403 = vpack.c.bf16 %v6350, %v6349
  %v6404 = vpack.c.bf16 %v6352, %v6351
  %v6405 = vpack.c.bf16 %v6354, %v6353
  %v6406 = vpack.c.bf16 %v6356, %v6355
  %v6407 = vpack.c.bf16 %v6358, %v6357
  %v6408 = vpack.c.bf16 %v6360, %v6359
  %v6409 = vpack.c.bf16 %v6362, %v6361
  %v6410 = vpack.c.bf16 %v6364, %v6363
  %v6411 = vpack.c.bf16 %v6366, %v6365
  %v6412 = vpack.c.bf16 %v6368, %v6367
  %v6413 = vpack.c.bf16 %v6370, %v6369
  %v6414 = vpack.c.bf16 %v6372, %v6371
  %v6415 = vpack.c.bf16 %v6374, %v6373
  %v6416 = vpack.c.bf16 %v6376, %v6375
  %v6417 = vpack.c.bf16 %v6378, %v6377
  %v6418 = vpack.c.bf16 %v6380, %v6379
  %v6419 = vpack.c.bf16 %v6382, %v6381
  %v6420 = vpack.c.bf16 %v6384, %v6383
  %v6421 = vpack.c.bf16 %v6386, %v6385
  %v6422 = vpack.c.bf16 %v6388, %v6387
  %v6423 = vpack.c.bf16 %v6390, %v6389
  %v6424 = vpack.c.bf16 %v6392, %v6391
  %v6457 = vunpack.c.l.b16 %v6393
  %v6458 = vunpack.c.h.b16 %v6393
  %v6459 = vunpack.c.l.b16 %v6394
  %v6460 = vunpack.c.h.b16 %v6394
  %v6461 = vunpack.c.l.b16 %v6395
  %v6462 = vunpack.c.h.b16 %v6395
  %v6463 = vunpack.c.l.b16 %v6396
  %v6464 = vunpack.c.h.b16 %v6396
  %v6465 = vunpack.c.l.b16 %v6397
  %v6466 = vunpack.c.h.b16 %v6397
  %v6467 = vunpack.c.l.b16 %v6398
  %v6468 = vunpack.c.h.b16 %v6398
  %v6469 = vunpack.c.l.b16 %v6399
  %v6470 = vunpack.c.h.b16 %v6399
  %v6471 = vunpack.c.l.b16 %v6400
  %v6472 = vunpack.c.h.b16 %v6400
  %v6473 = vunpack.c.l.b16 %v6401
  %v6474 = vunpack.c.h.b16 %v6401
  %v6475 = vunpack.c.l.b16 %v6402
  %v6476 = vunpack.c.h.b16 %v6402
  %v6477 = vunpack.c.l.b16 %v6403
  %v6478 = vunpack.c.h.b16 %v6403
  %v6479 = vunpack.c.l.b16 %v6404
  %v6480 = vunpack.c.h.b16 %v6404
  %v6481 = vunpack.c.l.b16 %v6405
  %v6482 = vunpack.c.h.b16 %v6405
  %v6483 = vunpack.c.l.b16 %v6406
  %v6484 = vunpack.c.h.b16 %v6406
  %v6485 = vunpack.c.l.b16 %v6407
  %v6486 = vunpack.c.h.b16 %v6407
  %v6487 = vunpack.c.l.b16 %v6408
  %v6488 = vunpack.c.h.b16 %v6408
  %v6489 = vunpack.c.l.b16 %v6409
  %v6490 = vunpack.c.h.b16 %v6409
  %v6491 = vunpack.c.l.b16 %v6410
  %v6492 = vunpack.c.h.b16 %v6410
  %v6493 = vunpack.c.l.b16 %v6411
  %v6494 = vunpack.c.h.b16 %v6411
  %v6495 = vunpack.c.l.b16 %v6412
  %v6496 = vunpack.c.h.b16 %v6412
  %v6497 = vunpack.c.l.b16 %v6413
  %v6498 = vunpack.c.h.b16 %v6413
  %v6499 = vunpack.c.l.b16 %v6414
  %v6500 = vunpack.c.h.b16 %v6414
  %v6501 = vunpack.c.l.b16 %v6415
  %v6502 = vunpack.c.h.b16 %v6415
  %v6503 = vunpack.c.l.b16 %v6416
  %v6504 = vunpack.c.h.b16 %v6416
  %v6505 = vunpack.c.l.b16 %v6417
  %v6506 = vunpack.c.h.b16 %v6417
  %v6507 = vunpack.c.l.b16 %v6418
  %v6508 = vunpack.c.h.b16 %v6418
  %v6509 = vunpack.c.l.b16 %v6419
  %v6510 = vunpack.c.h.b16 %v6419
  %v6511 = vunpack.c.l.b16 %v6420
  %v6512 = vunpack.c.h.b16 %v6420
  %v6513 = vunpack.c.l.b16 %v6421
  %v6514 = vunpack.c.h.b16 %v6421
  %v6515 = vunpack.c.l.b16 %v6422
  %v6516 = vunpack.c.h.b16 %v6422
  %v6517 = vunpack.c.l.b16 %v6423
  %v6518 = vunpack.c.h.b16 %v6423
  %v6519 = vunpack.c.l.b16 %v6424
  %v6520 = vunpack.c.h.b16 %v6424
  %v6521 = vpack.c.b16 %v6457, %v6457
  %v6522 = vpack.c.b16 %v6458, %v6458
  %v6523 = vpack.c.b16 %v6459, %v6459
  %v6524 = vpack.c.b16 %v6460, %v6460
  %v6525 = vpack.c.b16 %v6461, %v6461
  %v6526 = vpack.c.b16 %v6462, %v6462
  %v6527 = vpack.c.b16 %v6463, %v6463
  %v6528 = vpack.c.b16 %v6464, %v6464
  %v6529 = vpack.c.b16 %v6465, %v6465
  %v6530 = vpack.c.b16 %v6466, %v6466
  %v6531 = vpack.c.b16 %v6467, %v6467
  %v6532 = vpack.c.b16 %v6468, %v6468
  %v6533 = vpack.c.b16 %v6469, %v6469
  %v6534 = vpack.c.b16 %v6470, %v6470
  %v6535 = vpack.c.b16 %v6471, %v6471
  %v6536 = vpack.c.b16 %v6472, %v6472
  %v6537 = vpack.c.b16 %v6473, %v6473
  %v6538 = vpack.c.b16 %v6474, %v6474
  %v6539 = vpack.c.b16 %v6475, %v6475
  %v6540 = vpack.c.b16 %v6476, %v6476
  %v6541 = vpack.c.b16 %v6477, %v6477
  %v6542 = vpack.c.b16 %v6478, %v6478
  %v6543 = vpack.c.b16 %v6479, %v6479
  %v6544 = vpack.c.b16 %v6480, %v6480
  %v6545 = vpack.c.b16 %v6481, %v6481
  %v6546 = vpack.c.b16 %v6482, %v6482
  %v6547 = vpack.c.b16 %v6483, %v6483
  %v6548 = vpack.c.b16 %v6484, %v6484
  %v6549 = vpack.c.b16 %v6485, %v6485
  %v6550 = vpack.c.b16 %v6486, %v6486
  %v6551 = vpack.c.b16 %v6487, %v6487
  %v6552 = vpack.c.b16 %v6488, %v6488
  %v6553 = vpack.c.b16 %v6489, %v6489
  %v6554 = vpack.c.b16 %v6490, %v6490
  %v6555 = vpack.c.b16 %v6491, %v6491
  %v6556 = vpack.c.b16 %v6492, %v6492
  %v6557 = vpack.c.b16 %v6493, %v6493
  %v6558 = vpack.c.b16 %v6494, %v6494
  %v6559 = vpack.c.b16 %v6495, %v6495
  %v6560 = vpack.c.b16 %v6496, %v6496
  %v6561 = vpack.c.b16 %v6497, %v6497
  %v6562 = vpack.c.b16 %v6498, %v6498
  %v6563 = vpack.c.b16 %v6499, %v6499
  %v6564 = vpack.c.b16 %v6500, %v6500
  %v6565 = vpack.c.b16 %v6501, %v6501
  %v6566 = vpack.c.b16 %v6502, %v6502
  %v6567 = vpack.c.b16 %v6503, %v6503
  %v6568 = vpack.c.b16 %v6504, %v6504
  %v6569 = vpack.c.b16 %v6505, %v6505
  %v6570 = vpack.c.b16 %v6506, %v6506
  %v6571 = vpack.c.b16 %v6507, %v6507
  %v6572 = vpack.c.b16 %v6508, %v6508
  %v6573 = vpack.c.b16 %v6509, %v6509
  %v6574 = vpack.c.b16 %v6510, %v6510
  %v6575 = vpack.c.b16 %v6511, %v6511
  %v6576 = vpack.c.b16 %v6512, %v6512
  %v6577 = vpack.c.b16 %v6513, %v6513
  %v6578 = vpack.c.b16 %v6514, %v6514
  %v6579 = vpack.c.b16 %v6515, %v6515
  %v6580 = vpack.c.b16 %v6516, %v6516
  %v6581 = vpack.c.b16 %v6517, %v6517
  %v6582 = vpack.c.b16 %v6518, %v6518
  %v6583 = vpack.c.b16 %v6519, %v6519
  %v6584 = vpack.c.b16 %v6520, %v6520
  %vm6649 = vcmask 27648
  %6650 = vst.msk [vmem:[%s12] sm:$0xf] %vm6649, %v6521
  %6651 = vst.msk [vmem:[%s12 + $0x4] sm:$0xf] %vm6649, %v6522
  %6652 = vst.msk [vmem:[%s12 + $0x8] sm:$0xf] %vm6649, %v6523
  %6653 = vst.msk [vmem:[%s12 + $0xc] sm:$0xf] %vm6649, %v6524
  %6654 = vst.msk [vmem:[%s12 + $0x10] sm:$0xf] %vm6649, %v6525
  %6655 = vst.msk [vmem:[%s12 + $0x14] sm:$0xf] %vm6649, %v6526
  %6656 = vst.msk [vmem:[%s12 + $0x18] sm:$0xf] %vm6649, %v6527
  %6657 = vst.msk [vmem:[%s12 + $0x1c] sm:$0xf] %vm6649, %v6528
  %6658 = vst.msk [vmem:[%s12 + $0x20] sm:$0xf] %vm6649, %v6529
  %6659 = vst.msk [vmem:[%s12 + $0x24] sm:$0xf] %vm6649, %v6530
  %6660 = vst.msk [vmem:[%s12 + $0x28] sm:$0xf] %vm6649, %v6531
  %6661 = vst.msk [vmem:[%s12 + $0x2c] sm:$0xf] %vm6649, %v6532
  %6662 = vst.msk [vmem:[%s12 + $0x30] sm:$0xf] %vm6649, %v6533
  %6663 = vst.msk [vmem:[%s12 + $0x34] sm:$0xf] %vm6649, %v6534
  %6664 = vst.msk [vmem:[%s12 + $0x38] sm:$0xf] %vm6649, %v6535
  %6665 = vst.msk [vmem:[%s12 + $0x3c] sm:$0xf] %vm6649, %v6536
  %6666 = vst.msk [vmem:[%s12 + $0x40] sm:$0xf] %vm6649, %v6537
  %6667 = vst.msk [vmem:[%s12 + $0x44] sm:$0xf] %vm6649, %v6538
  %6668 = vst.msk [vmem:[%s12 + $0x48] sm:$0xf] %vm6649, %v6539
  %6669 = vst.msk [vmem:[%s12 + $0x4c] sm:$0xf] %vm6649, %v6540
  %6670 = vst.msk [vmem:[%s12 + $0x50] sm:$0xf] %vm6649, %v6541
  %6671 = vst.msk [vmem:[%s12 + $0x54] sm:$0xf] %vm6649, %v6542
  %6672 = vst.msk [vmem:[%s12 + $0x58] sm:$0xf] %vm6649, %v6543
  %6673 = vst.msk [vmem:[%s12 + $0x5c] sm:$0xf] %vm6649, %v6544
  %6674 = vst.msk [vmem:[%s12 + $0x60] sm:$0xf] %vm6649, %v6545
  %6675 = vst.msk [vmem:[%s12 + $0x64] sm:$0xf] %vm6649, %v6546
  %6676 = vst.msk [vmem:[%s12 + $0x68] sm:$0xf] %vm6649, %v6547
  %6677 = vst.msk [vmem:[%s12 + $0x6c] sm:$0xf] %vm6649, %v6548
  %6678 = vst.msk [vmem:[%s12 + $0x70] sm:$0xf] %vm6649, %v6549
  %6679 = vst.msk [vmem:[%s12 + $0x74] sm:$0xf] %vm6649, %v6550
  %6680 = vst.msk [vmem:[%s12 + $0x78] sm:$0xf] %vm6649, %v6551
  %6681 = vst.msk [vmem:[%s12 + $0x7c] sm:$0xf] %vm6649, %v6552
  %6682 = vst.msk [vmem:[%s12 + $0x80] sm:$0xf] %vm6649, %v6553
  %6683 = vst.msk [vmem:[%s12 + $0x84] sm:$0xf] %vm6649, %v6554
  %6684 = vst.msk [vmem:[%s12 + $0x88] sm:$0xf] %vm6649, %v6555
  %6685 = vst.msk [vmem:[%s12 + $0x8c] sm:$0xf] %vm6649, %v6556
  %6686 = vst.msk [vmem:[%s12 + $0x90] sm:$0xf] %vm6649, %v6557
  %6687 = vst.msk [vmem:[%s12 + $0x94] sm:$0xf] %vm6649, %v6558
  %6688 = vst.msk [vmem:[%s12 + $0x98] sm:$0xf] %vm6649, %v6559
  %6689 = vst.msk [vmem:[%s12 + $0x9c] sm:$0xf] %vm6649, %v6560
  %6690 = vst.msk [vmem:[%s12 + $0xa0] sm:$0xf] %vm6649, %v6561
  %6691 = vst.msk [vmem:[%s12 + $0xa4] sm:$0xf] %vm6649, %v6562
  %6692 = vst.msk [vmem:[%s12 + $0xa8] sm:$0xf] %vm6649, %v6563
  %6693 = vst.msk [vmem:[%s12 + $0xac] sm:$0xf] %vm6649, %v6564
  %6694 = vst.msk [vmem:[%s12 + $0xb0] sm:$0xf] %vm6649, %v6565
  %6695 = vst.msk [vmem:[%s12 + $0xb4] sm:$0xf] %vm6649, %v6566
  %6696 = vst.msk [vmem:[%s12 + $0xb8] sm:$0xf] %vm6649, %v6567
  %6697 = vst.msk [vmem:[%s12 + $0xbc] sm:$0xf] %vm6649, %v6568
  %6698 = vst.msk [vmem:[%s12 + $0xc0] sm:$0xf] %vm6649, %v6569
  %6699 = vst.msk [vmem:[%s12 + $0xc4] sm:$0xf] %vm6649, %v6570
  %6700 = vst.msk [vmem:[%s12 + $0xc8] sm:$0xf] %vm6649, %v6571
  %6701 = vst.msk [vmem:[%s12 + $0xcc] sm:$0xf] %vm6649, %v6572
  %6702 = vst.msk [vmem:[%s12 + $0xd0] sm:$0xf] %vm6649, %v6573
  %6703 = vst.msk [vmem:[%s12 + $0xd4] sm:$0xf] %vm6649, %v6574
  %6704 = vst.msk [vmem:[%s12 + $0xd8] sm:$0xf] %vm6649, %v6575
  %6705 = vst.msk [vmem:[%s12 + $0xdc] sm:$0xf] %vm6649, %v6576
  %6706 = vst.msk [vmem:[%s12 + $0xe0] sm:$0xf] %vm6649, %v6577
  %6707 = vst.msk [vmem:[%s12 + $0xe4] sm:$0xf] %vm6649, %v6578
  %6708 = vst.msk [vmem:[%s12 + $0xe8] sm:$0xf] %vm6649, %v6579
  %6709 = vst.msk [vmem:[%s12 + $0xec] sm:$0xf] %vm6649, %v6580
  %6710 = vst.msk [vmem:[%s12 + $0xf0] sm:$0xf] %vm6649, %v6581
  %6711 = vst.msk [vmem:[%s12 + $0xf4] sm:$0xf] %vm6649, %v6582
  %6712 = vst.msk [vmem:[%s12 + $0xf8] sm:$0xf] %vm6649, %v6583
  %6713 = vst.msk [vmem:[%s12 + $0xfc] sm:$0xf] %vm6649, %v6584
  // Predicated region
  $region50: #{tpu_custom_call.1} parent=0 // pred_check
    _
  $region51: #{tpu_custom_call.1} parent=0 // pred_check_branch
    %6715 = sbr.rel (0) target = $region53
  $region52: #{tpu_custom_call.1} parent=0 // pred_region
    _
  $region53: #{tpu_custom_call.1} parent=0 // pred_fallthru
    _
  // Predicated region
  $region54: #{tpu_custom_call.1} parent=0 // pred_check
    _
  $region55: #{tpu_custom_call.1} parent=0 // pred_check_branch
    %6717 = sbr.rel (0) target = $region57
  $region56: #{tpu_custom_call.1} parent=0 // pred_region
    _
  $region57: #{tpu_custom_call.1} parent=0 // pred_fallthru
    _

</llo_original>
